<compile_context>
chip_gen: v5e
topology: v5e:2x2
jax: 0.10.0
libtpu: 0.0.40
codegen_flags: <defaults>
</compile_context>

<pallas_src>
import functools

import jax
import jax.numpy as jnp
from jax import lax
from jax.experimental import pallas as pl
from jax.experimental.pallas import tpu as pltpu

# ---------------------------------------------------------------------------
# Problem sizes (small, synthetic, consistent with the module's structure)
# ---------------------------------------------------------------------------
N_USERS = 384       # module uses 27094
M_SPOTS = 512       # module uses 42852
HIDDEN = 64         # config['model']['hidden_channels'] (64 -> 2H=128 lane-dense)
NUM_LAYERS = 2      # config['model']['num_layers']
N_US_EDGES = 2048   # user<->spot interaction edges
N_SPOT_EDGES = 1536 # spot<->spot category edges (per graph)

TM = 128            # A row tile
TK = 128            # A contraction tile
TN = 128            # B row-panel (user) tile


# ---------------------------------------------------------------------------
# Kernel 1: cat1/cat2 fused -- stream A1 and A10 tiles against one resident RHS
#   out[:, :H]  = A1  @ emb_s
#   out[:, H:]  = A10 @ emb_s
# ---------------------------------------------------------------------------
def cat_pair_kernel(a1_ref, a10_ref, x_ref, out_ref, acc_ref):
    k = pl.program_id(1)
    h = x_ref.shape[1]

    @pl.when(k == 0)
    def _init():
        acc_ref[...] = jnp.zeros_like(acc_ref)

    x_bf = x_ref[...].astype(jnp.bfloat16)                     # shared MXU RHS (tk, H)
    acc_ref[:, 0:h] += jnp.dot(a1_ref[...], x_bf,
                               preferred_element_type=jnp.float32)
    acc_ref[:, h:2 * h] += jnp.dot(a10_ref[...], x_bf,
                                   preferred_element_type=jnp.float32)

    @pl.when(k == pl.num_programs(1) - 1)
    def _store():
        out_ref[...] = acc_ref[...]                            # (tm, 2H) lane-dense


# ---------------------------------------------------------------------------
# Kernel 2: the bipartite layer loop for the two distinct trajectories
# (view 1 and the shared view-2/3 trajectory), batched along hidden (2H).
# Grid = (num_layers, n // tn); B is streamed in (tn, m) row panels and each
# panel is used for BOTH products, so B is read exactly once per layer.
# Spot state kept TRANSPOSED (2H, m) so B is never transposed:
#   user update:  U_new[panel] = B_panel @ S      (B = MXU LHS, trans_b on state)
#   spot update:  S_new^T     += U_panel^T @ B    (B = MXU RHS)
# ---------------------------------------------------------------------------
def bipartite_loop_kernel(b_ref, semb_t_ref, cat1_t_ref, uemb_ref,
                          sacc_t_ref, uacc_ref, sfin_t_ref,
                          st_bf, stn, u_st, acc_st, acc_u):
    l = pl.program_id(0)
    i = pl.program_id(1)
    nl = pl.num_programs(0)
    nt = pl.num_programs(1)
    h = semb_t_ref.shape[0]
    tn = b_ref.shape[0]

    # one-time init (first layer, first panel)
    @pl.when((l == 0) & (i == 0))
    def _init():
        s0 = semb_t_ref[...]                       # (H, m) f32
        s1 = s0 + cat1_t_ref[...]                  # view-1 init: emb_s + cat1
        st_bf[0:h, :] = s1.astype(jnp.bfloat16)    # resident bf16 state (MXU operand)
        st_bf[h:2 * h, :] = s0.astype(jnp.bfloat16)
        acc_st[0:h, :] = s1                        # f32 accumulators
        acc_st[h:2 * h, :] = s0
        ue = uemb_ref[...]                         # (n, H) f32
        u_st[:, 0:h] = ue
        u_st[:, h:2 * h] = ue
        acc_u[:, 0:h] = ue
        acc_u[:, h:2 * h] = ue

    # start of every layer: reset the next-spot-state accumulator
    @pl.when(i == 0)
    def _layer_start():
        stn[...] = jnp.zeros_like(stn)

    # ---- per (layer, B row panel) step -------------------------------------
    b_t = b_ref[...]                                             # (tn, m) bf16
    row0 = pl.multiple_of(i * tn, tn)
    u_cur = u_st[pl.ds(row0, tn), :]                             # (tn, 2H) f32, prev layer
    # user update: rows of U_new = B_panel @ S (state held transposed -> trans_b,
    # the flash-attention q@k^T pattern; no B transpose).
    u_new = lax.dot_general(b_t, st_bf[...], (((1,), (1,)), ((), ())),
                            preferred_element_type=jnp.float32)  # (tn, 2H)
    # spot update: Stn (2H, m) += U_panel^T @ B_panel.  Only the small (tn, 2H)
    # f32 user tile is transposed; B is the MXU RHS, untouched.
    u_t_bf = u_cur.T.astype(jnp.bfloat16)                        # (2H, tn)
    stn[...] += lax.dot_general(u_t_bf, b_t, (((1,), (0,)), ((), ())),
                                preferred_element_type=jnp.float32)
    # in-place user-state update is safe: each row block is read exactly once
    # per layer (above) before being overwritten here.
    u_st[pl.ds(row0, tn), :] = u_new

    # end of layer: accumulate trajectories and advance the state
    @pl.when(i == nt - 1)
    def _layer_end():
        acc_u[...] += u_st[...]
        acc_st[...] += stn[...]
        st_bf[...] = stn[...].astype(jnp.bfloat16)   # next layer's MXU operand

    # final epilogue: write resident output blocks once
    @pl.when((i == nt - 1) & (l == nl - 1))
    def _finalize():
        inv = 1.0 / (nl + 1.0)
        uacc_ref[...] = acc_u[...] * inv             # (n, 2H) lane-dense, scaled
        sacc_t_ref[...] = acc_st[...]                # (2H, m) unscaled; scaled in kernel 3
        # final shared-trajectory spot state (view-2/3), kept transposed + bf16:
        # it is only consumed as the MXU RHS of the cat3 matmul.
        sfin_t_ref[...] = stn[h:2 * h, :].astype(jnp.bfloat16)


# ---------------------------------------------------------------------------
# Kernel 3: cat3 = A20 @ (final shared spot state), fused with the spot-output
# epilogue (adds cat2/cat3 to the shared accumulator, scales all three views).
# ---------------------------------------------------------------------------
def spot_out_kernel(a20_ref, sfin_t_ref, sacc_t_ref, cat12_ref, out_ref,
                    acc3_ref, *, num_layers):
    k = pl.program_id(1)
    h = sfin_t_ref.shape[0]

    @pl.when(k == 0)
    def _init():
        acc3_ref[...] = jnp.zeros_like(acc3_ref)

    # cat3 partial: A20 row tile @ k-slice of the final shared spot state
    # (state arrives transposed & bf16 -> trans_b contraction).
    acc3_ref[...] += lax.dot_general(a20_ref[...], sfin_t_ref[...],
                                     (((1,), (1,)), ((), ())),
                                     preferred_element_type=jnp.float32)  # (tm, H)

    @pl.when(k == pl.num_programs(1) - 1)
    def _finalize():
        inv = 1.0 / (num_layers + 1.0)
        sacc = sacc_t_ref[...].T                 # one small (2H, tm) transpose per row tile
        cat12 = cat12_ref[...]
        shared = sacc[:, h:]                     # shared view-2/3 accumulator
        out_ref[:, 0:h] = sacc[:, 0:h] * inv                       # view 1
        out_ref[:, h:2 * h] = (shared + cat12[:, h:]) * inv        # view 2 (+cat2)
        out_ref[:, 2 * h:3 * h] = (shared + acc3_ref[...]) * inv   # view 3 (+cat3)
        out_ref[:, 3 * h:4 * h] = jnp.zeros_like(shared)           # lane padding -> 256-wide writeback


def _vmem_limit_bytes():
    # Derive from the chip instead of hardcoding (v7x has 64 MiB/TC vs 128 MiB
    # on v5e/v6e); leave headroom for double-buffered streamed tiles.
    try:
        cap = int(pltpu.get_tpu_info().vmem_capacity_bytes)
    except Exception:
        cap = 128 << 20
    return max(32 << 20, min(cap * 3 // 4, 96 << 20))


# ---------------------------------------------------------------------------
# Wrapper: three tiled pallas_calls
# ---------------------------------------------------------------------------
def sslgcn_forward(a1, a10, a20, b, spot_emb, user_emb,
                   num_layers=NUM_LAYERS, tm=TM, tk=TK, tn=TN):
    m, h = spot_emb.shape
    n = user_emb.shape[0]
    assert m % tm == 0 and m % tk == 0 and n % tn == 0

    # bf16 for the big streamed operands (halves HBM bytes, MXU-native);
    # embeddings / accumulators stay f32 (f32 accumulation via
    # preferred_element_type; on v5e all elementwise math is f32 anyway).
    a1 = a1.astype(jnp.bfloat16)
    a10 = a10.astype(jnp.bfloat16)
    a20 = a20.astype(jnp.bfloat16)
    b = b.astype(jnp.bfloat16)

    vmem_limit = _vmem_limit_bytes()

    # ---- call 1: cat1/cat2 fused (A1, A10 streamed against one resident RHS)
    cat12 = pl.pallas_call(
        cat_pair_kernel,
        out_shape=jax.ShapeDtypeStruct((m, 2 * h), jnp.float32),
        grid_spec=pltpu.PrefetchScalarGridSpec(
            num_scalar_prefetch=0,
            grid=(m // tm, m // tk),
            in_specs=[pl.BlockSpec((tm, tk), lambda i, k: (i, k)),
                      pl.BlockSpec((tm, tk), lambda i, k: (i, k)),
                      pl.BlockSpec((tk, h), lambda i, k: (k, 0))],
            out_specs=pl.BlockSpec((tm, 2 * h), lambda i, k: (i, 0)),
            scratch_shapes=[pltpu.VMEM((tm, 2 * h), jnp.float32)]),
        compiler_params=pltpu.CompilerParams(
            dimension_semantics=("parallel", "arbitrary"),   # v7x: 2 TCs split rows
            vmem_limit_bytes=vmem_limit),
        cost_estimate=pl.CostEstimate(
            flops=int(4 * m * m * h), transcendentals=0,
            bytes_accessed=int(2 * m * m * 2 + m * h * 4 + m * 2 * h * 4)),
    )(a1, a10, spot_emb)

    # Wrapper-side layout plumbing only (cheap XLA transposes of small arrays).
    spot_emb_t = spot_emb.T          # (H, m)
    cat1_t = cat12[:, :h].T          # (H, m)

    # ---- call 2: bipartite layer loop (view 1 + shared view 2/3 trajectory)
    # Grid axes are sequential: the layer axis carries state and the B-panel
    # axis is a reduction for the spot update.
    # TODO(synk): at real sizes, row-tile the resident (m,2H)/(n,2H) states
    #             (v7x 64 MiB budget) and split the user-panel axis across
    #             TensorCores with per-core spot partials.
    sacc_t, uacc, sfin_t = pl.pallas_call(
        bipartite_loop_kernel,
        out_shape=(jax.ShapeDtypeStruct((2 * h, m), jnp.float32),   # spot accs (transposed)
                   jax.ShapeDtypeStruct((n, 2 * h), jnp.float32),   # user outputs (scaled)
                   jax.ShapeDtypeStruct((h, m), jnp.bfloat16)),     # final shared spot state^T
        grid_spec=pltpu.PrefetchScalarGridSpec(
            num_scalar_prefetch=0,
            grid=(num_layers, n // tn),
            in_specs=[pl.BlockSpec((tn, m), lambda l, i: (i, 0)),   # B row panels, streamed
                      pl.BlockSpec((h, m), lambda l, i: (0, 0)),    # emb_s^T, resident
                      pl.BlockSpec((h, m), lambda l, i: (0, 0)),    # cat1^T, resident
                      pl.BlockSpec((n, h), lambda l, i: (0, 0))],   # user_emb, resident
            out_specs=(pl.BlockSpec((2 * h, m), lambda l, i: (0, 0)),
                       pl.BlockSpec((n, 2 * h), lambda l, i: (0, 0)),
                       pl.BlockSpec((h, m), lambda l, i: (0, 0))),
            scratch_shapes=[pltpu.VMEM((2 * h, m), jnp.bfloat16),   # st_bf  (state, MXU operand)
                            pltpu.VMEM((2 * h, m), jnp.float32),    # stn    (next spot state)
                            pltpu.VMEM((n, 2 * h), jnp.float32),    # u_st   (user state)
                            pltpu.VMEM((2 * h, m), jnp.float32),    # acc_st
                            pltpu.VMEM((n, 2 * h), jnp.float32)]),  # acc_u
        compiler_params=pltpu.CompilerParams(
            dimension_semantics=("arbitrary", "arbitrary"),
            vmem_limit_bytes=vmem_limit),
        cost_estimate=pl.CostEstimate(
            flops=int(8 * num_layers * n * m * h), transcendentals=0,
            bytes_accessed=int(num_layers * n * m * 2
                               + (m + n) * 2 * h * 4 * 2 + m * h * 2)),
    )(b, spot_emb_t, cat1_t, user_emb)

    # ---- call 3: cat3 + spot-output epilogue (all three views, scaled)
    s_out = pl.pallas_call(
        functools.partial(spot_out_kernel, num_layers=num_layers),
        out_shape=jax.ShapeDtypeStruct((m, 4 * h), jnp.float32),
        grid_spec=pltpu.PrefetchScalarGridSpec(
            num_scalar_prefetch=0,
            grid=(m // tm, m // tk),
            in_specs=[pl.BlockSpec((tm, tk), lambda i, k: (i, k)),      # A20 streamed
                      pl.BlockSpec((h, tk), lambda i, k: (0, k)),       # S_final^T (bf16)
                      pl.BlockSpec((2 * h, tm), lambda i, k: (0, i)),   # unscaled spot accs^T
                      pl.BlockSpec((tm, 2 * h), lambda i, k: (i, 0))],  # [cat1 | cat2]
            out_specs=pl.BlockSpec((tm, 4 * h), lambda i, k: (i, 0)),
            scratch_shapes=[pltpu.VMEM((tm, h), jnp.float32)]),
        compiler_params=pltpu.CompilerParams(
            dimension_semantics=("parallel", "arbitrary"),
            vmem_limit_bytes=vmem_limit),
        cost_estimate=pl.CostEstimate(
            flops=int(2 * m * m * h), transcendentals=0,
            bytes_accessed=int(m * m * 2 + m * h * 2 + 4 * m * h * 4
                               + m * 2 * h * 4 + m * 4 * h * 4)),
    )(a20, sfin_t, sacc_t, cat12)

    spot1 = s_out[:, :h]
    spot2 = s_out[:, h:2 * h]
    spot3 = s_out[:, 2 * h:3 * h]
    user1 = uacc[:, :h]
    user23 = uacc[:, h:]        # user_out2 == user_out3 exactly (shared trajectory)
    return spot1, user1, spot2, user23, spot3, user23


# ---------------------------------------------------------------------------
# Glue: build dense normalized adjacency matrices from synthetic edge lists
# ---------------------------------------------------------------------------
def build_user_spot_matrix(user_idx, spot_idx, n_user, m_spot):
    """UserSpotConv normalization: div_e = sqrt(count(u_e) * count(s_e))."""
    user_div = jnp.zeros((n_user,), jnp.float32).at[user_idx].add(1.0)
    spot_div = jnp.zeros((m_spot,), jnp.float32).at[spot_idx].add(1.0)
    vals = 1.0 / jnp.sqrt(user_div[user_idx] * spot_div[spot_idx])
    return jnp.zeros((n_user, m_spot), jnp.float32).at[user_idx, spot_idx].add(vals)


def build_spot_graph_matrix(row, col, weight, m_spot):
    """GCNLightConv (no self loops, no bias): out[row] += w/sqrt(d_row*d_col) x[col]."""
    # TODO(synk): GCNLightConv source not provided; standard GCN symmetric
    #             normalization with weighted degrees assumed.
    deg = jnp.zeros((m_spot,), jnp.float32).at[col].add(weight)
    dinv = jnp.where(deg > 0, 1.0 / jnp.sqrt(deg), 0.0)
    norm = dinv[row] * weight * dinv[col]
    return jnp.zeros((m_spot, m_spot), jnp.float32).at[row, col].add(norm)


def reference_forward(a1, a10, a20, b, spot_emb, user_emb, num_layers=NUM_LAYERS):
    """Pure-jnp f32 reference mirroring the PyTorch module exactly."""
    bt = b.T
    inv = 1.0 / (num_layers + 1)

    def bip(s, u):
        return bt @ u, b @ s

    # view 1
    s, u = spot_emb + a1 @ spot_emb, user_emb
    acc_s, acc_u = s, u
    for _ in range(num_layers):
        s, u = bip(s, u)
        acc_s, acc_u = acc_s + s, acc_u + u
    out1 = (acc_s * inv, acc_u * inv)
    # view 2
    s, u = spot_emb, user_emb
    acc_s, acc_u = spot_emb + a10 @ spot_emb, user_emb
    for _ in range(num_layers):
        s, u = bip(s, u)
        acc_s, acc_u = acc_s + s, acc_u + u
    out2 = (acc_s * inv, acc_u * inv)
    s2_final = s
    # view 3 (cat3 uses spot_x2 AFTER view-2's loop, as in the reference code)
    s, u = spot_emb, user_emb
    acc_s, acc_u = spot_emb + a20 @ s2_final, user_emb
    for _ in range(num_layers):
        s, u = bip(s, u)
        acc_s, acc_u = acc_s + s, acc_u + u
    out3 = (acc_s * inv, acc_u * inv)
    return out1 + out2 + out3


if __name__ == "__main__":
    key = jax.random.PRNGKey(0)
    k_ue, k_se, k_u, k_s, k_g1, k_g2, k_g3, k_w1, k_w2, k_w3 = jax.random.split(key, 10)

    # Deterministic "embedding" parameters (normal, std=0.1, as in __init__)
    user_emb = 0.1 * jax.random.normal(k_ue, (N_USERS, HIDDEN), jnp.float32)
    spot_emb = 0.1 * jax.random.normal(k_se, (M_SPOTS, HIDDEN), jnp.float32)

    # Synthetic user-spot interaction edges (replaces train_edge.npy)
    us_user = jax.random.randint(k_u, (N_US_EDGES,), 0, N_USERS)
    us_spot = jax.random.randint(k_s, (N_US_EDGES,), 0, M_SPOTS)
    b_mat = build_user_spot_matrix(us_user, us_spot, N_USERS, M_SPOTS)

    # Synthetic spot-spot category graphs (replace the three .pt edge files)
    def make_spot_graph(kg, kw):
        ei = jax.random.randint(kg, (2, N_SPOT_EDGES), 0, M_SPOTS)
        ew = jax.random.uniform(kw, (N_SPOT_EDGES,), jnp.float32, 0.1, 1.0)
        return build_spot_graph_matrix(ei[0], ei[1], ew, M_SPOTS)

    a1 = make_spot_graph(k_g1, k_w1)
    a10 = make_spot_graph(k_g2, k_w2)
    a20 = make_spot_graph(k_g3, k_w3)

    outs = jax.jit(sslgcn_forward)(a1, a10, a20, b_mat, spot_emb, user_emb)
    outs = jax.block_until_ready(outs)

    refs = reference_forward(a1, a10, a20, b_mat, spot_emb, user_emb)
    for o, r in zip(outs, refs):
        assert o.shape == r.shape and o.dtype == jnp.float32
        # bf16 MXU operands / bf16 resident state with f32 accumulation ->
        # looser tolerance vs the pure-f32 reference.
        assert jnp.allclose(o, r, atol=2e-2, rtol=2e-2), (
            "mismatch vs reference, max abs diff = %g"
            % float(jnp.max(jnp.abs(o - r))))

    print("KERNEL_OK")
</pallas_src>

<mosaic_0001>
module attributes {stable_mosaic.version = 11 : i64} {
  func.func @cat_pair_kernel(%arg0: i32, %arg1: i32, %arg2: memref<128x128xbf16, #tpu.memory_space<vmem>>, %arg3: memref<128x128xbf16, #tpu.memory_space<vmem>>, %arg4: memref<128x64xf32, #tpu.memory_space<vmem>>, %arg5: memref<128x128xf32, #tpu.memory_space<vmem>>, %arg6: memref<128x128xf32, #tpu.memory_space<vmem>>) attributes {dimension_semantics = [#tpu.dimension_semantics<parallel>, #tpu.dimension_semantics<arbitrary>], iteration_bounds = array<i64: 4, 4>, scalar_prefetch = 0 : i64, scratch_operands = 1 : i64, tpu.core_type = #tpu.core_type<tc>, window_params = [{transform_indices = @transform_0, window_bounds = array<i64: 128, 128>}, {transform_indices = @transform_1, window_bounds = array<i64: 128, 128>}, {transform_indices = @transform_2, window_bounds = array<i64: 128, 64>}, {transform_indices = @transform_3, window_bounds = array<i64: 128, 128>}]} {
    %c0_i32 = arith.constant 0 : i32
    %0 = arith.cmpi eq, %arg1, %c0_i32 : i32
    %1 = arith.extui %0 : i1 to i32
    %c0_i32_0 = arith.constant 0 : i32
    %2 = arith.cmpi ne, %1, %c0_i32_0 : i32
    scf.if %2 {
      %cst_15 = arith.constant 0.000000e+00 : f32
      %18 = vector.broadcast %cst_15 : f32 to vector<128x128xf32>
      %c0_16 = arith.constant 0 : index
      %c0_17 = arith.constant 0 : index
      %19 = vector.load %arg6[%c0_16, %c0_17] : memref<128x128xf32, #tpu.memory_space<vmem>>, vector<128x128xf32>
      tpu.vector_store %arg6[%c0_16, %c0_17], %18 {strides = array<i32>} : memref<128x128xf32, #tpu.memory_space<vmem>>, vector<128x128xf32>,
    } else {
    }
    %c0 = arith.constant 0 : index
    %c0_1 = arith.constant 0 : index
    %3 = vector.load %arg4[%c0, %c0_1] : memref<128x64xf32, #tpu.memory_space<vmem>>, vector<128x64xf32>
    %4 = arith.truncf %3 : vector<128x64xf32> to vector<128x64xbf16>
    %c0_2 = arith.constant 0 : index
    %c0_3 = arith.constant 0 : index
    %5 = vector.load %arg6[%c0_2, %c0_3] : memref<128x128xf32, #tpu.memory_space<vmem>>, vector<128x64xf32>
    %c0_4 = arith.constant 0 : index
    %c0_5 = arith.constant 0 : index
    %6 = vector.load %arg2[%c0_4, %c0_5] : memref<128x128xbf16, #tpu.memory_space<vmem>>, vector<128x128xbf16>
    %cst = arith.constant dense<0.000000e+00> : vector<128x64xf32>
    %7 = tpu.matmul %6, %4, %cst {dimension_numbers = #tpu.dot_dimension_numbers<[1], [0], [0], [1], [0, 0, 1, 1], [], []>} : vector<128x128xbf16>, vector<128x64xbf16>, vector<128x64xf32> -> vector<128x64xf32>
    %8 = arith.addf %5, %7 : vector<128x64xf32>
    %c0_6 = arith.constant 0 : index
    %c0_7 = arith.constant 0 : index
    %9 = vector.load %arg6[%c0_6, %c0_7] : memref<128x128xf32, #tpu.memory_space<vmem>>, vector<128x64xf32>
    tpu.vector_store %arg6[%c0_6, %c0_7], %8 {strides = array<i32>} : memref<128x128xf32, #tpu.memory_space<vmem>>, vector<128x64xf32>,
    %c0_8 = arith.constant 0 : index
    %c64 = arith.constant 64 : index
    %10 = vector.load %arg6[%c0_8, %c64] : memref<128x128xf32, #tpu.memory_space<vmem>>, vector<128x64xf32>
    %c0_9 = arith.constant 0 : index
    %c0_10 = arith.constant 0 : index
    %11 = vector.load %arg3[%c0_9, %c0_10] : memref<128x128xbf16, #tpu.memory_space<vmem>>, vector<128x128xbf16>
    %cst_11 = arith.constant dense<0.000000e+00> : vector<128x64xf32>
    %12 = tpu.matmul %11, %4, %cst_11 {dimension_numbers = #tpu.dot_dimension_numbers<[1], [0], [0], [1], [0, 0, 1, 1], [], []>} : vector<128x128xbf16>, vector<128x64xbf16>, vector<128x64xf32> -> vector<128x64xf32>
    %13 = arith.addf %10, %12 : vector<128x64xf32>
    %c0_12 = arith.constant 0 : index
    %c64_13 = arith.constant 64 : index
    %14 = vector.load %arg6[%c0_12, %c64_13] : memref<128x128xf32, #tpu.memory_space<vmem>>, vector<128x64xf32>
    tpu.vector_store %arg6[%c0_12, %c64_13], %13 {strides = array<i32>} : memref<128x128xf32, #tpu.memory_space<vmem>>, vector<128x64xf32>,
    %c3_i32 = arith.constant 3 : i32
    %15 = arith.cmpi eq, %arg1, %c3_i32 : i32
    %16 = arith.extui %15 : i1 to i32
    %c0_i32_14 = arith.constant 0 : i32
    %17 = arith.cmpi ne, %16, %c0_i32_14 : i32
    scf.if %17 {
      %c0_15 = arith.constant 0 : index
      %c0_16 = arith.constant 0 : index
      %18 = vector.load %arg6[%c0_15, %c0_16] : memref<128x128xf32, #tpu.memory_space<vmem>>, vector<128x128xf32>
      %c0_17 = arith.constant 0 : index
      %c0_18 = arith.constant 0 : index
      %19 = vector.load %arg5[%c0_17, %c0_18] : memref<128x128xf32, #tpu.memory_space<vmem>>, vector<128x128xf32>
      tpu.vector_store %arg5[%c0_17, %c0_18], %18 {strides = array<i32>} : memref<128x128xf32, #tpu.memory_space<vmem>>, vector<128x128xf32>,
    } else {
    }
    return
  }
  func.func @transform_0(%arg0: i32, %arg1: i32) -> (i32, i32) {
    %c0_i32 = arith.constant 0 : i32
    return %arg0, %arg1 : i32, i32
  }
  func.func @transform_1(%arg0: i32, %arg1: i32) -> (i32, i32) {
    %c0_i32 = arith.constant 0 : i32
    return %arg0, %arg1 : i32, i32
  }
  func.func @transform_2(%arg0: i32, %arg1: i32) -> (i32, i32) {
    %c0_i32 = arith.constant 0 : i32
    %c0_i32_0 = arith.constant 0 : i32
    return %arg1, %c0_i32 : i32, i32
  }
  func.func @transform_3(%arg0: i32, %arg1: i32) -> (i32, i32) {
    %c0_i32 = arith.constant 0 : i32
    %c0_i32_0 = arith.constant 0 : i32
    return %arg0, %c0_i32 : i32, i32
  }
}

module attributes {stable_mosaic.version = 11 : i64} {
  func.func @bipartite_loop_kernel(%arg0: i32, %arg1: i32, %arg2: memref<128x512xbf16, #tpu.memory_space<vmem>>, %arg3: memref<64x512xf32, #tpu.memory_space<vmem>>, %arg4: memref<64x512xf32, #tpu.memory_space<vmem>>, %arg5: memref<384x64xf32, #tpu.memory_space<vmem>>, %arg6: memref<128x512xf32, #tpu.memory_space<vmem>>, %arg7: memref<384x128xf32, #tpu.memory_space<vmem>>, %arg8: memref<64x512xbf16, #tpu.memory_space<vmem>>, %arg9: memref<128x512xbf16, #tpu.memory_space<vmem>>, %arg10: memref<128x512xf32, #tpu.memory_space<vmem>>, %arg11: memref<384x128xf32, #tpu.memory_space<vmem>>, %arg12: memref<128x512xf32, #tpu.memory_space<vmem>>, %arg13: memref<384x128xf32, #tpu.memory_space<vmem>>) attributes {dimension_semantics = [#tpu.dimension_semantics<arbitrary>, #tpu.dimension_semantics<arbitrary>], iteration_bounds = array<i64: 2, 3>, scalar_prefetch = 0 : i64, scratch_operands = 5 : i64, tpu.core_type = #tpu.core_type<tc>, window_params = [{transform_indices = @transform_0, window_bounds = array<i64: 128, 512>}, {pipeline_mode = #tpu.pipeline_mode<synchronous>, transform_indices = @transform_1, window_bounds = array<i64: 64, 512>}, {pipeline_mode = #tpu.pipeline_mode<synchronous>, transform_indices = @transform_2, window_bounds = array<i64: 64, 512>}, {pipeline_mode = #tpu.pipeline_mode<synchronous>, transform_indices = @transform_3, window_bounds = array<i64: 384, 64>}, {pipeline_mode = #tpu.pipeline_mode<synchronous>, transform_indices = @transform_4, window_bounds = array<i64: 128, 512>}, {pipeline_mode = #tpu.pipeline_mode<synchronous>, transform_indices = @transform_5, window_bounds = array<i64: 384, 128>}, {pipeline_mode = #tpu.pipeline_mode<synchronous>, transform_indices = @transform_6, window_bounds = array<i64: 64, 512>}]} {
    %c0_i32 = arith.constant 0 : i32
    %0 = arith.cmpi eq, %arg0, %c0_i32 : i32
    %c0_i32_0 = arith.constant 0 : i32
    %1 = arith.cmpi eq, %arg1, %c0_i32_0 : i32
    %2 = arith.andi %0, %1 : i1
    %3 = arith.extui %2 : i1 to i32
    %c0_i32_1 = arith.constant 0 : i32
    %4 = arith.cmpi ne, %3, %c0_i32_1 : i32
    scf.if %4 {
      %c0_17 = arith.constant 0 : index
      %c0_18 = arith.constant 0 : index
      %31 = vector.load %arg3[%c0_17, %c0_18] : memref<64x512xf32, #tpu.memory_space<vmem>>, vector<64x512xf32>
      %c0_19 = arith.constant 0 : index
      %c0_20 = arith.constant 0 : index
      %32 = vector.load %arg4[%c0_19, %c0_20] : memref<64x512xf32, #tpu.memory_space<vmem>>, vector<64x512xf32>
      %33 = arith.addf %31, %32 : vector<64x512xf32>
      %34 = arith.truncf %33 : vector<64x512xf32> to vector<64x512xbf16>
      %c0_21 = arith.constant 0 : index
      %c0_22 = arith.constant 0 : index
      %35 = vector.load %arg9[%c0_21, %c0_22] : memref<128x512xbf16, #tpu.memory_space<vmem>>, vector<64x512xbf16>
      tpu.vector_store %arg9[%c0_21, %c0_22], %34 {strides = array<i32>} : memref<128x512xbf16, #tpu.memory_space<vmem>>, vector<64x512xbf16>,
      %36 = arith.truncf %31 : vector<64x512xf32> to vector<64x512xbf16>
      %c64 = arith.constant 64 : index
      %c0_23 = arith.constant 0 : index
      %37 = vector.load %arg9[%c64, %c0_23] : memref<128x512xbf16, #tpu.memory_space<vmem>>, vector<64x512xbf16>
      tpu.vector_store %arg9[%c64, %c0_23], %36 {strides = array<i32>} : memref<128x512xbf16, #tpu.memory_space<vmem>>, vector<64x512xbf16>,
      %c0_24 = arith.constant 0 : index
      %c0_25 = arith.constant 0 : index
      %38 = vector.load %arg12[%c0_24, %c0_25] : memref<128x512xf32, #tpu.memory_space<vmem>>, vector<64x512xf32>
      tpu.vector_store %arg12[%c0_24, %c0_25], %33 {strides = array<i32>} : memref<128x512xf32, #tpu.memory_space<vmem>>, vector<64x512xf32>,
      %c64_26 = arith.constant 64 : index
      %c0_27 = arith.constant 0 : index
      %39 = vector.load %arg12[%c64_26, %c0_27] : memref<128x512xf32, #tpu.memory_space<vmem>>, vector<64x512xf32>
      tpu.vector_store %arg12[%c64_26, %c0_27], %31 {strides = array<i32>} : memref<128x512xf32, #tpu.memory_space<vmem>>, vector<64x512xf32>,
      %c0_28 = arith.constant 0 : index
      %c0_29 = arith.constant 0 : index
      %40 = vector.load %arg5[%c0_28, %c0_29] : memref<384x64xf32, #tpu.memory_space<vmem>>, vector<384x64xf32>
      %c0_30 = arith.constant 0 : index
      %c0_31 = arith.constant 0 : index
      %41 = vector.load %arg11[%c0_30, %c0_31] : memref<384x128xf32, #tpu.memory_space<vmem>>, vector<384x64xf32>
      tpu.vector_store %arg11[%c0_30, %c0_31], %40 {strides = array<i32>} : memref<384x128xf32, #tpu.memory_space<vmem>>, vector<384x64xf32>,
      %c0_32 = arith.constant 0 : index
      %c64_33 = arith.constant 64 : index
      %42 = vector.load %arg11[%c0_32, %c64_33] : memref<384x128xf32, #tpu.memory_space<vmem>>, vector<384x64xf32>
      tpu.vector_store %arg11[%c0_32, %c64_33], %40 {strides = array<i32>} : memref<384x128xf32, #tpu.memory_space<vmem>>, vector<384x64xf32>,
      %c0_34 = arith.constant 0 : index
      %c0_35 = arith.constant 0 : index
      %43 = vector.load %arg13[%c0_34, %c0_35] : memref<384x128xf32, #tpu.memory_space<vmem>>, vector<384x64xf32>
      tpu.vector_store %arg13[%c0_34, %c0_35], %40 {strides = array<i32>} : memref<384x128xf32, #tpu.memory_space<vmem>>, vector<384x64xf32>,
      %c0_36 = arith.constant 0 : index
      %c64_37 = arith.constant 64 : index
      %44 = vector.load %arg13[%c0_36, %c64_37] : memref<384x128xf32, #tpu.memory_space<vmem>>, vector<384x64xf32>
      tpu.vector_store %arg13[%c0_36, %c64_37], %40 {strides = array<i32>} : memref<384x128xf32, #tpu.memory_space<vmem>>, vector<384x64xf32>,
    } else {
    }
    %c0_i32_2 = arith.constant 0 : i32
    %5 = arith.cmpi eq, %arg1, %c0_i32_2 : i32
    %6 = arith.extui %5 : i1 to i32
    %c0_i32_3 = arith.constant 0 : i32
    %7 = arith.cmpi ne, %6, %c0_i32_3 : i32
    scf.if %7 {
      %cst_17 = arith.constant 0.000000e+00 : f32
      %31 = vector.broadcast %cst_17 : f32 to vector<128x512xf32>
      %c0_18 = arith.constant 0 : index
      %c0_19 = arith.constant 0 : index
      %32 = vector.load %arg10[%c0_18, %c0_19] : memref<128x512xf32, #tpu.memory_space<vmem>>, vector<128x512xf32>
      tpu.vector_store %arg10[%c0_18, %c0_19], %31 {strides = array<i32>} : memref<128x512xf32, #tpu.memory_space<vmem>>, vector<128x512xf32>,
    } else {
    }
    %c0 = arith.constant 0 : index
    %c0_4 = arith.constant 0 : index
    %8 = vector.load %arg2[%c0, %c0_4] : memref<128x512xbf16, #tpu.memory_space<vmem>>, vector<128x512xbf16>
    %c128_i32 = arith.constant 128 : i32
    %9 = arith.muli %arg1, %c128_i32 : i32
    %10 = tpu.assume_multiple %9, 128 : i32
    %11 = arith.index_cast %10 : i32 to index
    %c0_5 = arith.constant 0 : index
    %12 = vector.load %arg11[%11, %c0_5] : memref<384x128xf32, #tpu.memory_space<vmem>>, vector<128x128xf32>
    %c0_6 = arith.constant 0 : index
    %c0_7 = arith.constant 0 : index
    %13 = vector.load %arg9[%c0_6, %c0_7] : memref<128x512xbf16, #tpu.memory_space<vmem>>, vector<128x512xbf16>
    %cst = arith.constant dense<0.000000e+00> : vector<128x128xf32>
    %14 = tpu.matmul %8, %13, %cst {dimension_numbers = #tpu.dot_dimension_numbers<[1], [1], [0], [0], [0, 0, 1, 0], [], []>} : vector<128x512xbf16>, vector<128x512xbf16>, vector<128x128xf32> -> vector<128x128xf32>
    %15 = tpu.transpose %12, [1, 0] : vector<128x128xf32> -> vector<128x128xf32>
    %16 = arith.truncf %15 : vector<128x128xf32> to vector<128x128xbf16>
    %c0_8 = arith.constant 0 : index
    %c0_9 = arith.constant 0 : index
    %17 = vector.load %arg10[%c0_8, %c0_9] : memref<128x512xf32, #tpu.memory_space<vmem>>, vector<128x512xf32>
    %cst_10 = arith.constant dense<0.000000e+00> : vector<128x512xf32>
    %18 = tpu.matmul %16, %8, %cst_10 {dimension_numbers = #tpu.dot_dimension_numbers<[1], [0], [0], [1], [0, 0, 1, 1], [], []>} : vector<128x128xbf16>, vector<128x512xbf16>, vector<128x512xf32> -> vector<128x512xf32>
    %19 = arith.addf %17, %18 : vector<128x512xf32>
    %c0_11 = arith.constant 0 : index
    %c0_12 = arith.constant 0 : index
    %20 = vector.load %arg10[%c0_11, %c0_12] : memref<128x512xf32, #tpu.memory_space<vmem>>, vector<128x512xf32>
    tpu.vector_store %arg10[%c0_11, %c0_12], %19 {strides = array<i32>} : memref<128x512xf32, #tpu.memory_space<vmem>>, vector<128x512xf32>,
    %21 = arith.index_cast %10 : i32 to index
    %c0_13 = arith.constant 0 : index
    %22 = vector.load %arg11[%21, %c0_13] : memref<384x128xf32, #tpu.memory_space<vmem>>, vector<128x128xf32>
    tpu.vector_store %arg11[%21, %c0_13], %14 {strides = array<i32>} : memref<384x128xf32, #tpu.memory_space<vmem>>, vector<128x128xf32>,
    %c2_i32 = arith.constant 2 : i32
    %23 = arith.cmpi eq, %arg1, %c2_i32 : i32
    %24 = arith.extui %23 : i1 to i32
    %c0_i32_14 = arith.constant 0 : i32
    %25 = arith.cmpi ne, %24, %c0_i32_14 : i32
    scf.if %25 {
      %c0_17 = arith.constant 0 : index
      %c0_18 = arith.constant 0 : index
      %31 = vector.load %arg13[%c0_17, %c0_18] : memref<384x128xf32, #tpu.memory_space<vmem>>, vector<384x128xf32>
      %c0_19 = arith.constant 0 : index
      %c0_20 = arith.constant 0 : index
      %32 = vector.load %arg11[%c0_19, %c0_20] : memref<384x128xf32, #tpu.memory_space<vmem>>, vector<384x128xf32>
      %33 = arith.addf %31, %32 : vector<384x128xf32>
      %c0_21 = arith.constant 0 : index
      %c0_22 = arith.constant 0 : index
      %34 = vector.load %arg13[%c0_21, %c0_22] : memref<384x128xf32, #tpu.memory_space<vmem>>, vector<384x128xf32>
      tpu.vector_store %arg13[%c0_21, %c0_22], %33 {strides = array<i32>} : memref<384x128xf32, #tpu.memory_space<vmem>>, vector<384x128xf32>,
      %c0_23 = arith.constant 0 : index
      %c0_24 = arith.constant 0 : index
      %35 = vector.load %arg12[%c0_23, %c0_24] : memref<128x512xf32, #tpu.memory_space<vmem>>, vector<128x512xf32>
      %c0_25 = arith.constant 0 : index
      %c0_26 = arith.constant 0 : index
      %36 = vector.load %arg10[%c0_25, %c0_26] : memref<128x512xf32, #tpu.memory_space<vmem>>, vector<128x512xf32>
      %37 = arith.addf %35, %36 : vector<128x512xf32>
      %c0_27 = arith.constant 0 : index
      %c0_28 = arith.constant 0 : index
      %38 = vector.load %arg12[%c0_27, %c0_28] : memref<128x512xf32, #tpu.memory_space<vmem>>, vector<128x512xf32>
      tpu.vector_store %arg12[%c0_27, %c0_28], %37 {strides = array<i32>} : memref<128x512xf32, #tpu.memory_space<vmem>>, vector<128x512xf32>,
      %c0_29 = arith.constant 0 : index
      %c0_30 = arith.constant 0 : index
      %39 = vector.load %arg10[%c0_29, %c0_30] : memref<128x512xf32, #tpu.memory_space<vmem>>, vector<128x512xf32>
      %40 = arith.truncf %39 : vector<128x512xf32> to vector<128x512xbf16>
      %c0_31 = arith.constant 0 : index
      %c0_32 = arith.constant 0 : index
      %41 = vector.load %arg9[%c0_31, %c0_32] : memref<128x512xbf16, #tpu.memory_space<vmem>>, vector<128x512xbf16>
      tpu.vector_store %arg9[%c0_31, %c0_32], %40 {strides = array<i32>} : memref<128x512xbf16, #tpu.memory_space<vmem>>, vector<128x512xbf16>,
    } else {
    }
    %c2_i32_15 = arith.constant 2 : i32
    %26 = arith.cmpi eq, %arg1, %c2_i32_15 : i32
    %c1_i32 = arith.constant 1 : i32
    %27 = arith.cmpi eq, %arg0, %c1_i32 : i32
    %28 = arith.andi %26, %27 : i1
    %29 = arith.extui %28 : i1 to i32
    %c0_i32_16 = arith.constant 0 : i32
    %30 = arith.cmpi ne, %29, %c0_i32_16 : i32
    scf.if %30 {
      %c0_17 = arith.constant 0 : index
      %c0_18 = arith.constant 0 : index
      %31 = vector.load %arg13[%c0_17, %c0_18] : memref<384x128xf32, #tpu.memory_space<vmem>>, vector<384x128xf32>
      %cst_19 = arith.constant 0.333333343 : f32
      %32 = vector.broadcast %cst_19 : f32 to vector<384x128xf32>
      %33 = arith.mulf %31, %32 : vector<384x128xf32>
      %c0_20 = arith.constant 0 : index
      %c0_21 = arith.constant 0 : index
      %34 = vector.load %arg7[%c0_20, %c0_21] : memref<384x128xf32, #tpu.memory_space<vmem>>, vector<384x128xf32>
      tpu.vector_store %arg7[%c0_20, %c0_21], %33 {strides = array<i32>} : memref<384x128xf32, #tpu.memory_space<vmem>>, vector<384x128xf32>,
      %c0_22 = arith.constant 0 : index
      %c0_23 = arith.constant 0 : index
      %35 = vector.load %arg12[%c0_22, %c0_23] : memref<128x512xf32, #tpu.memory_space<vmem>>, vector<128x512xf32>
      %c0_24 = arith.constant 0 : index
      %c0_25 = arith.constant 0 : index
      %36 = vector.load %arg6[%c0_24, %c0_25] : memref<128x512xf32, #tpu.memory_space<vmem>>, vector<128x512xf32>
      tpu.vector_store %arg6[%c0_24, %c0_25], %35 {strides = array<i32>} : memref<128x512xf32, #tpu.memory_space<vmem>>, vector<128x512xf32>,
      %c64 = arith.constant 64 : index
      %c0_26 = arith.constant 0 : index
      %37 = vector.load %arg10[%c64, %c0_26] : memref<128x512xf32, #tpu.memory_space<vmem>>, vector<64x512xf32>
      %38 = arith.truncf %37 : vector<64x512xf32> to vector<64x512xbf16>
      %c0_27 = arith.constant 0 : index
      %c0_28 = arith.constant 0 : index
      %39 = vector.load %arg8[%c0_27, %c0_28] : memref<64x512xbf16, #tpu.memory_space<vmem>>, vector<64x512xbf16>
      tpu.vector_store %arg8[%c0_27, %c0_28], %38 {strides = array<i32>} : memref<64x512xbf16, #tpu.memory_space<vmem>>, vector<64x512xbf16>,
    } else {
    }
    return
  }
  func.func @transform_0(%arg0: i32, %arg1: i32) -> (i32, i32) {
    %c0_i32 = arith.constant 0 : i32
    %c0_i32_0 = arith.constant 0 : i32
    return %arg1, %c0_i32 : i32, i32
  }
  func.func @transform_1(%arg0: i32, %arg1: i32) -> (i32, i32) {
    %c0_i32 = arith.constant 0 : i32
    %c0_i32_0 = arith.constant 0 : i32
    %c0_i32_1 = arith.constant 0 : i32
    return %c0_i32, %c0_i32_0 : i32, i32
  }
  func.func @transform_2(%arg0: i32, %arg1: i32) -> (i32, i32) {
    %c0_i32 = arith.constant 0 : i32
    %c0_i32_0 = arith.constant 0 : i32
    %c0_i32_1 = arith.constant 0 : i32
    return %c0_i32, %c0_i32_0 : i32, i32
  }
  func.func @transform_3(%arg0: i32, %arg1: i32) -> (i32, i32) {
    %c0_i32 = arith.constant 0 : i32
    %c0_i32_0 = arith.constant 0 : i32
    %c0_i32_1 = arith.constant 0 : i32
    return %c0_i32, %c0_i32_0 : i32, i32
  }
  func.func @transform_4(%arg0: i32, %arg1: i32) -> (i32, i32) {
    %c0_i32 = arith.constant 0 : i32
    %c0_i32_0 = arith.constant 0 : i32
    %c0_i32_1 = arith.constant 0 : i32
    return %c0_i32, %c0_i32_0 : i32, i32
  }
  func.func @transform_5(%arg0: i32, %arg1: i32) -> (i32, i32) {
    %c0_i32 = arith.constant 0 : i32
    %c0_i32_0 = arith.constant 0 : i32
    %c0_i32_1 = arith.constant 0 : i32
    return %c0_i32, %c0_i32_0 : i32, i32
  }
  func.func @transform_6(%arg0: i32, %arg1: i32) -> (i32, i32) {
    %c0_i32 = arith.constant 0 : i32
    %c0_i32_0 = arith.constant 0 : i32
    %c0_i32_1 = arith.constant 0 : i32
    return %c0_i32, %c0_i32_0 : i32, i32
  }
}

module attributes {stable_mosaic.version = 11 : i64} {
  func.func @spot_out_kernel(%arg0: i32, %arg1: i32, %arg2: memref<128x128xbf16, #tpu.memory_space<vmem>>, %arg3: memref<64x128xbf16, #tpu.memory_space<vmem>>, %arg4: memref<128x128xf32, #tpu.memory_space<vmem>>, %arg5: memref<128x128xf32, #tpu.memory_space<vmem>>, %arg6: memref<128x256xf32, #tpu.memory_space<vmem>>, %arg7: memref<128x64xf32, #tpu.memory_space<vmem>>) attributes {dimension_semantics = [#tpu.dimension_semantics<parallel>, #tpu.dimension_semantics<arbitrary>], iteration_bounds = array<i64: 4, 4>, scalar_prefetch = 0 : i64, scratch_operands = 1 : i64, tpu.core_type = #tpu.core_type<tc>, window_params = [{transform_indices = @transform_0, window_bounds = array<i64: 128, 128>}, {transform_indices = @transform_1, window_bounds = array<i64: 64, 128>}, {transform_indices = @transform_2, window_bounds = array<i64: 128, 128>}, {transform_indices = @transform_3, window_bounds = array<i64: 128, 128>}, {transform_indices = @transform_4, window_bounds = array<i64: 128, 256>}]} {
    %c0_i32 = arith.constant 0 : i32
    %0 = arith.cmpi eq, %arg1, %c0_i32 : i32
    %1 = arith.extui %0 : i1 to i32
    %c0_i32_0 = arith.constant 0 : i32
    %2 = arith.cmpi ne, %1, %c0_i32_0 : i32
    scf.if %2 {
      %cst_9 = arith.constant 0.000000e+00 : f32
      %12 = vector.broadcast %cst_9 : f32 to vector<128x64xf32>
      %c0_10 = arith.constant 0 : index
      %c0_11 = arith.constant 0 : index
      %13 = vector.load %arg7[%c0_10, %c0_11] : memref<128x64xf32, #tpu.memory_space<vmem>>, vector<128x64xf32>
      tpu.vector_store %arg7[%c0_10, %c0_11], %12 {strides = array<i32>} : memref<128x64xf32, #tpu.memory_space<vmem>>, vector<128x64xf32>,
    } else {
    }
    %c0 = arith.constant 0 : index
    %c0_1 = arith.constant 0 : index
    %3 = vector.load %arg7[%c0, %c0_1] : memref<128x64xf32, #tpu.memory_space<vmem>>, vector<128x64xf32>
    %c0_2 = arith.constant 0 : index
    %c0_3 = arith.constant 0 : index
    %4 = vector.load %arg2[%c0_2, %c0_3] : memref<128x128xbf16, #tpu.memory_space<vmem>>, vector<128x128xbf16>
    %c0_4 = arith.constant 0 : index
    %c0_5 = arith.constant 0 : index
    %5 = vector.load %arg3[%c0_4, %c0_5] : memref<64x128xbf16, #tpu.memory_space<vmem>>, vector<64x128xbf16>
    %cst = arith.constant dense<0.000000e+00> : vector<128x64xf32>
    %6 = tpu.matmul %4, %5, %cst {dimension_numbers = #tpu.dot_dimension_numbers<[1], [1], [0], [0], [0, 0, 1, 0], [], []>} : vector<128x128xbf16>, vector<64x128xbf16>, vector<128x64xf32> -> vector<128x64xf32>
    %7 = arith.addf %3, %6 : vector<128x64xf32>
    %c0_6 = arith.constant 0 : index
    %c0_7 = arith.constant 0 : index
    %8 = vector.load %arg7[%c0_6, %c0_7] : memref<128x64xf32, #tpu.memory_space<vmem>>, vector<128x64xf32>
    tpu.vector_store %arg7[%c0_6, %c0_7], %7 {strides = array<i32>} : memref<128x64xf32, #tpu.memory_space<vmem>>, vector<128x64xf32>,
    %c3_i32 = arith.constant 3 : i32
    %9 = arith.cmpi eq, %arg1, %c3_i32 : i32
    %10 = arith.extui %9 : i1 to i32
    %c0_i32_8 = arith.constant 0 : i32
    %11 = arith.cmpi ne, %10, %c0_i32_8 : i32
    scf.if %11 {
      %c0_9 = arith.constant 0 : index
      %c0_10 = arith.constant 0 : index
      %12 = vector.load %arg4[%c0_9, %c0_10] : memref<128x128xf32, #tpu.memory_space<vmem>>, vector<128x128xf32>
      %13 = tpu.transpose %12, [1, 0] : vector<128x128xf32> -> vector<128x128xf32>
      %c0_11 = arith.constant 0 : index
      %c0_12 = arith.constant 0 : index
      %14 = vector.load %arg5[%c0_11, %c0_12] : memref<128x128xf32, #tpu.memory_space<vmem>>, vector<128x128xf32>
      %15 = vector.extract_strided_slice %13 {offsets = [0, 64], sizes = [128, 64], strides = [1, 1]} : vector<128x128xf32> to vector<128x64xf32>
      %16 = vector.extract_strided_slice %13 {offsets = [0, 0], sizes = [128, 64], strides = [1, 1]} : vector<128x128xf32> to vector<128x64xf32>
      %cst_13 = arith.constant 0.333333343 : f32
      %17 = vector.broadcast %cst_13 : f32 to vector<128x64xf32>
      %18 = arith.mulf %16, %17 : vector<128x64xf32>
      %c0_14 = arith.constant 0 : index
      %c0_15 = arith.constant 0 : index
      %19 = vector.load %arg6[%c0_14, %c0_15] : memref<128x256xf32, #tpu.memory_space<vmem>>, vector<128x64xf32>
      tpu.vector_store %arg6[%c0_14, %c0_15], %18 {strides = array<i32>} : memref<128x256xf32, #tpu.memory_space<vmem>>, vector<128x64xf32>,
      %20 = vector.extract_strided_slice %14 {offsets = [0, 64], sizes = [128, 64], strides = [1, 1]} : vector<128x128xf32> to vector<128x64xf32>
      %21 = arith.addf %15, %20 : vector<128x64xf32>
      %cst_16 = arith.constant 0.333333343 : f32
      %22 = vector.broadcast %cst_16 : f32 to vector<128x64xf32>
      %23 = arith.mulf %21, %22 : vector<128x64xf32>
      %c0_17 = arith.constant 0 : index
      %c64 = arith.constant 64 : index
      %24 = vector.load %arg6[%c0_17, %c64] : memref<128x256xf32, #tpu.memory_space<vmem>>, vector<128x64xf32>
      tpu.vector_store %arg6[%c0_17, %c64], %23 {strides = array<i32>} : memref<128x256xf32, #tpu.memory_space<vmem>>, vector<128x64xf32>,
      %c0_18 = arith.constant 0 : index
      %c0_19 = arith.constant 0 : index
      %25 = vector.load %arg7[%c0_18, %c0_19] : memref<128x64xf32, #tpu.memory_space<vmem>>, vector<128x64xf32>
      %26 = arith.addf %15, %25 : vector<128x64xf32>
      %cst_20 = arith.constant 0.333333343 : f32
      %27 = vector.broadcast %cst_20 : f32 to vector<128x64xf32>
      %28 = arith.mulf %26, %27 : vector<128x64xf32>
      %c0_21 = arith.constant 0 : index
      %c128 = arith.constant 128 : index
      %29 = vector.load %arg6[%c0_21, %c128] : memref<128x256xf32, #tpu.memory_space<vmem>>, vector<128x64xf32>
      tpu.vector_store %arg6[%c0_21, %c128], %28 {strides = array<i32>} : memref<128x256xf32, #tpu.memory_space<vmem>>, vector<128x64xf32>,
      %cst_22 = arith.constant 0.000000e+00 : f32
      %30 = vector.broadcast %cst_22 : f32 to vector<128x64xf32>
      %c0_23 = arith.constant 0 : index
      %c192 = arith.constant 192 : index
      %31 = vector.load %arg6[%c0_23, %c192] : memref<128x256xf32, #tpu.memory_space<vmem>>, vector<128x64xf32>
      tpu.vector_store %arg6[%c0_23, %c192], %30 {strides = array<i32>} : memref<128x256xf32, #tpu.memory_space<vmem>>, vector<128x64xf32>,
    } else {
    }
    return
  }
  func.func @transform_0(%arg0: i32, %arg1: i32) -> (i32, i32) {
    %c0_i32 = arith.constant 0 : i32
    return %arg0, %arg1 : i32, i32
  }
  func.func @transform_1(%arg0: i32, %arg1: i32) -> (i32, i32) {
    %c0_i32 = arith.constant 0 : i32
    %c0_i32_0 = arith.constant 0 : i32
    return %c0_i32, %arg1 : i32, i32
  }
  func.func @transform_2(%arg0: i32, %arg1: i32) -> (i32, i32) {
    %c0_i32 = arith.constant 0 : i32
    %c0_i32_0 = arith.constant 0 : i32
    return %c0_i32, %arg0 : i32, i32
  }
  func.func @transform_3(%arg0: i32, %arg1: i32) -> (i32, i32) {
    %c0_i32 = arith.constant 0 : i32
    %c0_i32_0 = arith.constant 0 : i32
    return %arg0, %c0_i32 : i32, i32
  }
  func.func @transform_4(%arg0: i32, %arg1: i32) -> (i32, i32) {
    %c0_i32 = arith.constant 0 : i32
    %c0_i32_0 = arith.constant 0 : i32
    return %arg0, %c0_i32 : i32, i32
  }
}

</mosaic_0001>

<llo_original>
// kernel: sslgcn_forward.3
$region0: #{sslgcn_forward.3}
  #allocation0 [shape = 'u32[]', space=smem, size = 0x4, offset = 0x4, fixed_abs, tag = 'smem constant byte address 0x4 - core index']
  #allocation1 [shape = 'u32[72,128]{1,0:T(1,128)}', space=vmem, size = 0x9000, scoped, tag = 'internal scratch']
  #allocation2 [shape = 'f32[128,128]{1,0:T(8,128)}', space=vmem, size = 0x10000, scoped, tag = 'scratch operand']
  %s0 = inlined_call_operand.vmem [shape: bf16[512,512], index: 0, kind: input, shape index: {}]
  %s1 = inlined_call_operand.vmem [shape: bf16[512,512], index: 1, kind: input, shape index: {}]
  %s2 = inlined_call_operand.vmem [shape: f32[512,64], index: 2, kind: input, shape index: {}]
  %s3 = inlined_call_operand.vmem [shape: f32[512,128], index: 3, kind: output, shape index: {}]
  %s4 = sld [smem:[#allocation0]]
  $region135: #{sslgcn_forward.3} parent=0
    _
  %s6 = ssub.s32 1, %s4
  %s7 = scalar_select 0, %s6, %s4
  $region1: #{sslgcn_forward.3} parent=0
    #allocation3 [shape = 'u8[65536]{0}', space=vmem, size = 0x10000, scoped, tag = 'input window, operand 0']
    #allocation4 [shape = 'u8[65536]{0}', space=vmem, size = 0x10000, scoped, tag = 'input window, operand 1']
    loop: start=0, step=1, limit=18
    $region2: #{sslgcn_forward.3} parent=1 // loop_pre_header
      _
    $region3: #{sslgcn_forward.3} parent=1 // loop_header
      %s9 = sphi 0, %s13
      %p10 = scmp.ge.s32.totalorder %s9, 18
      %s16 = sphi 0, %s28
      %s17 = sphi 0, %s24
      %s18 = sphi 0, %s16
      %s19 = sphi 0, %s17
      %s20 = sphi 0, %s18
      %s21 = sphi 0, %s19
      %s33 = sphi 0, %s35
      %s36 = sphi 0, %s33
      %s37 = sphi 0, %s36
      %s53 = sphi 0, %s37
      %s61 = sphi 0, %s63
      %s64 = sphi 0, %s61
      %s65 = sphi 0, %s64
      %s81 = sphi 0, %s65
      %s87 = sphi 0, %s89
      %s90 = sphi 0, %s87
      %s91 = sphi 0, %s90
      %s107 = sphi 0, %s91
      %s113 = sphi 0, %s115
      %s116 = sphi 0, %s113
      %s117 = sphi 0, %s116
      %s133 = sphi 0, %s117
    $region4: #{sslgcn_forward.3} parent=1 // loop_header_branch
      %12 = sbr.rel (%p10) target = $region8
    $region5: #{sslgcn_forward.3} parent=1 // loop_body
      %s14 = ssub.s32 %s9, 1
      %s15 = ssub.s32 %s9, 2
      %s22 = sadd.s32 1, %s17
      %p23 = scmp.ge.s32.totalorder %s22, 4
      %s24 = scalar_select %p23, 0, %s22
      %s25 = sadd.s32 1, %s16
      %s26 = scalar_select %p23, %s25, %s16
      %p27 = scmp.ge.s32.totalorder %s26, 4
      %s28 = scalar_select %p27, 0, %s26
      %s29 = ssub.s32 %s16, %s28
      %s30 = ssub.s32 %s17, %s24
      %s31 = sor.u32 %s29, %s30
      %p32 = scmp.eq.s32.totalorder %s31, 0
      %s34 = sadd.s32 %s33, 1
      %s35 = scalar_select %p32, %s33, %s34
      %p38 = pneg %p32
      %p39 = scmp.eq.s32.totalorder %s9, 15
      %p40 = por %p38, %p39
      %p41 = scmp.ne.s32.totalorder %s33, %s36
      %p42 = scmp.eq.s32.totalorder %s9, 0
      %p43 = por %p41, %p42
      %p44 = scmp.ne.s32.totalorder %s33, %s36
      %p45 = scmp.eq.s32.totalorder %s14, 15
      %p46 = por %p44, %p45
      %p47 = scmp.ne.s32.totalorder %s36, %s37
      %p48 = scmp.eq.s32.totalorder %s14, 0
      %p49 = por %p47, %p48
      %p50 = scmp.ne.s32.totalorder %s36, %s37
      %p51 = scmp.eq.s32.totalorder %s15, 15
      %p52 = por %p50, %p51
      %p54 = scmp.ne.s32.totalorder %s37, %s53
      %p55 = scmp.eq.s32.totalorder %s15, 0
      %p56 = por %p54, %p55
      %s57 = ssub.s32 %s16, %s28
      %s58 = ssub.s32 %s17, %s24
      %s59 = sor.u32 %s57, %s58
      %p60 = scmp.eq.s32.totalorder %s59, 0
      %s62 = sadd.s32 %s61, 1
      %s63 = scalar_select %p60, %s61, %s62
      %p66 = pneg %p60
      %p67 = scmp.eq.s32.totalorder %s9, 15
      %p68 = por %p66, %p67
      %p69 = scmp.ne.s32.totalorder %s61, %s64
      %p70 = scmp.eq.s32.totalorder %s9, 0
      %p71 = por %p69, %p70
      %p72 = scmp.ne.s32.totalorder %s61, %s64
      %p73 = scmp.eq.s32.totalorder %s14, 15
      %p74 = por %p72, %p73
      %p75 = scmp.ne.s32.totalorder %s64, %s65
      %p76 = scmp.eq.s32.totalorder %s14, 0
      %p77 = por %p75, %p76
      %p78 = scmp.ne.s32.totalorder %s64, %s65
      %p79 = scmp.eq.s32.totalorder %s15, 15
      %p80 = por %p78, %p79
      %p82 = scmp.ne.s32.totalorder %s65, %s81
      %p83 = scmp.eq.s32.totalorder %s15, 0
      %p84 = por %p82, %p83
      %s85 = ssub.s32 %s17, %s24
      %p86 = scmp.eq.s32.totalorder %s85, 0
      %s88 = sadd.s32 %s87, 1
      %s89 = scalar_select %p86, %s87, %s88
      %p92 = pneg %p86
      %p93 = scmp.eq.s32.totalorder %s9, 15
      %p94 = por %p92, %p93
      %p95 = scmp.ne.s32.totalorder %s87, %s90
      %p96 = scmp.eq.s32.totalorder %s9, 0
      %p97 = por %p95, %p96
      %p98 = scmp.ne.s32.totalorder %s87, %s90
      %p99 = scmp.eq.s32.totalorder %s14, 15
      %p100 = por %p98, %p99
      %p101 = scmp.ne.s32.totalorder %s90, %s91
      %p102 = scmp.eq.s32.totalorder %s14, 0
      %p103 = por %p101, %p102
      %p104 = scmp.ne.s32.totalorder %s90, %s91
      %p105 = scmp.eq.s32.totalorder %s15, 15
      %p106 = por %p104, %p105
      %p108 = scmp.ne.s32.totalorder %s91, %s107
      %p109 = scmp.eq.s32.totalorder %s15, 0
      %p110 = por %p108, %p109
      %s111 = ssub.s32 %s16, %s28
      %p112 = scmp.eq.s32.totalorder %s111, 0
      %s114 = sadd.s32 %s113, 1
      %s115 = scalar_select %p112, %s113, %s114
      %p118 = pneg %p112
      %p119 = scmp.eq.s32.totalorder %s9, 15
      %p120 = por %p118, %p119
      %p121 = scmp.ne.s32.totalorder %s113, %s116
      %p122 = scmp.eq.s32.totalorder %s9, 0
      %p123 = por %p121, %p122
      %p124 = scmp.ne.s32.totalorder %s113, %s116
      %p125 = scmp.eq.s32.totalorder %s14, 15
      %p126 = por %p124, %p125
      %p127 = scmp.ne.s32.totalorder %s116, %s117
      %p128 = scmp.eq.s32.totalorder %s14, 0
      %p129 = por %p127, %p128
      %p130 = scmp.ne.s32.totalorder %s116, %s117
      %p131 = scmp.eq.s32.totalorder %s15, 15
      %p132 = por %p130, %p131
      %p134 = scmp.ne.s32.totalorder %s117, %s133
      %p135 = scmp.eq.s32.totalorder %s15, 0
      %p136 = por %p134, %p135
      %p137 = scmp.le.s32.totalorder 1, %s9
      %p138 = scmp.lt.s32.totalorder %s9, 17
      %p139 = pnand %p137, %p138
      %p140 = pneg %p139
      // Predicated region
      $region9: #{sslgcn_forward.3} parent=5 // pred_check
        _
      $region10: #{sslgcn_forward.3} parent=5 // pred_check_branch
        %142 = sbr.rel (%p139) target = $region12
      $region11: #{sslgcn_forward.3} parent=5 // pred_region
        %s143 = ssub.s32 %s9, 1
      $region12: #{sslgcn_forward.3} parent=5 // pred_fallthru
        _
      %p144 = scmp.lt.s32.totalorder %s9, 16
      // Predicated region
      $region13: #{sslgcn_forward.3} parent=5 // pred_check
        %p145 = pneg %p144
      $region14: #{sslgcn_forward.3} parent=5 // pred_check_branch
        %147 = sbr.rel (%p145) target = $region16
      $region15: #{sslgcn_forward.3} parent=5 // pred_region
        // Predicated region
        $region17: #{sslgcn_forward.3} parent=15 // pred_check
          %p148 = pneg %p43
        $region18: #{sslgcn_forward.3} parent=15 // pred_check_branch
          %150 = sbr.rel (%p148) target = $region20
        $region19: #{sslgcn_forward.3} parent=15 // pred_region
          %s151 = sand.u32 %s33, 1
          %s152 = sand.u32 %s33, 1
          %s153 = smul.addr %s152, 64
          %s154 = scalar_lea.vmem [#allocation3], %s153
          %s155 = smul.u32 16, %s16
          %s156 = smul.addr %s155, 4
          %s157 = sadd.s32 %s17, %s156
          %s158 = smul.addr %s157, 4
          %s159 = scalar_lea.vmem %s0, %s158
          // Predicated region
          $region21: #{sslgcn_forward.3} parent=19 // pred_check
            _
          $region22: #{sslgcn_forward.3} parent=19 // pred_check_branch
            %161 = sbr.rel (0) target = $region24
          $region23: #{sslgcn_forward.3} parent=19 // pred_region
            // Predicated region
            $region25: #{sslgcn_forward.3} parent=23 // pred_check
              _
            $region26: #{sslgcn_forward.3} parent=23 // pred_check_branch
              %163 = sbr.rel target = $region28
            $region27: #{sslgcn_forward.3} parent=23 // pred_region
              // Predicated region
              $region40: #{sslgcn_forward.3} parent=27 // pred_check
                _
              $region41: #{sslgcn_forward.3} parent=27 // pred_check_branch
                %209 = sbr.rel (0) target = $region43
              $region42: #{sslgcn_forward.3} parent=27 // pred_region
                loop: start=0, step=1, limit=1
                $region44: #{sslgcn_forward.3} parent=42 // loop_pre_header
                  _
                $region45: #{sslgcn_forward.3} parent=42 // loop_header
                  %s211 = sphi 0, %s215
                  %p212 = scmp.ge.s32.totalorder %s211, 1
                  %s216 = sphi %s159, %s159
                  %s217 = sphi %s154, %s154
                $region46: #{sslgcn_forward.3} parent=42 // loop_header_branch
                  %214 = sbr.rel (%p212) target = $region50
                $region47: #{sslgcn_forward.3} parent=42 // loop_body
                  _
                $region48: #{sslgcn_forward.3} parent=42 // loop_footer
                  %s215 = sadd.s32 1, %s211
                $region49: #{sslgcn_forward.3} parent=42 // loop_footer_branch
                  %210 = sbr.rel target = $region45
                $region50: #{sslgcn_forward.3} parent=42 // loop_exit
                  _
                %s219 = ssub.s32 16, 1
                loop: start=0, step=1, limit=1
                $region51: #{sslgcn_forward.3} parent=42 // loop_pre_header
                  _
                $region52: #{sslgcn_forward.3} parent=42 // loop_header
                  %s221 = sphi 0, %s225
                  %p222 = scmp.ge.s32.totalorder %s221, 1
                  %s226 = sphi %s159, %s159
                  %s227 = sphi %s154, %s154
                $region53: #{sslgcn_forward.3} parent=42 // loop_header_branch
                  %224 = sbr.rel (%p222) target = $region57
                $region54: #{sslgcn_forward.3} parent=42 // loop_body
                  %v228 = vld [vmem:[%s226] sm:%s219]
                  %229 = vst [vmem:[%s227] sm:%s219] %v228
                  %v230 = vld [vmem:[%s226 + $0x10] sm:%s219]
                  %231 = vst [vmem:[%s227 + $0x4] sm:%s219] %v230
                  %v232 = vld [vmem:[%s226 + $0x20] sm:%s219]
                  %233 = vst [vmem:[%s227 + $0x8] sm:%s219] %v232
                  %v234 = vld [vmem:[%s226 + $0x30] sm:%s219]
                  %235 = vst [vmem:[%s227 + $0xc] sm:%s219] %v234
                  %v236 = vld [vmem:[%s226 + $0x40] sm:%s219]
                  %237 = vst [vmem:[%s227 + $0x10] sm:%s219] %v236
                  %v238 = vld [vmem:[%s226 + $0x50] sm:%s219]
                  %239 = vst [vmem:[%s227 + $0x14] sm:%s219] %v238
                  %v240 = vld [vmem:[%s226 + $0x60] sm:%s219]
                  %241 = vst [vmem:[%s227 + $0x18] sm:%s219] %v240
                  %v242 = vld [vmem:[%s226 + $0x70] sm:%s219]
                  %243 = vst [vmem:[%s227 + $0x1c] sm:%s219] %v242
                  %v244 = vld [vmem:[%s226 + $0x80] sm:%s219]
                  %245 = vst [vmem:[%s227 + $0x20] sm:%s219] %v244
                  %v246 = vld [vmem:[%s226 + $0x90] sm:%s219]
                  %247 = vst [vmem:[%s227 + $0x24] sm:%s219] %v246
                  %v248 = vld [vmem:[%s226 + $0xa0] sm:%s219]
                  %249 = vst [vmem:[%s227 + $0x28] sm:%s219] %v248
                  %v250 = vld [vmem:[%s226 + $0xb0] sm:%s219]
                  %251 = vst [vmem:[%s227 + $0x2c] sm:%s219] %v250
                  %v252 = vld [vmem:[%s226 + $0xc0] sm:%s219]
                  %253 = vst [vmem:[%s227 + $0x30] sm:%s219] %v252
                  %v254 = vld [vmem:[%s226 + $0xd0] sm:%s219]
                  %255 = vst [vmem:[%s227 + $0x34] sm:%s219] %v254
                  %v256 = vld [vmem:[%s226 + $0xe0] sm:%s219]
                  %257 = vst [vmem:[%s227 + $0x38] sm:%s219] %v256
                  %v258 = vld [vmem:[%s226 + $0xf0] sm:%s219]
                  %259 = vst [vmem:[%s227 + $0x3c] sm:%s219] %v258
                $region55: #{sslgcn_forward.3} parent=42 // loop_footer
                  %s225 = sadd.s32 1, %s221
                $region56: #{sslgcn_forward.3} parent=42 // loop_footer_branch
                  %220 = sbr.rel target = $region52
                $region57: #{sslgcn_forward.3} parent=42 // loop_exit
                  _
              $region43: #{sslgcn_forward.3} parent=27 // pred_fallthru
                _
            $region28: #{sslgcn_forward.3} parent=23 // pred_fallthru
              _
            // Predicated region
            $region29: #{sslgcn_forward.3} parent=23 // pred_check
              _
            $region30: #{sslgcn_forward.3} parent=23 // pred_check_branch
              %165 = sbr.rel (0) target = $region32
            $region31: #{sslgcn_forward.3} parent=23 // pred_region
              %s167 = ssub.s32 16, 1
              loop: start=0, step=1, limit=1
              $region33: #{sslgcn_forward.3} parent=31 // loop_pre_header
                _
              $region34: #{sslgcn_forward.3} parent=31 // loop_header
                %s169 = sphi 0, %s173
                %p170 = scmp.ge.s32.totalorder %s169, 1
                %s174 = sphi %s159, %s159
                %s175 = sphi %s154, %s154
              $region35: #{sslgcn_forward.3} parent=31 // loop_header_branch
                %172 = sbr.rel (%p170) target = $region39
              $region36: #{sslgcn_forward.3} parent=31 // loop_body
                %v176 = vld [vmem:[%s174] sm:%s167]
                %177 = vst [vmem:[%s175] sm:%s167] %v176
                %v178 = vld [vmem:[%s174 + $0x10] sm:%s167]
                %179 = vst [vmem:[%s175 + $0x4] sm:%s167] %v178
                %v180 = vld [vmem:[%s174 + $0x20] sm:%s167]
                %181 = vst [vmem:[%s175 + $0x8] sm:%s167] %v180
                %v182 = vld [vmem:[%s174 + $0x30] sm:%s167]
                %183 = vst [vmem:[%s175 + $0xc] sm:%s167] %v182
                %v184 = vld [vmem:[%s174 + $0x40] sm:%s167]
                %185 = vst [vmem:[%s175 + $0x10] sm:%s167] %v184
                %v186 = vld [vmem:[%s174 + $0x50] sm:%s167]
                %187 = vst [vmem:[%s175 + $0x14] sm:%s167] %v186
                %v188 = vld [vmem:[%s174 + $0x60] sm:%s167]
                %189 = vst [vmem:[%s175 + $0x18] sm:%s167] %v188
                %v190 = vld [vmem:[%s174 + $0x70] sm:%s167]
                %191 = vst [vmem:[%s175 + $0x1c] sm:%s167] %v190
                %v192 = vld [vmem:[%s174 + $0x80] sm:%s167]
                %193 = vst [vmem:[%s175 + $0x20] sm:%s167] %v192
                %v194 = vld [vmem:[%s174 + $0x90] sm:%s167]
                %195 = vst [vmem:[%s175 + $0x24] sm:%s167] %v194
                %v196 = vld [vmem:[%s174 + $0xa0] sm:%s167]
                %197 = vst [vmem:[%s175 + $0x28] sm:%s167] %v196
                %v198 = vld [vmem:[%s174 + $0xb0] sm:%s167]
                %199 = vst [vmem:[%s175 + $0x2c] sm:%s167] %v198
                %v200 = vld [vmem:[%s174 + $0xc0] sm:%s167]
                %201 = vst [vmem:[%s175 + $0x30] sm:%s167] %v200
                %v202 = vld [vmem:[%s174 + $0xd0] sm:%s167]
                %203 = vst [vmem:[%s175 + $0x34] sm:%s167] %v202
                %v204 = vld [vmem:[%s174 + $0xe0] sm:%s167]
                %205 = vst [vmem:[%s175 + $0x38] sm:%s167] %v204
                %v206 = vld [vmem:[%s174 + $0xf0] sm:%s167]
                %207 = vst [vmem:[%s175 + $0x3c] sm:%s167] %v206
              $region37: #{sslgcn_forward.3} parent=31 // loop_footer
                %s173 = sadd.s32 1, %s169
              $region38: #{sslgcn_forward.3} parent=31 // loop_footer_branch
                %168 = sbr.rel target = $region34
              $region39: #{sslgcn_forward.3} parent=31 // loop_exit
                _
            $region32: #{sslgcn_forward.3} parent=23 // pred_fallthru
              _
          $region24: #{sslgcn_forward.3} parent=19 // pred_fallthru
            _
          %260 = vnop
        $region20: #{sslgcn_forward.3} parent=15 // pred_fallthru
          _
        // Predicated region
        $region58: #{sslgcn_forward.3} parent=15 // pred_check
          %p261 = pneg %p71
        $region59: #{sslgcn_forward.3} parent=15 // pred_check_branch
          %263 = sbr.rel (%p261) target = $region61
        $region60: #{sslgcn_forward.3} parent=15 // pred_region
          %s264 = sand.u32 %s61, 1
          %s265 = sand.u32 %s61, 1
          %s266 = smul.addr %s265, 64
          %s267 = scalar_lea.vmem [#allocation4], %s266
          %s268 = smul.u32 16, %s16
          %s269 = smul.addr %s268, 4
          %s270 = sadd.s32 %s17, %s269
          %s271 = smul.addr %s270, 4
          %s272 = scalar_lea.vmem %s1, %s271
          // Predicated region
          $region62: #{sslgcn_forward.3} parent=60 // pred_check
            _
          $region63: #{sslgcn_forward.3} parent=60 // pred_check_branch
            %274 = sbr.rel (0) target = $region65
          $region64: #{sslgcn_forward.3} parent=60 // pred_region
            // Predicated region
            $region66: #{sslgcn_forward.3} parent=64 // pred_check
              _
            $region67: #{sslgcn_forward.3} parent=64 // pred_check_branch
              %276 = sbr.rel target = $region69
            $region68: #{sslgcn_forward.3} parent=64 // pred_region
              // Predicated region
              $region81: #{sslgcn_forward.3} parent=68 // pred_check
                _
              $region82: #{sslgcn_forward.3} parent=68 // pred_check_branch
                %322 = sbr.rel (0) target = $region84
              $region83: #{sslgcn_forward.3} parent=68 // pred_region
                loop: start=0, step=1, limit=1
                $region85: #{sslgcn_forward.3} parent=83 // loop_pre_header
                  _
                $region86: #{sslgcn_forward.3} parent=83 // loop_header
                  %s324 = sphi 0, %s328
                  %p325 = scmp.ge.s32.totalorder %s324, 1
                  %s329 = sphi %s272, %s272
                  %s330 = sphi %s267, %s267
                $region87: #{sslgcn_forward.3} parent=83 // loop_header_branch
                  %327 = sbr.rel (%p325) target = $region91
                $region88: #{sslgcn_forward.3} parent=83 // loop_body
                  _
                $region89: #{sslgcn_forward.3} parent=83 // loop_footer
                  %s328 = sadd.s32 1, %s324
                $region90: #{sslgcn_forward.3} parent=83 // loop_footer_branch
                  %323 = sbr.rel target = $region86
                $region91: #{sslgcn_forward.3} parent=83 // loop_exit
                  _
                %s332 = ssub.s32 16, 1
                loop: start=0, step=1, limit=1
                $region92: #{sslgcn_forward.3} parent=83 // loop_pre_header
                  _
                $region93: #{sslgcn_forward.3} parent=83 // loop_header
                  %s334 = sphi 0, %s338
                  %p335 = scmp.ge.s32.totalorder %s334, 1
                  %s339 = sphi %s272, %s272
                  %s340 = sphi %s267, %s267
                $region94: #{sslgcn_forward.3} parent=83 // loop_header_branch
                  %337 = sbr.rel (%p335) target = $region98
                $region95: #{sslgcn_forward.3} parent=83 // loop_body
                  %v341 = vld [vmem:[%s339] sm:%s332]
                  %342 = vst [vmem:[%s340] sm:%s332] %v341
                  %v343 = vld [vmem:[%s339 + $0x10] sm:%s332]
                  %344 = vst [vmem:[%s340 + $0x4] sm:%s332] %v343
                  %v345 = vld [vmem:[%s339 + $0x20] sm:%s332]
                  %346 = vst [vmem:[%s340 + $0x8] sm:%s332] %v345
                  %v347 = vld [vmem:[%s339 + $0x30] sm:%s332]
                  %348 = vst [vmem:[%s340 + $0xc] sm:%s332] %v347
                  %v349 = vld [vmem:[%s339 + $0x40] sm:%s332]
                  %350 = vst [vmem:[%s340 + $0x10] sm:%s332] %v349
                  %v351 = vld [vmem:[%s339 + $0x50] sm:%s332]
                  %352 = vst [vmem:[%s340 + $0x14] sm:%s332] %v351
                  %v353 = vld [vmem:[%s339 + $0x60] sm:%s332]
                  %354 = vst [vmem:[%s340 + $0x18] sm:%s332] %v353
                  %v355 = vld [vmem:[%s339 + $0x70] sm:%s332]
                  %356 = vst [vmem:[%s340 + $0x1c] sm:%s332] %v355
                  %v357 = vld [vmem:[%s339 + $0x80] sm:%s332]
                  %358 = vst [vmem:[%s340 + $0x20] sm:%s332] %v357
                  %v359 = vld [vmem:[%s339 + $0x90] sm:%s332]
                  %360 = vst [vmem:[%s340 + $0x24] sm:%s332] %v359
                  %v361 = vld [vmem:[%s339 + $0xa0] sm:%s332]
                  %362 = vst [vmem:[%s340 + $0x28] sm:%s332] %v361
                  %v363 = vld [vmem:[%s339 + $0xb0] sm:%s332]
                  %364 = vst [vmem:[%s340 + $0x2c] sm:%s332] %v363
                  %v365 = vld [vmem:[%s339 + $0xc0] sm:%s332]
                  %366 = vst [vmem:[%s340 + $0x30] sm:%s332] %v365
                  %v367 = vld [vmem:[%s339 + $0xd0] sm:%s332]
                  %368 = vst [vmem:[%s340 + $0x34] sm:%s332] %v367
                  %v369 = vld [vmem:[%s339 + $0xe0] sm:%s332]
                  %370 = vst [vmem:[%s340 + $0x38] sm:%s332] %v369
                  %v371 = vld [vmem:[%s339 + $0xf0] sm:%s332]
                  %372 = vst [vmem:[%s340 + $0x3c] sm:%s332] %v371
                $region96: #{sslgcn_forward.3} parent=83 // loop_footer
                  %s338 = sadd.s32 1, %s334
                $region97: #{sslgcn_forward.3} parent=83 // loop_footer_branch
                  %333 = sbr.rel target = $region93
                $region98: #{sslgcn_forward.3} parent=83 // loop_exit
                  _
              $region84: #{sslgcn_forward.3} parent=68 // pred_fallthru
                _
            $region69: #{sslgcn_forward.3} parent=64 // pred_fallthru
              _
            // Predicated region
            $region70: #{sslgcn_forward.3} parent=64 // pred_check
              _
            $region71: #{sslgcn_forward.3} parent=64 // pred_check_branch
              %278 = sbr.rel (0) target = $region73
            $region72: #{sslgcn_forward.3} parent=64 // pred_region
              %s280 = ssub.s32 16, 1
              loop: start=0, step=1, limit=1
              $region74: #{sslgcn_forward.3} parent=72 // loop_pre_header
                _
              $region75: #{sslgcn_forward.3} parent=72 // loop_header
                %s282 = sphi 0, %s286
                %p283 = scmp.ge.s32.totalorder %s282, 1
                %s287 = sphi %s272, %s272
                %s288 = sphi %s267, %s267
              $region76: #{sslgcn_forward.3} parent=72 // loop_header_branch
                %285 = sbr.rel (%p283) target = $region80
              $region77: #{sslgcn_forward.3} parent=72 // loop_body
                %v289 = vld [vmem:[%s287] sm:%s280]
                %290 = vst [vmem:[%s288] sm:%s280] %v289
                %v291 = vld [vmem:[%s287 + $0x10] sm:%s280]
                %292 = vst [vmem:[%s288 + $0x4] sm:%s280] %v291
                %v293 = vld [vmem:[%s287 + $0x20] sm:%s280]
                %294 = vst [vmem:[%s288 + $0x8] sm:%s280] %v293
                %v295 = vld [vmem:[%s287 + $0x30] sm:%s280]
                %296 = vst [vmem:[%s288 + $0xc] sm:%s280] %v295
                %v297 = vld [vmem:[%s287 + $0x40] sm:%s280]
                %298 = vst [vmem:[%s288 + $0x10] sm:%s280] %v297
                %v299 = vld [vmem:[%s287 + $0x50] sm:%s280]
                %300 = vst [vmem:[%s288 + $0x14] sm:%s280] %v299
                %v301 = vld [vmem:[%s287 + $0x60] sm:%s280]
                %302 = vst [vmem:[%s288 + $0x18] sm:%s280] %v301
                %v303 = vld [vmem:[%s287 + $0x70] sm:%s280]
                %304 = vst [vmem:[%s288 + $0x1c] sm:%s280] %v303
                %v305 = vld [vmem:[%s287 + $0x80] sm:%s280]
                %306 = vst [vmem:[%s288 + $0x20] sm:%s280] %v305
                %v307 = vld [vmem:[%s287 + $0x90] sm:%s280]
                %308 = vst [vmem:[%s288 + $0x24] sm:%s280] %v307
                %v309 = vld [vmem:[%s287 + $0xa0] sm:%s280]
                %310 = vst [vmem:[%s288 + $0x28] sm:%s280] %v309
                %v311 = vld [vmem:[%s287 + $0xb0] sm:%s280]
                %312 = vst [vmem:[%s288 + $0x2c] sm:%s280] %v311
                %v313 = vld [vmem:[%s287 + $0xc0] sm:%s280]
                %314 = vst [vmem:[%s288 + $0x30] sm:%s280] %v313
                %v315 = vld [vmem:[%s287 + $0xd0] sm:%s280]
                %316 = vst [vmem:[%s288 + $0x34] sm:%s280] %v315
                %v317 = vld [vmem:[%s287 + $0xe0] sm:%s280]
                %318 = vst [vmem:[%s288 + $0x38] sm:%s280] %v317
                %v319 = vld [vmem:[%s287 + $0xf0] sm:%s280]
                %320 = vst [vmem:[%s288 + $0x3c] sm:%s280] %v319
              $region78: #{sslgcn_forward.3} parent=72 // loop_footer
                %s286 = sadd.s32 1, %s282
              $region79: #{sslgcn_forward.3} parent=72 // loop_footer_branch
                %281 = sbr.rel target = $region75
              $region80: #{sslgcn_forward.3} parent=72 // loop_exit
                _
            $region73: #{sslgcn_forward.3} parent=64 // pred_fallthru
              _
          $region65: #{sslgcn_forward.3} parent=60 // pred_fallthru
            _
          %373 = vnop
        $region61: #{sslgcn_forward.3} parent=15 // pred_fallthru
          _
        // Predicated region
        $region99: #{sslgcn_forward.3} parent=15 // pred_check
          %p374 = pneg %p97
        $region100: #{sslgcn_forward.3} parent=15 // pred_check_branch
          %376 = sbr.rel (%p374) target = $region102
        $region101: #{sslgcn_forward.3} parent=15 // pred_region
          %s377 = smul.u32 16, %s17
          %p378 = scmp.lt.s32.totalorder %s377, 63
          %s379 = scalar_select %p378, %s377, 63
          %s380 = smul.addr %s379, 8
          %s381 = scalar_lea.vmem %s2, %s380
          %s382 = smul.u32 16, %s17
        $region102: #{sslgcn_forward.3} parent=15 // pred_fallthru
          _
      $region16: #{sslgcn_forward.3} parent=5 // pred_fallthru
        _
      %p383 = scmp.le.s32.totalorder 1, %s9
      %p384 = scmp.lt.s32.totalorder %s9, 17
      %p385 = pnand %p383, %p384
      %p386 = pneg %p385
      // Predicated region
      $region103: #{sslgcn_forward.3} parent=5 // pred_check
        _
      $region104: #{sslgcn_forward.3} parent=5 // pred_check_branch
        %388 = sbr.rel (%p385) target = $region106
      $region105: #{sslgcn_forward.3} parent=5 // pred_region
        %s389 = ssub.s32 %s9, 1
        %s390 = sand.u32 %s36, 1
        %s391 = sand.u32 %s36, 1
        %s392 = smul.addr %s391, 64
        %s393 = scalar_lea.vmem [#allocation3], %s392
        // Predicated region
        $region107: #{sslgcn_forward.3} parent=105 // pred_check
          %p394 = pneg %p49
        $region108: #{sslgcn_forward.3} parent=105 // pred_check_branch
          %396 = sbr.rel (%p394) target = $region110
        $region109: #{sslgcn_forward.3} parent=105 // pred_region
          _
        $region110: #{sslgcn_forward.3} parent=105 // pred_fallthru
          _
        %s397 = sand.u32 %s64, 1
        %s398 = sand.u32 %s64, 1
        %s399 = smul.addr %s398, 64
        %s400 = scalar_lea.vmem [#allocation4], %s399
        // Predicated region
        $region111: #{sslgcn_forward.3} parent=105 // pred_check
          %p401 = pneg %p77
        $region112: #{sslgcn_forward.3} parent=105 // pred_check_branch
          %403 = sbr.rel (%p401) target = $region114
        $region113: #{sslgcn_forward.3} parent=105 // pred_region
          _
        $region114: #{sslgcn_forward.3} parent=105 // pred_fallthru
          _
        %s404 = sand.u32 %s36, 1
        %s405 = sand.u32 %s36, 1
        %s406 = smul.addr %s405, 64
        %s407 = scalar_lea.vmem [#allocation3], %s406
        %p408 = pneg %p49
        %p409 = pneg %p46
        %s410 = sand.u32 %s64, 1
        %s411 = sand.u32 %s64, 1
        %s412 = smul.addr %s411, 64
        %s413 = scalar_lea.vmem [#allocation4], %s412
        %p414 = pneg %p77
        %p415 = pneg %p74
        %s416 = smul.u32 16, %s19
        %p417 = scmp.lt.s32.totalorder %s416, 63
        %s418 = scalar_select %p417, %s416, 63
        %s419 = smul.addr %s418, 8
        %s420 = scalar_lea.vmem %s2, %s419
        %p421 = pneg %p103
        %p422 = pneg %p100
        %p423 = pneg %p129
        %p424 = pneg %p126
        %s425 = smul.u32 16, %s18
        %p426 = scmp.lt.s32.totalorder %s425, 63
        %s427 = scalar_select %p426, %s425, 63
        %s428 = smul.addr %s427, 8
        %s429 = scalar_lea.vmem %s3, %s428
        %s430 = smul.u32 16, %s18
        %s431 = smul.u32 16, %s18
        %s432 = smul.u32 16, %s19
        %p433 = scmp.lt.s32.totalorder %s432, 63
        %s434 = scalar_select %p433, %s432, 63
        %s435 = smul.addr %s434, 8
        %s436 = scalar_lea.vmem %s2, %s435
        %s437 = smul.u32 16, %s19
        %s438 = smul.u32 16, %s18
        %p439 = scmp.lt.s32.totalorder %s438, 63
        %s440 = scalar_select %p439, %s438, 63
        %s441 = smul.addr %s440, 8
        %s442 = scalar_lea.vmem %s3, %s441
        %s443 = smul.u32 16, %s18
        %p444 = scmp.eq.s32.totalorder %s19, 0
        // Predicated region
        $region115: #{sslgcn_forward.3} parent=105 // pred_check
          %p445 = pneg %p444
        $region116: #{sslgcn_forward.3} parent=105 // pred_check_branch
          %447 = sbr.rel (%p445) target = $region118
        $region117: #{sslgcn_forward.3} parent=105 // pred_region
          %448 = vst [vmem:[#allocation2] sm:$0xff] 0.0
          %449 = vst [vmem:[#allocation2 + $0x8] sm:$0xff] 0.0
          %450 = vst [vmem:[#allocation2 + $0x10] sm:$0xff] 0.0
          %451 = vst [vmem:[#allocation2 + $0x18] sm:$0xff] 0.0
          %452 = vst [vmem:[#allocation2 + $0x20] sm:$0xff] 0.0
          %453 = vst [vmem:[#allocation2 + $0x28] sm:$0xff] 0.0
          %454 = vst [vmem:[#allocation2 + $0x30] sm:$0xff] 0.0
          %455 = vst [vmem:[#allocation2 + $0x38] sm:$0xff] 0.0
          %456 = vst [vmem:[#allocation2 + $0x40] sm:$0xff] 0.0
          %457 = vst [vmem:[#allocation2 + $0x48] sm:$0xff] 0.0
          %458 = vst [vmem:[#allocation2 + $0x50] sm:$0xff] 0.0
          %459 = vst [vmem:[#allocation2 + $0x58] sm:$0xff] 0.0
          %460 = vst [vmem:[#allocation2 + $0x60] sm:$0xff] 0.0
          %461 = vst [vmem:[#allocation2 + $0x68] sm:$0xff] 0.0
          %462 = vst [vmem:[#allocation2 + $0x70] sm:$0xff] 0.0
          %463 = vst [vmem:[#allocation2 + $0x78] sm:$0xff] 0.0
        $region118: #{sslgcn_forward.3} parent=105 // pred_fallthru
          _
        %v464 = vld [vmem:[%s436] sm:$0xff]
        %v465 = vld [vmem:[%s436 + $0x8] sm:$0xff]
        %v466 = vld [vmem:[%s436 + $0x10] sm:$0xff]
        %v467 = vld [vmem:[%s436 + $0x18] sm:$0xff]
        %v468 = vld [vmem:[%s436 + $0x20] sm:$0xff]
        %v469 = vld [vmem:[%s436 + $0x28] sm:$0xff]
        %v470 = vld [vmem:[%s436 + $0x30] sm:$0xff]
        %v471 = vld [vmem:[%s436 + $0x38] sm:$0xff]
        %v472 = vld [vmem:[%s436 + $0x40] sm:$0xff]
        %v473 = vld [vmem:[%s436 + $0x48] sm:$0xff]
        %v474 = vld [vmem:[%s436 + $0x50] sm:$0xff]
        %v475 = vld [vmem:[%s436 + $0x58] sm:$0xff]
        %v476 = vld [vmem:[%s436 + $0x60] sm:$0xff]
        %v477 = vld [vmem:[%s436 + $0x68] sm:$0xff]
        %v478 = vld [vmem:[%s436 + $0x70] sm:$0xff]
        %v479 = vld [vmem:[%s436 + $0x78] sm:$0xff]
        %v480 = vpack.c.bf16 %v465, %v464
        %v481 = vpack.c.bf16 %v467, %v466
        %v482 = vpack.c.bf16 %v469, %v468
        %v483 = vpack.c.bf16 %v471, %v470
        %v484 = vpack.c.bf16 %v473, %v472
        %v485 = vpack.c.bf16 %v475, %v474
        %v486 = vpack.c.bf16 %v477, %v476
        %v487 = vpack.c.bf16 %v479, %v478
        %v488 = vld [vmem:[#allocation2] sm:$0xff]
        %v489 = vld [vmem:[#allocation2 + $0x8] sm:$0xff]
        %v490 = vld [vmem:[#allocation2 + $0x10] sm:$0xff]
        %v491 = vld [vmem:[#allocation2 + $0x18] sm:$0xff]
        %v492 = vld [vmem:[#allocation2 + $0x20] sm:$0xff]
        %v493 = vld [vmem:[#allocation2 + $0x28] sm:$0xff]
        %v494 = vld [vmem:[#allocation2 + $0x30] sm:$0xff]
        %v495 = vld [vmem:[#allocation2 + $0x38] sm:$0xff]
        %v496 = vld [vmem:[#allocation2 + $0x40] sm:$0xff]
        %v497 = vld [vmem:[#allocation2 + $0x48] sm:$0xff]
        %v498 = vld [vmem:[#allocation2 + $0x50] sm:$0xff]
        %v499 = vld [vmem:[#allocation2 + $0x58] sm:$0xff]
        %v500 = vld [vmem:[#allocation2 + $0x60] sm:$0xff]
        %v501 = vld [vmem:[#allocation2 + $0x68] sm:$0xff]
        %v502 = vld [vmem:[#allocation2 + $0x70] sm:$0xff]
        %v503 = vld [vmem:[#allocation2 + $0x78] sm:$0xff]
        %v504 = vld [vmem:[%s393] sm:$0xf]
        %v505 = vld [vmem:[%s393 + $0x4] sm:$0xf]
        %v506 = vld [vmem:[%s393 + $0x8] sm:$0xf]
        %v507 = vld [vmem:[%s393 + $0xc] sm:$0xf]
        %v508 = vld [vmem:[%s393 + $0x10] sm:$0xf]
        %v509 = vld [vmem:[%s393 + $0x14] sm:$0xf]
        %v510 = vld [vmem:[%s393 + $0x18] sm:$0xf]
        %v511 = vld [vmem:[%s393 + $0x1c] sm:$0xf]
        %v512 = vld [vmem:[%s393 + $0x20] sm:$0xf]
        %v513 = vld [vmem:[%s393 + $0x24] sm:$0xf]
        %v514 = vld [vmem:[%s393 + $0x28] sm:$0xf]
        %v515 = vld [vmem:[%s393 + $0x2c] sm:$0xf]
        %v516 = vld [vmem:[%s393 + $0x30] sm:$0xf]
        %v517 = vld [vmem:[%s393 + $0x34] sm:$0xf]
        %v518 = vld [vmem:[%s393 + $0x38] sm:$0xf]
        %v519 = vld [vmem:[%s393 + $0x3c] sm:$0xf]
        %v536 = vunpack.c.l.b16 %v504
        %v537 = vunpack.c.l.b16 %v505
        %v538 = vunpack.c.l.b16 %v506
        %v539 = vunpack.c.l.b16 %v507
        %v540 = vunpack.c.l.b16 %v508
        %v541 = vunpack.c.l.b16 %v509
        %v542 = vunpack.c.l.b16 %v510
        %v543 = vunpack.c.l.b16 %v511
        %v544 = vunpack.c.l.b16 %v512
        %v545 = vunpack.c.l.b16 %v513
        %v546 = vunpack.c.l.b16 %v514
        %v547 = vunpack.c.l.b16 %v515
        %v548 = vunpack.c.l.b16 %v516
        %v549 = vunpack.c.l.b16 %v517
        %v550 = vunpack.c.l.b16 %v518
        %v551 = vunpack.c.l.b16 %v519
        %v552 = vpack.c.b16 %v537, %v536
        %v553 = vpack.c.b16 %v539, %v538
        %v554 = vpack.c.b16 %v541, %v540
        %v555 = vpack.c.b16 %v543, %v542
        %v556 = vpack.c.b16 %v545, %v544
        %v557 = vpack.c.b16 %v547, %v546
        %v558 = vpack.c.b16 %v549, %v548
        %v559 = vpack.c.b16 %v551, %v550
        %568 = vmatpush.bf16.msra.mxu0 %v487
        %569 = vmatpush.bf16.msra.mxu0 %v486
        %570 = vmatpush.bf16.msra.mxu0 %v485
        %571 = vmatpush.bf16.msra.mxu0 %v484
        %572 = vmatpush.bf16.msra.mxu0 %v483
        %573 = vmatpush.bf16.msra.mxu0 %v482
        %574 = vmatpush.bf16.msra.mxu0 %v481
        %575 = vmatpush.bf16.msra.mxu0 %v480
        %576 = vmatmul.bf16.gmra.mxu0 %v552
        %v577 = vpop.f32.mrf.mxu0
        %v578 = vadd.f32 0.0, %v577
        %v579 = vpop.f32.mrf.mxu0
        %v580 = vadd.f32 0.0, %v579
        %581 = vmatmul.bf16.gmra.mxu0 %v553
        %v582 = vpop.f32.mrf.mxu0
        %v583 = vadd.f32 0.0, %v582
        %v584 = vpop.f32.mrf.mxu0
        %v585 = vadd.f32 0.0, %v584
        %586 = vmatmul.bf16.gmra.mxu0 %v554
        %v587 = vpop.f32.mrf.mxu0
        %v588 = vadd.f32 0.0, %v587
        %v589 = vpop.f32.mrf.mxu0
        %v590 = vadd.f32 0.0, %v589
        %591 = vmatmul.bf16.gmra.mxu0 %v555
        %v592 = vpop.f32.mrf.mxu0
        %v593 = vadd.f32 0.0, %v592
        %v594 = vpop.f32.mrf.mxu0
        %v595 = vadd.f32 0.0, %v594
        %596 = vmatmul.bf16.gmra.mxu0 %v556
        %v597 = vpop.f32.mrf.mxu0
        %v598 = vadd.f32 0.0, %v597
        %v599 = vpop.f32.mrf.mxu0
        %v600 = vadd.f32 0.0, %v599
        %601 = vmatmul.bf16.gmra.mxu0 %v557
        %v602 = vpop.f32.mrf.mxu0
        %v603 = vadd.f32 0.0, %v602
        %v604 = vpop.f32.mrf.mxu0
        %v605 = vadd.f32 0.0, %v604
        %606 = vmatmul.bf16.gmra.mxu0 %v558
        %v607 = vpop.f32.mrf.mxu0
        %v608 = vadd.f32 0.0, %v607
        %v609 = vpop.f32.mrf.mxu0
        %v610 = vadd.f32 0.0, %v609
        %611 = vmatmul.bf16.gmra.mxu0 %v559
        %v612 = vpop.f32.mrf.mxu0
        %v613 = vadd.f32 0.0, %v612
        %v614 = vpop.f32.mrf.mxu0
        %v615 = vadd.f32 0.0, %v614
        %616 = vdwg.mxu0
        %v617 = vadd.f32 %v488, %v578
        %v618 = vadd.f32 %v489, %v580
        %v619 = vadd.f32 %v490, %v583
        %v620 = vadd.f32 %v491, %v585
        %v621 = vadd.f32 %v492, %v588
        %v622 = vadd.f32 %v493, %v590
        %v623 = vadd.f32 %v494, %v593
        %v624 = vadd.f32 %v495, %v595
        %v625 = vadd.f32 %v496, %v598
        %v626 = vadd.f32 %v497, %v600
        %v627 = vadd.f32 %v498, %v603
        %v628 = vadd.f32 %v499, %v605
        %v629 = vadd.f32 %v500, %v608
        %v630 = vadd.f32 %v501, %v610
        %v631 = vadd.f32 %v502, %v613
        %v632 = vadd.f32 %v503, %v615
        %vm633 = vcmask 523264
        %634 = vst.msk [vmem:[#allocation2] sm:$0xff] %vm633, %v617
        %635 = vst.msk [vmem:[#allocation2 + $0x8] sm:$0xff] %vm633, %v618
        %636 = vst.msk [vmem:[#allocation2 + $0x10] sm:$0xff] %vm633, %v619
        %637 = vst.msk [vmem:[#allocation2 + $0x18] sm:$0xff] %vm633, %v620
        %638 = vst.msk [vmem:[#allocation2 + $0x20] sm:$0xff] %vm633, %v621
        %639 = vst.msk [vmem:[#allocation2 + $0x28] sm:$0xff] %vm633, %v622
        %640 = vst.msk [vmem:[#allocation2 + $0x30] sm:$0xff] %vm633, %v623
        %641 = vst.msk [vmem:[#allocation2 + $0x38] sm:$0xff] %vm633, %v624
        %642 = vst.msk [vmem:[#allocation2 + $0x40] sm:$0xff] %vm633, %v625
        %643 = vst.msk [vmem:[#allocation2 + $0x48] sm:$0xff] %vm633, %v626
        %644 = vst.msk [vmem:[#allocation2 + $0x50] sm:$0xff] %vm633, %v627
        %645 = vst.msk [vmem:[#allocation2 + $0x58] sm:$0xff] %vm633, %v628
        %646 = vst.msk [vmem:[#allocation2 + $0x60] sm:$0xff] %vm633, %v629
        %647 = vst.msk [vmem:[#allocation2 + $0x68] sm:$0xff] %vm633, %v630
        %648 = vst.msk [vmem:[#allocation2 + $0x70] sm:$0xff] %vm633, %v631
        %649 = vst.msk [vmem:[#allocation2 + $0x78] sm:$0xff] %vm633, %v632
        %v650 = vld [vmem:[#allocation2] sm:$0xff]
        %v651 = vld [vmem:[#allocation2 + $0x8] sm:$0xff]
        %v652 = vld [vmem:[#allocation2 + $0x10] sm:$0xff]
        %v653 = vld [vmem:[#allocation2 + $0x18] sm:$0xff]
        %v654 = vld [vmem:[#allocation2 + $0x20] sm:$0xff]
        %v655 = vld [vmem:[#allocation2 + $0x28] sm:$0xff]
        %v656 = vld [vmem:[#allocation2 + $0x30] sm:$0xff]
        %v657 = vld [vmem:[#allocation2 + $0x38] sm:$0xff]
        %v658 = vld [vmem:[#allocation2 + $0x40] sm:$0xff]
        %v659 = vld [vmem:[#allocation2 + $0x48] sm:$0xff]
        %v660 = vld [vmem:[#allocation2 + $0x50] sm:$0xff]
        %v661 = vld [vmem:[#allocation2 + $0x58] sm:$0xff]
        %v662 = vld [vmem:[#allocation2 + $0x60] sm:$0xff]
        %v663 = vld [vmem:[#allocation2 + $0x68] sm:$0xff]
        %v664 = vld [vmem:[#allocation2 + $0x70] sm:$0xff]
        %v665 = vld [vmem:[#allocation2 + $0x78] sm:$0xff]
        %v666 = vld [vmem:[%s400] sm:$0xf]
        %v667 = vld [vmem:[%s400 + $0x4] sm:$0xf]
        %v668 = vld [vmem:[%s400 + $0x8] sm:$0xf]
        %v669 = vld [vmem:[%s400 + $0xc] sm:$0xf]
        %v670 = vld [vmem:[%s400 + $0x10] sm:$0xf]
        %v671 = vld [vmem:[%s400 + $0x14] sm:$0xf]
        %v672 = vld [vmem:[%s400 + $0x18] sm:$0xf]
        %v673 = vld [vmem:[%s400 + $0x1c] sm:$0xf]
        %v674 = vld [vmem:[%s400 + $0x20] sm:$0xf]
        %v675 = vld [vmem:[%s400 + $0x24] sm:$0xf]
        %v676 = vld [vmem:[%s400 + $0x28] sm:$0xf]
        %v677 = vld [vmem:[%s400 + $0x2c] sm:$0xf]
        %v678 = vld [vmem:[%s400 + $0x30] sm:$0xf]
        %v679 = vld [vmem:[%s400 + $0x34] sm:$0xf]
        %v680 = vld [vmem:[%s400 + $0x38] sm:$0xf]
        %v681 = vld [vmem:[%s400 + $0x3c] sm:$0xf]
        %v698 = vunpack.c.l.b16 %v666
        %v699 = vunpack.c.l.b16 %v667
        %v700 = vunpack.c.l.b16 %v668
        %v701 = vunpack.c.l.b16 %v669
        %v702 = vunpack.c.l.b16 %v670
        %v703 = vunpack.c.l.b16 %v671
        %v704 = vunpack.c.l.b16 %v672
        %v705 = vunpack.c.l.b16 %v673
        %v706 = vunpack.c.l.b16 %v674
        %v707 = vunpack.c.l.b16 %v675
        %v708 = vunpack.c.l.b16 %v676
        %v709 = vunpack.c.l.b16 %v677
        %v710 = vunpack.c.l.b16 %v678
        %v711 = vunpack.c.l.b16 %v679
        %v712 = vunpack.c.l.b16 %v680
        %v713 = vunpack.c.l.b16 %v681
        %v714 = vpack.c.b16 %v699, %v698
        %v715 = vpack.c.b16 %v701, %v700
        %v716 = vpack.c.b16 %v703, %v702
        %v717 = vpack.c.b16 %v705, %v704
        %v718 = vpack.c.b16 %v707, %v706
        %v719 = vpack.c.b16 %v709, %v708
        %v720 = vpack.c.b16 %v711, %v710
        %v721 = vpack.c.b16 %v713, %v712
        %730 = vmatpush.bf16.msra.mxu0 %v487
        %731 = vmatpush.bf16.msra.mxu0 %v486
        %732 = vmatpush.bf16.msra.mxu0 %v485
        %733 = vmatpush.bf16.msra.mxu0 %v484
        %734 = vmatpush.bf16.msra.mxu0 %v483
        %735 = vmatpush.bf16.msra.mxu0 %v482
        %736 = vmatpush.bf16.msra.mxu0 %v481
        %737 = vmatpush.bf16.msra.mxu0 %v480
        %738 = vmatmul.bf16.gmra.mxu0 %v714
        %v739 = vpop.f32.mrf.mxu0
        %v740 = vadd.f32 0.0, %v739
        %v741 = vpop.f32.mrf.mxu0
        %v742 = vadd.f32 0.0, %v741
        %743 = vmatmul.bf16.gmra.mxu0 %v715
        %v744 = vpop.f32.mrf.mxu0
        %v745 = vadd.f32 0.0, %v744
        %v746 = vpop.f32.mrf.mxu0
        %v747 = vadd.f32 0.0, %v746
        %748 = vmatmul.bf16.gmra.mxu0 %v716
        %v749 = vpop.f32.mrf.mxu0
        %v750 = vadd.f32 0.0, %v749
        %v751 = vpop.f32.mrf.mxu0
        %v752 = vadd.f32 0.0, %v751
        %753 = vmatmul.bf16.gmra.mxu0 %v717
        %v754 = vpop.f32.mrf.mxu0
        %v755 = vadd.f32 0.0, %v754
        %v756 = vpop.f32.mrf.mxu0
        %v757 = vadd.f32 0.0, %v756
        %758 = vmatmul.bf16.gmra.mxu0 %v718
        %v759 = vpop.f32.mrf.mxu0
        %v760 = vadd.f32 0.0, %v759
        %v761 = vpop.f32.mrf.mxu0
        %v762 = vadd.f32 0.0, %v761
        %763 = vmatmul.bf16.gmra.mxu0 %v719
        %v764 = vpop.f32.mrf.mxu0
        %v765 = vadd.f32 0.0, %v764
        %v766 = vpop.f32.mrf.mxu0
        %v767 = vadd.f32 0.0, %v766
        %768 = vmatmul.bf16.gmra.mxu0 %v720
        %v769 = vpop.f32.mrf.mxu0
        %v770 = vadd.f32 0.0, %v769
        %v771 = vpop.f32.mrf.mxu0
        %v772 = vadd.f32 0.0, %v771
        %773 = vmatmul.bf16.gmra.mxu0 %v721
        %v774 = vpop.f32.mrf.mxu0
        %v775 = vadd.f32 0.0, %v774
        %v776 = vpop.f32.mrf.mxu0
        %v777 = vadd.f32 0.0, %v776
        %778 = vdwg.mxu0
        %795 = vrot.lane.b32.xlu0 %v740, 64
        %v796 = vpop.permute.xlu0 %795
        %797 = vrot.lane.b32.xlu0 %v742, 64
        %v798 = vpop.permute.xlu0 %797
        %799 = vrot.lane.b32.xlu0 %v745, 64
        %v800 = vpop.permute.xlu0 %799
        %801 = vrot.lane.b32.xlu0 %v747, 64
        %v802 = vpop.permute.xlu0 %801
        %803 = vrot.lane.b32.xlu0 %v750, 64
        %v804 = vpop.permute.xlu0 %803
        %805 = vrot.lane.b32.xlu0 %v752, 64
        %v806 = vpop.permute.xlu0 %805
        %807 = vrot.lane.b32.xlu0 %v755, 64
        %v808 = vpop.permute.xlu0 %807
        %809 = vrot.lane.b32.xlu0 %v757, 64
        %v810 = vpop.permute.xlu0 %809
        %811 = vrot.lane.b32.xlu0 %v760, 64
        %v812 = vpop.permute.xlu0 %811
        %813 = vrot.lane.b32.xlu0 %v762, 64
        %v814 = vpop.permute.xlu0 %813
        %815 = vrot.lane.b32.xlu0 %v765, 64
        %v816 = vpop.permute.xlu0 %815
        %817 = vrot.lane.b32.xlu0 %v767, 64
        %v818 = vpop.permute.xlu0 %817
        %819 = vrot.lane.b32.xlu0 %v770, 64
        %v820 = vpop.permute.xlu0 %819
        %821 = vrot.lane.b32.xlu0 %v772, 64
        %v822 = vpop.permute.xlu0 %821
        %823 = vrot.lane.b32.xlu0 %v775, 64
        %v824 = vpop.permute.xlu0 %823
        %825 = vrot.lane.b32.xlu0 %v777, 64
        %v826 = vpop.permute.xlu0 %825
        %v843 = vadd.f32 %v650, %v796
        %v844 = vadd.f32 %v651, %v798
        %v845 = vadd.f32 %v652, %v800
        %v846 = vadd.f32 %v653, %v802
        %v847 = vadd.f32 %v654, %v804
        %v848 = vadd.f32 %v655, %v806
        %v849 = vadd.f32 %v656, %v808
        %v850 = vadd.f32 %v657, %v810
        %v851 = vadd.f32 %v658, %v812
        %v852 = vadd.f32 %v659, %v814
        %v853 = vadd.f32 %v660, %v816
        %v854 = vadd.f32 %v661, %v818
        %v855 = vadd.f32 %v662, %v820
        %v856 = vadd.f32 %v663, %v822
        %v857 = vadd.f32 %v664, %v824
        %v858 = vadd.f32 %v665, %v826
        %vm859 = vcmask 1048064
        %860 = vst.msk [vmem:[#allocation2] sm:$0xff] %vm859, %v843
        %861 = vst.msk [vmem:[#allocation2 + $0x8] sm:$0xff] %vm859, %v844
        %862 = vst.msk [vmem:[#allocation2 + $0x10] sm:$0xff] %vm859, %v845
        %863 = vst.msk [vmem:[#allocation2 + $0x18] sm:$0xff] %vm859, %v846
        %864 = vst.msk [vmem:[#allocation2 + $0x20] sm:$0xff] %vm859, %v847
        %865 = vst.msk [vmem:[#allocation2 + $0x28] sm:$0xff] %vm859, %v848
        %866 = vst.msk [vmem:[#allocation2 + $0x30] sm:$0xff] %vm859, %v849
        %867 = vst.msk [vmem:[#allocation2 + $0x38] sm:$0xff] %vm859, %v850
        %868 = vst.msk [vmem:[#allocation2 + $0x40] sm:$0xff] %vm859, %v851
        %869 = vst.msk [vmem:[#allocation2 + $0x48] sm:$0xff] %vm859, %v852
        %870 = vst.msk [vmem:[#allocation2 + $0x50] sm:$0xff] %vm859, %v853
        %871 = vst.msk [vmem:[#allocation2 + $0x58] sm:$0xff] %vm859, %v854
        %872 = vst.msk [vmem:[#allocation2 + $0x60] sm:$0xff] %vm859, %v855
        %873 = vst.msk [vmem:[#allocation2 + $0x68] sm:$0xff] %vm859, %v856
        %874 = vst.msk [vmem:[#allocation2 + $0x70] sm:$0xff] %vm859, %v857
        %875 = vst.msk [vmem:[#allocation2 + $0x78] sm:$0xff] %vm859, %v858
        %p876 = scmp.eq.s32.totalorder %s19, 3
        // Predicated region
        $region119: #{sslgcn_forward.3} parent=105 // pred_check
          %p877 = pneg %p876
        $region120: #{sslgcn_forward.3} parent=105 // pred_check_branch
          %879 = sbr.rel (%p877) target = $region122
        $region121: #{sslgcn_forward.3} parent=105 // pred_region
          %v880 = vld [vmem:[#allocation2] sm:$0xff]
          %v881 = vld [vmem:[#allocation2 + $0x8] sm:$0xff]
          %v882 = vld [vmem:[#allocation2 + $0x10] sm:$0xff]
          %v883 = vld [vmem:[#allocation2 + $0x18] sm:$0xff]
          %v884 = vld [vmem:[#allocation2 + $0x20] sm:$0xff]
          %v885 = vld [vmem:[#allocation2 + $0x28] sm:$0xff]
          %v886 = vld [vmem:[#allocation2 + $0x30] sm:$0xff]
          %v887 = vld [vmem:[#allocation2 + $0x38] sm:$0xff]
          %v888 = vld [vmem:[#allocation2 + $0x40] sm:$0xff]
          %v889 = vld [vmem:[#allocation2 + $0x48] sm:$0xff]
          %v890 = vld [vmem:[#allocation2 + $0x50] sm:$0xff]
          %v891 = vld [vmem:[#allocation2 + $0x58] sm:$0xff]
          %v892 = vld [vmem:[#allocation2 + $0x60] sm:$0xff]
          %v893 = vld [vmem:[#allocation2 + $0x68] sm:$0xff]
          %v894 = vld [vmem:[#allocation2 + $0x70] sm:$0xff]
          %v895 = vld [vmem:[#allocation2 + $0x78] sm:$0xff]
          %896 = vst [vmem:[%s442] sm:$0xff] %v880
          %897 = vst [vmem:[%s442 + $0x8] sm:$0xff] %v881
          %898 = vst [vmem:[%s442 + $0x10] sm:$0xff] %v882
          %899 = vst [vmem:[%s442 + $0x18] sm:$0xff] %v883
          %900 = vst [vmem:[%s442 + $0x20] sm:$0xff] %v884
          %901 = vst [vmem:[%s442 + $0x28] sm:$0xff] %v885
          %902 = vst [vmem:[%s442 + $0x30] sm:$0xff] %v886
          %903 = vst [vmem:[%s442 + $0x38] sm:$0xff] %v887
          %904 = vst [vmem:[%s442 + $0x40] sm:$0xff] %v888
          %905 = vst [vmem:[%s442 + $0x48] sm:$0xff] %v889
          %906 = vst [vmem:[%s442 + $0x50] sm:$0xff] %v890
          %907 = vst [vmem:[%s442 + $0x58] sm:$0xff] %v891
          %908 = vst [vmem:[%s442 + $0x60] sm:$0xff] %v892
          %909 = vst [vmem:[%s442 + $0x68] sm:$0xff] %v893
          %910 = vst [vmem:[%s442 + $0x70] sm:$0xff] %v894
          %911 = vst [vmem:[%s442 + $0x78] sm:$0xff] %v895
        $region122: #{sslgcn_forward.3} parent=105 // pred_fallthru
          _
        %s912 = smul.u32 16, %s18
        %p913 = scmp.lt.s32.totalorder %s912, 63
        %s914 = scalar_select %p913, %s912, 63
        %s915 = smul.addr %s914, 8
        %s916 = scalar_lea.vmem %s3, %s915
        // Predicated region
        $region123: #{sslgcn_forward.3} parent=105 // pred_check
          %p917 = pneg %p126
        $region124: #{sslgcn_forward.3} parent=105 // pred_check_branch
          %919 = sbr.rel (%p917) target = $region126
        $region125: #{sslgcn_forward.3} parent=105 // pred_region
          %s920 = smul.u32 16, %s18
        $region126: #{sslgcn_forward.3} parent=105 // pred_fallthru
          _
      $region106: #{sslgcn_forward.3} parent=5 // pred_fallthru
        _
      %p921 = scmp.le.s32.totalorder 2, %s9
      // Predicated region
      $region127: #{sslgcn_forward.3} parent=5 // pred_check
        %p922 = pneg %p921
      $region128: #{sslgcn_forward.3} parent=5 // pred_check_branch
        %924 = sbr.rel (%p922) target = $region130
      $region129: #{sslgcn_forward.3} parent=5 // pred_region
        %s925 = ssub.s32 %s9, 2
        // Predicated region
        $region131: #{sslgcn_forward.3} parent=129 // pred_check
          %p926 = pneg %p132
        $region132: #{sslgcn_forward.3} parent=129 // pred_check_branch
          %928 = sbr.rel (%p926) target = $region134
        $region133: #{sslgcn_forward.3} parent=129 // pred_region
          %s929 = smul.u32 16, %s20
          %p930 = scmp.lt.s32.totalorder %s929, 63
          %s931 = scalar_select %p930, %s929, 63
          %s932 = smul.addr %s931, 8
          %s933 = scalar_lea.vmem %s3, %s932
        $region134: #{sslgcn_forward.3} parent=129 // pred_fallthru
          _
      $region130: #{sslgcn_forward.3} parent=5 // pred_fallthru
        _
    $region6: #{sslgcn_forward.3} parent=1 // loop_footer
      %s13 = sadd.s32 1, %s9
    $region7: #{sslgcn_forward.3} parent=1 // loop_footer_branch
      %8 = sbr.rel target = $region3
    $region8: #{sslgcn_forward.3} parent=1 // loop_exit
      _

// kernel: sslgcn_forward.5
$region0: #{sslgcn_forward.5}
  #allocation0 [shape = 'u32[]', space=smem, size = 0x4, offset = 0x4, fixed_abs, tag = 'smem constant byte address 0x4 - core index']
  #allocation1 [shape = 'u32[72,128]{1,0:T(1,128)}', space=vmem, size = 0x9000, scoped, tag = 'internal scratch']
  #allocation2 [shape = 'f32[128,64]{1,0:T(8,128)}', space=vmem, size = 0x10000, scoped, tag = 'scratch operand']
  %s0 = inlined_call_operand.vmem [shape: bf16[512,512], index: 0, kind: input, shape index: {}]
  %s1 = inlined_call_operand.vmem [shape: bf16[64,512], index: 1, kind: input, shape index: {}]
  %s2 = inlined_call_operand.vmem [shape: f32[128,512], index: 2, kind: input, shape index: {}]
  %s3 = inlined_call_operand.vmem [shape: f32[512,128], index: 3, kind: input, shape index: {}]
  %s4 = inlined_call_operand.vmem [shape: f32[512,256], index: 4, kind: output, shape index: {}]
  %s5 = sld [smem:[#allocation0]]
  $region177: #{sslgcn_forward.5} parent=0
    _
  %s7 = ssub.s32 1, %s5
  %s8 = scalar_select 0, %s7, %s5
  $region1: #{sslgcn_forward.5} parent=0
    #allocation3 [shape = 'u8[65536]{0}', space=vmem, size = 0x10000, scoped, tag = 'input window, operand 0']
    #allocation4 [shape = 'u8[32768]{0}', space=vmem, size = 0x8000, scoped, tag = 'input window, operand 1']
    #allocation5 [shape = 'u8[131072]{0}', space=vmem, size = 0x20000, scoped, tag = 'input window, operand 2']
    loop: start=0, step=1, limit=18
    $region2: #{sslgcn_forward.5} parent=1 // loop_pre_header
      _
    $region3: #{sslgcn_forward.5} parent=1 // loop_header
      %s10 = sphi 0, %s14
      %p11 = scmp.ge.s32.totalorder %s10, 18
      %s17 = sphi 0, %s29
      %s18 = sphi 0, %s25
      %s19 = sphi 0, %s17
      %s20 = sphi 0, %s18
      %s21 = sphi 0, %s19
      %s22 = sphi 0, %s20
      %s34 = sphi 0, %s36
      %s37 = sphi 0, %s34
      %s38 = sphi 0, %s37
      %s54 = sphi 0, %s38
      %s60 = sphi 0, %s62
      %s63 = sphi 0, %s60
      %s64 = sphi 0, %s63
      %s80 = sphi 0, %s64
      %s86 = sphi 0, %s88
      %s89 = sphi 0, %s86
      %s90 = sphi 0, %s89
      %s106 = sphi 0, %s90
      %s112 = sphi 0, %s114
      %s115 = sphi 0, %s112
      %s116 = sphi 0, %s115
      %s132 = sphi 0, %s116
      %s138 = sphi 0, %s140
      %s141 = sphi 0, %s138
      %s142 = sphi 0, %s141
      %s158 = sphi 0, %s142
    $region4: #{sslgcn_forward.5} parent=1 // loop_header_branch
      %13 = sbr.rel (%p11) target = $region8
    $region5: #{sslgcn_forward.5} parent=1 // loop_body
      %s15 = ssub.s32 %s10, 1
      %s16 = ssub.s32 %s10, 2
      %s23 = sadd.s32 1, %s18
      %p24 = scmp.ge.s32.totalorder %s23, 4
      %s25 = scalar_select %p24, 0, %s23
      %s26 = sadd.s32 1, %s17
      %s27 = scalar_select %p24, %s26, %s17
      %p28 = scmp.ge.s32.totalorder %s27, 4
      %s29 = scalar_select %p28, 0, %s27
      %s30 = ssub.s32 %s17, %s29
      %s31 = ssub.s32 %s18, %s25
      %s32 = sor.u32 %s30, %s31
      %p33 = scmp.eq.s32.totalorder %s32, 0
      %s35 = sadd.s32 %s34, 1
      %s36 = scalar_select %p33, %s34, %s35
      %p39 = pneg %p33
      %p40 = scmp.eq.s32.totalorder %s10, 15
      %p41 = por %p39, %p40
      %p42 = scmp.ne.s32.totalorder %s34, %s37
      %p43 = scmp.eq.s32.totalorder %s10, 0
      %p44 = por %p42, %p43
      %p45 = scmp.ne.s32.totalorder %s34, %s37
      %p46 = scmp.eq.s32.totalorder %s15, 15
      %p47 = por %p45, %p46
      %p48 = scmp.ne.s32.totalorder %s37, %s38
      %p49 = scmp.eq.s32.totalorder %s15, 0
      %p50 = por %p48, %p49
      %p51 = scmp.ne.s32.totalorder %s37, %s38
      %p52 = scmp.eq.s32.totalorder %s16, 15
      %p53 = por %p51, %p52
      %p55 = scmp.ne.s32.totalorder %s38, %s54
      %p56 = scmp.eq.s32.totalorder %s16, 0
      %p57 = por %p55, %p56
      %s58 = ssub.s32 %s18, %s25
      %p59 = scmp.eq.s32.totalorder %s58, 0
      %s61 = sadd.s32 %s60, 1
      %s62 = scalar_select %p59, %s60, %s61
      %p65 = pneg %p59
      %p66 = scmp.eq.s32.totalorder %s10, 15
      %p67 = por %p65, %p66
      %p68 = scmp.ne.s32.totalorder %s60, %s63
      %p69 = scmp.eq.s32.totalorder %s10, 0
      %p70 = por %p68, %p69
      %p71 = scmp.ne.s32.totalorder %s60, %s63
      %p72 = scmp.eq.s32.totalorder %s15, 15
      %p73 = por %p71, %p72
      %p74 = scmp.ne.s32.totalorder %s63, %s64
      %p75 = scmp.eq.s32.totalorder %s15, 0
      %p76 = por %p74, %p75
      %p77 = scmp.ne.s32.totalorder %s63, %s64
      %p78 = scmp.eq.s32.totalorder %s16, 15
      %p79 = por %p77, %p78
      %p81 = scmp.ne.s32.totalorder %s64, %s80
      %p82 = scmp.eq.s32.totalorder %s16, 0
      %p83 = por %p81, %p82
      %s84 = ssub.s32 %s17, %s29
      %p85 = scmp.eq.s32.totalorder %s84, 0
      %s87 = sadd.s32 %s86, 1
      %s88 = scalar_select %p85, %s86, %s87
      %p91 = pneg %p85
      %p92 = scmp.eq.s32.totalorder %s10, 15
      %p93 = por %p91, %p92
      %p94 = scmp.ne.s32.totalorder %s86, %s89
      %p95 = scmp.eq.s32.totalorder %s10, 0
      %p96 = por %p94, %p95
      %p97 = scmp.ne.s32.totalorder %s86, %s89
      %p98 = scmp.eq.s32.totalorder %s15, 15
      %p99 = por %p97, %p98
      %p100 = scmp.ne.s32.totalorder %s89, %s90
      %p101 = scmp.eq.s32.totalorder %s15, 0
      %p102 = por %p100, %p101
      %p103 = scmp.ne.s32.totalorder %s89, %s90
      %p104 = scmp.eq.s32.totalorder %s16, 15
      %p105 = por %p103, %p104
      %p107 = scmp.ne.s32.totalorder %s90, %s106
      %p108 = scmp.eq.s32.totalorder %s16, 0
      %p109 = por %p107, %p108
      %s110 = ssub.s32 %s17, %s29
      %p111 = scmp.eq.s32.totalorder %s110, 0
      %s113 = sadd.s32 %s112, 1
      %s114 = scalar_select %p111, %s112, %s113
      %p117 = pneg %p111
      %p118 = scmp.eq.s32.totalorder %s10, 15
      %p119 = por %p117, %p118
      %p120 = scmp.ne.s32.totalorder %s112, %s115
      %p121 = scmp.eq.s32.totalorder %s10, 0
      %p122 = por %p120, %p121
      %p123 = scmp.ne.s32.totalorder %s112, %s115
      %p124 = scmp.eq.s32.totalorder %s15, 15
      %p125 = por %p123, %p124
      %p126 = scmp.ne.s32.totalorder %s115, %s116
      %p127 = scmp.eq.s32.totalorder %s15, 0
      %p128 = por %p126, %p127
      %p129 = scmp.ne.s32.totalorder %s115, %s116
      %p130 = scmp.eq.s32.totalorder %s16, 15
      %p131 = por %p129, %p130
      %p133 = scmp.ne.s32.totalorder %s116, %s132
      %p134 = scmp.eq.s32.totalorder %s16, 0
      %p135 = por %p133, %p134
      %s136 = ssub.s32 %s17, %s29
      %p137 = scmp.eq.s32.totalorder %s136, 0
      %s139 = sadd.s32 %s138, 1
      %s140 = scalar_select %p137, %s138, %s139
      %p143 = pneg %p137
      %p144 = scmp.eq.s32.totalorder %s10, 15
      %p145 = por %p143, %p144
      %p146 = scmp.ne.s32.totalorder %s138, %s141
      %p147 = scmp.eq.s32.totalorder %s10, 0
      %p148 = por %p146, %p147
      %p149 = scmp.ne.s32.totalorder %s138, %s141
      %p150 = scmp.eq.s32.totalorder %s15, 15
      %p151 = por %p149, %p150
      %p152 = scmp.ne.s32.totalorder %s141, %s142
      %p153 = scmp.eq.s32.totalorder %s15, 0
      %p154 = por %p152, %p153
      %p155 = scmp.ne.s32.totalorder %s141, %s142
      %p156 = scmp.eq.s32.totalorder %s16, 15
      %p157 = por %p155, %p156
      %p159 = scmp.ne.s32.totalorder %s142, %s158
      %p160 = scmp.eq.s32.totalorder %s16, 0
      %p161 = por %p159, %p160
      %p162 = scmp.le.s32.totalorder 1, %s10
      %p163 = scmp.lt.s32.totalorder %s10, 17
      %p164 = pnand %p162, %p163
      %p165 = pneg %p164
      // Predicated region
      $region9: #{sslgcn_forward.5} parent=5 // pred_check
        _
      $region10: #{sslgcn_forward.5} parent=5 // pred_check_branch
        %167 = sbr.rel (%p164) target = $region12
      $region11: #{sslgcn_forward.5} parent=5 // pred_region
        %s168 = ssub.s32 %s10, 1
      $region12: #{sslgcn_forward.5} parent=5 // pred_fallthru
        _
      %p169 = scmp.lt.s32.totalorder %s10, 16
      // Predicated region
      $region13: #{sslgcn_forward.5} parent=5 // pred_check
        %p170 = pneg %p169
      $region14: #{sslgcn_forward.5} parent=5 // pred_check_branch
        %172 = sbr.rel (%p170) target = $region16
      $region15: #{sslgcn_forward.5} parent=5 // pred_region
        // Predicated region
        $region17: #{sslgcn_forward.5} parent=15 // pred_check
          %p173 = pneg %p44
        $region18: #{sslgcn_forward.5} parent=15 // pred_check_branch
          %175 = sbr.rel (%p173) target = $region20
        $region19: #{sslgcn_forward.5} parent=15 // pred_region
          %s176 = sand.u32 %s34, 1
          %s177 = sand.u32 %s34, 1
          %s178 = smul.addr %s177, 64
          %s179 = scalar_lea.vmem [#allocation3], %s178
          %s180 = smul.u32 16, %s17
          %s181 = smul.addr %s180, 4
          %s182 = sadd.s32 %s18, %s181
          %s183 = smul.addr %s182, 4
          %s184 = scalar_lea.vmem %s0, %s183
          // Predicated region
          $region21: #{sslgcn_forward.5} parent=19 // pred_check
            _
          $region22: #{sslgcn_forward.5} parent=19 // pred_check_branch
            %186 = sbr.rel (0) target = $region24
          $region23: #{sslgcn_forward.5} parent=19 // pred_region
            // Predicated region
            $region25: #{sslgcn_forward.5} parent=23 // pred_check
              _
            $region26: #{sslgcn_forward.5} parent=23 // pred_check_branch
              %188 = sbr.rel target = $region28
            $region27: #{sslgcn_forward.5} parent=23 // pred_region
              // Predicated region
              $region40: #{sslgcn_forward.5} parent=27 // pred_check
                _
              $region41: #{sslgcn_forward.5} parent=27 // pred_check_branch
                %234 = sbr.rel (0) target = $region43
              $region42: #{sslgcn_forward.5} parent=27 // pred_region
                loop: start=0, step=1, limit=1
                $region44: #{sslgcn_forward.5} parent=42 // loop_pre_header
                  _
                $region45: #{sslgcn_forward.5} parent=42 // loop_header
                  %s236 = sphi 0, %s240
                  %p237 = scmp.ge.s32.totalorder %s236, 1
                  %s241 = sphi %s184, %s184
                  %s242 = sphi %s179, %s179
                $region46: #{sslgcn_forward.5} parent=42 // loop_header_branch
                  %239 = sbr.rel (%p237) target = $region50
                $region47: #{sslgcn_forward.5} parent=42 // loop_body
                  _
                $region48: #{sslgcn_forward.5} parent=42 // loop_footer
                  %s240 = sadd.s32 1, %s236
                $region49: #{sslgcn_forward.5} parent=42 // loop_footer_branch
                  %235 = sbr.rel target = $region45
                $region50: #{sslgcn_forward.5} parent=42 // loop_exit
                  _
                %s244 = ssub.s32 16, 1
                loop: start=0, step=1, limit=1
                $region51: #{sslgcn_forward.5} parent=42 // loop_pre_header
                  _
                $region52: #{sslgcn_forward.5} parent=42 // loop_header
                  %s246 = sphi 0, %s250
                  %p247 = scmp.ge.s32.totalorder %s246, 1
                  %s251 = sphi %s184, %s184
                  %s252 = sphi %s179, %s179
                $region53: #{sslgcn_forward.5} parent=42 // loop_header_branch
                  %249 = sbr.rel (%p247) target = $region57
                $region54: #{sslgcn_forward.5} parent=42 // loop_body
                  %v253 = vld [vmem:[%s251] sm:%s244]
                  %254 = vst [vmem:[%s252] sm:%s244] %v253
                  %v255 = vld [vmem:[%s251 + $0x10] sm:%s244]
                  %256 = vst [vmem:[%s252 + $0x4] sm:%s244] %v255
                  %v257 = vld [vmem:[%s251 + $0x20] sm:%s244]
                  %258 = vst [vmem:[%s252 + $0x8] sm:%s244] %v257
                  %v259 = vld [vmem:[%s251 + $0x30] sm:%s244]
                  %260 = vst [vmem:[%s252 + $0xc] sm:%s244] %v259
                  %v261 = vld [vmem:[%s251 + $0x40] sm:%s244]
                  %262 = vst [vmem:[%s252 + $0x10] sm:%s244] %v261
                  %v263 = vld [vmem:[%s251 + $0x50] sm:%s244]
                  %264 = vst [vmem:[%s252 + $0x14] sm:%s244] %v263
                  %v265 = vld [vmem:[%s251 + $0x60] sm:%s244]
                  %266 = vst [vmem:[%s252 + $0x18] sm:%s244] %v265
                  %v267 = vld [vmem:[%s251 + $0x70] sm:%s244]
                  %268 = vst [vmem:[%s252 + $0x1c] sm:%s244] %v267
                  %v269 = vld [vmem:[%s251 + $0x80] sm:%s244]
                  %270 = vst [vmem:[%s252 + $0x20] sm:%s244] %v269
                  %v271 = vld [vmem:[%s251 + $0x90] sm:%s244]
                  %272 = vst [vmem:[%s252 + $0x24] sm:%s244] %v271
                  %v273 = vld [vmem:[%s251 + $0xa0] sm:%s244]
                  %274 = vst [vmem:[%s252 + $0x28] sm:%s244] %v273
                  %v275 = vld [vmem:[%s251 + $0xb0] sm:%s244]
                  %276 = vst [vmem:[%s252 + $0x2c] sm:%s244] %v275
                  %v277 = vld [vmem:[%s251 + $0xc0] sm:%s244]
                  %278 = vst [vmem:[%s252 + $0x30] sm:%s244] %v277
                  %v279 = vld [vmem:[%s251 + $0xd0] sm:%s244]
                  %280 = vst [vmem:[%s252 + $0x34] sm:%s244] %v279
                  %v281 = vld [vmem:[%s251 + $0xe0] sm:%s244]
                  %282 = vst [vmem:[%s252 + $0x38] sm:%s244] %v281
                  %v283 = vld [vmem:[%s251 + $0xf0] sm:%s244]
                  %284 = vst [vmem:[%s252 + $0x3c] sm:%s244] %v283
                $region55: #{sslgcn_forward.5} parent=42 // loop_footer
                  %s250 = sadd.s32 1, %s246
                $region56: #{sslgcn_forward.5} parent=42 // loop_footer_branch
                  %245 = sbr.rel target = $region52
                $region57: #{sslgcn_forward.5} parent=42 // loop_exit
                  _
              $region43: #{sslgcn_forward.5} parent=27 // pred_fallthru
                _
            $region28: #{sslgcn_forward.5} parent=23 // pred_fallthru
              _
            // Predicated region
            $region29: #{sslgcn_forward.5} parent=23 // pred_check
              _
            $region30: #{sslgcn_forward.5} parent=23 // pred_check_branch
              %190 = sbr.rel (0) target = $region32
            $region31: #{sslgcn_forward.5} parent=23 // pred_region
              %s192 = ssub.s32 16, 1
              loop: start=0, step=1, limit=1
              $region33: #{sslgcn_forward.5} parent=31 // loop_pre_header
                _
              $region34: #{sslgcn_forward.5} parent=31 // loop_header
                %s194 = sphi 0, %s198
                %p195 = scmp.ge.s32.totalorder %s194, 1
                %s199 = sphi %s184, %s184
                %s200 = sphi %s179, %s179
              $region35: #{sslgcn_forward.5} parent=31 // loop_header_branch
                %197 = sbr.rel (%p195) target = $region39
              $region36: #{sslgcn_forward.5} parent=31 // loop_body
                %v201 = vld [vmem:[%s199] sm:%s192]
                %202 = vst [vmem:[%s200] sm:%s192] %v201
                %v203 = vld [vmem:[%s199 + $0x10] sm:%s192]
                %204 = vst [vmem:[%s200 + $0x4] sm:%s192] %v203
                %v205 = vld [vmem:[%s199 + $0x20] sm:%s192]
                %206 = vst [vmem:[%s200 + $0x8] sm:%s192] %v205
                %v207 = vld [vmem:[%s199 + $0x30] sm:%s192]
                %208 = vst [vmem:[%s200 + $0xc] sm:%s192] %v207
                %v209 = vld [vmem:[%s199 + $0x40] sm:%s192]
                %210 = vst [vmem:[%s200 + $0x10] sm:%s192] %v209
                %v211 = vld [vmem:[%s199 + $0x50] sm:%s192]
                %212 = vst [vmem:[%s200 + $0x14] sm:%s192] %v211
                %v213 = vld [vmem:[%s199 + $0x60] sm:%s192]
                %214 = vst [vmem:[%s200 + $0x18] sm:%s192] %v213
                %v215 = vld [vmem:[%s199 + $0x70] sm:%s192]
                %216 = vst [vmem:[%s200 + $0x1c] sm:%s192] %v215
                %v217 = vld [vmem:[%s199 + $0x80] sm:%s192]
                %218 = vst [vmem:[%s200 + $0x20] sm:%s192] %v217
                %v219 = vld [vmem:[%s199 + $0x90] sm:%s192]
                %220 = vst [vmem:[%s200 + $0x24] sm:%s192] %v219
                %v221 = vld [vmem:[%s199 + $0xa0] sm:%s192]
                %222 = vst [vmem:[%s200 + $0x28] sm:%s192] %v221
                %v223 = vld [vmem:[%s199 + $0xb0] sm:%s192]
                %224 = vst [vmem:[%s200 + $0x2c] sm:%s192] %v223
                %v225 = vld [vmem:[%s199 + $0xc0] sm:%s192]
                %226 = vst [vmem:[%s200 + $0x30] sm:%s192] %v225
                %v227 = vld [vmem:[%s199 + $0xd0] sm:%s192]
                %228 = vst [vmem:[%s200 + $0x34] sm:%s192] %v227
                %v229 = vld [vmem:[%s199 + $0xe0] sm:%s192]
                %230 = vst [vmem:[%s200 + $0x38] sm:%s192] %v229
                %v231 = vld [vmem:[%s199 + $0xf0] sm:%s192]
                %232 = vst [vmem:[%s200 + $0x3c] sm:%s192] %v231
              $region37: #{sslgcn_forward.5} parent=31 // loop_footer
                %s198 = sadd.s32 1, %s194
              $region38: #{sslgcn_forward.5} parent=31 // loop_footer_branch
                %193 = sbr.rel target = $region34
              $region39: #{sslgcn_forward.5} parent=31 // loop_exit
                _
            $region32: #{sslgcn_forward.5} parent=23 // pred_fallthru
              _
          $region24: #{sslgcn_forward.5} parent=19 // pred_fallthru
            _
          %285 = vnop
        $region20: #{sslgcn_forward.5} parent=15 // pred_fallthru
          _
        // Predicated region
        $region58: #{sslgcn_forward.5} parent=15 // pred_check
          %p286 = pneg %p70
        $region59: #{sslgcn_forward.5} parent=15 // pred_check_branch
          %288 = sbr.rel (%p286) target = $region61
        $region60: #{sslgcn_forward.5} parent=15 // pred_region
          %s289 = sand.u32 %s60, 1
          %s290 = sand.u32 %s60, 1
          %s291 = smul.addr %s290, 32
          %s292 = scalar_lea.vmem [#allocation4], %s291
          %s293 = smul.addr %s18, 4
          %s294 = scalar_lea.vmem %s1, %s293
          // Predicated region
          $region62: #{sslgcn_forward.5} parent=60 // pred_check
            _
          $region63: #{sslgcn_forward.5} parent=60 // pred_check_branch
            %296 = sbr.rel (0) target = $region65
          $region64: #{sslgcn_forward.5} parent=60 // pred_region
            // Predicated region
            $region66: #{sslgcn_forward.5} parent=64 // pred_check
              _
            $region67: #{sslgcn_forward.5} parent=64 // pred_check_branch
              %298 = sbr.rel target = $region69
            $region68: #{sslgcn_forward.5} parent=64 // pred_region
              // Predicated region
              $region81: #{sslgcn_forward.5} parent=68 // pred_check
                _
              $region82: #{sslgcn_forward.5} parent=68 // pred_check_branch
                %328 = sbr.rel (0) target = $region84
              $region83: #{sslgcn_forward.5} parent=68 // pred_region
                loop: start=0, step=1, limit=1
                $region85: #{sslgcn_forward.5} parent=83 // loop_pre_header
                  _
                $region86: #{sslgcn_forward.5} parent=83 // loop_header
                  %s330 = sphi 0, %s334
                  %p331 = scmp.ge.s32.totalorder %s330, 1
                  %s335 = sphi %s294, %s294
                  %s336 = sphi %s292, %s292
                $region87: #{sslgcn_forward.5} parent=83 // loop_header_branch
                  %333 = sbr.rel (%p331) target = $region91
                $region88: #{sslgcn_forward.5} parent=83 // loop_body
                  _
                $region89: #{sslgcn_forward.5} parent=83 // loop_footer
                  %s334 = sadd.s32 1, %s330
                $region90: #{sslgcn_forward.5} parent=83 // loop_footer_branch
                  %329 = sbr.rel target = $region86
                $region91: #{sslgcn_forward.5} parent=83 // loop_exit
                  _
                %s338 = ssub.s32 16, 1
                loop: start=0, step=1, limit=1
                $region92: #{sslgcn_forward.5} parent=83 // loop_pre_header
                  _
                $region93: #{sslgcn_forward.5} parent=83 // loop_header
                  %s340 = sphi 0, %s344
                  %p341 = scmp.ge.s32.totalorder %s340, 1
                  %s345 = sphi %s294, %s294
                  %s346 = sphi %s292, %s292
                $region94: #{sslgcn_forward.5} parent=83 // loop_header_branch
                  %343 = sbr.rel (%p341) target = $region98
                $region95: #{sslgcn_forward.5} parent=83 // loop_body
                  %v347 = vld [vmem:[%s345] sm:%s338]
                  %348 = vst [vmem:[%s346] sm:%s338] %v347
                  %v349 = vld [vmem:[%s345 + $0x10] sm:%s338]
                  %350 = vst [vmem:[%s346 + $0x4] sm:%s338] %v349
                  %v351 = vld [vmem:[%s345 + $0x20] sm:%s338]
                  %352 = vst [vmem:[%s346 + $0x8] sm:%s338] %v351
                  %v353 = vld [vmem:[%s345 + $0x30] sm:%s338]
                  %354 = vst [vmem:[%s346 + $0xc] sm:%s338] %v353
                  %v355 = vld [vmem:[%s345 + $0x40] sm:%s338]
                  %356 = vst [vmem:[%s346 + $0x10] sm:%s338] %v355
                  %v357 = vld [vmem:[%s345 + $0x50] sm:%s338]
                  %358 = vst [vmem:[%s346 + $0x14] sm:%s338] %v357
                  %v359 = vld [vmem:[%s345 + $0x60] sm:%s338]
                  %360 = vst [vmem:[%s346 + $0x18] sm:%s338] %v359
                  %v361 = vld [vmem:[%s345 + $0x70] sm:%s338]
                  %362 = vst [vmem:[%s346 + $0x1c] sm:%s338] %v361
                $region96: #{sslgcn_forward.5} parent=83 // loop_footer
                  %s344 = sadd.s32 1, %s340
                $region97: #{sslgcn_forward.5} parent=83 // loop_footer_branch
                  %339 = sbr.rel target = $region93
                $region98: #{sslgcn_forward.5} parent=83 // loop_exit
                  _
              $region84: #{sslgcn_forward.5} parent=68 // pred_fallthru
                _
            $region69: #{sslgcn_forward.5} parent=64 // pred_fallthru
              _
            // Predicated region
            $region70: #{sslgcn_forward.5} parent=64 // pred_check
              _
            $region71: #{sslgcn_forward.5} parent=64 // pred_check_branch
              %300 = sbr.rel (0) target = $region73
            $region72: #{sslgcn_forward.5} parent=64 // pred_region
              %s302 = ssub.s32 16, 1
              loop: start=0, step=1, limit=1
              $region74: #{sslgcn_forward.5} parent=72 // loop_pre_header
                _
              $region75: #{sslgcn_forward.5} parent=72 // loop_header
                %s304 = sphi 0, %s308
                %p305 = scmp.ge.s32.totalorder %s304, 1
                %s309 = sphi %s294, %s294
                %s310 = sphi %s292, %s292
              $region76: #{sslgcn_forward.5} parent=72 // loop_header_branch
                %307 = sbr.rel (%p305) target = $region80
              $region77: #{sslgcn_forward.5} parent=72 // loop_body
                %v311 = vld [vmem:[%s309] sm:%s302]
                %312 = vst [vmem:[%s310] sm:%s302] %v311
                %v313 = vld [vmem:[%s309 + $0x10] sm:%s302]
                %314 = vst [vmem:[%s310 + $0x4] sm:%s302] %v313
                %v315 = vld [vmem:[%s309 + $0x20] sm:%s302]
                %316 = vst [vmem:[%s310 + $0x8] sm:%s302] %v315
                %v317 = vld [vmem:[%s309 + $0x30] sm:%s302]
                %318 = vst [vmem:[%s310 + $0xc] sm:%s302] %v317
                %v319 = vld [vmem:[%s309 + $0x40] sm:%s302]
                %320 = vst [vmem:[%s310 + $0x10] sm:%s302] %v319
                %v321 = vld [vmem:[%s309 + $0x50] sm:%s302]
                %322 = vst [vmem:[%s310 + $0x14] sm:%s302] %v321
                %v323 = vld [vmem:[%s309 + $0x60] sm:%s302]
                %324 = vst [vmem:[%s310 + $0x18] sm:%s302] %v323
                %v325 = vld [vmem:[%s309 + $0x70] sm:%s302]
                %326 = vst [vmem:[%s310 + $0x1c] sm:%s302] %v325
              $region78: #{sslgcn_forward.5} parent=72 // loop_footer
                %s308 = sadd.s32 1, %s304
              $region79: #{sslgcn_forward.5} parent=72 // loop_footer_branch
                %303 = sbr.rel target = $region75
              $region80: #{sslgcn_forward.5} parent=72 // loop_exit
                _
            $region73: #{sslgcn_forward.5} parent=64 // pred_fallthru
              _
          $region65: #{sslgcn_forward.5} parent=60 // pred_fallthru
            _
          %363 = vnop
        $region61: #{sslgcn_forward.5} parent=15 // pred_fallthru
          _
        // Predicated region
        $region99: #{sslgcn_forward.5} parent=15 // pred_check
          %p364 = pneg %p96
        $region100: #{sslgcn_forward.5} parent=15 // pred_check_branch
          %366 = sbr.rel (%p364) target = $region102
        $region101: #{sslgcn_forward.5} parent=15 // pred_region
          %s367 = sand.u32 %s86, 1
          %s368 = sand.u32 %s86, 1
          %s369 = smul.addr %s368, 128
          %s370 = scalar_lea.vmem [#allocation5], %s369
          %s371 = smul.addr %s17, 8
          %s372 = scalar_lea.vmem %s2, %s371
          // Predicated region
          $region103: #{sslgcn_forward.5} parent=101 // pred_check
            _
          $region104: #{sslgcn_forward.5} parent=101 // pred_check_branch
            %374 = sbr.rel (0) target = $region106
          $region105: #{sslgcn_forward.5} parent=101 // pred_region
            // Predicated region
            $region107: #{sslgcn_forward.5} parent=105 // pred_check
              _
            $region108: #{sslgcn_forward.5} parent=105 // pred_check_branch
              %376 = sbr.rel (0) target = $region110
            $region109: #{sslgcn_forward.5} parent=105 // pred_region
              // Predicated region
              $region122: #{sslgcn_forward.5} parent=109 // pred_check
                _
              $region123: #{sslgcn_forward.5} parent=109 // pred_check_branch
                %422 = sbr.rel (0) target = $region125
              $region124: #{sslgcn_forward.5} parent=109 // pred_region
                loop: start=0, step=1, limit=1
                $region126: #{sslgcn_forward.5} parent=124 // loop_pre_header
                  _
                $region127: #{sslgcn_forward.5} parent=124 // loop_header
                  %s424 = sphi 0, %s428
                  %p425 = scmp.ge.s32.totalorder %s424, 1
                  %s429 = sphi %s372, %s372
                  %s430 = sphi %s370, %s370
                $region128: #{sslgcn_forward.5} parent=124 // loop_header_branch
                  %427 = sbr.rel (%p425) target = $region132
                $region129: #{sslgcn_forward.5} parent=124 // loop_body
                  %v431 = vld [vmem:[%s429] sm:$0xff]
                  %432 = vst [vmem:[%s430] sm:$0xff] %v431
                  %v433 = vld [vmem:[%s429 + $0x20] sm:$0xff]
                  %434 = vst [vmem:[%s430 + $0x8] sm:$0xff] %v433
                  %v435 = vld [vmem:[%s429 + $0x40] sm:$0xff]
                  %436 = vst [vmem:[%s430 + $0x10] sm:$0xff] %v435
                  %v437 = vld [vmem:[%s429 + $0x60] sm:$0xff]
                  %438 = vst [vmem:[%s430 + $0x18] sm:$0xff] %v437
                  %v439 = vld [vmem:[%s429 + $0x80] sm:$0xff]
                  %440 = vst [vmem:[%s430 + $0x20] sm:$0xff] %v439
                  %v441 = vld [vmem:[%s429 + $0xa0] sm:$0xff]
                  %442 = vst [vmem:[%s430 + $0x28] sm:$0xff] %v441
                  %v443 = vld [vmem:[%s429 + $0xc0] sm:$0xff]
                  %444 = vst [vmem:[%s430 + $0x30] sm:$0xff] %v443
                  %v445 = vld [vmem:[%s429 + $0xe0] sm:$0xff]
                  %446 = vst [vmem:[%s430 + $0x38] sm:$0xff] %v445
                  %v447 = vld [vmem:[%s429 + $0x100] sm:$0xff]
                  %448 = vst [vmem:[%s430 + $0x40] sm:$0xff] %v447
                  %v449 = vld [vmem:[%s429 + $0x120] sm:$0xff]
                  %450 = vst [vmem:[%s430 + $0x48] sm:$0xff] %v449
                  %v451 = vld [vmem:[%s429 + $0x140] sm:$0xff]
                  %452 = vst [vmem:[%s430 + $0x50] sm:$0xff] %v451
                  %v453 = vld [vmem:[%s429 + $0x160] sm:$0xff]
                  %454 = vst [vmem:[%s430 + $0x58] sm:$0xff] %v453
                  %v455 = vld [vmem:[%s429 + $0x180] sm:$0xff]
                  %456 = vst [vmem:[%s430 + $0x60] sm:$0xff] %v455
                  %v457 = vld [vmem:[%s429 + $0x1a0] sm:$0xff]
                  %458 = vst [vmem:[%s430 + $0x68] sm:$0xff] %v457
                  %v459 = vld [vmem:[%s429 + $0x1c0] sm:$0xff]
                  %460 = vst [vmem:[%s430 + $0x70] sm:$0xff] %v459
                  %v461 = vld [vmem:[%s429 + $0x1e0] sm:$0xff]
                  %462 = vst [vmem:[%s430 + $0x78] sm:$0xff] %v461
                $region130: #{sslgcn_forward.5} parent=124 // loop_footer
                  %s428 = sadd.s32 1, %s424
                $region131: #{sslgcn_forward.5} parent=124 // loop_footer_branch
                  %423 = sbr.rel target = $region127
                $region132: #{sslgcn_forward.5} parent=124 // loop_exit
                  _
              $region125: #{sslgcn_forward.5} parent=109 // pred_fallthru
                _
              // Predicated region
              $region133: #{sslgcn_forward.5} parent=109 // pred_check
                _
              $region134: #{sslgcn_forward.5} parent=109 // pred_check_branch
                %464 = sbr.rel target = $region136
              $region135: #{sslgcn_forward.5} parent=109 // pred_region
                _
              $region136: #{sslgcn_forward.5} parent=109 // pred_fallthru
                _
            $region110: #{sslgcn_forward.5} parent=105 // pred_fallthru
              _
            // Predicated region
            $region111: #{sslgcn_forward.5} parent=105 // pred_check
              _
            $region112: #{sslgcn_forward.5} parent=105 // pred_check_branch
              %378 = sbr.rel target = $region114
            $region113: #{sslgcn_forward.5} parent=105 // pred_region
              %s380 = ssub.s32 256, 1
              loop: start=0, step=1, limit=1
              $region115: #{sslgcn_forward.5} parent=113 // loop_pre_header
                _
              $region116: #{sslgcn_forward.5} parent=113 // loop_header
                %s382 = sphi 0, %s386
                %p383 = scmp.ge.s32.totalorder %s382, 1
                %s387 = sphi %s372, %s372
                %s388 = sphi %s370, %s370
              $region117: #{sslgcn_forward.5} parent=113 // loop_header_branch
                %385 = sbr.rel (%p383) target = $region121
              $region118: #{sslgcn_forward.5} parent=113 // loop_body
                %v389 = vld [vmem:[%s387] sm:%s380]
                %390 = vst [vmem:[%s388] sm:%s380] %v389
                %v391 = vld [vmem:[%s387 + $0x20] sm:%s380]
                %392 = vst [vmem:[%s388 + $0x8] sm:%s380] %v391
                %v393 = vld [vmem:[%s387 + $0x40] sm:%s380]
                %394 = vst [vmem:[%s388 + $0x10] sm:%s380] %v393
                %v395 = vld [vmem:[%s387 + $0x60] sm:%s380]
                %396 = vst [vmem:[%s388 + $0x18] sm:%s380] %v395
                %v397 = vld [vmem:[%s387 + $0x80] sm:%s380]
                %398 = vst [vmem:[%s388 + $0x20] sm:%s380] %v397
                %v399 = vld [vmem:[%s387 + $0xa0] sm:%s380]
                %400 = vst [vmem:[%s388 + $0x28] sm:%s380] %v399
                %v401 = vld [vmem:[%s387 + $0xc0] sm:%s380]
                %402 = vst [vmem:[%s388 + $0x30] sm:%s380] %v401
                %v403 = vld [vmem:[%s387 + $0xe0] sm:%s380]
                %404 = vst [vmem:[%s388 + $0x38] sm:%s380] %v403
                %v405 = vld [vmem:[%s387 + $0x100] sm:%s380]
                %406 = vst [vmem:[%s388 + $0x40] sm:%s380] %v405
                %v407 = vld [vmem:[%s387 + $0x120] sm:%s380]
                %408 = vst [vmem:[%s388 + $0x48] sm:%s380] %v407
                %v409 = vld [vmem:[%s387 + $0x140] sm:%s380]
                %410 = vst [vmem:[%s388 + $0x50] sm:%s380] %v409
                %v411 = vld [vmem:[%s387 + $0x160] sm:%s380]
                %412 = vst [vmem:[%s388 + $0x58] sm:%s380] %v411
                %v413 = vld [vmem:[%s387 + $0x180] sm:%s380]
                %414 = vst [vmem:[%s388 + $0x60] sm:%s380] %v413
                %v415 = vld [vmem:[%s387 + $0x1a0] sm:%s380]
                %416 = vst [vmem:[%s388 + $0x68] sm:%s380] %v415
                %v417 = vld [vmem:[%s387 + $0x1c0] sm:%s380]
                %418 = vst [vmem:[%s388 + $0x70] sm:%s380] %v417
                %v419 = vld [vmem:[%s387 + $0x1e0] sm:%s380]
                %420 = vst [vmem:[%s388 + $0x78] sm:%s380] %v419
              $region119: #{sslgcn_forward.5} parent=113 // loop_footer
                %s386 = sadd.s32 1, %s382
              $region120: #{sslgcn_forward.5} parent=113 // loop_footer_branch
                %381 = sbr.rel target = $region116
              $region121: #{sslgcn_forward.5} parent=113 // loop_exit
                _
            $region114: #{sslgcn_forward.5} parent=105 // pred_fallthru
              _
          $region106: #{sslgcn_forward.5} parent=101 // pred_fallthru
            _
          %465 = vnop
        $region102: #{sslgcn_forward.5} parent=15 // pred_fallthru
          _
        // Predicated region
        $region137: #{sslgcn_forward.5} parent=15 // pred_check
          %p466 = pneg %p122
        $region138: #{sslgcn_forward.5} parent=15 // pred_check_branch
          %468 = sbr.rel (%p466) target = $region140
        $region139: #{sslgcn_forward.5} parent=15 // pred_region
          %s469 = smul.u32 16, %s17
          %p470 = scmp.lt.s32.totalorder %s469, 63
          %s471 = scalar_select %p470, %s469, 63
          %s472 = smul.addr %s471, 8
          %s473 = scalar_lea.vmem %s3, %s472
          %s474 = smul.u32 16, %s17
        $region140: #{sslgcn_forward.5} parent=15 // pred_fallthru
          _
      $region16: #{sslgcn_forward.5} parent=5 // pred_fallthru
        _
      %p475 = scmp.le.s32.totalorder 1, %s10
      %p476 = scmp.lt.s32.totalorder %s10, 17
      %p477 = pnand %p475, %p476
      %p478 = pneg %p477
      // Predicated region
      $region141: #{sslgcn_forward.5} parent=5 // pred_check
        _
      $region142: #{sslgcn_forward.5} parent=5 // pred_check_branch
        %480 = sbr.rel (%p477) target = $region144
      $region143: #{sslgcn_forward.5} parent=5 // pred_region
        %s481 = ssub.s32 %s10, 1
        %s482 = sand.u32 %s37, 1
        %s483 = sand.u32 %s37, 1
        %s484 = smul.addr %s483, 64
        %s485 = scalar_lea.vmem [#allocation3], %s484
        // Predicated region
        $region145: #{sslgcn_forward.5} parent=143 // pred_check
          %p486 = pneg %p50
        $region146: #{sslgcn_forward.5} parent=143 // pred_check_branch
          %488 = sbr.rel (%p486) target = $region148
        $region147: #{sslgcn_forward.5} parent=143 // pred_region
          _
        $region148: #{sslgcn_forward.5} parent=143 // pred_fallthru
          _
        %s489 = sand.u32 %s63, 1
        %s490 = sand.u32 %s63, 1
        %s491 = smul.addr %s490, 32
        %s492 = scalar_lea.vmem [#allocation4], %s491
        // Predicated region
        $region149: #{sslgcn_forward.5} parent=143 // pred_check
          %p493 = pneg %p76
        $region150: #{sslgcn_forward.5} parent=143 // pred_check_branch
          %495 = sbr.rel (%p493) target = $region152
        $region151: #{sslgcn_forward.5} parent=143 // pred_region
          _
        $region152: #{sslgcn_forward.5} parent=143 // pred_fallthru
          _
        %s496 = sand.u32 %s89, 1
        %s497 = sand.u32 %s89, 1
        %s498 = smul.addr %s497, 128
        %s499 = scalar_lea.vmem [#allocation5], %s498
        // Predicated region
        $region153: #{sslgcn_forward.5} parent=143 // pred_check
          %p500 = pneg %p102
        $region154: #{sslgcn_forward.5} parent=143 // pred_check_branch
          %502 = sbr.rel (%p500) target = $region156
        $region155: #{sslgcn_forward.5} parent=143 // pred_region
          _
        $region156: #{sslgcn_forward.5} parent=143 // pred_fallthru
          _
        %s503 = sand.u32 %s37, 1
        %s504 = sand.u32 %s37, 1
        %s505 = smul.addr %s504, 64
        %s506 = scalar_lea.vmem [#allocation3], %s505
        %p507 = pneg %p50
        %p508 = pneg %p47
        %s509 = sand.u32 %s63, 1
        %s510 = sand.u32 %s63, 1
        %s511 = smul.addr %s510, 32
        %s512 = scalar_lea.vmem [#allocation4], %s511
        %p513 = pneg %p76
        %p514 = pneg %p73
        %s515 = sand.u32 %s89, 1
        %s516 = sand.u32 %s89, 1
        %s517 = smul.addr %s516, 128
        %s518 = scalar_lea.vmem [#allocation5], %s517
        %p519 = pneg %p102
        %p520 = pneg %p99
        %s521 = smul.u32 16, %s19
        %p522 = scmp.lt.s32.totalorder %s521, 63
        %s523 = scalar_select %p522, %s521, 63
        %s524 = smul.addr %s523, 8
        %s525 = scalar_lea.vmem %s3, %s524
        %p526 = pneg %p128
        %p527 = pneg %p125
        %p528 = pneg %p154
        %p529 = pneg %p151
        %s530 = smul.u32 16, %s19
        %p531 = scmp.lt.s32.totalorder %s530, 63
        %s532 = scalar_select %p531, %s530, 63
        %s533 = smul.addr %s532, 2
        %s534 = smul.addr %s533, 8
        %s535 = scalar_lea.vmem %s4, %s534
        %s536 = smul.u32 16, %s19
        %s537 = smul.u32 16, %s19
        %p538 = scmp.lt.s32.totalorder %s537, 63
        %s539 = scalar_select %p538, %s537, 63
        %s540 = smul.addr %s539, 8
        %s541 = scalar_lea.vmem %s3, %s540
        %s542 = smul.u32 16, %s19
        %s543 = smul.u32 16, %s19
        %p544 = scmp.lt.s32.totalorder %s543, 63
        %s545 = scalar_select %p544, %s543, 63
        %s546 = smul.addr %s545, 2
        %s547 = smul.addr %s546, 8
        %s548 = scalar_lea.vmem %s4, %s547
        %s549 = smul.u32 16, %s19
        %p551 = scmp.eq.s32.totalorder %s20, 0
        // Predicated region
        $region157: #{sslgcn_forward.5} parent=143 // pred_check
          %p552 = pneg %p551
        $region158: #{sslgcn_forward.5} parent=143 // pred_check_branch
          %554 = sbr.rel (%p552) target = $region160
        $region159: #{sslgcn_forward.5} parent=143 // pred_region
          %vm555 = vcmask 523264
          %556 = vst.msk [vmem:[#allocation2] sm:$0xff] %vm555, 0.0
          %557 = vst.msk [vmem:[#allocation2 + $0x8] sm:$0xff] %vm555, 0.0
          %558 = vst.msk [vmem:[#allocation2 + $0x10] sm:$0xff] %vm555, 0.0
          %559 = vst.msk [vmem:[#allocation2 + $0x18] sm:$0xff] %vm555, 0.0
          %560 = vst.msk [vmem:[#allocation2 + $0x20] sm:$0xff] %vm555, 0.0
          %561 = vst.msk [vmem:[#allocation2 + $0x28] sm:$0xff] %vm555, 0.0
          %562 = vst.msk [vmem:[#allocation2 + $0x30] sm:$0xff] %vm555, 0.0
          %563 = vst.msk [vmem:[#allocation2 + $0x38] sm:$0xff] %vm555, 0.0
          %564 = vst.msk [vmem:[#allocation2 + $0x40] sm:$0xff] %vm555, 0.0
          %565 = vst.msk [vmem:[#allocation2 + $0x48] sm:$0xff] %vm555, 0.0
          %566 = vst.msk [vmem:[#allocation2 + $0x50] sm:$0xff] %vm555, 0.0
          %567 = vst.msk [vmem:[#allocation2 + $0x58] sm:$0xff] %vm555, 0.0
          %568 = vst.msk [vmem:[#allocation2 + $0x60] sm:$0xff] %vm555, 0.0
          %569 = vst.msk [vmem:[#allocation2 + $0x68] sm:$0xff] %vm555, 0.0
          %570 = vst.msk [vmem:[#allocation2 + $0x70] sm:$0xff] %vm555, 0.0
          %571 = vst.msk [vmem:[#allocation2 + $0x78] sm:$0xff] %vm555, 0.0
        $region160: #{sslgcn_forward.5} parent=143 // pred_fallthru
          _
        %v572 = vld [vmem:[#allocation2] sm:$0xff]
        %v573 = vld [vmem:[#allocation2 + $0x8] sm:$0xff]
        %v574 = vld [vmem:[#allocation2 + $0x10] sm:$0xff]
        %v575 = vld [vmem:[#allocation2 + $0x18] sm:$0xff]
        %v576 = vld [vmem:[#allocation2 + $0x20] sm:$0xff]
        %v577 = vld [vmem:[#allocation2 + $0x28] sm:$0xff]
        %v578 = vld [vmem:[#allocation2 + $0x30] sm:$0xff]
        %v579 = vld [vmem:[#allocation2 + $0x38] sm:$0xff]
        %v580 = vld [vmem:[#allocation2 + $0x40] sm:$0xff]
        %v581 = vld [vmem:[#allocation2 + $0x48] sm:$0xff]
        %v582 = vld [vmem:[#allocation2 + $0x50] sm:$0xff]
        %v583 = vld [vmem:[#allocation2 + $0x58] sm:$0xff]
        %v584 = vld [vmem:[#allocation2 + $0x60] sm:$0xff]
        %v585 = vld [vmem:[#allocation2 + $0x68] sm:$0xff]
        %v586 = vld [vmem:[#allocation2 + $0x70] sm:$0xff]
        %v587 = vld [vmem:[#allocation2 + $0x78] sm:$0xff]
        %v588 = vld [vmem:[%s485] sm:$0xf]
        %v589 = vld [vmem:[%s485 + $0x4] sm:$0xf]
        %v590 = vld [vmem:[%s485 + $0x8] sm:$0xf]
        %v591 = vld [vmem:[%s485 + $0xc] sm:$0xf]
        %v592 = vld [vmem:[%s485 + $0x10] sm:$0xf]
        %v593 = vld [vmem:[%s485 + $0x14] sm:$0xf]
        %v594 = vld [vmem:[%s485 + $0x18] sm:$0xf]
        %v595 = vld [vmem:[%s485 + $0x1c] sm:$0xf]
        %v596 = vld [vmem:[%s485 + $0x20] sm:$0xf]
        %v597 = vld [vmem:[%s485 + $0x24] sm:$0xf]
        %v598 = vld [vmem:[%s485 + $0x28] sm:$0xf]
        %v599 = vld [vmem:[%s485 + $0x2c] sm:$0xf]
        %v600 = vld [vmem:[%s485 + $0x30] sm:$0xf]
        %v601 = vld [vmem:[%s485 + $0x34] sm:$0xf]
        %v602 = vld [vmem:[%s485 + $0x38] sm:$0xf]
        %v603 = vld [vmem:[%s485 + $0x3c] sm:$0xf]
        %v604 = vld [vmem:[%s492] sm:$0xf]
        %v605 = vld [vmem:[%s492 + $0x4] sm:$0xf]
        %v606 = vld [vmem:[%s492 + $0x8] sm:$0xf]
        %v607 = vld [vmem:[%s492 + $0xc] sm:$0xf]
        %v608 = vld [vmem:[%s492 + $0x10] sm:$0xf]
        %v609 = vld [vmem:[%s492 + $0x14] sm:$0xf]
        %v610 = vld [vmem:[%s492 + $0x18] sm:$0xf]
        %v611 = vld [vmem:[%s492 + $0x1c] sm:$0xf]
        %v628 = vunpack.c.l.b16 %v588
        %v629 = vunpack.c.l.b16 %v589
        %v630 = vunpack.c.l.b16 %v590
        %v631 = vunpack.c.l.b16 %v591
        %v632 = vunpack.c.l.b16 %v592
        %v633 = vunpack.c.l.b16 %v593
        %v634 = vunpack.c.l.b16 %v594
        %v635 = vunpack.c.l.b16 %v595
        %v636 = vunpack.c.l.b16 %v596
        %v637 = vunpack.c.l.b16 %v597
        %v638 = vunpack.c.l.b16 %v598
        %v639 = vunpack.c.l.b16 %v599
        %v640 = vunpack.c.l.b16 %v600
        %v641 = vunpack.c.l.b16 %v601
        %v642 = vunpack.c.l.b16 %v602
        %v643 = vunpack.c.l.b16 %v603
        %v644 = vpack.c.b16 %v629, %v628
        %v645 = vpack.c.b16 %v631, %v630
        %v646 = vpack.c.b16 %v633, %v632
        %v647 = vpack.c.b16 %v635, %v634
        %v648 = vpack.c.b16 %v637, %v636
        %v649 = vpack.c.b16 %v639, %v638
        %v650 = vpack.c.b16 %v641, %v640
        %v651 = vpack.c.b16 %v643, %v642
        %v668 = vunpack.c.l.b16 %v604
        %v669 = vunpack.c.l.b16 %v605
        %v670 = vunpack.c.l.b16 %v606
        %v671 = vunpack.c.l.b16 %v607
        %v672 = vunpack.c.l.b16 %v608
        %v673 = vunpack.c.l.b16 %v609
        %v674 = vunpack.c.l.b16 %v610
        %v675 = vunpack.c.l.b16 %v611
        %v676 = vpack.c.b16 %v669, %v668
        %v677 = vpack.c.b16 %v671, %v670
        %v678 = vpack.c.b16 %v673, %v672
        %v679 = vpack.c.b16 %v675, %v674
        %684 = vmatpush.bf16.xpose.msra.mxu0 0
        %685 = vmatpush.bf16.xpose.msra.mxu0 0
        %686 = vmatpush.bf16.xpose.msra.mxu0 0
        %687 = vmatpush.bf16.xpose.msra.mxu0 0
        %688 = vmatpush.bf16.xpose.msra.mxu0 %v679
        %689 = vmatpush.bf16.xpose.msra.mxu0 %v678
        %690 = vmatpush.bf16.xpose.msra.mxu0 %v677
        %691 = vmatpush.bf16.xpose.msra.mxu0 %v676
        %692 = vmatmul.bf16.gmra.mxu0 %v644
        %v693 = vpop.f32.mrf.mxu0
        %v694 = vadd.f32 0.0, %v693
        %v695 = vpop.f32.mrf.mxu0
        %v696 = vadd.f32 0.0, %v695
        %697 = vmatmul.bf16.gmra.mxu0 %v645
        %v698 = vpop.f32.mrf.mxu0
        %v699 = vadd.f32 0.0, %v698
        %v700 = vpop.f32.mrf.mxu0
        %v701 = vadd.f32 0.0, %v700
        %702 = vmatmul.bf16.gmra.mxu0 %v646
        %v703 = vpop.f32.mrf.mxu0
        %v704 = vadd.f32 0.0, %v703
        %v705 = vpop.f32.mrf.mxu0
        %v706 = vadd.f32 0.0, %v705
        %707 = vmatmul.bf16.gmra.mxu0 %v647
        %v708 = vpop.f32.mrf.mxu0
        %v709 = vadd.f32 0.0, %v708
        %v710 = vpop.f32.mrf.mxu0
        %v711 = vadd.f32 0.0, %v710
        %712 = vmatmul.bf16.gmra.mxu0 %v648
        %v713 = vpop.f32.mrf.mxu0
        %v714 = vadd.f32 0.0, %v713
        %v715 = vpop.f32.mrf.mxu0
        %v716 = vadd.f32 0.0, %v715
        %717 = vmatmul.bf16.gmra.mxu0 %v649
        %v718 = vpop.f32.mrf.mxu0
        %v719 = vadd.f32 0.0, %v718
        %v720 = vpop.f32.mrf.mxu0
        %v721 = vadd.f32 0.0, %v720
        %722 = vmatmul.bf16.gmra.mxu0 %v650
        %v723 = vpop.f32.mrf.mxu0
        %v724 = vadd.f32 0.0, %v723
        %v725 = vpop.f32.mrf.mxu0
        %v726 = vadd.f32 0.0, %v725
        %727 = vmatmul.bf16.gmra.mxu0 %v651
        %v728 = vpop.f32.mrf.mxu0
        %v729 = vadd.f32 0.0, %v728
        %v730 = vpop.f32.mrf.mxu0
        %v731 = vadd.f32 0.0, %v730
        %732 = vdwg.mxu0
        %v733 = vadd.f32 %v572, %v694
        %v734 = vadd.f32 %v573, %v696
        %v735 = vadd.f32 %v574, %v699
        %v736 = vadd.f32 %v575, %v701
        %v737 = vadd.f32 %v576, %v704
        %v738 = vadd.f32 %v577, %v706
        %v739 = vadd.f32 %v578, %v709
        %v740 = vadd.f32 %v579, %v711
        %v741 = vadd.f32 %v580, %v714
        %v742 = vadd.f32 %v581, %v716
        %v743 = vadd.f32 %v582, %v719
        %v744 = vadd.f32 %v583, %v721
        %v745 = vadd.f32 %v584, %v724
        %v746 = vadd.f32 %v585, %v726
        %v747 = vadd.f32 %v586, %v729
        %v748 = vadd.f32 %v587, %v731
        %vm749 = vcmask 523264
        %750 = vst.msk [vmem:[#allocation2] sm:$0xff] %vm749, %v733
        %751 = vst.msk [vmem:[#allocation2 + $0x8] sm:$0xff] %vm749, %v734
        %752 = vst.msk [vmem:[#allocation2 + $0x10] sm:$0xff] %vm749, %v735
        %753 = vst.msk [vmem:[#allocation2 + $0x18] sm:$0xff] %vm749, %v736
        %754 = vst.msk [vmem:[#allocation2 + $0x20] sm:$0xff] %vm749, %v737
        %755 = vst.msk [vmem:[#allocation2 + $0x28] sm:$0xff] %vm749, %v738
        %756 = vst.msk [vmem:[#allocation2 + $0x30] sm:$0xff] %vm749, %v739
        %757 = vst.msk [vmem:[#allocation2 + $0x38] sm:$0xff] %vm749, %v740
        %758 = vst.msk [vmem:[#allocation2 + $0x40] sm:$0xff] %vm749, %v741
        %759 = vst.msk [vmem:[#allocation2 + $0x48] sm:$0xff] %vm749, %v742
        %760 = vst.msk [vmem:[#allocation2 + $0x50] sm:$0xff] %vm749, %v743
        %761 = vst.msk [vmem:[#allocation2 + $0x58] sm:$0xff] %vm749, %v744
        %762 = vst.msk [vmem:[#allocation2 + $0x60] sm:$0xff] %vm749, %v745
        %763 = vst.msk [vmem:[#allocation2 + $0x68] sm:$0xff] %vm749, %v746
        %764 = vst.msk [vmem:[#allocation2 + $0x70] sm:$0xff] %vm749, %v747
        %765 = vst.msk [vmem:[#allocation2 + $0x78] sm:$0xff] %vm749, %v748
        %p766 = scmp.eq.s32.totalorder %s20, 3
        // Predicated region
        $region161: #{sslgcn_forward.5} parent=143 // pred_check
          %p767 = pneg %p766
        $region162: #{sslgcn_forward.5} parent=143 // pred_check_branch
          %769 = sbr.rel (%p767) target = $region164
        $region163: #{sslgcn_forward.5} parent=143 // pred_region
          %v770 = vld [vmem:[%s499] sm:$0xff]
          %v771 = vld [vmem:[%s499 + $0x8] sm:$0xff]
          %v772 = vld [vmem:[%s499 + $0x10] sm:$0xff]
          %v773 = vld [vmem:[%s499 + $0x18] sm:$0xff]
          %v774 = vld [vmem:[%s499 + $0x20] sm:$0xff]
          %v775 = vld [vmem:[%s499 + $0x28] sm:$0xff]
          %v776 = vld [vmem:[%s499 + $0x30] sm:$0xff]
          %v777 = vld [vmem:[%s499 + $0x38] sm:$0xff]
          %v778 = vld [vmem:[%s499 + $0x40] sm:$0xff]
          %v779 = vld [vmem:[%s499 + $0x48] sm:$0xff]
          %v780 = vld [vmem:[%s499 + $0x50] sm:$0xff]
          %v781 = vld [vmem:[%s499 + $0x58] sm:$0xff]
          %v782 = vld [vmem:[%s499 + $0x60] sm:$0xff]
          %v783 = vld [vmem:[%s499 + $0x68] sm:$0xff]
          %v784 = vld [vmem:[%s499 + $0x70] sm:$0xff]
          %v785 = vld [vmem:[%s499 + $0x78] sm:$0xff]
          %786 = vxpose.xlu0.b32.start [1/16] %v770, 128
          %787 = vxpose.xlu0.b32.cont [2/16] %v771, 128
          %788 = vxpose.xlu0.b32.cont [3/16] %v772, 128
          %789 = vxpose.xlu0.b32.cont [4/16] %v773, 128
          %790 = vxpose.xlu0.b32.cont [5/16] %v774, 128
          %791 = vxpose.xlu0.b32.cont [6/16] %v775, 128
          %792 = vxpose.xlu0.b32.cont [7/16] %v776, 128
          %793 = vxpose.xlu0.b32.cont [8/16] %v777, 128
          %794 = vxpose.xlu0.b32.cont [9/16] %v778, 128
          %795 = vxpose.xlu0.b32.cont [10/16] %v779, 128
          %796 = vxpose.xlu0.b32.cont [11/16] %v780, 128
          %797 = vxpose.xlu0.b32.cont [12/16] %v781, 128
          %798 = vxpose.xlu0.b32.cont [13/16] %v782, 128
          %799 = vxpose.xlu0.b32.cont [14/16] %v783, 128
          %800 = vxpose.xlu0.b32.cont [15/16] %v784, 128
          %801 = vxpose.xlu0.b32.end [16/16] %v785, 128
          %v802 = vpop.trf.xlu0
          %v803 = vpop.trf.xlu0
          %v804 = vpop.trf.xlu0
          %v805 = vpop.trf.xlu0
          %v806 = vpop.trf.xlu0
          %v807 = vpop.trf.xlu0
          %v808 = vpop.trf.xlu0
          %v809 = vpop.trf.xlu0
          %v810 = vpop.trf.xlu0
          %v811 = vpop.trf.xlu0
          %v812 = vpop.trf.xlu0
          %v813 = vpop.trf.xlu0
          %v814 = vpop.trf.xlu0
          %v815 = vpop.trf.xlu0
          %v816 = vpop.trf.xlu0
          %v817 = vpop.trf.xlu0
          %v818 = vld [vmem:[%s541] sm:$0xff]
          %v819 = vld [vmem:[%s541 + $0x8] sm:$0xff]
          %v820 = vld [vmem:[%s541 + $0x10] sm:$0xff]
          %v821 = vld [vmem:[%s541 + $0x18] sm:$0xff]
          %v822 = vld [vmem:[%s541 + $0x20] sm:$0xff]
          %v823 = vld [vmem:[%s541 + $0x28] sm:$0xff]
          %v824 = vld [vmem:[%s541 + $0x30] sm:$0xff]
          %v825 = vld [vmem:[%s541 + $0x38] sm:$0xff]
          %v826 = vld [vmem:[%s541 + $0x40] sm:$0xff]
          %v827 = vld [vmem:[%s541 + $0x48] sm:$0xff]
          %v828 = vld [vmem:[%s541 + $0x50] sm:$0xff]
          %v829 = vld [vmem:[%s541 + $0x58] sm:$0xff]
          %v830 = vld [vmem:[%s541 + $0x60] sm:$0xff]
          %v831 = vld [vmem:[%s541 + $0x68] sm:$0xff]
          %v832 = vld [vmem:[%s541 + $0x70] sm:$0xff]
          %v833 = vld [vmem:[%s541 + $0x78] sm:$0xff]
          %v834 = vmul.f32 %v802, 0.33333334
          %v835 = vmul.f32 %v803, 0.33333334
          %v836 = vmul.f32 %v804, 0.33333334
          %v837 = vmul.f32 %v805, 0.33333334
          %v838 = vmul.f32 %v806, 0.33333334
          %v839 = vmul.f32 %v807, 0.33333334
          %v840 = vmul.f32 %v808, 0.33333334
          %v841 = vmul.f32 %v809, 0.33333334
          %v842 = vmul.f32 %v810, 0.33333334
          %v843 = vmul.f32 %v811, 0.33333334
          %v844 = vmul.f32 %v812, 0.33333334
          %v845 = vmul.f32 %v813, 0.33333334
          %v846 = vmul.f32 %v814, 0.33333334
          %v847 = vmul.f32 %v815, 0.33333334
          %v848 = vmul.f32 %v816, 0.33333334
          %v849 = vmul.f32 %v817, 0.33333334
          %850 = vst.msk [vmem:[%s548] sm:$0xff] %vm749, %v834
          %851 = vst.msk [vmem:[%s548 + $0x10] sm:$0xff] %vm749, %v835
          %852 = vst.msk [vmem:[%s548 + $0x20] sm:$0xff] %vm749, %v836
          %853 = vst.msk [vmem:[%s548 + $0x30] sm:$0xff] %vm749, %v837
          %854 = vst.msk [vmem:[%s548 + $0x40] sm:$0xff] %vm749, %v838
          %855 = vst.msk [vmem:[%s548 + $0x50] sm:$0xff] %vm749, %v839
          %856 = vst.msk [vmem:[%s548 + $0x60] sm:$0xff] %vm749, %v840
          %857 = vst.msk [vmem:[%s548 + $0x70] sm:$0xff] %vm749, %v841
          %858 = vst.msk [vmem:[%s548 + $0x80] sm:$0xff] %vm749, %v842
          %859 = vst.msk [vmem:[%s548 + $0x90] sm:$0xff] %vm749, %v843
          %860 = vst.msk [vmem:[%s548 + $0xa0] sm:$0xff] %vm749, %v844
          %861 = vst.msk [vmem:[%s548 + $0xb0] sm:$0xff] %vm749, %v845
          %862 = vst.msk [vmem:[%s548 + $0xc0] sm:$0xff] %vm749, %v846
          %863 = vst.msk [vmem:[%s548 + $0xd0] sm:$0xff] %vm749, %v847
          %864 = vst.msk [vmem:[%s548 + $0xe0] sm:$0xff] %vm749, %v848
          %865 = vst.msk [vmem:[%s548 + $0xf0] sm:$0xff] %vm749, %v849
          %v866 = vadd.f32 %v802, %v818
          %v867 = vadd.f32 %v803, %v819
          %v868 = vadd.f32 %v804, %v820
          %v869 = vadd.f32 %v805, %v821
          %v870 = vadd.f32 %v806, %v822
          %v871 = vadd.f32 %v807, %v823
          %v872 = vadd.f32 %v808, %v824
          %v873 = vadd.f32 %v809, %v825
          %v874 = vadd.f32 %v810, %v826
          %v875 = vadd.f32 %v811, %v827
          %v876 = vadd.f32 %v812, %v828
          %v877 = vadd.f32 %v813, %v829
          %v878 = vadd.f32 %v814, %v830
          %v879 = vadd.f32 %v815, %v831
          %v880 = vadd.f32 %v816, %v832
          %v881 = vadd.f32 %v817, %v833
          %v882 = vmul.f32 %v866, 0.33333334
          %v883 = vmul.f32 %v867, 0.33333334
          %v884 = vmul.f32 %v868, 0.33333334
          %v885 = vmul.f32 %v869, 0.33333334
          %v886 = vmul.f32 %v870, 0.33333334
          %v887 = vmul.f32 %v871, 0.33333334
          %v888 = vmul.f32 %v872, 0.33333334
          %v889 = vmul.f32 %v873, 0.33333334
          %v890 = vmul.f32 %v874, 0.33333334
          %v891 = vmul.f32 %v875, 0.33333334
          %v892 = vmul.f32 %v876, 0.33333334
          %v893 = vmul.f32 %v877, 0.33333334
          %v894 = vmul.f32 %v878, 0.33333334
          %v895 = vmul.f32 %v879, 0.33333334
          %v896 = vmul.f32 %v880, 0.33333334
          %v897 = vmul.f32 %v881, 0.33333334
          %vm898 = vcmask 1048064
          %899 = vst.msk [vmem:[%s548] sm:$0xff] %vm898, %v882
          %900 = vst.msk [vmem:[%s548 + $0x10] sm:$0xff] %vm898, %v883
          %901 = vst.msk [vmem:[%s548 + $0x20] sm:$0xff] %vm898, %v884
          %902 = vst.msk [vmem:[%s548 + $0x30] sm:$0xff] %vm898, %v885
          %903 = vst.msk [vmem:[%s548 + $0x40] sm:$0xff] %vm898, %v886
          %904 = vst.msk [vmem:[%s548 + $0x50] sm:$0xff] %vm898, %v887
          %905 = vst.msk [vmem:[%s548 + $0x60] sm:$0xff] %vm898, %v888
          %906 = vst.msk [vmem:[%s548 + $0x70] sm:$0xff] %vm898, %v889
          %907 = vst.msk [vmem:[%s548 + $0x80] sm:$0xff] %vm898, %v890
          %908 = vst.msk [vmem:[%s548 + $0x90] sm:$0xff] %vm898, %v891
          %909 = vst.msk [vmem:[%s548 + $0xa0] sm:$0xff] %vm898, %v892
          %910 = vst.msk [vmem:[%s548 + $0xb0] sm:$0xff] %vm898, %v893
          %911 = vst.msk [vmem:[%s548 + $0xc0] sm:$0xff] %vm898, %v894
          %912 = vst.msk [vmem:[%s548 + $0xd0] sm:$0xff] %vm898, %v895
          %913 = vst.msk [vmem:[%s548 + $0xe0] sm:$0xff] %vm898, %v896
          %914 = vst.msk [vmem:[%s548 + $0xf0] sm:$0xff] %vm898, %v897
          %v915 = vld [vmem:[#allocation2] sm:$0xff]
          %v916 = vld [vmem:[#allocation2 + $0x8] sm:$0xff]
          %v917 = vld [vmem:[#allocation2 + $0x10] sm:$0xff]
          %v918 = vld [vmem:[#allocation2 + $0x18] sm:$0xff]
          %v919 = vld [vmem:[#allocation2 + $0x20] sm:$0xff]
          %v920 = vld [vmem:[#allocation2 + $0x28] sm:$0xff]
          %v921 = vld [vmem:[#allocation2 + $0x30] sm:$0xff]
          %v922 = vld [vmem:[#allocation2 + $0x38] sm:$0xff]
          %v923 = vld [vmem:[#allocation2 + $0x40] sm:$0xff]
          %v924 = vld [vmem:[#allocation2 + $0x48] sm:$0xff]
          %v925 = vld [vmem:[#allocation2 + $0x50] sm:$0xff]
          %v926 = vld [vmem:[#allocation2 + $0x58] sm:$0xff]
          %v927 = vld [vmem:[#allocation2 + $0x60] sm:$0xff]
          %v928 = vld [vmem:[#allocation2 + $0x68] sm:$0xff]
          %v929 = vld [vmem:[#allocation2 + $0x70] sm:$0xff]
          %v930 = vld [vmem:[#allocation2 + $0x78] sm:$0xff]
          %947 = vrot.lane.b32.xlu0 %v915, 64
          %v948 = vpop.permute.xlu0 %947
          %949 = vrot.lane.b32.xlu0 %v916, 64
          %v950 = vpop.permute.xlu0 %949
          %951 = vrot.lane.b32.xlu0 %v917, 64
          %v952 = vpop.permute.xlu0 %951
          %953 = vrot.lane.b32.xlu0 %v918, 64
          %v954 = vpop.permute.xlu0 %953
          %955 = vrot.lane.b32.xlu0 %v919, 64
          %v956 = vpop.permute.xlu0 %955
          %957 = vrot.lane.b32.xlu0 %v920, 64
          %v958 = vpop.permute.xlu0 %957
          %959 = vrot.lane.b32.xlu0 %v921, 64
          %v960 = vpop.permute.xlu0 %959
          %961 = vrot.lane.b32.xlu0 %v922, 64
          %v962 = vpop.permute.xlu0 %961
          %963 = vrot.lane.b32.xlu0 %v923, 64
          %v964 = vpop.permute.xlu0 %963
          %965 = vrot.lane.b32.xlu0 %v924, 64
          %v966 = vpop.permute.xlu0 %965
          %967 = vrot.lane.b32.xlu0 %v925, 64
          %v968 = vpop.permute.xlu0 %967
          %969 = vrot.lane.b32.xlu0 %v926, 64
          %v970 = vpop.permute.xlu0 %969
          %971 = vrot.lane.b32.xlu0 %v927, 64
          %v972 = vpop.permute.xlu0 %971
          %973 = vrot.lane.b32.xlu0 %v928, 64
          %v974 = vpop.permute.xlu0 %973
          %975 = vrot.lane.b32.xlu0 %v929, 64
          %v976 = vpop.permute.xlu0 %975
          %977 = vrot.lane.b32.xlu0 %v930, 64
          %v978 = vpop.permute.xlu0 %977
          %v995 = vadd.f32 %v802, %v948
          %v996 = vadd.f32 %v803, %v950
          %v997 = vadd.f32 %v804, %v952
          %v998 = vadd.f32 %v805, %v954
          %v999 = vadd.f32 %v806, %v956
          %v1000 = vadd.f32 %v807, %v958
          %v1001 = vadd.f32 %v808, %v960
          %v1002 = vadd.f32 %v809, %v962
          %v1003 = vadd.f32 %v810, %v964
          %v1004 = vadd.f32 %v811, %v966
          %v1005 = vadd.f32 %v812, %v968
          %v1006 = vadd.f32 %v813, %v970
          %v1007 = vadd.f32 %v814, %v972
          %v1008 = vadd.f32 %v815, %v974
          %v1009 = vadd.f32 %v816, %v976
          %v1010 = vadd.f32 %v817, %v978
          %v1011 = vmul.f32 %v995, 0.33333334
          %v1012 = vmul.f32 %v996, 0.33333334
          %v1013 = vmul.f32 %v997, 0.33333334
          %v1014 = vmul.f32 %v998, 0.33333334
          %v1015 = vmul.f32 %v999, 0.33333334
          %v1016 = vmul.f32 %v1000, 0.33333334
          %v1017 = vmul.f32 %v1001, 0.33333334
          %v1018 = vmul.f32 %v1002, 0.33333334
          %v1019 = vmul.f32 %v1003, 0.33333334
          %v1020 = vmul.f32 %v1004, 0.33333334
          %v1021 = vmul.f32 %v1005, 0.33333334
          %v1022 = vmul.f32 %v1006, 0.33333334
          %v1023 = vmul.f32 %v1007, 0.33333334
          %v1024 = vmul.f32 %v1008, 0.33333334
          %v1025 = vmul.f32 %v1009, 0.33333334
          %v1026 = vmul.f32 %v1010, 0.33333334
          %1043 = vrot.lane.b32.xlu0 %v1011, 64
          %v1044 = vpop.permute.xlu0 %1043
          %1045 = vrot.lane.b32.xlu0 %v1012, 64
          %v1046 = vpop.permute.xlu0 %1045
          %1047 = vrot.lane.b32.xlu0 %v1013, 64
          %v1048 = vpop.permute.xlu0 %1047
          %1049 = vrot.lane.b32.xlu0 %v1014, 64
          %v1050 = vpop.permute.xlu0 %1049
          %1051 = vrot.lane.b32.xlu0 %v1015, 64
          %v1052 = vpop.permute.xlu0 %1051
          %1053 = vrot.lane.b32.xlu0 %v1016, 64
          %v1054 = vpop.permute.xlu0 %1053
          %1055 = vrot.lane.b32.xlu0 %v1017, 64
          %v1056 = vpop.permute.xlu0 %1055
          %1057 = vrot.lane.b32.xlu0 %v1018, 64
          %v1058 = vpop.permute.xlu0 %1057
          %1059 = vrot.lane.b32.xlu0 %v1019, 64
          %v1060 = vpop.permute.xlu0 %1059
          %1061 = vrot.lane.b32.xlu0 %v1020, 64
          %v1062 = vpop.permute.xlu0 %1061
          %1063 = vrot.lane.b32.xlu0 %v1021, 64
          %v1064 = vpop.permute.xlu0 %1063
          %1065 = vrot.lane.b32.xlu0 %v1022, 64
          %v1066 = vpop.permute.xlu0 %1065
          %1067 = vrot.lane.b32.xlu0 %v1023, 64
          %v1068 = vpop.permute.xlu0 %1067
          %1069 = vrot.lane.b32.xlu0 %v1024, 64
          %v1070 = vpop.permute.xlu0 %1069
          %1071 = vrot.lane.b32.xlu0 %v1025, 64
          %v1072 = vpop.permute.xlu0 %1071
          %1073 = vrot.lane.b32.xlu0 %v1026, 64
          %v1074 = vpop.permute.xlu0 %1073
          %1091 = vst.msk [vmem:[%s548 + $0x8] sm:$0xff] %vm749, %v1044
          %1092 = vst.msk [vmem:[%s548 + $0x18] sm:$0xff] %vm749, %v1046
          %1093 = vst.msk [vmem:[%s548 + $0x28] sm:$0xff] %vm749, %v1048
          %1094 = vst.msk [vmem:[%s548 + $0x38] sm:$0xff] %vm749, %v1050
          %1095 = vst.msk [vmem:[%s548 + $0x48] sm:$0xff] %vm749, %v1052
          %1096 = vst.msk [vmem:[%s548 + $0x58] sm:$0xff] %vm749, %v1054
          %1097 = vst.msk [vmem:[%s548 + $0x68] sm:$0xff] %vm749, %v1056
          %1098 = vst.msk [vmem:[%s548 + $0x78] sm:$0xff] %vm749, %v1058
          %1099 = vst.msk [vmem:[%s548 + $0x88] sm:$0xff] %vm749, %v1060
          %1100 = vst.msk [vmem:[%s548 + $0x98] sm:$0xff] %vm749, %v1062
          %1101 = vst.msk [vmem:[%s548 + $0xa8] sm:$0xff] %vm749, %v1064
          %1102 = vst.msk [vmem:[%s548 + $0xb8] sm:$0xff] %vm749, %v1066
          %1103 = vst.msk [vmem:[%s548 + $0xc8] sm:$0xff] %vm749, %v1068
          %1104 = vst.msk [vmem:[%s548 + $0xd8] sm:$0xff] %vm749, %v1070
          %1105 = vst.msk [vmem:[%s548 + $0xe8] sm:$0xff] %vm749, %v1072
          %1106 = vst.msk [vmem:[%s548 + $0xf8] sm:$0xff] %vm749, %v1074
          %1107 = vst.msk [vmem:[%s548 + $0x8] sm:$0xff] %vm898, 0.0
          %1108 = vst.msk [vmem:[%s548 + $0x18] sm:$0xff] %vm898, 0.0
          %1109 = vst.msk [vmem:[%s548 + $0x28] sm:$0xff] %vm898, 0.0
          %1110 = vst.msk [vmem:[%s548 + $0x38] sm:$0xff] %vm898, 0.0
          %1111 = vst.msk [vmem:[%s548 + $0x48] sm:$0xff] %vm898, 0.0
          %1112 = vst.msk [vmem:[%s548 + $0x58] sm:$0xff] %vm898, 0.0
          %1113 = vst.msk [vmem:[%s548 + $0x68] sm:$0xff] %vm898, 0.0
          %1114 = vst.msk [vmem:[%s548 + $0x78] sm:$0xff] %vm898, 0.0
          %1115 = vst.msk [vmem:[%s548 + $0x88] sm:$0xff] %vm898, 0.0
          %1116 = vst.msk [vmem:[%s548 + $0x98] sm:$0xff] %vm898, 0.0
          %1117 = vst.msk [vmem:[%s548 + $0xa8] sm:$0xff] %vm898, 0.0
          %1118 = vst.msk [vmem:[%s548 + $0xb8] sm:$0xff] %vm898, 0.0
          %1119 = vst.msk [vmem:[%s548 + $0xc8] sm:$0xff] %vm898, 0.0
          %1120 = vst.msk [vmem:[%s548 + $0xd8] sm:$0xff] %vm898, 0.0
          %1121 = vst.msk [vmem:[%s548 + $0xe8] sm:$0xff] %vm898, 0.0
          %1122 = vst.msk [vmem:[%s548 + $0xf8] sm:$0xff] %vm898, 0.0
        $region164: #{sslgcn_forward.5} parent=143 // pred_fallthru
          _
        %s1123 = smul.u32 16, %s19
        %p1124 = scmp.lt.s32.totalorder %s1123, 63
        %s1125 = scalar_select %p1124, %s1123, 63
        %s1126 = smul.addr %s1125, 2
        %s1127 = smul.addr %s1126, 8
        %s1128 = scalar_lea.vmem %s4, %s1127
        // Predicated region
        $region165: #{sslgcn_forward.5} parent=143 // pred_check
          %p1129 = pneg %p151
        $region166: #{sslgcn_forward.5} parent=143 // pred_check_branch
          %1131 = sbr.rel (%p1129) target = $region168
        $region167: #{sslgcn_forward.5} parent=143 // pred_region
          %s1132 = smul.u32 16, %s19
        $region168: #{sslgcn_forward.5} parent=143 // pred_fallthru
          _
      $region144: #{sslgcn_forward.5} parent=5 // pred_fallthru
        _
      %p1133 = scmp.le.s32.totalorder 2, %s10
      // Predicated region
      $region169: #{sslgcn_forward.5} parent=5 // pred_check
        %p1134 = pneg %p1133
      $region170: #{sslgcn_forward.5} parent=5 // pred_check_branch
        %1136 = sbr.rel (%p1134) target = $region172
      $region171: #{sslgcn_forward.5} parent=5 // pred_region
        %s1137 = ssub.s32 %s10, 2
        // Predicated region
        $region173: #{sslgcn_forward.5} parent=171 // pred_check
          %p1138 = pneg %p157
        $region174: #{sslgcn_forward.5} parent=171 // pred_check_branch
          %1140 = sbr.rel (%p1138) target = $region176
        $region175: #{sslgcn_forward.5} parent=171 // pred_region
          %s1141 = smul.u32 16, %s21
          %p1142 = scmp.lt.s32.totalorder %s1141, 63
          %s1143 = scalar_select %p1142, %s1141, 63
          %s1144 = smul.addr %s1143, 2
          %s1145 = smul.addr %s1144, 8
          %s1146 = scalar_lea.vmem %s4, %s1145
        $region176: #{sslgcn_forward.5} parent=171 // pred_fallthru
          _
      $region172: #{sslgcn_forward.5} parent=5 // pred_fallthru
        _
    $region6: #{sslgcn_forward.5} parent=1 // loop_footer
      %s14 = sadd.s32 1, %s10
    $region7: #{sslgcn_forward.5} parent=1 // loop_footer_branch
      %9 = sbr.rel target = $region3
    $region8: #{sslgcn_forward.5} parent=1 // loop_exit
      _

// kernel: sslgcn_forward.4
$region0: #{sslgcn_forward.4}
  #allocation0 [shape = 'u32[]', space=smem, size = 0x4, offset = 0x4, fixed_abs, tag = 'smem constant byte address 0x4 - core index']
  #allocation1 [shape = 'u32[72,128]{1,0:T(1,128)}', space=vmem, size = 0x9000, scoped, tag = 'internal scratch']
  #allocation2 [shape = 'bf16[128,512]{1,0:T(8,128)(2,1)}', space=vmem, size = 0x20000, scoped, tag = 'scratch operand']
  #allocation3 [shape = 'f32[128,512]{1,0:T(8,128)}', space=vmem, size = 0x40000, scoped, tag = 'scratch operand']
  #allocation4 [shape = 'f32[384,128]{1,0:T(8,128)}', space=vmem, size = 0x30000, scoped, tag = 'scratch operand']
  #allocation5 [shape = 'f32[128,512]{1,0:T(8,128)}', space=vmem, size = 0x40000, scoped, tag = 'scratch operand']
  #allocation6 [shape = 'f32[384,128]{1,0:T(8,128)}', space=vmem, size = 0x30000, scoped, tag = 'scratch operand']
  %s0 = inlined_call_operand.vmem [shape: bf16[384,512], index: 0, kind: input, shape index: {}]
  %s1 = inlined_call_operand.vmem [shape: f32[64,512], index: 1, kind: input, shape index: {}]
  %s2 = inlined_call_operand.vmem [shape: f32[64,512], index: 2, kind: input, shape index: {}]
  %s3 = inlined_call_operand.vmem [shape: f32[384,64], index: 3, kind: input, shape index: {}]
  %s4 = inlined_call_operand.vmem [shape: f32[128,512], index: 4, kind: output, shape index: {0}]
  %s5 = inlined_call_operand.vmem [shape: f32[384,128], index: 5, kind: output, shape index: {1}]
  %s6 = inlined_call_operand.vmem [shape: bf16[64,512], index: 6, kind: output, shape index: {2}]
  %7 = xla_tuple %s4, %s5, %s6
  %s8 = sld [smem:[#allocation0]]
  $region81: #{sslgcn_forward.4} parent=0
    _
  %s10 = ssub.s32 1, %s8
  %s11 = scalar_select 0, %s10, %s8
  loop: start=0, step=1, limit=8
  $region2: #{sslgcn_forward.4} parent=0 // loop_pre_header
    _
  $region3: #{sslgcn_forward.4} parent=0 // loop_header
    %s13 = sphi 0, %s17
    %p14 = scmp.ge.s32.totalorder %s13, 8
    %s20 = sphi 0, %s32
    %s21 = sphi 0, %s28
    %s22 = sphi 0, %s20
    %s23 = sphi 0, %s21
    %s24 = sphi 0, %s22
    %s25 = sphi 0, %s23
    %s35 = sphi 0, %s37
    %s38 = sphi 0, %s35
    %s39 = sphi 0, %s38
    %s55 = sphi 0, %s39
    %s59 = sphi 0, %s59
    %s61 = sphi 0, %s59
    %s62 = sphi 0, %s61
    %s76 = sphi 0, %s62
    %s80 = sphi 0, %s80
    %s82 = sphi 0, %s80
    %s83 = sphi 0, %s82
    %s97 = sphi 0, %s83
    %s101 = sphi 0, %s101
    %s103 = sphi 0, %s101
    %s104 = sphi 0, %s103
    %s118 = sphi 0, %s104
    %s122 = sphi 0, %s122
    %s124 = sphi 0, %s122
    %s125 = sphi 0, %s124
    %s139 = sphi 0, %s125
    %s143 = sphi 0, %s143
    %s145 = sphi 0, %s143
    %s146 = sphi 0, %s145
    %s160 = sphi 0, %s146
    %s164 = sphi 0, %s164
    %s166 = sphi 0, %s164
    %s167 = sphi 0, %s166
    %s181 = sphi 0, %s167
  $region4: #{sslgcn_forward.4} parent=0 // loop_header_branch
    %16 = sbr.rel (%p14) target = $region8
  $region5: #{sslgcn_forward.4} parent=0 // loop_body
    %s18 = ssub.s32 %s13, 1
    %s19 = ssub.s32 %s13, 2
    %s26 = sadd.s32 1, %s21
    %p27 = scmp.ge.s32.totalorder %s26, 3
    %s28 = scalar_select %p27, 0, %s26
    %s29 = sadd.s32 1, %s20
    %s30 = scalar_select %p27, %s29, %s20
    %p31 = scmp.ge.s32.totalorder %s30, 2
    %s32 = scalar_select %p31, 0, %s30
    %s33 = ssub.s32 %s21, %s28
    %p34 = scmp.eq.s32.totalorder %s33, 0
    %s36 = sadd.s32 %s35, 1
    %s37 = scalar_select %p34, %s35, %s36
    %p40 = pneg %p34
    %p41 = scmp.eq.s32.totalorder %s13, 5
    %p42 = por %p40, %p41
    %p43 = scmp.ne.s32.totalorder %s35, %s38
    %p44 = scmp.eq.s32.totalorder %s13, 0
    %p45 = por %p43, %p44
    %p46 = scmp.ne.s32.totalorder %s35, %s38
    %p47 = scmp.eq.s32.totalorder %s18, 5
    %p48 = por %p46, %p47
    %p49 = scmp.ne.s32.totalorder %s38, %s39
    %p50 = scmp.eq.s32.totalorder %s18, 0
    %p51 = por %p49, %p50
    %p52 = scmp.ne.s32.totalorder %s38, %s39
    %p53 = scmp.eq.s32.totalorder %s19, 5
    %p54 = por %p52, %p53
    %p56 = scmp.ne.s32.totalorder %s39, %s55
    %p57 = scmp.eq.s32.totalorder %s19, 0
    %p58 = por %p56, %p57
    %s60 = sadd.s32 %s59, 1
    %p63 = scmp.eq.s32.totalorder %s13, 5
    %p64 = scmp.ne.s32.totalorder %s59, %s61
    %p65 = scmp.eq.s32.totalorder %s13, 0
    %p66 = por %p64, %p65
    %p67 = scmp.ne.s32.totalorder %s59, %s61
    %p68 = scmp.eq.s32.totalorder %s18, 5
    %p69 = por %p67, %p68
    %p70 = scmp.ne.s32.totalorder %s61, %s62
    %p71 = scmp.eq.s32.totalorder %s18, 0
    %p72 = por %p70, %p71
    %p73 = scmp.ne.s32.totalorder %s61, %s62
    %p74 = scmp.eq.s32.totalorder %s19, 5
    %p75 = por %p73, %p74
    %p77 = scmp.ne.s32.totalorder %s62, %s76
    %p78 = scmp.eq.s32.totalorder %s19, 0
    %p79 = por %p77, %p78
    %s81 = sadd.s32 %s80, 1
    %p84 = scmp.eq.s32.totalorder %s13, 5
    %p85 = scmp.ne.s32.totalorder %s80, %s82
    %p86 = scmp.eq.s32.totalorder %s13, 0
    %p87 = por %p85, %p86
    %p88 = scmp.ne.s32.totalorder %s80, %s82
    %p89 = scmp.eq.s32.totalorder %s18, 5
    %p90 = por %p88, %p89
    %p91 = scmp.ne.s32.totalorder %s82, %s83
    %p92 = scmp.eq.s32.totalorder %s18, 0
    %p93 = por %p91, %p92
    %p94 = scmp.ne.s32.totalorder %s82, %s83
    %p95 = scmp.eq.s32.totalorder %s19, 5
    %p96 = por %p94, %p95
    %p98 = scmp.ne.s32.totalorder %s83, %s97
    %p99 = scmp.eq.s32.totalorder %s19, 0
    %p100 = por %p98, %p99
    %s102 = sadd.s32 %s101, 1
    %p105 = scmp.eq.s32.totalorder %s13, 5
    %p106 = scmp.ne.s32.totalorder %s101, %s103
    %p107 = scmp.eq.s32.totalorder %s13, 0
    %p108 = por %p106, %p107
    %p109 = scmp.ne.s32.totalorder %s101, %s103
    %p110 = scmp.eq.s32.totalorder %s18, 5
    %p111 = por %p109, %p110
    %p112 = scmp.ne.s32.totalorder %s103, %s104
    %p113 = scmp.eq.s32.totalorder %s18, 0
    %p114 = por %p112, %p113
    %p115 = scmp.ne.s32.totalorder %s103, %s104
    %p116 = scmp.eq.s32.totalorder %s19, 5
    %p117 = por %p115, %p116
    %p119 = scmp.ne.s32.totalorder %s104, %s118
    %p120 = scmp.eq.s32.totalorder %s19, 0
    %p121 = por %p119, %p120
    %s123 = sadd.s32 %s122, 1
    %p126 = scmp.eq.s32.totalorder %s13, 5
    %p127 = scmp.ne.s32.totalorder %s122, %s124
    %p128 = scmp.eq.s32.totalorder %s13, 0
    %p129 = por %p127, %p128
    %p130 = scmp.ne.s32.totalorder %s122, %s124
    %p131 = scmp.eq.s32.totalorder %s18, 5
    %p132 = por %p130, %p131
    %p133 = scmp.ne.s32.totalorder %s124, %s125
    %p134 = scmp.eq.s32.totalorder %s18, 0
    %p135 = por %p133, %p134
    %p136 = scmp.ne.s32.totalorder %s124, %s125
    %p137 = scmp.eq.s32.totalorder %s19, 5
    %p138 = por %p136, %p137
    %p140 = scmp.ne.s32.totalorder %s125, %s139
    %p141 = scmp.eq.s32.totalorder %s19, 0
    %p142 = por %p140, %p141
    %s144 = sadd.s32 %s143, 1
    %p147 = scmp.eq.s32.totalorder %s13, 5
    %p148 = scmp.ne.s32.totalorder %s143, %s145
    %p149 = scmp.eq.s32.totalorder %s13, 0
    %p150 = por %p148, %p149
    %p151 = scmp.ne.s32.totalorder %s143, %s145
    %p152 = scmp.eq.s32.totalorder %s18, 5
    %p153 = por %p151, %p152
    %p154 = scmp.ne.s32.totalorder %s145, %s146
    %p155 = scmp.eq.s32.totalorder %s18, 0
    %p156 = por %p154, %p155
    %p157 = scmp.ne.s32.totalorder %s145, %s146
    %p158 = scmp.eq.s32.totalorder %s19, 5
    %p159 = por %p157, %p158
    %p161 = scmp.ne.s32.totalorder %s146, %s160
    %p162 = scmp.eq.s32.totalorder %s19, 0
    %p163 = por %p161, %p162
    %s165 = sadd.s32 %s164, 1
    %p168 = scmp.eq.s32.totalorder %s13, 5
    %p169 = scmp.ne.s32.totalorder %s164, %s166
    %p170 = scmp.eq.s32.totalorder %s13, 0
    %p171 = por %p169, %p170
    %p172 = scmp.ne.s32.totalorder %s164, %s166
    %p173 = scmp.eq.s32.totalorder %s18, 5
    %p174 = por %p172, %p173
    %p175 = scmp.ne.s32.totalorder %s166, %s167
    %p176 = scmp.eq.s32.totalorder %s18, 0
    %p177 = por %p175, %p176
    %p178 = scmp.ne.s32.totalorder %s166, %s167
    %p179 = scmp.eq.s32.totalorder %s19, 5
    %p180 = por %p178, %p179
    %p182 = scmp.ne.s32.totalorder %s167, %s181
    %p183 = scmp.eq.s32.totalorder %s19, 0
    %p184 = por %p182, %p183
    %p185 = scmp.le.s32.totalorder 1, %s13
    %p186 = scmp.lt.s32.totalorder %s13, 7
    %p187 = pnand %p185, %p186
    %p188 = pneg %p187
    // Predicated region
    $region9: #{sslgcn_forward.4} parent=5 // pred_check
      _
    $region10: #{sslgcn_forward.4} parent=5 // pred_check_branch
      %190 = sbr.rel (%p187) target = $region12
    $region11: #{sslgcn_forward.4} parent=5 // pred_region
      %s191 = ssub.s32 %s13, 1
      // Predicated region
      $region13: #{sslgcn_forward.4} parent=11 // pred_check
        %p192 = pneg %p72
      $region14: #{sslgcn_forward.4} parent=11 // pred_check_branch
        %194 = sbr.rel (%p192) target = $region16
      $region15: #{sslgcn_forward.4} parent=11 // pred_region
        _
      $region16: #{sslgcn_forward.4} parent=11 // pred_fallthru
        _
      // Predicated region
      $region17: #{sslgcn_forward.4} parent=11 // pred_check
        %p195 = pneg %p93
      $region18: #{sslgcn_forward.4} parent=11 // pred_check_branch
        %197 = sbr.rel (%p195) target = $region20
      $region19: #{sslgcn_forward.4} parent=11 // pred_region
        _
      $region20: #{sslgcn_forward.4} parent=11 // pred_fallthru
        _
      // Predicated region
      $region21: #{sslgcn_forward.4} parent=11 // pred_check
        %p198 = pneg %p114
      $region22: #{sslgcn_forward.4} parent=11 // pred_check_branch
        %200 = sbr.rel (%p198) target = $region24
      $region23: #{sslgcn_forward.4} parent=11 // pred_region
        _
      $region24: #{sslgcn_forward.4} parent=11 // pred_fallthru
        _
    $region12: #{sslgcn_forward.4} parent=5 // pred_fallthru
      _
    %p201 = scmp.lt.s32.totalorder %s13, 6
    // Predicated region
    $region25: #{sslgcn_forward.4} parent=5 // pred_check
      %p202 = pneg %p201
    $region26: #{sslgcn_forward.4} parent=5 // pred_check_branch
      %204 = sbr.rel (%p202) target = $region28
    $region27: #{sslgcn_forward.4} parent=5 // pred_region
      // Predicated region
      $region29: #{sslgcn_forward.4} parent=27 // pred_check
        %p205 = pneg %p45
      $region30: #{sslgcn_forward.4} parent=27 // pred_check_branch
        %207 = sbr.rel (%p205) target = $region32
      $region31: #{sslgcn_forward.4} parent=27 // pred_region
        %s208 = smul.u32 16, %s21
        %p209 = scmp.lt.s32.totalorder %s208, 47
        %s210 = scalar_select %p209, %s208, 47
        %s211 = smul.addr %s210, 4
        %s212 = smul.addr %s211, 4
        %s213 = scalar_lea.vmem %s0, %s212
        %s214 = smul.u32 16, %s21
      $region32: #{sslgcn_forward.4} parent=27 // pred_fallthru
        _
    $region28: #{sslgcn_forward.4} parent=5 // pred_fallthru
      _
    %p215 = scmp.le.s32.totalorder 1, %s13
    %p216 = scmp.lt.s32.totalorder %s13, 7
    %p217 = pnand %p215, %p216
    %p218 = pneg %p217
    // Predicated region
    $region33: #{sslgcn_forward.4} parent=5 // pred_check
      _
    $region34: #{sslgcn_forward.4} parent=5 // pred_check_branch
      %220 = sbr.rel (%p217) target = $region36
    $region35: #{sslgcn_forward.4} parent=5 // pred_region
      %s221 = ssub.s32 %s13, 1
      %s222 = smul.u32 16, %s23
      %p223 = scmp.lt.s32.totalorder %s222, 47
      %s224 = scalar_select %p223, %s222, 47
      %s225 = smul.addr %s224, 4
      %s226 = smul.addr %s225, 4
      %s227 = scalar_lea.vmem %s0, %s226
      %p228 = pneg %p51
      %p229 = pneg %p48
      %p230 = pneg %p72
      %p231 = pneg %p69
      %p232 = pneg %p93
      %p233 = pneg %p90
      %p234 = pneg %p114
      %p235 = pneg %p111
      %p236 = pneg %p135
      %p237 = pneg %p132
      %p238 = pneg %p156
      %p239 = pneg %p153
      %p240 = pneg %p177
      %p241 = pneg %p174
      %s242 = smul.u32 16, %s23
      %p243 = scmp.lt.s32.totalorder %s242, 47
      %s244 = scalar_select %p243, %s242, 47
      %s245 = smul.addr %s244, 4
      %s246 = smul.addr %s245, 4
      %s247 = scalar_lea.vmem %s0, %s246
      %s248 = smul.u32 16, %s23
      %p249 = scmp.eq.s32.totalorder %s22, 0
      %p250 = scmp.eq.s32.totalorder %s23, 0
      %p251 = pnand %p249, %p250
      %p252 = pneg %p251
      // Predicated region
      $region37: #{sslgcn_forward.4} parent=35 // pred_check
        _
      $region38: #{sslgcn_forward.4} parent=35 // pred_check_branch
        %254 = sbr.rel (%p251) target = $region40
      $region39: #{sslgcn_forward.4} parent=35 // pred_region
        %v255 = vld [vmem:[%s1] sm:$0xff]
        %v256 = vld [vmem:[%s1 + $0x8] sm:$0xff]
        %v257 = vld [vmem:[%s1 + $0x10] sm:$0xff]
        %v258 = vld [vmem:[%s1 + $0x18] sm:$0xff]
        %v259 = vld [vmem:[%s1 + $0x20] sm:$0xff]
        %v260 = vld [vmem:[%s1 + $0x28] sm:$0xff]
        %v261 = vld [vmem:[%s1 + $0x30] sm:$0xff]
        %v262 = vld [vmem:[%s1 + $0x38] sm:$0xff]
        %v263 = vld [vmem:[%s1 + $0x40] sm:$0xff]
        %v264 = vld [vmem:[%s1 + $0x48] sm:$0xff]
        %v265 = vld [vmem:[%s1 + $0x50] sm:$0xff]
        %v266 = vld [vmem:[%s1 + $0x58] sm:$0xff]
        %v267 = vld [vmem:[%s1 + $0x60] sm:$0xff]
        %v268 = vld [vmem:[%s1 + $0x68] sm:$0xff]
        %v269 = vld [vmem:[%s1 + $0x70] sm:$0xff]
        %v270 = vld [vmem:[%s1 + $0x78] sm:$0xff]
        %v271 = vld [vmem:[%s1 + $0x80] sm:$0xff]
        %v272 = vld [vmem:[%s1 + $0x88] sm:$0xff]
        %v273 = vld [vmem:[%s1 + $0x90] sm:$0xff]
        %v274 = vld [vmem:[%s1 + $0x98] sm:$0xff]
        %v275 = vld [vmem:[%s1 + $0xa0] sm:$0xff]
        %v276 = vld [vmem:[%s1 + $0xa8] sm:$0xff]
        %v277 = vld [vmem:[%s1 + $0xb0] sm:$0xff]
        %v278 = vld [vmem:[%s1 + $0xb8] sm:$0xff]
        %v279 = vld [vmem:[%s1 + $0xc0] sm:$0xff]
        %v280 = vld [vmem:[%s1 + $0xc8] sm:$0xff]
        %v281 = vld [vmem:[%s1 + $0xd0] sm:$0xff]
        %v282 = vld [vmem:[%s1 + $0xd8] sm:$0xff]
        %v283 = vld [vmem:[%s1 + $0xe0] sm:$0xff]
        %v284 = vld [vmem:[%s1 + $0xe8] sm:$0xff]
        %v285 = vld [vmem:[%s1 + $0xf0] sm:$0xff]
        %v286 = vld [vmem:[%s1 + $0xf8] sm:$0xff]
        %v287 = vld [vmem:[%s2] sm:$0xff]
        %v288 = vld [vmem:[%s2 + $0x8] sm:$0xff]
        %v289 = vld [vmem:[%s2 + $0x10] sm:$0xff]
        %v290 = vld [vmem:[%s2 + $0x18] sm:$0xff]
        %v291 = vld [vmem:[%s2 + $0x20] sm:$0xff]
        %v292 = vld [vmem:[%s2 + $0x28] sm:$0xff]
        %v293 = vld [vmem:[%s2 + $0x30] sm:$0xff]
        %v294 = vld [vmem:[%s2 + $0x38] sm:$0xff]
        %v295 = vld [vmem:[%s2 + $0x40] sm:$0xff]
        %v296 = vld [vmem:[%s2 + $0x48] sm:$0xff]
        %v297 = vld [vmem:[%s2 + $0x50] sm:$0xff]
        %v298 = vld [vmem:[%s2 + $0x58] sm:$0xff]
        %v299 = vld [vmem:[%s2 + $0x60] sm:$0xff]
        %v300 = vld [vmem:[%s2 + $0x68] sm:$0xff]
        %v301 = vld [vmem:[%s2 + $0x70] sm:$0xff]
        %v302 = vld [vmem:[%s2 + $0x78] sm:$0xff]
        %v303 = vld [vmem:[%s2 + $0x80] sm:$0xff]
        %v304 = vld [vmem:[%s2 + $0x88] sm:$0xff]
        %v305 = vld [vmem:[%s2 + $0x90] sm:$0xff]
        %v306 = vld [vmem:[%s2 + $0x98] sm:$0xff]
        %v307 = vld [vmem:[%s2 + $0xa0] sm:$0xff]
        %v308 = vld [vmem:[%s2 + $0xa8] sm:$0xff]
        %v309 = vld [vmem:[%s2 + $0xb0] sm:$0xff]
        %v310 = vld [vmem:[%s2 + $0xb8] sm:$0xff]
        %v311 = vld [vmem:[%s2 + $0xc0] sm:$0xff]
        %v312 = vld [vmem:[%s2 + $0xc8] sm:$0xff]
        %v313 = vld [vmem:[%s2 + $0xd0] sm:$0xff]
        %v314 = vld [vmem:[%s2 + $0xd8] sm:$0xff]
        %v315 = vld [vmem:[%s2 + $0xe0] sm:$0xff]
        %v316 = vld [vmem:[%s2 + $0xe8] sm:$0xff]
        %v317 = vld [vmem:[%s2 + $0xf0] sm:$0xff]
        %v318 = vld [vmem:[%s2 + $0xf8] sm:$0xff]
        %v319 = vadd.f32 %v255, %v287
        %v320 = vadd.f32 %v256, %v288
        %v321 = vadd.f32 %v257, %v289
        %v322 = vadd.f32 %v258, %v290
        %v323 = vadd.f32 %v259, %v291
        %v324 = vadd.f32 %v260, %v292
        %v325 = vadd.f32 %v261, %v293
        %v326 = vadd.f32 %v262, %v294
        %v327 = vadd.f32 %v263, %v295
        %v328 = vadd.f32 %v264, %v296
        %v329 = vadd.f32 %v265, %v297
        %v330 = vadd.f32 %v266, %v298
        %v331 = vadd.f32 %v267, %v299
        %v332 = vadd.f32 %v268, %v300
        %v333 = vadd.f32 %v269, %v301
        %v334 = vadd.f32 %v270, %v302
        %v335 = vadd.f32 %v271, %v303
        %v336 = vadd.f32 %v272, %v304
        %v337 = vadd.f32 %v273, %v305
        %v338 = vadd.f32 %v274, %v306
        %v339 = vadd.f32 %v275, %v307
        %v340 = vadd.f32 %v276, %v308
        %v341 = vadd.f32 %v277, %v309
        %v342 = vadd.f32 %v278, %v310
        %v343 = vadd.f32 %v279, %v311
        %v344 = vadd.f32 %v280, %v312
        %v345 = vadd.f32 %v281, %v313
        %v346 = vadd.f32 %v282, %v314
        %v347 = vadd.f32 %v283, %v315
        %v348 = vadd.f32 %v284, %v316
        %v349 = vadd.f32 %v285, %v317
        %v350 = vadd.f32 %v286, %v318
        %v351 = vpack.c.bf16 %v320, %v319
        %v352 = vpack.c.bf16 %v322, %v321
        %v353 = vpack.c.bf16 %v324, %v323
        %v354 = vpack.c.bf16 %v326, %v325
        %v355 = vpack.c.bf16 %v328, %v327
        %v356 = vpack.c.bf16 %v330, %v329
        %v357 = vpack.c.bf16 %v332, %v331
        %v358 = vpack.c.bf16 %v334, %v333
        %v359 = vpack.c.bf16 %v336, %v335
        %v360 = vpack.c.bf16 %v338, %v337
        %v361 = vpack.c.bf16 %v340, %v339
        %v362 = vpack.c.bf16 %v342, %v341
        %v363 = vpack.c.bf16 %v344, %v343
        %v364 = vpack.c.bf16 %v346, %v345
        %v365 = vpack.c.bf16 %v348, %v347
        %v366 = vpack.c.bf16 %v350, %v349
        %367 = vst [vmem:[#allocation2] sm:$0xff] %v351
        %368 = vst [vmem:[#allocation2 + $0x8] sm:$0xff] %v352
        %369 = vst [vmem:[#allocation2 + $0x10] sm:$0xff] %v353
        %370 = vst [vmem:[#allocation2 + $0x18] sm:$0xff] %v354
        %371 = vst [vmem:[#allocation2 + $0x20] sm:$0xff] %v355
        %372 = vst [vmem:[#allocation2 + $0x28] sm:$0xff] %v356
        %373 = vst [vmem:[#allocation2 + $0x30] sm:$0xff] %v357
        %374 = vst [vmem:[#allocation2 + $0x38] sm:$0xff] %v358
        %375 = vst [vmem:[#allocation2 + $0x40] sm:$0xff] %v359
        %376 = vst [vmem:[#allocation2 + $0x48] sm:$0xff] %v360
        %377 = vst [vmem:[#allocation2 + $0x50] sm:$0xff] %v361
        %378 = vst [vmem:[#allocation2 + $0x58] sm:$0xff] %v362
        %379 = vst [vmem:[#allocation2 + $0x60] sm:$0xff] %v363
        %380 = vst [vmem:[#allocation2 + $0x68] sm:$0xff] %v364
        %381 = vst [vmem:[#allocation2 + $0x70] sm:$0xff] %v365
        %382 = vst [vmem:[#allocation2 + $0x78] sm:$0xff] %v366
        %v383 = vpack.c.bf16 %v256, %v255
        %v384 = vpack.c.bf16 %v258, %v257
        %v385 = vpack.c.bf16 %v260, %v259
        %v386 = vpack.c.bf16 %v262, %v261
        %v387 = vpack.c.bf16 %v264, %v263
        %v388 = vpack.c.bf16 %v266, %v265
        %v389 = vpack.c.bf16 %v268, %v267
        %v390 = vpack.c.bf16 %v270, %v269
        %v391 = vpack.c.bf16 %v272, %v271
        %v392 = vpack.c.bf16 %v274, %v273
        %v393 = vpack.c.bf16 %v276, %v275
        %v394 = vpack.c.bf16 %v278, %v277
        %v395 = vpack.c.bf16 %v280, %v279
        %v396 = vpack.c.bf16 %v282, %v281
        %v397 = vpack.c.bf16 %v284, %v283
        %v398 = vpack.c.bf16 %v286, %v285
        %399 = vst [vmem:[#allocation2 + $0x80] sm:$0xff] %v383
        %400 = vst [vmem:[#allocation2 + $0x88] sm:$0xff] %v384
        %401 = vst [vmem:[#allocation2 + $0x90] sm:$0xff] %v385
        %402 = vst [vmem:[#allocation2 + $0x98] sm:$0xff] %v386
        %403 = vst [vmem:[#allocation2 + $0xa0] sm:$0xff] %v387
        %404 = vst [vmem:[#allocation2 + $0xa8] sm:$0xff] %v388
        %405 = vst [vmem:[#allocation2 + $0xb0] sm:$0xff] %v389
        %406 = vst [vmem:[#allocation2 + $0xb8] sm:$0xff] %v390
        %407 = vst [vmem:[#allocation2 + $0xc0] sm:$0xff] %v391
        %408 = vst [vmem:[#allocation2 + $0xc8] sm:$0xff] %v392
        %409 = vst [vmem:[#allocation2 + $0xd0] sm:$0xff] %v393
        %410 = vst [vmem:[#allocation2 + $0xd8] sm:$0xff] %v394
        %411 = vst [vmem:[#allocation2 + $0xe0] sm:$0xff] %v395
        %412 = vst [vmem:[#allocation2 + $0xe8] sm:$0xff] %v396
        %413 = vst [vmem:[#allocation2 + $0xf0] sm:$0xff] %v397
        %414 = vst [vmem:[#allocation2 + $0xf8] sm:$0xff] %v398
        %415 = vst [vmem:[#allocation5] sm:$0xff] %v319
        %416 = vst [vmem:[#allocation5 + $0x8] sm:$0xff] %v320
        %417 = vst [vmem:[#allocation5 + $0x10] sm:$0xff] %v321
        %418 = vst [vmem:[#allocation5 + $0x18] sm:$0xff] %v322
        %419 = vst [vmem:[#allocation5 + $0x20] sm:$0xff] %v323
        %420 = vst [vmem:[#allocation5 + $0x28] sm:$0xff] %v324
        %421 = vst [vmem:[#allocation5 + $0x30] sm:$0xff] %v325
        %422 = vst [vmem:[#allocation5 + $0x38] sm:$0xff] %v326
        %423 = vst [vmem:[#allocation5 + $0x40] sm:$0xff] %v327
        %424 = vst [vmem:[#allocation5 + $0x48] sm:$0xff] %v328
        %425 = vst [vmem:[#allocation5 + $0x50] sm:$0xff] %v329
        %426 = vst [vmem:[#allocation5 + $0x58] sm:$0xff] %v330
        %427 = vst [vmem:[#allocation5 + $0x60] sm:$0xff] %v331
        %428 = vst [vmem:[#allocation5 + $0x68] sm:$0xff] %v332
        %429 = vst [vmem:[#allocation5 + $0x70] sm:$0xff] %v333
        %430 = vst [vmem:[#allocation5 + $0x78] sm:$0xff] %v334
        %431 = vst [vmem:[#allocation5 + $0x80] sm:$0xff] %v335
        %432 = vst [vmem:[#allocation5 + $0x88] sm:$0xff] %v336
        %433 = vst [vmem:[#allocation5 + $0x90] sm:$0xff] %v337
        %434 = vst [vmem:[#allocation5 + $0x98] sm:$0xff] %v338
        %435 = vst [vmem:[#allocation5 + $0xa0] sm:$0xff] %v339
        %436 = vst [vmem:[#allocation5 + $0xa8] sm:$0xff] %v340
        %437 = vst [vmem:[#allocation5 + $0xb0] sm:$0xff] %v341
        %438 = vst [vmem:[#allocation5 + $0xb8] sm:$0xff] %v342
        %439 = vst [vmem:[#allocation5 + $0xc0] sm:$0xff] %v343
        %440 = vst [vmem:[#allocation5 + $0xc8] sm:$0xff] %v344
        %441 = vst [vmem:[#allocation5 + $0xd0] sm:$0xff] %v345
        %442 = vst [vmem:[#allocation5 + $0xd8] sm:$0xff] %v346
        %443 = vst [vmem:[#allocation5 + $0xe0] sm:$0xff] %v347
        %444 = vst [vmem:[#allocation5 + $0xe8] sm:$0xff] %v348
        %445 = vst [vmem:[#allocation5 + $0xf0] sm:$0xff] %v349
        %446 = vst [vmem:[#allocation5 + $0xf8] sm:$0xff] %v350
        %447 = vst [vmem:[#allocation5 + $0x100] sm:$0xff] %v255
        %448 = vst [vmem:[#allocation5 + $0x108] sm:$0xff] %v256
        %449 = vst [vmem:[#allocation5 + $0x110] sm:$0xff] %v257
        %450 = vst [vmem:[#allocation5 + $0x118] sm:$0xff] %v258
        %451 = vst [vmem:[#allocation5 + $0x120] sm:$0xff] %v259
        %452 = vst [vmem:[#allocation5 + $0x128] sm:$0xff] %v260
        %453 = vst [vmem:[#allocation5 + $0x130] sm:$0xff] %v261
        %454 = vst [vmem:[#allocation5 + $0x138] sm:$0xff] %v262
        %455 = vst [vmem:[#allocation5 + $0x140] sm:$0xff] %v263
        %456 = vst [vmem:[#allocation5 + $0x148] sm:$0xff] %v264
        %457 = vst [vmem:[#allocation5 + $0x150] sm:$0xff] %v265
        %458 = vst [vmem:[#allocation5 + $0x158] sm:$0xff] %v266
        %459 = vst [vmem:[#allocation5 + $0x160] sm:$0xff] %v267
        %460 = vst [vmem:[#allocation5 + $0x168] sm:$0xff] %v268
        %461 = vst [vmem:[#allocation5 + $0x170] sm:$0xff] %v269
        %462 = vst [vmem:[#allocation5 + $0x178] sm:$0xff] %v270
        %463 = vst [vmem:[#allocation5 + $0x180] sm:$0xff] %v271
        %464 = vst [vmem:[#allocation5 + $0x188] sm:$0xff] %v272
        %465 = vst [vmem:[#allocation5 + $0x190] sm:$0xff] %v273
        %466 = vst [vmem:[#allocation5 + $0x198] sm:$0xff] %v274
        %467 = vst [vmem:[#allocation5 + $0x1a0] sm:$0xff] %v275
        %468 = vst [vmem:[#allocation5 + $0x1a8] sm:$0xff] %v276
        %469 = vst [vmem:[#allocation5 + $0x1b0] sm:$0xff] %v277
        %470 = vst [vmem:[#allocation5 + $0x1b8] sm:$0xff] %v278
        %471 = vst [vmem:[#allocation5 + $0x1c0] sm:$0xff] %v279
        %472 = vst [vmem:[#allocation5 + $0x1c8] sm:$0xff] %v280
        %473 = vst [vmem:[#allocation5 + $0x1d0] sm:$0xff] %v281
        %474 = vst [vmem:[#allocation5 + $0x1d8] sm:$0xff] %v282
        %475 = vst [vmem:[#allocation5 + $0x1e0] sm:$0xff] %v283
        %476 = vst [vmem:[#allocation5 + $0x1e8] sm:$0xff] %v284
        %477 = vst [vmem:[#allocation5 + $0x1f0] sm:$0xff] %v285
        %478 = vst [vmem:[#allocation5 + $0x1f8] sm:$0xff] %v286
        %v479 = vld [vmem:[%s3] sm:$0xff]
        %v480 = vld [vmem:[%s3 + $0x8] sm:$0xff]
        %v481 = vld [vmem:[%s3 + $0x10] sm:$0xff]
        %v482 = vld [vmem:[%s3 + $0x18] sm:$0xff]
        %v483 = vld [vmem:[%s3 + $0x20] sm:$0xff]
        %v484 = vld [vmem:[%s3 + $0x28] sm:$0xff]
        %v485 = vld [vmem:[%s3 + $0x30] sm:$0xff]
        %v486 = vld [vmem:[%s3 + $0x38] sm:$0xff]
        %v487 = vld [vmem:[%s3 + $0x40] sm:$0xff]
        %v488 = vld [vmem:[%s3 + $0x48] sm:$0xff]
        %v489 = vld [vmem:[%s3 + $0x50] sm:$0xff]
        %v490 = vld [vmem:[%s3 + $0x58] sm:$0xff]
        %v491 = vld [vmem:[%s3 + $0x60] sm:$0xff]
        %v492 = vld [vmem:[%s3 + $0x68] sm:$0xff]
        %v493 = vld [vmem:[%s3 + $0x70] sm:$0xff]
        %v494 = vld [vmem:[%s3 + $0x78] sm:$0xff]
        %v495 = vld [vmem:[%s3 + $0x80] sm:$0xff]
        %v496 = vld [vmem:[%s3 + $0x88] sm:$0xff]
        %v497 = vld [vmem:[%s3 + $0x90] sm:$0xff]
        %v498 = vld [vmem:[%s3 + $0x98] sm:$0xff]
        %v499 = vld [vmem:[%s3 + $0xa0] sm:$0xff]
        %v500 = vld [vmem:[%s3 + $0xa8] sm:$0xff]
        %v501 = vld [vmem:[%s3 + $0xb0] sm:$0xff]
        %v502 = vld [vmem:[%s3 + $0xb8] sm:$0xff]
        %v503 = vld [vmem:[%s3 + $0xc0] sm:$0xff]
        %v504 = vld [vmem:[%s3 + $0xc8] sm:$0xff]
        %v505 = vld [vmem:[%s3 + $0xd0] sm:$0xff]
        %v506 = vld [vmem:[%s3 + $0xd8] sm:$0xff]
        %v507 = vld [vmem:[%s3 + $0xe0] sm:$0xff]
        %v508 = vld [vmem:[%s3 + $0xe8] sm:$0xff]
        %v509 = vld [vmem:[%s3 + $0xf0] sm:$0xff]
        %v510 = vld [vmem:[%s3 + $0xf8] sm:$0xff]
        %v511 = vld [vmem:[%s3 + $0x100] sm:$0xff]
        %v512 = vld [vmem:[%s3 + $0x108] sm:$0xff]
        %v513 = vld [vmem:[%s3 + $0x110] sm:$0xff]
        %v514 = vld [vmem:[%s3 + $0x118] sm:$0xff]
        %v515 = vld [vmem:[%s3 + $0x120] sm:$0xff]
        %v516 = vld [vmem:[%s3 + $0x128] sm:$0xff]
        %v517 = vld [vmem:[%s3 + $0x130] sm:$0xff]
        %v518 = vld [vmem:[%s3 + $0x138] sm:$0xff]
        %v519 = vld [vmem:[%s3 + $0x140] sm:$0xff]
        %v520 = vld [vmem:[%s3 + $0x148] sm:$0xff]
        %v521 = vld [vmem:[%s3 + $0x150] sm:$0xff]
        %v522 = vld [vmem:[%s3 + $0x158] sm:$0xff]
        %v523 = vld [vmem:[%s3 + $0x160] sm:$0xff]
        %v524 = vld [vmem:[%s3 + $0x168] sm:$0xff]
        %v525 = vld [vmem:[%s3 + $0x170] sm:$0xff]
        %v526 = vld [vmem:[%s3 + $0x178] sm:$0xff]
        %vm527 = vcmask 523264
        %528 = vst.msk [vmem:[#allocation4] sm:$0xff] %vm527, %v479
        %529 = vst.msk [vmem:[#allocation4 + $0x8] sm:$0xff] %vm527, %v480
        %530 = vst.msk [vmem:[#allocation4 + $0x10] sm:$0xff] %vm527, %v481
        %531 = vst.msk [vmem:[#allocation4 + $0x18] sm:$0xff] %vm527, %v482
        %532 = vst.msk [vmem:[#allocation4 + $0x20] sm:$0xff] %vm527, %v483
        %533 = vst.msk [vmem:[#allocation4 + $0x28] sm:$0xff] %vm527, %v484
        %534 = vst.msk [vmem:[#allocation4 + $0x30] sm:$0xff] %vm527, %v485
        %535 = vst.msk [vmem:[#allocation4 + $0x38] sm:$0xff] %vm527, %v486
        %536 = vst.msk [vmem:[#allocation4 + $0x40] sm:$0xff] %vm527, %v487
        %537 = vst.msk [vmem:[#allocation4 + $0x48] sm:$0xff] %vm527, %v488
        %538 = vst.msk [vmem:[#allocation4 + $0x50] sm:$0xff] %vm527, %v489
        %539 = vst.msk [vmem:[#allocation4 + $0x58] sm:$0xff] %vm527, %v490
        %540 = vst.msk [vmem:[#allocation4 + $0x60] sm:$0xff] %vm527, %v491
        %541 = vst.msk [vmem:[#allocation4 + $0x68] sm:$0xff] %vm527, %v492
        %542 = vst.msk [vmem:[#allocation4 + $0x70] sm:$0xff] %vm527, %v493
        %543 = vst.msk [vmem:[#allocation4 + $0x78] sm:$0xff] %vm527, %v494
        %544 = vst.msk [vmem:[#allocation4 + $0x80] sm:$0xff] %vm527, %v495
        %545 = vst.msk [vmem:[#allocation4 + $0x88] sm:$0xff] %vm527, %v496
        %546 = vst.msk [vmem:[#allocation4 + $0x90] sm:$0xff] %vm527, %v497
        %547 = vst.msk [vmem:[#allocation4 + $0x98] sm:$0xff] %vm527, %v498
        %548 = vst.msk [vmem:[#allocation4 + $0xa0] sm:$0xff] %vm527, %v499
        %549 = vst.msk [vmem:[#allocation4 + $0xa8] sm:$0xff] %vm527, %v500
        %550 = vst.msk [vmem:[#allocation4 + $0xb0] sm:$0xff] %vm527, %v501
        %551 = vst.msk [vmem:[#allocation4 + $0xb8] sm:$0xff] %vm527, %v502
        %552 = vst.msk [vmem:[#allocation4 + $0xc0] sm:$0xff] %vm527, %v503
        %553 = vst.msk [vmem:[#allocation4 + $0xc8] sm:$0xff] %vm527, %v504
        %554 = vst.msk [vmem:[#allocation4 + $0xd0] sm:$0xff] %vm527, %v505
        %555 = vst.msk [vmem:[#allocation4 + $0xd8] sm:$0xff] %vm527, %v506
        %556 = vst.msk [vmem:[#allocation4 + $0xe0] sm:$0xff] %vm527, %v507
        %557 = vst.msk [vmem:[#allocation4 + $0xe8] sm:$0xff] %vm527, %v508
        %558 = vst.msk [vmem:[#allocation4 + $0xf0] sm:$0xff] %vm527, %v509
        %559 = vst.msk [vmem:[#allocation4 + $0xf8] sm:$0xff] %vm527, %v510
        %560 = vst.msk [vmem:[#allocation4 + $0x100] sm:$0xff] %vm527, %v511
        %561 = vst.msk [vmem:[#allocation4 + $0x108] sm:$0xff] %vm527, %v512
        %562 = vst.msk [vmem:[#allocation4 + $0x110] sm:$0xff] %vm527, %v513
        %563 = vst.msk [vmem:[#allocation4 + $0x118] sm:$0xff] %vm527, %v514
        %564 = vst.msk [vmem:[#allocation4 + $0x120] sm:$0xff] %vm527, %v515
        %565 = vst.msk [vmem:[#allocation4 + $0x128] sm:$0xff] %vm527, %v516
        %566 = vst.msk [vmem:[#allocation4 + $0x130] sm:$0xff] %vm527, %v517
        %567 = vst.msk [vmem:[#allocation4 + $0x138] sm:$0xff] %vm527, %v518
        %568 = vst.msk [vmem:[#allocation4 + $0x140] sm:$0xff] %vm527, %v519
        %569 = vst.msk [vmem:[#allocation4 + $0x148] sm:$0xff] %vm527, %v520
        %570 = vst.msk [vmem:[#allocation4 + $0x150] sm:$0xff] %vm527, %v521
        %571 = vst.msk [vmem:[#allocation4 + $0x158] sm:$0xff] %vm527, %v522
        %572 = vst.msk [vmem:[#allocation4 + $0x160] sm:$0xff] %vm527, %v523
        %573 = vst.msk [vmem:[#allocation4 + $0x168] sm:$0xff] %vm527, %v524
        %574 = vst.msk [vmem:[#allocation4 + $0x170] sm:$0xff] %vm527, %v525
        %575 = vst.msk [vmem:[#allocation4 + $0x178] sm:$0xff] %vm527, %v526
        %624 = vrot.lane.b32.xlu0 %v479, 64
        %v625 = vpop.permute.xlu0 %624
        %626 = vrot.lane.b32.xlu0 %v480, 64
        %v627 = vpop.permute.xlu0 %626
        %628 = vrot.lane.b32.xlu0 %v481, 64
        %v629 = vpop.permute.xlu0 %628
        %630 = vrot.lane.b32.xlu0 %v482, 64
        %v631 = vpop.permute.xlu0 %630
        %632 = vrot.lane.b32.xlu0 %v483, 64
        %v633 = vpop.permute.xlu0 %632
        %634 = vrot.lane.b32.xlu0 %v484, 64
        %v635 = vpop.permute.xlu0 %634
        %636 = vrot.lane.b32.xlu0 %v485, 64
        %v637 = vpop.permute.xlu0 %636
        %638 = vrot.lane.b32.xlu0 %v486, 64
        %v639 = vpop.permute.xlu0 %638
        %640 = vrot.lane.b32.xlu0 %v487, 64
        %v641 = vpop.permute.xlu0 %640
        %642 = vrot.lane.b32.xlu0 %v488, 64
        %v643 = vpop.permute.xlu0 %642
        %644 = vrot.lane.b32.xlu0 %v489, 64
        %v645 = vpop.permute.xlu0 %644
        %646 = vrot.lane.b32.xlu0 %v490, 64
        %v647 = vpop.permute.xlu0 %646
        %648 = vrot.lane.b32.xlu0 %v491, 64
        %v649 = vpop.permute.xlu0 %648
        %650 = vrot.lane.b32.xlu0 %v492, 64
        %v651 = vpop.permute.xlu0 %650
        %652 = vrot.lane.b32.xlu0 %v493, 64
        %v653 = vpop.permute.xlu0 %652
        %654 = vrot.lane.b32.xlu0 %v494, 64
        %v655 = vpop.permute.xlu0 %654
        %656 = vrot.lane.b32.xlu0 %v495, 64
        %v657 = vpop.permute.xlu0 %656
        %658 = vrot.lane.b32.xlu0 %v496, 64
        %v659 = vpop.permute.xlu0 %658
        %660 = vrot.lane.b32.xlu0 %v497, 64
        %v661 = vpop.permute.xlu0 %660
        %662 = vrot.lane.b32.xlu0 %v498, 64
        %v663 = vpop.permute.xlu0 %662
        %664 = vrot.lane.b32.xlu0 %v499, 64
        %v665 = vpop.permute.xlu0 %664
        %666 = vrot.lane.b32.xlu0 %v500, 64
        %v667 = vpop.permute.xlu0 %666
        %668 = vrot.lane.b32.xlu0 %v501, 64
        %v669 = vpop.permute.xlu0 %668
        %670 = vrot.lane.b32.xlu0 %v502, 64
        %v671 = vpop.permute.xlu0 %670
        %672 = vrot.lane.b32.xlu0 %v503, 64
        %v673 = vpop.permute.xlu0 %672
        %674 = vrot.lane.b32.xlu0 %v504, 64
        %v675 = vpop.permute.xlu0 %674
        %676 = vrot.lane.b32.xlu0 %v505, 64
        %v677 = vpop.permute.xlu0 %676
        %678 = vrot.lane.b32.xlu0 %v506, 64
        %v679 = vpop.permute.xlu0 %678
        %680 = vrot.lane.b32.xlu0 %v507, 64
        %v681 = vpop.permute.xlu0 %680
        %682 = vrot.lane.b32.xlu0 %v508, 64
        %v683 = vpop.permute.xlu0 %682
        %684 = vrot.lane.b32.xlu0 %v509, 64
        %v685 = vpop.permute.xlu0 %684
        %686 = vrot.lane.b32.xlu0 %v510, 64
        %v687 = vpop.permute.xlu0 %686
        %688 = vrot.lane.b32.xlu0 %v511, 64
        %v689 = vpop.permute.xlu0 %688
        %690 = vrot.lane.b32.xlu0 %v512, 64
        %v691 = vpop.permute.xlu0 %690
        %692 = vrot.lane.b32.xlu0 %v513, 64
        %v693 = vpop.permute.xlu0 %692
        %694 = vrot.lane.b32.xlu0 %v514, 64
        %v695 = vpop.permute.xlu0 %694
        %696 = vrot.lane.b32.xlu0 %v515, 64
        %v697 = vpop.permute.xlu0 %696
        %698 = vrot.lane.b32.xlu0 %v516, 64
        %v699 = vpop.permute.xlu0 %698
        %700 = vrot.lane.b32.xlu0 %v517, 64
        %v701 = vpop.permute.xlu0 %700
        %702 = vrot.lane.b32.xlu0 %v518, 64
        %v703 = vpop.permute.xlu0 %702
        %704 = vrot.lane.b32.xlu0 %v519, 64
        %v705 = vpop.permute.xlu0 %704
        %706 = vrot.lane.b32.xlu0 %v520, 64
        %v707 = vpop.permute.xlu0 %706
        %708 = vrot.lane.b32.xlu0 %v521, 64
        %v709 = vpop.permute.xlu0 %708
        %710 = vrot.lane.b32.xlu0 %v522, 64
        %v711 = vpop.permute.xlu0 %710
        %712 = vrot.lane.b32.xlu0 %v523, 64
        %v713 = vpop.permute.xlu0 %712
        %714 = vrot.lane.b32.xlu0 %v524, 64
        %v715 = vpop.permute.xlu0 %714
        %716 = vrot.lane.b32.xlu0 %v525, 64
        %v717 = vpop.permute.xlu0 %716
        %718 = vrot.lane.b32.xlu0 %v526, 64
        %v719 = vpop.permute.xlu0 %718
        %vm768 = vcmask 1048064
        %769 = vst.msk [vmem:[#allocation4] sm:$0xff] %vm768, %v625
        %770 = vst.msk [vmem:[#allocation4 + $0x8] sm:$0xff] %vm768, %v627
        %771 = vst.msk [vmem:[#allocation4 + $0x10] sm:$0xff] %vm768, %v629
        %772 = vst.msk [vmem:[#allocation4 + $0x18] sm:$0xff] %vm768, %v631
        %773 = vst.msk [vmem:[#allocation4 + $0x20] sm:$0xff] %vm768, %v633
        %774 = vst.msk [vmem:[#allocation4 + $0x28] sm:$0xff] %vm768, %v635
        %775 = vst.msk [vmem:[#allocation4 + $0x30] sm:$0xff] %vm768, %v637
        %776 = vst.msk [vmem:[#allocation4 + $0x38] sm:$0xff] %vm768, %v639
        %777 = vst.msk [vmem:[#allocation4 + $0x40] sm:$0xff] %vm768, %v641
        %778 = vst.msk [vmem:[#allocation4 + $0x48] sm:$0xff] %vm768, %v643
        %779 = vst.msk [vmem:[#allocation4 + $0x50] sm:$0xff] %vm768, %v645
        %780 = vst.msk [vmem:[#allocation4 + $0x58] sm:$0xff] %vm768, %v647
        %781 = vst.msk [vmem:[#allocation4 + $0x60] sm:$0xff] %vm768, %v649
        %782 = vst.msk [vmem:[#allocation4 + $0x68] sm:$0xff] %vm768, %v651
        %783 = vst.msk [vmem:[#allocation4 + $0x70] sm:$0xff] %vm768, %v653
        %784 = vst.msk [vmem:[#allocation4 + $0x78] sm:$0xff] %vm768, %v655
        %785 = vst.msk [vmem:[#allocation4 + $0x80] sm:$0xff] %vm768, %v657
        %786 = vst.msk [vmem:[#allocation4 + $0x88] sm:$0xff] %vm768, %v659
        %787 = vst.msk [vmem:[#allocation4 + $0x90] sm:$0xff] %vm768, %v661
        %788 = vst.msk [vmem:[#allocation4 + $0x98] sm:$0xff] %vm768, %v663
        %789 = vst.msk [vmem:[#allocation4 + $0xa0] sm:$0xff] %vm768, %v665
        %790 = vst.msk [vmem:[#allocation4 + $0xa8] sm:$0xff] %vm768, %v667
        %791 = vst.msk [vmem:[#allocation4 + $0xb0] sm:$0xff] %vm768, %v669
        %792 = vst.msk [vmem:[#allocation4 + $0xb8] sm:$0xff] %vm768, %v671
        %793 = vst.msk [vmem:[#allocation4 + $0xc0] sm:$0xff] %vm768, %v673
        %794 = vst.msk [vmem:[#allocation4 + $0xc8] sm:$0xff] %vm768, %v675
        %795 = vst.msk [vmem:[#allocation4 + $0xd0] sm:$0xff] %vm768, %v677
        %796 = vst.msk [vmem:[#allocation4 + $0xd8] sm:$0xff] %vm768, %v679
        %797 = vst.msk [vmem:[#allocation4 + $0xe0] sm:$0xff] %vm768, %v681
        %798 = vst.msk [vmem:[#allocation4 + $0xe8] sm:$0xff] %vm768, %v683
        %799 = vst.msk [vmem:[#allocation4 + $0xf0] sm:$0xff] %vm768, %v685
        %800 = vst.msk [vmem:[#allocation4 + $0xf8] sm:$0xff] %vm768, %v687
        %801 = vst.msk [vmem:[#allocation4 + $0x100] sm:$0xff] %vm768, %v689
        %802 = vst.msk [vmem:[#allocation4 + $0x108] sm:$0xff] %vm768, %v691
        %803 = vst.msk [vmem:[#allocation4 + $0x110] sm:$0xff] %vm768, %v693
        %804 = vst.msk [vmem:[#allocation4 + $0x118] sm:$0xff] %vm768, %v695
        %805 = vst.msk [vmem:[#allocation4 + $0x120] sm:$0xff] %vm768, %v697
        %806 = vst.msk [vmem:[#allocation4 + $0x128] sm:$0xff] %vm768, %v699
        %807 = vst.msk [vmem:[#allocation4 + $0x130] sm:$0xff] %vm768, %v701
        %808 = vst.msk [vmem:[#allocation4 + $0x138] sm:$0xff] %vm768, %v703
        %809 = vst.msk [vmem:[#allocation4 + $0x140] sm:$0xff] %vm768, %v705
        %810 = vst.msk [vmem:[#allocation4 + $0x148] sm:$0xff] %vm768, %v707
        %811 = vst.msk [vmem:[#allocation4 + $0x150] sm:$0xff] %vm768, %v709
        %812 = vst.msk [vmem:[#allocation4 + $0x158] sm:$0xff] %vm768, %v711
        %813 = vst.msk [vmem:[#allocation4 + $0x160] sm:$0xff] %vm768, %v713
        %814 = vst.msk [vmem:[#allocation4 + $0x168] sm:$0xff] %vm768, %v715
        %815 = vst.msk [vmem:[#allocation4 + $0x170] sm:$0xff] %vm768, %v717
        %816 = vst.msk [vmem:[#allocation4 + $0x178] sm:$0xff] %vm768, %v719
        %817 = vst.msk [vmem:[#allocation6] sm:$0xff] %vm527, %v479
        %818 = vst.msk [vmem:[#allocation6 + $0x8] sm:$0xff] %vm527, %v480
        %819 = vst.msk [vmem:[#allocation6 + $0x10] sm:$0xff] %vm527, %v481
        %820 = vst.msk [vmem:[#allocation6 + $0x18] sm:$0xff] %vm527, %v482
        %821 = vst.msk [vmem:[#allocation6 + $0x20] sm:$0xff] %vm527, %v483
        %822 = vst.msk [vmem:[#allocation6 + $0x28] sm:$0xff] %vm527, %v484
        %823 = vst.msk [vmem:[#allocation6 + $0x30] sm:$0xff] %vm527, %v485
        %824 = vst.msk [vmem:[#allocation6 + $0x38] sm:$0xff] %vm527, %v486
        %825 = vst.msk [vmem:[#allocation6 + $0x40] sm:$0xff] %vm527, %v487
        %826 = vst.msk [vmem:[#allocation6 + $0x48] sm:$0xff] %vm527, %v488
        %827 = vst.msk [vmem:[#allocation6 + $0x50] sm:$0xff] %vm527, %v489
        %828 = vst.msk [vmem:[#allocation6 + $0x58] sm:$0xff] %vm527, %v490
        %829 = vst.msk [vmem:[#allocation6 + $0x60] sm:$0xff] %vm527, %v491
        %830 = vst.msk [vmem:[#allocation6 + $0x68] sm:$0xff] %vm527, %v492
        %831 = vst.msk [vmem:[#allocation6 + $0x70] sm:$0xff] %vm527, %v493
        %832 = vst.msk [vmem:[#allocation6 + $0x78] sm:$0xff] %vm527, %v494
        %833 = vst.msk [vmem:[#allocation6 + $0x80] sm:$0xff] %vm527, %v495
        %834 = vst.msk [vmem:[#allocation6 + $0x88] sm:$0xff] %vm527, %v496
        %835 = vst.msk [vmem:[#allocation6 + $0x90] sm:$0xff] %vm527, %v497
        %836 = vst.msk [vmem:[#allocation6 + $0x98] sm:$0xff] %vm527, %v498
        %837 = vst.msk [vmem:[#allocation6 + $0xa0] sm:$0xff] %vm527, %v499
        %838 = vst.msk [vmem:[#allocation6 + $0xa8] sm:$0xff] %vm527, %v500
        %839 = vst.msk [vmem:[#allocation6 + $0xb0] sm:$0xff] %vm527, %v501
        %840 = vst.msk [vmem:[#allocation6 + $0xb8] sm:$0xff] %vm527, %v502
        %841 = vst.msk [vmem:[#allocation6 + $0xc0] sm:$0xff] %vm527, %v503
        %842 = vst.msk [vmem:[#allocation6 + $0xc8] sm:$0xff] %vm527, %v504
        %843 = vst.msk [vmem:[#allocation6 + $0xd0] sm:$0xff] %vm527, %v505
        %844 = vst.msk [vmem:[#allocation6 + $0xd8] sm:$0xff] %vm527, %v506
        %845 = vst.msk [vmem:[#allocation6 + $0xe0] sm:$0xff] %vm527, %v507
        %846 = vst.msk [vmem:[#allocation6 + $0xe8] sm:$0xff] %vm527, %v508
        %847 = vst.msk [vmem:[#allocation6 + $0xf0] sm:$0xff] %vm527, %v509
        %848 = vst.msk [vmem:[#allocation6 + $0xf8] sm:$0xff] %vm527, %v510
        %849 = vst.msk [vmem:[#allocation6 + $0x100] sm:$0xff] %vm527, %v511
        %850 = vst.msk [vmem:[#allocation6 + $0x108] sm:$0xff] %vm527, %v512
        %851 = vst.msk [vmem:[#allocation6 + $0x110] sm:$0xff] %vm527, %v513
        %852 = vst.msk [vmem:[#allocation6 + $0x118] sm:$0xff] %vm527, %v514
        %853 = vst.msk [vmem:[#allocation6 + $0x120] sm:$0xff] %vm527, %v515
        %854 = vst.msk [vmem:[#allocation6 + $0x128] sm:$0xff] %vm527, %v516
        %855 = vst.msk [vmem:[#allocation6 + $0x130] sm:$0xff] %vm527, %v517
        %856 = vst.msk [vmem:[#allocation6 + $0x138] sm:$0xff] %vm527, %v518
        %857 = vst.msk [vmem:[#allocation6 + $0x140] sm:$0xff] %vm527, %v519
        %858 = vst.msk [vmem:[#allocation6 + $0x148] sm:$0xff] %vm527, %v520
        %859 = vst.msk [vmem:[#allocation6 + $0x150] sm:$0xff] %vm527, %v521
        %860 = vst.msk [vmem:[#allocation6 + $0x158] sm:$0xff] %vm527, %v522
        %861 = vst.msk [vmem:[#allocation6 + $0x160] sm:$0xff] %vm527, %v523
        %862 = vst.msk [vmem:[#allocation6 + $0x168] sm:$0xff] %vm527, %v524
        %863 = vst.msk [vmem:[#allocation6 + $0x170] sm:$0xff] %vm527, %v525
        %864 = vst.msk [vmem:[#allocation6 + $0x178] sm:$0xff] %vm527, %v526
        %865 = vst.msk [vmem:[#allocation6] sm:$0xff] %vm768, %v625
        %866 = vst.msk [vmem:[#allocation6 + $0x8] sm:$0xff] %vm768, %v627
        %867 = vst.msk [vmem:[#allocation6 + $0x10] sm:$0xff] %vm768, %v629
        %868 = vst.msk [vmem:[#allocation6 + $0x18] sm:$0xff] %vm768, %v631
        %869 = vst.msk [vmem:[#allocation6 + $0x20] sm:$0xff] %vm768, %v633
        %870 = vst.msk [vmem:[#allocation6 + $0x28] sm:$0xff] %vm768, %v635
        %871 = vst.msk [vmem:[#allocation6 + $0x30] sm:$0xff] %vm768, %v637
        %872 = vst.msk [vmem:[#allocation6 + $0x38] sm:$0xff] %vm768, %v639
        %873 = vst.msk [vmem:[#allocation6 + $0x40] sm:$0xff] %vm768, %v641
        %874 = vst.msk [vmem:[#allocation6 + $0x48] sm:$0xff] %vm768, %v643
        %875 = vst.msk [vmem:[#allocation6 + $0x50] sm:$0xff] %vm768, %v645
        %876 = vst.msk [vmem:[#allocation6 + $0x58] sm:$0xff] %vm768, %v647
        %877 = vst.msk [vmem:[#allocation6 + $0x60] sm:$0xff] %vm768, %v649
        %878 = vst.msk [vmem:[#allocation6 + $0x68] sm:$0xff] %vm768, %v651
        %879 = vst.msk [vmem:[#allocation6 + $0x70] sm:$0xff] %vm768, %v653
        %880 = vst.msk [vmem:[#allocation6 + $0x78] sm:$0xff] %vm768, %v655
        %881 = vst.msk [vmem:[#allocation6 + $0x80] sm:$0xff] %vm768, %v657
        %882 = vst.msk [vmem:[#allocation6 + $0x88] sm:$0xff] %vm768, %v659
        %883 = vst.msk [vmem:[#allocation6 + $0x90] sm:$0xff] %vm768, %v661
        %884 = vst.msk [vmem:[#allocation6 + $0x98] sm:$0xff] %vm768, %v663
        %885 = vst.msk [vmem:[#allocation6 + $0xa0] sm:$0xff] %vm768, %v665
        %886 = vst.msk [vmem:[#allocation6 + $0xa8] sm:$0xff] %vm768, %v667
        %887 = vst.msk [vmem:[#allocation6 + $0xb0] sm:$0xff] %vm768, %v669
        %888 = vst.msk [vmem:[#allocation6 + $0xb8] sm:$0xff] %vm768, %v671
        %889 = vst.msk [vmem:[#allocation6 + $0xc0] sm:$0xff] %vm768, %v673
        %890 = vst.msk [vmem:[#allocation6 + $0xc8] sm:$0xff] %vm768, %v675
        %891 = vst.msk [vmem:[#allocation6 + $0xd0] sm:$0xff] %vm768, %v677
        %892 = vst.msk [vmem:[#allocation6 + $0xd8] sm:$0xff] %vm768, %v679
        %893 = vst.msk [vmem:[#allocation6 + $0xe0] sm:$0xff] %vm768, %v681
        %894 = vst.msk [vmem:[#allocation6 + $0xe8] sm:$0xff] %vm768, %v683
        %895 = vst.msk [vmem:[#allocation6 + $0xf0] sm:$0xff] %vm768, %v685
        %896 = vst.msk [vmem:[#allocation6 + $0xf8] sm:$0xff] %vm768, %v687
        %897 = vst.msk [vmem:[#allocation6 + $0x100] sm:$0xff] %vm768, %v689
        %898 = vst.msk [vmem:[#allocation6 + $0x108] sm:$0xff] %vm768, %v691
        %899 = vst.msk [vmem:[#allocation6 + $0x110] sm:$0xff] %vm768, %v693
        %900 = vst.msk [vmem:[#allocation6 + $0x118] sm:$0xff] %vm768, %v695
        %901 = vst.msk [vmem:[#allocation6 + $0x120] sm:$0xff] %vm768, %v697
        %902 = vst.msk [vmem:[#allocation6 + $0x128] sm:$0xff] %vm768, %v699
        %903 = vst.msk [vmem:[#allocation6 + $0x130] sm:$0xff] %vm768, %v701
        %904 = vst.msk [vmem:[#allocation6 + $0x138] sm:$0xff] %vm768, %v703
        %905 = vst.msk [vmem:[#allocation6 + $0x140] sm:$0xff] %vm768, %v705
        %906 = vst.msk [vmem:[#allocation6 + $0x148] sm:$0xff] %vm768, %v707
        %907 = vst.msk [vmem:[#allocation6 + $0x150] sm:$0xff] %vm768, %v709
        %908 = vst.msk [vmem:[#allocation6 + $0x158] sm:$0xff] %vm768, %v711
        %909 = vst.msk [vmem:[#allocation6 + $0x160] sm:$0xff] %vm768, %v713
        %910 = vst.msk [vmem:[#allocation6 + $0x168] sm:$0xff] %vm768, %v715
        %911 = vst.msk [vmem:[#allocation6 + $0x170] sm:$0xff] %vm768, %v717
        %912 = vst.msk [vmem:[#allocation6 + $0x178] sm:$0xff] %vm768, %v719
      $region40: #{sslgcn_forward.4} parent=35 // pred_fallthru
        _
      // Predicated region
      $region41: #{sslgcn_forward.4} parent=35 // pred_check
        %p913 = pneg %p250
      $region42: #{sslgcn_forward.4} parent=35 // pred_check_branch
        %915 = sbr.rel (%p913) target = $region44
      $region43: #{sslgcn_forward.4} parent=35 // pred_region
        %916 = vst [vmem:[#allocation3] sm:$0xff] 0.0
        %917 = vst [vmem:[#allocation3 + $0x8] sm:$0xff] 0.0
        %918 = vst [vmem:[#allocation3 + $0x10] sm:$0xff] 0.0
        %919 = vst [vmem:[#allocation3 + $0x18] sm:$0xff] 0.0
        %920 = vst [vmem:[#allocation3 + $0x20] sm:$0xff] 0.0
        %921 = vst [vmem:[#allocation3 + $0x28] sm:$0xff] 0.0
        %922 = vst [vmem:[#allocation3 + $0x30] sm:$0xff] 0.0
        %923 = vst [vmem:[#allocation3 + $0x38] sm:$0xff] 0.0
        %924 = vst [vmem:[#allocation3 + $0x40] sm:$0xff] 0.0
        %925 = vst [vmem:[#allocation3 + $0x48] sm:$0xff] 0.0
        %926 = vst [vmem:[#allocation3 + $0x50] sm:$0xff] 0.0
        %927 = vst [vmem:[#allocation3 + $0x58] sm:$0xff] 0.0
        %928 = vst [vmem:[#allocation3 + $0x60] sm:$0xff] 0.0
        %929 = vst [vmem:[#allocation3 + $0x68] sm:$0xff] 0.0
        %930 = vst [vmem:[#allocation3 + $0x70] sm:$0xff] 0.0
        %931 = vst [vmem:[#allocation3 + $0x78] sm:$0xff] 0.0
        %932 = vst [vmem:[#allocation3 + $0x80] sm:$0xff] 0.0
        %933 = vst [vmem:[#allocation3 + $0x88] sm:$0xff] 0.0
        %934 = vst [vmem:[#allocation3 + $0x90] sm:$0xff] 0.0
        %935 = vst [vmem:[#allocation3 + $0x98] sm:$0xff] 0.0
        %936 = vst [vmem:[#allocation3 + $0xa0] sm:$0xff] 0.0
        %937 = vst [vmem:[#allocation3 + $0xa8] sm:$0xff] 0.0
        %938 = vst [vmem:[#allocation3 + $0xb0] sm:$0xff] 0.0
        %939 = vst [vmem:[#allocation3 + $0xb8] sm:$0xff] 0.0
        %940 = vst [vmem:[#allocation3 + $0xc0] sm:$0xff] 0.0
        %941 = vst [vmem:[#allocation3 + $0xc8] sm:$0xff] 0.0
        %942 = vst [vmem:[#allocation3 + $0xd0] sm:$0xff] 0.0
        %943 = vst [vmem:[#allocation3 + $0xd8] sm:$0xff] 0.0
        %944 = vst [vmem:[#allocation3 + $0xe0] sm:$0xff] 0.0
        %945 = vst [vmem:[#allocation3 + $0xe8] sm:$0xff] 0.0
        %946 = vst [vmem:[#allocation3 + $0xf0] sm:$0xff] 0.0
        %947 = vst [vmem:[#allocation3 + $0xf8] sm:$0xff] 0.0
        %948 = vst [vmem:[#allocation3 + $0x100] sm:$0xff] 0.0
        %949 = vst [vmem:[#allocation3 + $0x108] sm:$0xff] 0.0
        %950 = vst [vmem:[#allocation3 + $0x110] sm:$0xff] 0.0
        %951 = vst [vmem:[#allocation3 + $0x118] sm:$0xff] 0.0
        %952 = vst [vmem:[#allocation3 + $0x120] sm:$0xff] 0.0
        %953 = vst [vmem:[#allocation3 + $0x128] sm:$0xff] 0.0
        %954 = vst [vmem:[#allocation3 + $0x130] sm:$0xff] 0.0
        %955 = vst [vmem:[#allocation3 + $0x138] sm:$0xff] 0.0
        %956 = vst [vmem:[#allocation3 + $0x140] sm:$0xff] 0.0
        %957 = vst [vmem:[#allocation3 + $0x148] sm:$0xff] 0.0
        %958 = vst [vmem:[#allocation3 + $0x150] sm:$0xff] 0.0
        %959 = vst [vmem:[#allocation3 + $0x158] sm:$0xff] 0.0
        %960 = vst [vmem:[#allocation3 + $0x160] sm:$0xff] 0.0
        %961 = vst [vmem:[#allocation3 + $0x168] sm:$0xff] 0.0
        %962 = vst [vmem:[#allocation3 + $0x170] sm:$0xff] 0.0
        %963 = vst [vmem:[#allocation3 + $0x178] sm:$0xff] 0.0
        %964 = vst [vmem:[#allocation3 + $0x180] sm:$0xff] 0.0
        %965 = vst [vmem:[#allocation3 + $0x188] sm:$0xff] 0.0
        %966 = vst [vmem:[#allocation3 + $0x190] sm:$0xff] 0.0
        %967 = vst [vmem:[#allocation3 + $0x198] sm:$0xff] 0.0
        %968 = vst [vmem:[#allocation3 + $0x1a0] sm:$0xff] 0.0
        %969 = vst [vmem:[#allocation3 + $0x1a8] sm:$0xff] 0.0
        %970 = vst [vmem:[#allocation3 + $0x1b0] sm:$0xff] 0.0
        %971 = vst [vmem:[#allocation3 + $0x1b8] sm:$0xff] 0.0
        %972 = vst [vmem:[#allocation3 + $0x1c0] sm:$0xff] 0.0
        %973 = vst [vmem:[#allocation3 + $0x1c8] sm:$0xff] 0.0
        %974 = vst [vmem:[#allocation3 + $0x1d0] sm:$0xff] 0.0
        %975 = vst [vmem:[#allocation3 + $0x1d8] sm:$0xff] 0.0
        %976 = vst [vmem:[#allocation3 + $0x1e0] sm:$0xff] 0.0
        %977 = vst [vmem:[#allocation3 + $0x1e8] sm:$0xff] 0.0
        %978 = vst [vmem:[#allocation3 + $0x1f0] sm:$0xff] 0.0
        %979 = vst [vmem:[#allocation3 + $0x1f8] sm:$0xff] 0.0
      $region44: #{sslgcn_forward.4} parent=35 // pred_fallthru
        _
      %v980 = vld [vmem:[%s247] sm:$0xff]
      %v981 = vld [vmem:[%s247 + $0x8] sm:$0xff]
      %v982 = vld [vmem:[%s247 + $0x10] sm:$0xff]
      %v983 = vld [vmem:[%s247 + $0x18] sm:$0xff]
      %v984 = vld [vmem:[%s247 + $0x20] sm:$0xff]
      %v985 = vld [vmem:[%s247 + $0x28] sm:$0xff]
      %v986 = vld [vmem:[%s247 + $0x30] sm:$0xff]
      %v987 = vld [vmem:[%s247 + $0x38] sm:$0xff]
      %v988 = vld [vmem:[%s247 + $0x40] sm:$0xff]
      %v989 = vld [vmem:[%s247 + $0x48] sm:$0xff]
      %v990 = vld [vmem:[%s247 + $0x50] sm:$0xff]
      %v991 = vld [vmem:[%s247 + $0x58] sm:$0xff]
      %v992 = vld [vmem:[%s247 + $0x60] sm:$0xff]
      %v993 = vld [vmem:[%s247 + $0x68] sm:$0xff]
      %v994 = vld [vmem:[%s247 + $0x70] sm:$0xff]
      %v995 = vld [vmem:[%s247 + $0x78] sm:$0xff]
      %v996 = vld [vmem:[%s247 + $0x80] sm:$0xff]
      %v997 = vld [vmem:[%s247 + $0x88] sm:$0xff]
      %v998 = vld [vmem:[%s247 + $0x90] sm:$0xff]
      %v999 = vld [vmem:[%s247 + $0x98] sm:$0xff]
      %v1000 = vld [vmem:[%s247 + $0xa0] sm:$0xff]
      %v1001 = vld [vmem:[%s247 + $0xa8] sm:$0xff]
      %v1002 = vld [vmem:[%s247 + $0xb0] sm:$0xff]
      %v1003 = vld [vmem:[%s247 + $0xb8] sm:$0xff]
      %v1004 = vld [vmem:[%s247 + $0xc0] sm:$0xff]
      %v1005 = vld [vmem:[%s247 + $0xc8] sm:$0xff]
      %v1006 = vld [vmem:[%s247 + $0xd0] sm:$0xff]
      %v1007 = vld [vmem:[%s247 + $0xd8] sm:$0xff]
      %v1008 = vld [vmem:[%s247 + $0xe0] sm:$0xff]
      %v1009 = vld [vmem:[%s247 + $0xe8] sm:$0xff]
      %v1010 = vld [vmem:[%s247 + $0xf0] sm:$0xff]
      %v1011 = vld [vmem:[%s247 + $0xf8] sm:$0xff]
      %s1012 = smul.u32 %s23, 128
      %s1013 = scalar_lea.vmem [#allocation4], %s1012
      %v1014 = vld [vmem:[%s1013] sm:$0xff]
      %v1015 = vld [vmem:[%s1013 + $0x8] sm:$0xff]
      %v1016 = vld [vmem:[%s1013 + $0x10] sm:$0xff]
      %v1017 = vld [vmem:[%s1013 + $0x18] sm:$0xff]
      %v1018 = vld [vmem:[%s1013 + $0x20] sm:$0xff]
      %v1019 = vld [vmem:[%s1013 + $0x28] sm:$0xff]
      %v1020 = vld [vmem:[%s1013 + $0x30] sm:$0xff]
      %v1021 = vld [vmem:[%s1013 + $0x38] sm:$0xff]
      %v1022 = vld [vmem:[%s1013 + $0x40] sm:$0xff]
      %v1023 = vld [vmem:[%s1013 + $0x48] sm:$0xff]
      %v1024 = vld [vmem:[%s1013 + $0x50] sm:$0xff]
      %v1025 = vld [vmem:[%s1013 + $0x58] sm:$0xff]
      %v1026 = vld [vmem:[%s1013 + $0x60] sm:$0xff]
      %v1027 = vld [vmem:[%s1013 + $0x68] sm:$0xff]
      %v1028 = vld [vmem:[%s1013 + $0x70] sm:$0xff]
      %v1029 = vld [vmem:[%s1013 + $0x78] sm:$0xff]
      %v1030 = vld [vmem:[#allocation2] sm:$0xff]
      %v1031 = vld [vmem:[#allocation2 + $0x8] sm:$0xff]
      %v1032 = vld [vmem:[#allocation2 + $0x10] sm:$0xff]
      %v1033 = vld [vmem:[#allocation2 + $0x18] sm:$0xff]
      %v1034 = vld [vmem:[#allocation2 + $0x20] sm:$0xff]
      %v1035 = vld [vmem:[#allocation2 + $0x28] sm:$0xff]
      %v1036 = vld [vmem:[#allocation2 + $0x30] sm:$0xff]
      %v1037 = vld [vmem:[#allocation2 + $0x38] sm:$0xff]
      %v1038 = vld [vmem:[#allocation2 + $0x40] sm:$0xff]
      %v1039 = vld [vmem:[#allocation2 + $0x48] sm:$0xff]
      %v1040 = vld [vmem:[#allocation2 + $0x50] sm:$0xff]
      %v1041 = vld [vmem:[#allocation2 + $0x58] sm:$0xff]
      %v1042 = vld [vmem:[#allocation2 + $0x60] sm:$0xff]
      %v1043 = vld [vmem:[#allocation2 + $0x68] sm:$0xff]
      %v1044 = vld [vmem:[#allocation2 + $0x70] sm:$0xff]
      %v1045 = vld [vmem:[#allocation2 + $0x78] sm:$0xff]
      %v1046 = vld [vmem:[#allocation2 + $0x80] sm:$0xff]
      %v1047 = vld [vmem:[#allocation2 + $0x88] sm:$0xff]
      %v1048 = vld [vmem:[#allocation2 + $0x90] sm:$0xff]
      %v1049 = vld [vmem:[#allocation2 + $0x98] sm:$0xff]
      %v1050 = vld [vmem:[#allocation2 + $0xa0] sm:$0xff]
      %v1051 = vld [vmem:[#allocation2 + $0xa8] sm:$0xff]
      %v1052 = vld [vmem:[#allocation2 + $0xb0] sm:$0xff]
      %v1053 = vld [vmem:[#allocation2 + $0xb8] sm:$0xff]
      %v1054 = vld [vmem:[#allocation2 + $0xc0] sm:$0xff]
      %v1055 = vld [vmem:[#allocation2 + $0xc8] sm:$0xff]
      %v1056 = vld [vmem:[#allocation2 + $0xd0] sm:$0xff]
      %v1057 = vld [vmem:[#allocation2 + $0xd8] sm:$0xff]
      %v1058 = vld [vmem:[#allocation2 + $0xe0] sm:$0xff]
      %v1059 = vld [vmem:[#allocation2 + $0xe8] sm:$0xff]
      %v1060 = vld [vmem:[#allocation2 + $0xf0] sm:$0xff]
      %v1061 = vld [vmem:[#allocation2 + $0xf8] sm:$0xff]
      %v1094 = vunpack.c.l.b16 %v980
      %v1095 = vunpack.c.h.b16 %v980
      %v1096 = vunpack.c.l.b16 %v981
      %v1097 = vunpack.c.h.b16 %v981
      %v1098 = vunpack.c.l.b16 %v982
      %v1099 = vunpack.c.h.b16 %v982
      %v1100 = vunpack.c.l.b16 %v983
      %v1101 = vunpack.c.h.b16 %v983
      %v1102 = vunpack.c.l.b16 %v984
      %v1103 = vunpack.c.h.b16 %v984
      %v1104 = vunpack.c.l.b16 %v985
      %v1105 = vunpack.c.h.b16 %v985
      %v1106 = vunpack.c.l.b16 %v986
      %v1107 = vunpack.c.h.b16 %v986
      %v1108 = vunpack.c.l.b16 %v987
      %v1109 = vunpack.c.h.b16 %v987
      %v1110 = vunpack.c.l.b16 %v988
      %v1111 = vunpack.c.h.b16 %v988
      %v1112 = vunpack.c.l.b16 %v989
      %v1113 = vunpack.c.h.b16 %v989
      %v1114 = vunpack.c.l.b16 %v990
      %v1115 = vunpack.c.h.b16 %v990
      %v1116 = vunpack.c.l.b16 %v991
      %v1117 = vunpack.c.h.b16 %v991
      %v1118 = vunpack.c.l.b16 %v992
      %v1119 = vunpack.c.h.b16 %v992
      %v1120 = vunpack.c.l.b16 %v993
      %v1121 = vunpack.c.h.b16 %v993
      %v1122 = vunpack.c.l.b16 %v994
      %v1123 = vunpack.c.h.b16 %v994
      %v1124 = vunpack.c.l.b16 %v995
      %v1125 = vunpack.c.h.b16 %v995
      %v1126 = vunpack.c.l.b16 %v996
      %v1127 = vunpack.c.h.b16 %v996
      %v1128 = vunpack.c.l.b16 %v997
      %v1129 = vunpack.c.h.b16 %v997
      %v1130 = vunpack.c.l.b16 %v998
      %v1131 = vunpack.c.h.b16 %v998
      %v1132 = vunpack.c.l.b16 %v999
      %v1133 = vunpack.c.h.b16 %v999
      %v1134 = vunpack.c.l.b16 %v1000
      %v1135 = vunpack.c.h.b16 %v1000
      %v1136 = vunpack.c.l.b16 %v1001
      %v1137 = vunpack.c.h.b16 %v1001
      %v1138 = vunpack.c.l.b16 %v1002
      %v1139 = vunpack.c.h.b16 %v1002
      %v1140 = vunpack.c.l.b16 %v1003
      %v1141 = vunpack.c.h.b16 %v1003
      %v1142 = vunpack.c.l.b16 %v1004
      %v1143 = vunpack.c.h.b16 %v1004
      %v1144 = vunpack.c.l.b16 %v1005
      %v1145 = vunpack.c.h.b16 %v1005
      %v1146 = vunpack.c.l.b16 %v1006
      %v1147 = vunpack.c.h.b16 %v1006
      %v1148 = vunpack.c.l.b16 %v1007
      %v1149 = vunpack.c.h.b16 %v1007
      %v1150 = vunpack.c.l.b16 %v1008
      %v1151 = vunpack.c.h.b16 %v1008
      %v1152 = vunpack.c.l.b16 %v1009
      %v1153 = vunpack.c.h.b16 %v1009
      %v1154 = vunpack.c.l.b16 %v1010
      %v1155 = vunpack.c.h.b16 %v1010
      %v1156 = vunpack.c.l.b16 %v1011
      %v1157 = vunpack.c.h.b16 %v1011
      %v1158 = vpack.c.b16 %v1098, %v1094
      %v1159 = vpack.c.b16 %v1099, %v1095
      %v1160 = vpack.c.b16 %v1100, %v1096
      %v1161 = vpack.c.b16 %v1101, %v1097
      %v1162 = vpack.c.b16 %v1106, %v1102
      %v1163 = vpack.c.b16 %v1107, %v1103
      %v1164 = vpack.c.b16 %v1108, %v1104
      %v1165 = vpack.c.b16 %v1109, %v1105
      %v1166 = vpack.c.b16 %v1114, %v1110
      %v1167 = vpack.c.b16 %v1115, %v1111
      %v1168 = vpack.c.b16 %v1116, %v1112
      %v1169 = vpack.c.b16 %v1117, %v1113
      %v1170 = vpack.c.b16 %v1122, %v1118
      %v1171 = vpack.c.b16 %v1123, %v1119
      %v1172 = vpack.c.b16 %v1124, %v1120
      %v1173 = vpack.c.b16 %v1125, %v1121
      %v1174 = vpack.c.b16 %v1130, %v1126
      %v1175 = vpack.c.b16 %v1131, %v1127
      %v1176 = vpack.c.b16 %v1132, %v1128
      %v1177 = vpack.c.b16 %v1133, %v1129
      %v1178 = vpack.c.b16 %v1138, %v1134
      %v1179 = vpack.c.b16 %v1139, %v1135
      %v1180 = vpack.c.b16 %v1140, %v1136
      %v1181 = vpack.c.b16 %v1141, %v1137
      %v1182 = vpack.c.b16 %v1146, %v1142
      %v1183 = vpack.c.b16 %v1147, %v1143
      %v1184 = vpack.c.b16 %v1148, %v1144
      %v1185 = vpack.c.b16 %v1149, %v1145
      %v1186 = vpack.c.b16 %v1154, %v1150
      %v1187 = vpack.c.b16 %v1155, %v1151
      %v1188 = vpack.c.b16 %v1156, %v1152
      %v1189 = vpack.c.b16 %v1157, %v1153
      %v1254 = vunpack.c.l.b16 %v1030
      %v1255 = vunpack.c.h.b16 %v1030
      %v1256 = vunpack.c.l.b16 %v1031
      %v1257 = vunpack.c.h.b16 %v1031
      %v1258 = vunpack.c.l.b16 %v1032
      %v1259 = vunpack.c.h.b16 %v1032
      %v1260 = vunpack.c.l.b16 %v1033
      %v1261 = vunpack.c.h.b16 %v1033
      %v1262 = vunpack.c.l.b16 %v1034
      %v1263 = vunpack.c.h.b16 %v1034
      %v1264 = vunpack.c.l.b16 %v1035
      %v1265 = vunpack.c.h.b16 %v1035
      %v1266 = vunpack.c.l.b16 %v1036
      %v1267 = vunpack.c.h.b16 %v1036
      %v1268 = vunpack.c.l.b16 %v1037
      %v1269 = vunpack.c.h.b16 %v1037
      %v1270 = vunpack.c.l.b16 %v1038
      %v1271 = vunpack.c.h.b16 %v1038
      %v1272 = vunpack.c.l.b16 %v1039
      %v1273 = vunpack.c.h.b16 %v1039
      %v1274 = vunpack.c.l.b16 %v1040
      %v1275 = vunpack.c.h.b16 %v1040
      %v1276 = vunpack.c.l.b16 %v1041
      %v1277 = vunpack.c.h.b16 %v1041
      %v1278 = vunpack.c.l.b16 %v1042
      %v1279 = vunpack.c.h.b16 %v1042
      %v1280 = vunpack.c.l.b16 %v1043
      %v1281 = vunpack.c.h.b16 %v1043
      %v1282 = vunpack.c.l.b16 %v1044
      %v1283 = vunpack.c.h.b16 %v1044
      %v1284 = vunpack.c.l.b16 %v1045
      %v1285 = vunpack.c.h.b16 %v1045
      %v1286 = vunpack.c.l.b16 %v1046
      %v1287 = vunpack.c.h.b16 %v1046
      %v1288 = vunpack.c.l.b16 %v1047
      %v1289 = vunpack.c.h.b16 %v1047
      %v1290 = vunpack.c.l.b16 %v1048
      %v1291 = vunpack.c.h.b16 %v1048
      %v1292 = vunpack.c.l.b16 %v1049
      %v1293 = vunpack.c.h.b16 %v1049
      %v1294 = vunpack.c.l.b16 %v1050
      %v1295 = vunpack.c.h.b16 %v1050
      %v1296 = vunpack.c.l.b16 %v1051
      %v1297 = vunpack.c.h.b16 %v1051
      %v1298 = vunpack.c.l.b16 %v1052
      %v1299 = vunpack.c.h.b16 %v1052
      %v1300 = vunpack.c.l.b16 %v1053
      %v1301 = vunpack.c.h.b16 %v1053
      %v1302 = vunpack.c.l.b16 %v1054
      %v1303 = vunpack.c.h.b16 %v1054
      %v1304 = vunpack.c.l.b16 %v1055
      %v1305 = vunpack.c.h.b16 %v1055
      %v1306 = vunpack.c.l.b16 %v1056
      %v1307 = vunpack.c.h.b16 %v1056
      %v1308 = vunpack.c.l.b16 %v1057
      %v1309 = vunpack.c.h.b16 %v1057
      %v1310 = vunpack.c.l.b16 %v1058
      %v1311 = vunpack.c.h.b16 %v1058
      %v1312 = vunpack.c.l.b16 %v1059
      %v1313 = vunpack.c.h.b16 %v1059
      %v1314 = vunpack.c.l.b16 %v1060
      %v1315 = vunpack.c.h.b16 %v1060
      %v1316 = vunpack.c.l.b16 %v1061
      %v1317 = vunpack.c.h.b16 %v1061
      %v1318 = vpack.c.b16 %v1258, %v1254
      %v1319 = vpack.c.b16 %v1259, %v1255
      %v1320 = vpack.c.b16 %v1260, %v1256
      %v1321 = vpack.c.b16 %v1261, %v1257
      %v1322 = vpack.c.b16 %v1266, %v1262
      %v1323 = vpack.c.b16 %v1267, %v1263
      %v1324 = vpack.c.b16 %v1268, %v1264
      %v1325 = vpack.c.b16 %v1269, %v1265
      %v1326 = vpack.c.b16 %v1274, %v1270
      %v1327 = vpack.c.b16 %v1275, %v1271
      %v1328 = vpack.c.b16 %v1276, %v1272
      %v1329 = vpack.c.b16 %v1277, %v1273
      %v1330 = vpack.c.b16 %v1282, %v1278
      %v1331 = vpack.c.b16 %v1283, %v1279
      %v1332 = vpack.c.b16 %v1284, %v1280
      %v1333 = vpack.c.b16 %v1285, %v1281
      %v1334 = vpack.c.b16 %v1290, %v1286
      %v1335 = vpack.c.b16 %v1291, %v1287
      %v1336 = vpack.c.b16 %v1292, %v1288
      %v1337 = vpack.c.b16 %v1293, %v1289
      %v1338 = vpack.c.b16 %v1298, %v1294
      %v1339 = vpack.c.b16 %v1299, %v1295
      %v1340 = vpack.c.b16 %v1300, %v1296
      %v1341 = vpack.c.b16 %v1301, %v1297
      %v1342 = vpack.c.b16 %v1306, %v1302
      %v1343 = vpack.c.b16 %v1307, %v1303
      %v1344 = vpack.c.b16 %v1308, %v1304
      %v1345 = vpack.c.b16 %v1309, %v1305
      %v1346 = vpack.c.b16 %v1314, %v1310
      %v1347 = vpack.c.b16 %v1315, %v1311
      %v1348 = vpack.c.b16 %v1316, %v1312
      %v1349 = vpack.c.b16 %v1317, %v1313
      %1382 = vmatpush.bf16.xpose.msra.mxu0 %v1346
      %1383 = vmatpush.bf16.xpose.msra.mxu0 %v1342
      %1384 = vmatpush.bf16.xpose.msra.mxu0 %v1338
      %1385 = vmatpush.bf16.xpose.msra.mxu0 %v1334
      %1386 = vmatpush.bf16.xpose.msra.mxu0 %v1330
      %1387 = vmatpush.bf16.xpose.msra.mxu0 %v1326
      %1388 = vmatpush.bf16.xpose.msra.mxu0 %v1322
      %1389 = vmatpush.bf16.xpose.msra.mxu0 %v1318
      %1390 = vmatmul.bf16.gmra.mxu0 %v1158
      %v1391 = vpop.f32.mrf.mxu0
      %v1392 = vadd.f32 0.0, %v1391
      %v1393 = vpop.f32.mrf.mxu0
      %v1394 = vadd.f32 0.0, %v1393
      %1395 = vmatmul.bf16.gmra.mxu0 %v1162
      %v1396 = vpop.f32.mrf.mxu0
      %v1397 = vadd.f32 0.0, %v1396
      %v1398 = vpop.f32.mrf.mxu0
      %v1399 = vadd.f32 0.0, %v1398
      %1400 = vmatmul.bf16.gmra.mxu0 %v1166
      %v1401 = vpop.f32.mrf.mxu0
      %v1402 = vadd.f32 0.0, %v1401
      %v1403 = vpop.f32.mrf.mxu0
      %v1404 = vadd.f32 0.0, %v1403
      %1405 = vmatmul.bf16.gmra.mxu0 %v1170
      %v1406 = vpop.f32.mrf.mxu0
      %v1407 = vadd.f32 0.0, %v1406
      %v1408 = vpop.f32.mrf.mxu0
      %v1409 = vadd.f32 0.0, %v1408
      %1410 = vmatmul.bf16.gmra.mxu0 %v1174
      %v1411 = vpop.f32.mrf.mxu0
      %v1412 = vadd.f32 0.0, %v1411
      %v1413 = vpop.f32.mrf.mxu0
      %v1414 = vadd.f32 0.0, %v1413
      %1415 = vmatmul.bf16.gmra.mxu0 %v1178
      %v1416 = vpop.f32.mrf.mxu0
      %v1417 = vadd.f32 0.0, %v1416
      %v1418 = vpop.f32.mrf.mxu0
      %v1419 = vadd.f32 0.0, %v1418
      %1420 = vmatmul.bf16.gmra.mxu0 %v1182
      %v1421 = vpop.f32.mrf.mxu0
      %v1422 = vadd.f32 0.0, %v1421
      %v1423 = vpop.f32.mrf.mxu0
      %v1424 = vadd.f32 0.0, %v1423
      %1425 = vmatmul.bf16.gmra.mxu0 %v1186
      %v1426 = vpop.f32.mrf.mxu0
      %v1427 = vadd.f32 0.0, %v1426
      %v1428 = vpop.f32.mrf.mxu0
      %v1429 = vadd.f32 0.0, %v1428
      %1430 = vdwg.mxu0
      %1431 = vmatpush.bf16.xpose.msra.mxu0 %v1347
      %1432 = vmatpush.bf16.xpose.msra.mxu0 %v1343
      %1433 = vmatpush.bf16.xpose.msra.mxu0 %v1339
      %1434 = vmatpush.bf16.xpose.msra.mxu0 %v1335
      %1435 = vmatpush.bf16.xpose.msra.mxu0 %v1331
      %1436 = vmatpush.bf16.xpose.msra.mxu0 %v1327
      %1437 = vmatpush.bf16.xpose.msra.mxu0 %v1323
      %1438 = vmatpush.bf16.xpose.msra.mxu0 %v1319
      %1439 = vmatmul.bf16.gmra.mxu0 %v1159
      %v1440 = vpop.f32.mrf.mxu0
      %v1441 = vadd.f32 %v1392, %v1440
      %v1442 = vpop.f32.mrf.mxu0
      %v1443 = vadd.f32 %v1394, %v1442
      %1444 = vmatmul.bf16.gmra.mxu0 %v1163
      %v1445 = vpop.f32.mrf.mxu0
      %v1446 = vadd.f32 %v1397, %v1445
      %v1447 = vpop.f32.mrf.mxu0
      %v1448 = vadd.f32 %v1399, %v1447
      %1449 = vmatmul.bf16.gmra.mxu0 %v1167
      %v1450 = vpop.f32.mrf.mxu0
      %v1451 = vadd.f32 %v1402, %v1450
      %v1452 = vpop.f32.mrf.mxu0
      %v1453 = vadd.f32 %v1404, %v1452
      %1454 = vmatmul.bf16.gmra.mxu0 %v1171
      %v1455 = vpop.f32.mrf.mxu0
      %v1456 = vadd.f32 %v1407, %v1455
      %v1457 = vpop.f32.mrf.mxu0
      %v1458 = vadd.f32 %v1409, %v1457
      %1459 = vmatmul.bf16.gmra.mxu0 %v1175
      %v1460 = vpop.f32.mrf.mxu0
      %v1461 = vadd.f32 %v1412, %v1460
      %v1462 = vpop.f32.mrf.mxu0
      %v1463 = vadd.f32 %v1414, %v1462
      %1464 = vmatmul.bf16.gmra.mxu0 %v1179
      %v1465 = vpop.f32.mrf.mxu0
      %v1466 = vadd.f32 %v1417, %v1465
      %v1467 = vpop.f32.mrf.mxu0
      %v1468 = vadd.f32 %v1419, %v1467
      %1469 = vmatmul.bf16.gmra.mxu0 %v1183
      %v1470 = vpop.f32.mrf.mxu0
      %v1471 = vadd.f32 %v1422, %v1470
      %v1472 = vpop.f32.mrf.mxu0
      %v1473 = vadd.f32 %v1424, %v1472
      %1474 = vmatmul.bf16.gmra.mxu0 %v1187
      %v1475 = vpop.f32.mrf.mxu0
      %v1476 = vadd.f32 %v1427, %v1475
      %v1477 = vpop.f32.mrf.mxu0
      %v1478 = vadd.f32 %v1429, %v1477
      %1479 = vdwg.mxu0
      %1480 = vmatpush.bf16.xpose.msra.mxu0 %v1348
      %1481 = vmatpush.bf16.xpose.msra.mxu0 %v1344
      %1482 = vmatpush.bf16.xpose.msra.mxu0 %v1340
      %1483 = vmatpush.bf16.xpose.msra.mxu0 %v1336
      %1484 = vmatpush.bf16.xpose.msra.mxu0 %v1332
      %1485 = vmatpush.bf16.xpose.msra.mxu0 %v1328
      %1486 = vmatpush.bf16.xpose.msra.mxu0 %v1324
      %1487 = vmatpush.bf16.xpose.msra.mxu0 %v1320
      %1488 = vmatmul.bf16.gmra.mxu0 %v1160
      %v1489 = vpop.f32.mrf.mxu0
      %v1490 = vadd.f32 %v1441, %v1489
      %v1491 = vpop.f32.mrf.mxu0
      %v1492 = vadd.f32 %v1443, %v1491
      %1493 = vmatmul.bf16.gmra.mxu0 %v1164
      %v1494 = vpop.f32.mrf.mxu0
      %v1495 = vadd.f32 %v1446, %v1494
      %v1496 = vpop.f32.mrf.mxu0
      %v1497 = vadd.f32 %v1448, %v1496
      %1498 = vmatmul.bf16.gmra.mxu0 %v1168
      %v1499 = vpop.f32.mrf.mxu0
      %v1500 = vadd.f32 %v1451, %v1499
      %v1501 = vpop.f32.mrf.mxu0
      %v1502 = vadd.f32 %v1453, %v1501
      %1503 = vmatmul.bf16.gmra.mxu0 %v1172
      %v1504 = vpop.f32.mrf.mxu0
      %v1505 = vadd.f32 %v1456, %v1504
      %v1506 = vpop.f32.mrf.mxu0
      %v1507 = vadd.f32 %v1458, %v1506
      %1508 = vmatmul.bf16.gmra.mxu0 %v1176
      %v1509 = vpop.f32.mrf.mxu0
      %v1510 = vadd.f32 %v1461, %v1509
      %v1511 = vpop.f32.mrf.mxu0
      %v1512 = vadd.f32 %v1463, %v1511
      %1513 = vmatmul.bf16.gmra.mxu0 %v1180
      %v1514 = vpop.f32.mrf.mxu0
      %v1515 = vadd.f32 %v1466, %v1514
      %v1516 = vpop.f32.mrf.mxu0
      %v1517 = vadd.f32 %v1468, %v1516
      %1518 = vmatmul.bf16.gmra.mxu0 %v1184
      %v1519 = vpop.f32.mrf.mxu0
      %v1520 = vadd.f32 %v1471, %v1519
      %v1521 = vpop.f32.mrf.mxu0
      %v1522 = vadd.f32 %v1473, %v1521
      %1523 = vmatmul.bf16.gmra.mxu0 %v1188
      %v1524 = vpop.f32.mrf.mxu0
      %v1525 = vadd.f32 %v1476, %v1524
      %v1526 = vpop.f32.mrf.mxu0
      %v1527 = vadd.f32 %v1478, %v1526
      %1528 = vdwg.mxu0
      %1529 = vmatpush.bf16.xpose.msra.mxu0 %v1349
      %1530 = vmatpush.bf16.xpose.msra.mxu0 %v1345
      %1531 = vmatpush.bf16.xpose.msra.mxu0 %v1341
      %1532 = vmatpush.bf16.xpose.msra.mxu0 %v1337
      %1533 = vmatpush.bf16.xpose.msra.mxu0 %v1333
      %1534 = vmatpush.bf16.xpose.msra.mxu0 %v1329
      %1535 = vmatpush.bf16.xpose.msra.mxu0 %v1325
      %1536 = vmatpush.bf16.xpose.msra.mxu0 %v1321
      %1537 = vmatmul.bf16.gmra.mxu0 %v1161
      %v1538 = vpop.f32.mrf.mxu0
      %v1539 = vadd.f32 %v1490, %v1538
      %v1540 = vpop.f32.mrf.mxu0
      %v1541 = vadd.f32 %v1492, %v1540
      %1542 = vmatmul.bf16.gmra.mxu0 %v1165
      %v1543 = vpop.f32.mrf.mxu0
      %v1544 = vadd.f32 %v1495, %v1543
      %v1545 = vpop.f32.mrf.mxu0
      %v1546 = vadd.f32 %v1497, %v1545
      %1547 = vmatmul.bf16.gmra.mxu0 %v1169
      %v1548 = vpop.f32.mrf.mxu0
      %v1549 = vadd.f32 %v1500, %v1548
      %v1550 = vpop.f32.mrf.mxu0
      %v1551 = vadd.f32 %v1502, %v1550
      %1552 = vmatmul.bf16.gmra.mxu0 %v1173
      %v1553 = vpop.f32.mrf.mxu0
      %v1554 = vadd.f32 %v1505, %v1553
      %v1555 = vpop.f32.mrf.mxu0
      %v1556 = vadd.f32 %v1507, %v1555
      %1557 = vmatmul.bf16.gmra.mxu0 %v1177
      %v1558 = vpop.f32.mrf.mxu0
      %v1559 = vadd.f32 %v1510, %v1558
      %v1560 = vpop.f32.mrf.mxu0
      %v1561 = vadd.f32 %v1512, %v1560
      %1562 = vmatmul.bf16.gmra.mxu0 %v1181
      %v1563 = vpop.f32.mrf.mxu0
      %v1564 = vadd.f32 %v1515, %v1563
      %v1565 = vpop.f32.mrf.mxu0
      %v1566 = vadd.f32 %v1517, %v1565
      %1567 = vmatmul.bf16.gmra.mxu0 %v1185
      %v1568 = vpop.f32.mrf.mxu0
      %v1569 = vadd.f32 %v1520, %v1568
      %v1570 = vpop.f32.mrf.mxu0
      %v1571 = vadd.f32 %v1522, %v1570
      %1572 = vmatmul.bf16.gmra.mxu0 %v1189
      %v1573 = vpop.f32.mrf.mxu0
      %v1574 = vadd.f32 %v1525, %v1573
      %v1575 = vpop.f32.mrf.mxu0
      %v1576 = vadd.f32 %v1527, %v1575
      %1577 = vdwg.mxu0
      %1578 = vxpose.xlu0.b32.start [1/16] %v1014, 128
      %1579 = vxpose.xlu0.b32.cont [2/16] %v1015, 128
      %1580 = vxpose.xlu0.b32.cont [3/16] %v1016, 128
      %1581 = vxpose.xlu0.b32.cont [4/16] %v1017, 128
      %1582 = vxpose.xlu0.b32.cont [5/16] %v1018, 128
      %1583 = vxpose.xlu0.b32.cont [6/16] %v1019, 128
      %1584 = vxpose.xlu0.b32.cont [7/16] %v1020, 128
      %1585 = vxpose.xlu0.b32.cont [8/16] %v1021, 128
      %1586 = vxpose.xlu0.b32.cont [9/16] %v1022, 128
      %1587 = vxpose.xlu0.b32.cont [10/16] %v1023, 128
      %1588 = vxpose.xlu0.b32.cont [11/16] %v1024, 128
      %1589 = vxpose.xlu0.b32.cont [12/16] %v1025, 128
      %1590 = vxpose.xlu0.b32.cont [13/16] %v1026, 128
      %1591 = vxpose.xlu0.b32.cont [14/16] %v1027, 128
      %1592 = vxpose.xlu0.b32.cont [15/16] %v1028, 128
      %1593 = vxpose.xlu0.b32.end [16/16] %v1029, 128
      %v1594 = vpop.trf.xlu0
      %v1595 = vpop.trf.xlu0
      %v1596 = vpop.trf.xlu0
      %v1597 = vpop.trf.xlu0
      %v1598 = vpop.trf.xlu0
      %v1599 = vpop.trf.xlu0
      %v1600 = vpop.trf.xlu0
      %v1601 = vpop.trf.xlu0
      %v1602 = vpop.trf.xlu0
      %v1603 = vpop.trf.xlu0
      %v1604 = vpop.trf.xlu0
      %v1605 = vpop.trf.xlu0
      %v1606 = vpop.trf.xlu0
      %v1607 = vpop.trf.xlu0
      %v1608 = vpop.trf.xlu0
      %v1609 = vpop.trf.xlu0
      %v1610 = vpack.c.bf16 %v1595, %v1594
      %v1611 = vpack.c.bf16 %v1597, %v1596
      %v1612 = vpack.c.bf16 %v1599, %v1598
      %v1613 = vpack.c.bf16 %v1601, %v1600
      %v1614 = vpack.c.bf16 %v1603, %v1602
      %v1615 = vpack.c.bf16 %v1605, %v1604
      %v1616 = vpack.c.bf16 %v1607, %v1606
      %v1617 = vpack.c.bf16 %v1609, %v1608
      %v1618 = vld [vmem:[#allocation3] sm:$0xff]
      %v1619 = vld [vmem:[#allocation3 + $0x8] sm:$0xff]
      %v1620 = vld [vmem:[#allocation3 + $0x10] sm:$0xff]
      %v1621 = vld [vmem:[#allocation3 + $0x18] sm:$0xff]
      %v1622 = vld [vmem:[#allocation3 + $0x20] sm:$0xff]
      %v1623 = vld [vmem:[#allocation3 + $0x28] sm:$0xff]
      %v1624 = vld [vmem:[#allocation3 + $0x30] sm:$0xff]
      %v1625 = vld [vmem:[#allocation3 + $0x38] sm:$0xff]
      %v1626 = vld [vmem:[#allocation3 + $0x40] sm:$0xff]
      %v1627 = vld [vmem:[#allocation3 + $0x48] sm:$0xff]
      %v1628 = vld [vmem:[#allocation3 + $0x50] sm:$0xff]
      %v1629 = vld [vmem:[#allocation3 + $0x58] sm:$0xff]
      %v1630 = vld [vmem:[#allocation3 + $0x60] sm:$0xff]
      %v1631 = vld [vmem:[#allocation3 + $0x68] sm:$0xff]
      %v1632 = vld [vmem:[#allocation3 + $0x70] sm:$0xff]
      %v1633 = vld [vmem:[#allocation3 + $0x78] sm:$0xff]
      %v1634 = vld [vmem:[#allocation3 + $0x80] sm:$0xff]
      %v1635 = vld [vmem:[#allocation3 + $0x88] sm:$0xff]
      %v1636 = vld [vmem:[#allocation3 + $0x90] sm:$0xff]
      %v1637 = vld [vmem:[#allocation3 + $0x98] sm:$0xff]
      %v1638 = vld [vmem:[#allocation3 + $0xa0] sm:$0xff]
      %v1639 = vld [vmem:[#allocation3 + $0xa8] sm:$0xff]
      %v1640 = vld [vmem:[#allocation3 + $0xb0] sm:$0xff]
      %v1641 = vld [vmem:[#allocation3 + $0xb8] sm:$0xff]
      %v1642 = vld [vmem:[#allocation3 + $0xc0] sm:$0xff]
      %v1643 = vld [vmem:[#allocation3 + $0xc8] sm:$0xff]
      %v1644 = vld [vmem:[#allocation3 + $0xd0] sm:$0xff]
      %v1645 = vld [vmem:[#allocation3 + $0xd8] sm:$0xff]
      %v1646 = vld [vmem:[#allocation3 + $0xe0] sm:$0xff]
      %v1647 = vld [vmem:[#allocation3 + $0xe8] sm:$0xff]
      %v1648 = vld [vmem:[#allocation3 + $0xf0] sm:$0xff]
      %v1649 = vld [vmem:[#allocation3 + $0xf8] sm:$0xff]
      %v1650 = vld [vmem:[#allocation3 + $0x100] sm:$0xff]
      %v1651 = vld [vmem:[#allocation3 + $0x108] sm:$0xff]
      %v1652 = vld [vmem:[#allocation3 + $0x110] sm:$0xff]
      %v1653 = vld [vmem:[#allocation3 + $0x118] sm:$0xff]
      %v1654 = vld [vmem:[#allocation3 + $0x120] sm:$0xff]
      %v1655 = vld [vmem:[#allocation3 + $0x128] sm:$0xff]
      %v1656 = vld [vmem:[#allocation3 + $0x130] sm:$0xff]
      %v1657 = vld [vmem:[#allocation3 + $0x138] sm:$0xff]
      %v1658 = vld [vmem:[#allocation3 + $0x140] sm:$0xff]
      %v1659 = vld [vmem:[#allocation3 + $0x148] sm:$0xff]
      %v1660 = vld [vmem:[#allocation3 + $0x150] sm:$0xff]
      %v1661 = vld [vmem:[#allocation3 + $0x158] sm:$0xff]
      %v1662 = vld [vmem:[#allocation3 + $0x160] sm:$0xff]
      %v1663 = vld [vmem:[#allocation3 + $0x168] sm:$0xff]
      %v1664 = vld [vmem:[#allocation3 + $0x170] sm:$0xff]
      %v1665 = vld [vmem:[#allocation3 + $0x178] sm:$0xff]
      %v1666 = vld [vmem:[#allocation3 + $0x180] sm:$0xff]
      %v1667 = vld [vmem:[#allocation3 + $0x188] sm:$0xff]
      %v1668 = vld [vmem:[#allocation3 + $0x190] sm:$0xff]
      %v1669 = vld [vmem:[#allocation3 + $0x198] sm:$0xff]
      %v1670 = vld [vmem:[#allocation3 + $0x1a0] sm:$0xff]
      %v1671 = vld [vmem:[#allocation3 + $0x1a8] sm:$0xff]
      %v1672 = vld [vmem:[#allocation3 + $0x1b0] sm:$0xff]
      %v1673 = vld [vmem:[#allocation3 + $0x1b8] sm:$0xff]
      %v1674 = vld [vmem:[#allocation3 + $0x1c0] sm:$0xff]
      %v1675 = vld [vmem:[#allocation3 + $0x1c8] sm:$0xff]
      %v1676 = vld [vmem:[#allocation3 + $0x1d0] sm:$0xff]
      %v1677 = vld [vmem:[#allocation3 + $0x1d8] sm:$0xff]
      %v1678 = vld [vmem:[#allocation3 + $0x1e0] sm:$0xff]
      %v1679 = vld [vmem:[#allocation3 + $0x1e8] sm:$0xff]
      %v1680 = vld [vmem:[#allocation3 + $0x1f0] sm:$0xff]
      %v1681 = vld [vmem:[#allocation3 + $0x1f8] sm:$0xff]
      %1682 = vmatpush.bf16.msra.mxu0 %v1186
      %1683 = vmatpush.bf16.msra.mxu0 %v1182
      %1684 = vmatpush.bf16.msra.mxu0 %v1178
      %1685 = vmatpush.bf16.msra.mxu0 %v1174
      %1686 = vmatpush.bf16.msra.mxu0 %v1170
      %1687 = vmatpush.bf16.msra.mxu0 %v1166
      %1688 = vmatpush.bf16.msra.mxu0 %v1162
      %1689 = vmatpush.bf16.msra.mxu0 %v1158
      %1690 = vmatmul.bf16.gmra.mxu0 %v1610
      %v1691 = vpop.f32.mrf.mxu0
      %v1692 = vadd.f32 0.0, %v1691
      %v1693 = vpop.f32.mrf.mxu0
      %v1694 = vadd.f32 0.0, %v1693
      %1695 = vmatmul.bf16.gmra.mxu0 %v1611
      %v1696 = vpop.f32.mrf.mxu0
      %v1697 = vadd.f32 0.0, %v1696
      %v1698 = vpop.f32.mrf.mxu0
      %v1699 = vadd.f32 0.0, %v1698
      %1700 = vmatmul.bf16.gmra.mxu0 %v1612
      %v1701 = vpop.f32.mrf.mxu0
      %v1702 = vadd.f32 0.0, %v1701
      %v1703 = vpop.f32.mrf.mxu0
      %v1704 = vadd.f32 0.0, %v1703
      %1705 = vmatmul.bf16.gmra.mxu0 %v1613
      %v1706 = vpop.f32.mrf.mxu0
      %v1707 = vadd.f32 0.0, %v1706
      %v1708 = vpop.f32.mrf.mxu0
      %v1709 = vadd.f32 0.0, %v1708
      %1710 = vmatmul.bf16.gmra.mxu0 %v1614
      %v1711 = vpop.f32.mrf.mxu0
      %v1712 = vadd.f32 0.0, %v1711
      %v1713 = vpop.f32.mrf.mxu0
      %v1714 = vadd.f32 0.0, %v1713
      %1715 = vmatmul.bf16.gmra.mxu0 %v1615
      %v1716 = vpop.f32.mrf.mxu0
      %v1717 = vadd.f32 0.0, %v1716
      %v1718 = vpop.f32.mrf.mxu0
      %v1719 = vadd.f32 0.0, %v1718
      %1720 = vmatmul.bf16.gmra.mxu0 %v1616
      %v1721 = vpop.f32.mrf.mxu0
      %v1722 = vadd.f32 0.0, %v1721
      %v1723 = vpop.f32.mrf.mxu0
      %v1724 = vadd.f32 0.0, %v1723
      %1725 = vmatmul.bf16.gmra.mxu0 %v1617
      %v1726 = vpop.f32.mrf.mxu0
      %v1727 = vadd.f32 0.0, %v1726
      %v1728 = vpop.f32.mrf.mxu0
      %v1729 = vadd.f32 0.0, %v1728
      %1730 = vdwg.mxu0
      %1731 = vmatpush.bf16.msra.mxu0 %v1187
      %1732 = vmatpush.bf16.msra.mxu0 %v1183
      %1733 = vmatpush.bf16.msra.mxu0 %v1179
      %1734 = vmatpush.bf16.msra.mxu0 %v1175
      %1735 = vmatpush.bf16.msra.mxu0 %v1171
      %1736 = vmatpush.bf16.msra.mxu0 %v1167
      %1737 = vmatpush.bf16.msra.mxu0 %v1163
      %1738 = vmatpush.bf16.msra.mxu0 %v1159
      %1739 = vmatmul.bf16.gmra.mxu0 %v1610
      %v1740 = vpop.f32.mrf.mxu0
      %v1741 = vadd.f32 0.0, %v1740
      %v1742 = vpop.f32.mrf.mxu0
      %v1743 = vadd.f32 0.0, %v1742
      %1744 = vmatmul.bf16.gmra.mxu0 %v1611
      %v1745 = vpop.f32.mrf.mxu0
      %v1746 = vadd.f32 0.0, %v1745
      %v1747 = vpop.f32.mrf.mxu0
      %v1748 = vadd.f32 0.0, %v1747
      %1749 = vmatmul.bf16.gmra.mxu0 %v1612
      %v1750 = vpop.f32.mrf.mxu0
      %v1751 = vadd.f32 0.0, %v1750
      %v1752 = vpop.f32.mrf.mxu0
      %v1753 = vadd.f32 0.0, %v1752
      %1754 = vmatmul.bf16.gmra.mxu0 %v1613
      %v1755 = vpop.f32.mrf.mxu0
      %v1756 = vadd.f32 0.0, %v1755
      %v1757 = vpop.f32.mrf.mxu0
      %v1758 = vadd.f32 0.0, %v1757
      %1759 = vmatmul.bf16.gmra.mxu0 %v1614
      %v1760 = vpop.f32.mrf.mxu0
      %v1761 = vadd.f32 0.0, %v1760
      %v1762 = vpop.f32.mrf.mxu0
      %v1763 = vadd.f32 0.0, %v1762
      %1764 = vmatmul.bf16.gmra.mxu0 %v1615
      %v1765 = vpop.f32.mrf.mxu0
      %v1766 = vadd.f32 0.0, %v1765
      %v1767 = vpop.f32.mrf.mxu0
      %v1768 = vadd.f32 0.0, %v1767
      %1769 = vmatmul.bf16.gmra.mxu0 %v1616
      %v1770 = vpop.f32.mrf.mxu0
      %v1771 = vadd.f32 0.0, %v1770
      %v1772 = vpop.f32.mrf.mxu0
      %v1773 = vadd.f32 0.0, %v1772
      %1774 = vmatmul.bf16.gmra.mxu0 %v1617
      %v1775 = vpop.f32.mrf.mxu0
      %v1776 = vadd.f32 0.0, %v1775
      %v1777 = vpop.f32.mrf.mxu0
      %v1778 = vadd.f32 0.0, %v1777
      %1779 = vdwg.mxu0
      %1780 = vmatpush.bf16.msra.mxu0 %v1188
      %1781 = vmatpush.bf16.msra.mxu0 %v1184
      %1782 = vmatpush.bf16.msra.mxu0 %v1180
      %1783 = vmatpush.bf16.msra.mxu0 %v1176
      %1784 = vmatpush.bf16.msra.mxu0 %v1172
      %1785 = vmatpush.bf16.msra.mxu0 %v1168
      %1786 = vmatpush.bf16.msra.mxu0 %v1164
      %1787 = vmatpush.bf16.msra.mxu0 %v1160
      %1788 = vmatmul.bf16.gmra.mxu0 %v1610
      %v1789 = vpop.f32.mrf.mxu0
      %v1790 = vadd.f32 0.0, %v1789
      %v1791 = vpop.f32.mrf.mxu0
      %v1792 = vadd.f32 0.0, %v1791
      %1793 = vmatmul.bf16.gmra.mxu0 %v1611
      %v1794 = vpop.f32.mrf.mxu0
      %v1795 = vadd.f32 0.0, %v1794
      %v1796 = vpop.f32.mrf.mxu0
      %v1797 = vadd.f32 0.0, %v1796
      %1798 = vmatmul.bf16.gmra.mxu0 %v1612
      %v1799 = vpop.f32.mrf.mxu0
      %v1800 = vadd.f32 0.0, %v1799
      %v1801 = vpop.f32.mrf.mxu0
      %v1802 = vadd.f32 0.0, %v1801
      %1803 = vmatmul.bf16.gmra.mxu0 %v1613
      %v1804 = vpop.f32.mrf.mxu0
      %v1805 = vadd.f32 0.0, %v1804
      %v1806 = vpop.f32.mrf.mxu0
      %v1807 = vadd.f32 0.0, %v1806
      %1808 = vmatmul.bf16.gmra.mxu0 %v1614
      %v1809 = vpop.f32.mrf.mxu0
      %v1810 = vadd.f32 0.0, %v1809
      %v1811 = vpop.f32.mrf.mxu0
      %v1812 = vadd.f32 0.0, %v1811
      %1813 = vmatmul.bf16.gmra.mxu0 %v1615
      %v1814 = vpop.f32.mrf.mxu0
      %v1815 = vadd.f32 0.0, %v1814
      %v1816 = vpop.f32.mrf.mxu0
      %v1817 = vadd.f32 0.0, %v1816
      %1818 = vmatmul.bf16.gmra.mxu0 %v1616
      %v1819 = vpop.f32.mrf.mxu0
      %v1820 = vadd.f32 0.0, %v1819
      %v1821 = vpop.f32.mrf.mxu0
      %v1822 = vadd.f32 0.0, %v1821
      %1823 = vmatmul.bf16.gmra.mxu0 %v1617
      %v1824 = vpop.f32.mrf.mxu0
      %v1825 = vadd.f32 0.0, %v1824
      %v1826 = vpop.f32.mrf.mxu0
      %v1827 = vadd.f32 0.0, %v1826
      %1828 = vdwg.mxu0
      %1829 = vmatpush.bf16.msra.mxu0 %v1189
      %1830 = vmatpush.bf16.msra.mxu0 %v1185
      %1831 = vmatpush.bf16.msra.mxu0 %v1181
      %1832 = vmatpush.bf16.msra.mxu0 %v1177
      %1833 = vmatpush.bf16.msra.mxu0 %v1173
      %1834 = vmatpush.bf16.msra.mxu0 %v1169
      %1835 = vmatpush.bf16.msra.mxu0 %v1165
      %1836 = vmatpush.bf16.msra.mxu0 %v1161
      %1837 = vmatmul.bf16.gmra.mxu0 %v1610
      %v1838 = vpop.f32.mrf.mxu0
      %v1839 = vadd.f32 0.0, %v1838
      %v1840 = vpop.f32.mrf.mxu0
      %v1841 = vadd.f32 0.0, %v1840
      %1842 = vmatmul.bf16.gmra.mxu0 %v1611
      %v1843 = vpop.f32.mrf.mxu0
      %v1844 = vadd.f32 0.0, %v1843
      %v1845 = vpop.f32.mrf.mxu0
      %v1846 = vadd.f32 0.0, %v1845
      %1847 = vmatmul.bf16.gmra.mxu0 %v1612
      %v1848 = vpop.f32.mrf.mxu0
      %v1849 = vadd.f32 0.0, %v1848
      %v1850 = vpop.f32.mrf.mxu0
      %v1851 = vadd.f32 0.0, %v1850
      %1852 = vmatmul.bf16.gmra.mxu0 %v1613
      %v1853 = vpop.f32.mrf.mxu0
      %v1854 = vadd.f32 0.0, %v1853
      %v1855 = vpop.f32.mrf.mxu0
      %v1856 = vadd.f32 0.0, %v1855
      %1857 = vmatmul.bf16.gmra.mxu0 %v1614
      %v1858 = vpop.f32.mrf.mxu0
      %v1859 = vadd.f32 0.0, %v1858
      %v1860 = vpop.f32.mrf.mxu0
      %v1861 = vadd.f32 0.0, %v1860
      %1862 = vmatmul.bf16.gmra.mxu0 %v1615
      %v1863 = vpop.f32.mrf.mxu0
      %v1864 = vadd.f32 0.0, %v1863
      %v1865 = vpop.f32.mrf.mxu0
      %v1866 = vadd.f32 0.0, %v1865
      %1867 = vmatmul.bf16.gmra.mxu0 %v1616
      %v1868 = vpop.f32.mrf.mxu0
      %v1869 = vadd.f32 0.0, %v1868
      %v1870 = vpop.f32.mrf.mxu0
      %v1871 = vadd.f32 0.0, %v1870
      %1872 = vmatmul.bf16.gmra.mxu0 %v1617
      %v1873 = vpop.f32.mrf.mxu0
      %v1874 = vadd.f32 0.0, %v1873
      %v1875 = vpop.f32.mrf.mxu0
      %v1876 = vadd.f32 0.0, %v1875
      %1877 = vdwg.mxu0
      %v1878 = vadd.f32 %v1618, %v1692
      %v1879 = vadd.f32 %v1619, %v1741
      %v1880 = vadd.f32 %v1620, %v1790
      %v1881 = vadd.f32 %v1621, %v1839
      %v1882 = vadd.f32 %v1622, %v1694
      %v1883 = vadd.f32 %v1623, %v1743
      %v1884 = vadd.f32 %v1624, %v1792
      %v1885 = vadd.f32 %v1625, %v1841
      %v1886 = vadd.f32 %v1626, %v1697
      %v1887 = vadd.f32 %v1627, %v1746
      %v1888 = vadd.f32 %v1628, %v1795
      %v1889 = vadd.f32 %v1629, %v1844
      %v1890 = vadd.f32 %v1630, %v1699
      %v1891 = vadd.f32 %v1631, %v1748
      %v1892 = vadd.f32 %v1632, %v1797
      %v1893 = vadd.f32 %v1633, %v1846
      %v1894 = vadd.f32 %v1634, %v1702
      %v1895 = vadd.f32 %v1635, %v1751
      %v1896 = vadd.f32 %v1636, %v1800
      %v1897 = vadd.f32 %v1637, %v1849
      %v1898 = vadd.f32 %v1638, %v1704
      %v1899 = vadd.f32 %v1639, %v1753
      %v1900 = vadd.f32 %v1640, %v1802
      %v1901 = vadd.f32 %v1641, %v1851
      %v1902 = vadd.f32 %v1642, %v1707
      %v1903 = vadd.f32 %v1643, %v1756
      %v1904 = vadd.f32 %v1644, %v1805
      %v1905 = vadd.f32 %v1645, %v1854
      %v1906 = vadd.f32 %v1646, %v1709
      %v1907 = vadd.f32 %v1647, %v1758
      %v1908 = vadd.f32 %v1648, %v1807
      %v1909 = vadd.f32 %v1649, %v1856
      %v1910 = vadd.f32 %v1650, %v1712
      %v1911 = vadd.f32 %v1651, %v1761
      %v1912 = vadd.f32 %v1652, %v1810
      %v1913 = vadd.f32 %v1653, %v1859
      %v1914 = vadd.f32 %v1654, %v1714
      %v1915 = vadd.f32 %v1655, %v1763
      %v1916 = vadd.f32 %v1656, %v1812
      %v1917 = vadd.f32 %v1657, %v1861
      %v1918 = vadd.f32 %v1658, %v1717
      %v1919 = vadd.f32 %v1659, %v1766
      %v1920 = vadd.f32 %v1660, %v1815
      %v1921 = vadd.f32 %v1661, %v1864
      %v1922 = vadd.f32 %v1662, %v1719
      %v1923 = vadd.f32 %v1663, %v1768
      %v1924 = vadd.f32 %v1664, %v1817
      %v1925 = vadd.f32 %v1665, %v1866
      %v1926 = vadd.f32 %v1666, %v1722
      %v1927 = vadd.f32 %v1667, %v1771
      %v1928 = vadd.f32 %v1668, %v1820
      %v1929 = vadd.f32 %v1669, %v1869
      %v1930 = vadd.f32 %v1670, %v1724
      %v1931 = vadd.f32 %v1671, %v1773
      %v1932 = vadd.f32 %v1672, %v1822
      %v1933 = vadd.f32 %v1673, %v1871
      %v1934 = vadd.f32 %v1674, %v1727
      %v1935 = vadd.f32 %v1675, %v1776
      %v1936 = vadd.f32 %v1676, %v1825
      %v1937 = vadd.f32 %v1677, %v1874
      %v1938 = vadd.f32 %v1678, %v1729
      %v1939 = vadd.f32 %v1679, %v1778
      %v1940 = vadd.f32 %v1680, %v1827
      %v1941 = vadd.f32 %v1681, %v1876
      %1942 = vst [vmem:[#allocation3] sm:$0xff] %v1878
      %1943 = vst [vmem:[#allocation3 + $0x8] sm:$0xff] %v1879
      %1944 = vst [vmem:[#allocation3 + $0x10] sm:$0xff] %v1880
      %1945 = vst [vmem:[#allocation3 + $0x18] sm:$0xff] %v1881
      %1946 = vst [vmem:[#allocation3 + $0x20] sm:$0xff] %v1882
      %1947 = vst [vmem:[#allocation3 + $0x28] sm:$0xff] %v1883
      %1948 = vst [vmem:[#allocation3 + $0x30] sm:$0xff] %v1884
      %1949 = vst [vmem:[#allocation3 + $0x38] sm:$0xff] %v1885
      %1950 = vst [vmem:[#allocation3 + $0x40] sm:$0xff] %v1886
      %1951 = vst [vmem:[#allocation3 + $0x48] sm:$0xff] %v1887
      %1952 = vst [vmem:[#allocation3 + $0x50] sm:$0xff] %v1888
      %1953 = vst [vmem:[#allocation3 + $0x58] sm:$0xff] %v1889
      %1954 = vst [vmem:[#allocation3 + $0x60] sm:$0xff] %v1890
      %1955 = vst [vmem:[#allocation3 + $0x68] sm:$0xff] %v1891
      %1956 = vst [vmem:[#allocation3 + $0x70] sm:$0xff] %v1892
      %1957 = vst [vmem:[#allocation3 + $0x78] sm:$0xff] %v1893
      %1958 = vst [vmem:[#allocation3 + $0x80] sm:$0xff] %v1894
      %1959 = vst [vmem:[#allocation3 + $0x88] sm:$0xff] %v1895
      %1960 = vst [vmem:[#allocation3 + $0x90] sm:$0xff] %v1896
      %1961 = vst [vmem:[#allocation3 + $0x98] sm:$0xff] %v1897
      %1962 = vst [vmem:[#allocation3 + $0xa0] sm:$0xff] %v1898
      %1963 = vst [vmem:[#allocation3 + $0xa8] sm:$0xff] %v1899
      %1964 = vst [vmem:[#allocation3 + $0xb0] sm:$0xff] %v1900
      %1965 = vst [vmem:[#allocation3 + $0xb8] sm:$0xff] %v1901
      %1966 = vst [vmem:[#allocation3 + $0xc0] sm:$0xff] %v1902
      %1967 = vst [vmem:[#allocation3 + $0xc8] sm:$0xff] %v1903
      %1968 = vst [vmem:[#allocation3 + $0xd0] sm:$0xff] %v1904
      %1969 = vst [vmem:[#allocation3 + $0xd8] sm:$0xff] %v1905
      %1970 = vst [vmem:[#allocation3 + $0xe0] sm:$0xff] %v1906
      %1971 = vst [vmem:[#allocation3 + $0xe8] sm:$0xff] %v1907
      %1972 = vst [vmem:[#allocation3 + $0xf0] sm:$0xff] %v1908
      %1973 = vst [vmem:[#allocation3 + $0xf8] sm:$0xff] %v1909
      %1974 = vst [vmem:[#allocation3 + $0x100] sm:$0xff] %v1910
      %1975 = vst [vmem:[#allocation3 + $0x108] sm:$0xff] %v1911
      %1976 = vst [vmem:[#allocation3 + $0x110] sm:$0xff] %v1912
      %1977 = vst [vmem:[#allocation3 + $0x118] sm:$0xff] %v1913
      %1978 = vst [vmem:[#allocation3 + $0x120] sm:$0xff] %v1914
      %1979 = vst [vmem:[#allocation3 + $0x128] sm:$0xff] %v1915
      %1980 = vst [vmem:[#allocation3 + $0x130] sm:$0xff] %v1916
      %1981 = vst [vmem:[#allocation3 + $0x138] sm:$0xff] %v1917
      %1982 = vst [vmem:[#allocation3 + $0x140] sm:$0xff] %v1918
      %1983 = vst [vmem:[#allocation3 + $0x148] sm:$0xff] %v1919
      %1984 = vst [vmem:[#allocation3 + $0x150] sm:$0xff] %v1920
      %1985 = vst [vmem:[#allocation3 + $0x158] sm:$0xff] %v1921
      %1986 = vst [vmem:[#allocation3 + $0x160] sm:$0xff] %v1922
      %1987 = vst [vmem:[#allocation3 + $0x168] sm:$0xff] %v1923
      %1988 = vst [vmem:[#allocation3 + $0x170] sm:$0xff] %v1924
      %1989 = vst [vmem:[#allocation3 + $0x178] sm:$0xff] %v1925
      %1990 = vst [vmem:[#allocation3 + $0x180] sm:$0xff] %v1926
      %1991 = vst [vmem:[#allocation3 + $0x188] sm:$0xff] %v1927
      %1992 = vst [vmem:[#allocation3 + $0x190] sm:$0xff] %v1928
      %1993 = vst [vmem:[#allocation3 + $0x198] sm:$0xff] %v1929
      %1994 = vst [vmem:[#allocation3 + $0x1a0] sm:$0xff] %v1930
      %1995 = vst [vmem:[#allocation3 + $0x1a8] sm:$0xff] %v1931
      %1996 = vst [vmem:[#allocation3 + $0x1b0] sm:$0xff] %v1932
      %1997 = vst [vmem:[#allocation3 + $0x1b8] sm:$0xff] %v1933
      %1998 = vst [vmem:[#allocation3 + $0x1c0] sm:$0xff] %v1934
      %1999 = vst [vmem:[#allocation3 + $0x1c8] sm:$0xff] %v1935
      %2000 = vst [vmem:[#allocation3 + $0x1d0] sm:$0xff] %v1936
      %2001 = vst [vmem:[#allocation3 + $0x1d8] sm:$0xff] %v1937
      %2002 = vst [vmem:[#allocation3 + $0x1e0] sm:$0xff] %v1938
      %2003 = vst [vmem:[#allocation3 + $0x1e8] sm:$0xff] %v1939
      %2004 = vst [vmem:[#allocation3 + $0x1f0] sm:$0xff] %v1940
      %2005 = vst [vmem:[#allocation3 + $0x1f8] sm:$0xff] %v1941
      %2006 = vst [vmem:[%s1013] sm:$0xff] %v1539
      %2007 = vst [vmem:[%s1013 + $0x8] sm:$0xff] %v1541
      %2008 = vst [vmem:[%s1013 + $0x10] sm:$0xff] %v1544
      %2009 = vst [vmem:[%s1013 + $0x18] sm:$0xff] %v1546
      %2010 = vst [vmem:[%s1013 + $0x20] sm:$0xff] %v1549
      %2011 = vst [vmem:[%s1013 + $0x28] sm:$0xff] %v1551
      %2012 = vst [vmem:[%s1013 + $0x30] sm:$0xff] %v1554
      %2013 = vst [vmem:[%s1013 + $0x38] sm:$0xff] %v1556
      %2014 = vst [vmem:[%s1013 + $0x40] sm:$0xff] %v1559
      %2015 = vst [vmem:[%s1013 + $0x48] sm:$0xff] %v1561
      %2016 = vst [vmem:[%s1013 + $0x50] sm:$0xff] %v1564
      %2017 = vst [vmem:[%s1013 + $0x58] sm:$0xff] %v1566
      %2018 = vst [vmem:[%s1013 + $0x60] sm:$0xff] %v1569
      %2019 = vst [vmem:[%s1013 + $0x68] sm:$0xff] %v1571
      %2020 = vst [vmem:[%s1013 + $0x70] sm:$0xff] %v1574
      %2021 = vst [vmem:[%s1013 + $0x78] sm:$0xff] %v1576
      %p2022 = scmp.eq.s32.totalorder %s23, 2
      // Predicated region
      $region45: #{sslgcn_forward.4} parent=35 // pred_check
        %p2023 = pneg %p2022
      $region46: #{sslgcn_forward.4} parent=35 // pred_check_branch
        %2025 = sbr.rel (%p2023) target = $region48
      $region47: #{sslgcn_forward.4} parent=35 // pred_region
        %v2026 = vld [vmem:[#allocation6] sm:$0xff]
        %v2027 = vld [vmem:[#allocation6 + $0x8] sm:$0xff]
        %v2028 = vld [vmem:[#allocation6 + $0x10] sm:$0xff]
        %v2029 = vld [vmem:[#allocation6 + $0x18] sm:$0xff]
        %v2030 = vld [vmem:[#allocation6 + $0x20] sm:$0xff]
        %v2031 = vld [vmem:[#allocation6 + $0x28] sm:$0xff]
        %v2032 = vld [vmem:[#allocation6 + $0x30] sm:$0xff]
        %v2033 = vld [vmem:[#allocation6 + $0x38] sm:$0xff]
        %v2034 = vld [vmem:[#allocation6 + $0x40] sm:$0xff]
        %v2035 = vld [vmem:[#allocation6 + $0x48] sm:$0xff]
        %v2036 = vld [vmem:[#allocation6 + $0x50] sm:$0xff]
        %v2037 = vld [vmem:[#allocation6 + $0x58] sm:$0xff]
        %v2038 = vld [vmem:[#allocation6 + $0x60] sm:$0xff]
        %v2039 = vld [vmem:[#allocation6 + $0x68] sm:$0xff]
        %v2040 = vld [vmem:[#allocation6 + $0x70] sm:$0xff]
        %v2041 = vld [vmem:[#allocation6 + $0x78] sm:$0xff]
        %v2042 = vld [vmem:[#allocation6 + $0x80] sm:$0xff]
        %v2043 = vld [vmem:[#allocation6 + $0x88] sm:$0xff]
        %v2044 = vld [vmem:[#allocation6 + $0x90] sm:$0xff]
        %v2045 = vld [vmem:[#allocation6 + $0x98] sm:$0xff]
        %v2046 = vld [vmem:[#allocation6 + $0xa0] sm:$0xff]
        %v2047 = vld [vmem:[#allocation6 + $0xa8] sm:$0xff]
        %v2048 = vld [vmem:[#allocation6 + $0xb0] sm:$0xff]
        %v2049 = vld [vmem:[#allocation6 + $0xb8] sm:$0xff]
        %v2050 = vld [vmem:[#allocation6 + $0xc0] sm:$0xff]
        %v2051 = vld [vmem:[#allocation6 + $0xc8] sm:$0xff]
        %v2052 = vld [vmem:[#allocation6 + $0xd0] sm:$0xff]
        %v2053 = vld [vmem:[#allocation6 + $0xd8] sm:$0xff]
        %v2054 = vld [vmem:[#allocation6 + $0xe0] sm:$0xff]
        %v2055 = vld [vmem:[#allocation6 + $0xe8] sm:$0xff]
        %v2056 = vld [vmem:[#allocation6 + $0xf0] sm:$0xff]
        %v2057 = vld [vmem:[#allocation6 + $0xf8] sm:$0xff]
        %v2058 = vld [vmem:[#allocation6 + $0x100] sm:$0xff]
        %v2059 = vld [vmem:[#allocation6 + $0x108] sm:$0xff]
        %v2060 = vld [vmem:[#allocation6 + $0x110] sm:$0xff]
        %v2061 = vld [vmem:[#allocation6 + $0x118] sm:$0xff]
        %v2062 = vld [vmem:[#allocation6 + $0x120] sm:$0xff]
        %v2063 = vld [vmem:[#allocation6 + $0x128] sm:$0xff]
        %v2064 = vld [vmem:[#allocation6 + $0x130] sm:$0xff]
        %v2065 = vld [vmem:[#allocation6 + $0x138] sm:$0xff]
        %v2066 = vld [vmem:[#allocation6 + $0x140] sm:$0xff]
        %v2067 = vld [vmem:[#allocation6 + $0x148] sm:$0xff]
        %v2068 = vld [vmem:[#allocation6 + $0x150] sm:$0xff]
        %v2069 = vld [vmem:[#allocation6 + $0x158] sm:$0xff]
        %v2070 = vld [vmem:[#allocation6 + $0x160] sm:$0xff]
        %v2071 = vld [vmem:[#allocation6 + $0x168] sm:$0xff]
        %v2072 = vld [vmem:[#allocation6 + $0x170] sm:$0xff]
        %v2073 = vld [vmem:[#allocation6 + $0x178] sm:$0xff]
        %v2074 = vld [vmem:[#allocation4] sm:$0xff]
        %v2075 = vld [vmem:[#allocation4 + $0x8] sm:$0xff]
        %v2076 = vld [vmem:[#allocation4 + $0x10] sm:$0xff]
        %v2077 = vld [vmem:[#allocation4 + $0x18] sm:$0xff]
        %v2078 = vld [vmem:[#allocation4 + $0x20] sm:$0xff]
        %v2079 = vld [vmem:[#allocation4 + $0x28] sm:$0xff]
        %v2080 = vld [vmem:[#allocation4 + $0x30] sm:$0xff]
        %v2081 = vld [vmem:[#allocation4 + $0x38] sm:$0xff]
        %v2082 = vld [vmem:[#allocation4 + $0x40] sm:$0xff]
        %v2083 = vld [vmem:[#allocation4 + $0x48] sm:$0xff]
        %v2084 = vld [vmem:[#allocation4 + $0x50] sm:$0xff]
        %v2085 = vld [vmem:[#allocation4 + $0x58] sm:$0xff]
        %v2086 = vld [vmem:[#allocation4 + $0x60] sm:$0xff]
        %v2087 = vld [vmem:[#allocation4 + $0x68] sm:$0xff]
        %v2088 = vld [vmem:[#allocation4 + $0x70] sm:$0xff]
        %v2089 = vld [vmem:[#allocation4 + $0x78] sm:$0xff]
        %v2090 = vld [vmem:[#allocation4 + $0x80] sm:$0xff]
        %v2091 = vld [vmem:[#allocation4 + $0x88] sm:$0xff]
        %v2092 = vld [vmem:[#allocation4 + $0x90] sm:$0xff]
        %v2093 = vld [vmem:[#allocation4 + $0x98] sm:$0xff]
        %v2094 = vld [vmem:[#allocation4 + $0xa0] sm:$0xff]
        %v2095 = vld [vmem:[#allocation4 + $0xa8] sm:$0xff]
        %v2096 = vld [vmem:[#allocation4 + $0xb0] sm:$0xff]
        %v2097 = vld [vmem:[#allocation4 + $0xb8] sm:$0xff]
        %v2098 = vld [vmem:[#allocation4 + $0xc0] sm:$0xff]
        %v2099 = vld [vmem:[#allocation4 + $0xc8] sm:$0xff]
        %v2100 = vld [vmem:[#allocation4 + $0xd0] sm:$0xff]
        %v2101 = vld [vmem:[#allocation4 + $0xd8] sm:$0xff]
        %v2102 = vld [vmem:[#allocation4 + $0xe0] sm:$0xff]
        %v2103 = vld [vmem:[#allocation4 + $0xe8] sm:$0xff]
        %v2104 = vld [vmem:[#allocation4 + $0xf0] sm:$0xff]
        %v2105 = vld [vmem:[#allocation4 + $0xf8] sm:$0xff]
        %v2106 = vld [vmem:[#allocation4 + $0x100] sm:$0xff]
        %v2107 = vld [vmem:[#allocation4 + $0x108] sm:$0xff]
        %v2108 = vld [vmem:[#allocation4 + $0x110] sm:$0xff]
        %v2109 = vld [vmem:[#allocation4 + $0x118] sm:$0xff]
        %v2110 = vld [vmem:[#allocation4 + $0x120] sm:$0xff]
        %v2111 = vld [vmem:[#allocation4 + $0x128] sm:$0xff]
        %v2112 = vld [vmem:[#allocation4 + $0x130] sm:$0xff]
        %v2113 = vld [vmem:[#allocation4 + $0x138] sm:$0xff]
        %v2114 = vld [vmem:[#allocation4 + $0x140] sm:$0xff]
        %v2115 = vld [vmem:[#allocation4 + $0x148] sm:$0xff]
        %v2116 = vld [vmem:[#allocation4 + $0x150] sm:$0xff]
        %v2117 = vld [vmem:[#allocation4 + $0x158] sm:$0xff]
        %v2118 = vld [vmem:[#allocation4 + $0x160] sm:$0xff]
        %v2119 = vld [vmem:[#allocation4 + $0x168] sm:$0xff]
        %v2120 = vld [vmem:[#allocation4 + $0x170] sm:$0xff]
        %v2121 = vld [vmem:[#allocation4 + $0x178] sm:$0xff]
        %v2122 = vadd.f32 %v2026, %v2074
        %v2123 = vadd.f32 %v2027, %v2075
        %v2124 = vadd.f32 %v2028, %v2076
        %v2125 = vadd.f32 %v2029, %v2077
        %v2126 = vadd.f32 %v2030, %v2078
        %v2127 = vadd.f32 %v2031, %v2079
        %v2128 = vadd.f32 %v2032, %v2080
        %v2129 = vadd.f32 %v2033, %v2081
        %v2130 = vadd.f32 %v2034, %v2082
        %v2131 = vadd.f32 %v2035, %v2083
        %v2132 = vadd.f32 %v2036, %v2084
        %v2133 = vadd.f32 %v2037, %v2085
        %v2134 = vadd.f32 %v2038, %v2086
        %v2135 = vadd.f32 %v2039, %v2087
        %v2136 = vadd.f32 %v2040, %v2088
        %v2137 = vadd.f32 %v2041, %v2089
        %v2138 = vadd.f32 %v2042, %v2090
        %v2139 = vadd.f32 %v2043, %v2091
        %v2140 = vadd.f32 %v2044, %v2092
        %v2141 = vadd.f32 %v2045, %v2093
        %v2142 = vadd.f32 %v2046, %v2094
        %v2143 = vadd.f32 %v2047, %v2095
        %v2144 = vadd.f32 %v2048, %v2096
        %v2145 = vadd.f32 %v2049, %v2097
        %v2146 = vadd.f32 %v2050, %v2098
        %v2147 = vadd.f32 %v2051, %v2099
        %v2148 = vadd.f32 %v2052, %v2100
        %v2149 = vadd.f32 %v2053, %v2101
        %v2150 = vadd.f32 %v2054, %v2102
        %v2151 = vadd.f32 %v2055, %v2103
        %v2152 = vadd.f32 %v2056, %v2104
        %v2153 = vadd.f32 %v2057, %v2105
        %v2154 = vadd.f32 %v2058, %v2106
        %v2155 = vadd.f32 %v2059, %v2107
        %v2156 = vadd.f32 %v2060, %v2108
        %v2157 = vadd.f32 %v2061, %v2109
        %v2158 = vadd.f32 %v2062, %v2110
        %v2159 = vadd.f32 %v2063, %v2111
        %v2160 = vadd.f32 %v2064, %v2112
        %v2161 = vadd.f32 %v2065, %v2113
        %v2162 = vadd.f32 %v2066, %v2114
        %v2163 = vadd.f32 %v2067, %v2115
        %v2164 = vadd.f32 %v2068, %v2116
        %v2165 = vadd.f32 %v2069, %v2117
        %v2166 = vadd.f32 %v2070, %v2118
        %v2167 = vadd.f32 %v2071, %v2119
        %v2168 = vadd.f32 %v2072, %v2120
        %v2169 = vadd.f32 %v2073, %v2121
        %2170 = vst [vmem:[#allocation6] sm:$0xff] %v2122
        %2171 = vst [vmem:[#allocation6 + $0x8] sm:$0xff] %v2123
        %2172 = vst [vmem:[#allocation6 + $0x10] sm:$0xff] %v2124
        %2173 = vst [vmem:[#allocation6 + $0x18] sm:$0xff] %v2125
        %2174 = vst [vmem:[#allocation6 + $0x20] sm:$0xff] %v2126
        %2175 = vst [vmem:[#allocation6 + $0x28] sm:$0xff] %v2127
        %2176 = vst [vmem:[#allocation6 + $0x30] sm:$0xff] %v2128
        %2177 = vst [vmem:[#allocation6 + $0x38] sm:$0xff] %v2129
        %2178 = vst [vmem:[#allocation6 + $0x40] sm:$0xff] %v2130
        %2179 = vst [vmem:[#allocation6 + $0x48] sm:$0xff] %v2131
        %2180 = vst [vmem:[#allocation6 + $0x50] sm:$0xff] %v2132
        %2181 = vst [vmem:[#allocation6 + $0x58] sm:$0xff] %v2133
        %2182 = vst [vmem:[#allocation6 + $0x60] sm:$0xff] %v2134
        %2183 = vst [vmem:[#allocation6 + $0x68] sm:$0xff] %v2135
        %2184 = vst [vmem:[#allocation6 + $0x70] sm:$0xff] %v2136
        %2185 = vst [vmem:[#allocation6 + $0x78] sm:$0xff] %v2137
        %2186 = vst [vmem:[#allocation6 + $0x80] sm:$0xff] %v2138
        %2187 = vst [vmem:[#allocation6 + $0x88] sm:$0xff] %v2139
        %2188 = vst [vmem:[#allocation6 + $0x90] sm:$0xff] %v2140
        %2189 = vst [vmem:[#allocation6 + $0x98] sm:$0xff] %v2141
        %2190 = vst [vmem:[#allocation6 + $0xa0] sm:$0xff] %v2142
        %2191 = vst [vmem:[#allocation6 + $0xa8] sm:$0xff] %v2143
        %2192 = vst [vmem:[#allocation6 + $0xb0] sm:$0xff] %v2144
        %2193 = vst [vmem:[#allocation6 + $0xb8] sm:$0xff] %v2145
        %2194 = vst [vmem:[#allocation6 + $0xc0] sm:$0xff] %v2146
        %2195 = vst [vmem:[#allocation6 + $0xc8] sm:$0xff] %v2147
        %2196 = vst [vmem:[#allocation6 + $0xd0] sm:$0xff] %v2148
        %2197 = vst [vmem:[#allocation6 + $0xd8] sm:$0xff] %v2149
        %2198 = vst [vmem:[#allocation6 + $0xe0] sm:$0xff] %v2150
        %2199 = vst [vmem:[#allocation6 + $0xe8] sm:$0xff] %v2151
        %2200 = vst [vmem:[#allocation6 + $0xf0] sm:$0xff] %v2152
        %2201 = vst [vmem:[#allocation6 + $0xf8] sm:$0xff] %v2153
        %2202 = vst [vmem:[#allocation6 + $0x100] sm:$0xff] %v2154
        %2203 = vst [vmem:[#allocation6 + $0x108] sm:$0xff] %v2155
        %2204 = vst [vmem:[#allocation6 + $0x110] sm:$0xff] %v2156
        %2205 = vst [vmem:[#allocation6 + $0x118] sm:$0xff] %v2157
        %2206 = vst [vmem:[#allocation6 + $0x120] sm:$0xff] %v2158
        %2207 = vst [vmem:[#allocation6 + $0x128] sm:$0xff] %v2159
        %2208 = vst [vmem:[#allocation6 + $0x130] sm:$0xff] %v2160
        %2209 = vst [vmem:[#allocation6 + $0x138] sm:$0xff] %v2161
        %2210 = vst [vmem:[#allocation6 + $0x140] sm:$0xff] %v2162
        %2211 = vst [vmem:[#allocation6 + $0x148] sm:$0xff] %v2163
        %2212 = vst [vmem:[#allocation6 + $0x150] sm:$0xff] %v2164
        %2213 = vst [vmem:[#allocation6 + $0x158] sm:$0xff] %v2165
        %2214 = vst [vmem:[#allocation6 + $0x160] sm:$0xff] %v2166
        %2215 = vst [vmem:[#allocation6 + $0x168] sm:$0xff] %v2167
        %2216 = vst [vmem:[#allocation6 + $0x170] sm:$0xff] %v2168
        %2217 = vst [vmem:[#allocation6 + $0x178] sm:$0xff] %v2169
        %v2218 = vld [vmem:[#allocation5] sm:$0xff]
        %v2219 = vld [vmem:[#allocation5 + $0x8] sm:$0xff]
        %v2220 = vld [vmem:[#allocation5 + $0x10] sm:$0xff]
        %v2221 = vld [vmem:[#allocation5 + $0x18] sm:$0xff]
        %v2222 = vld [vmem:[#allocation5 + $0x20] sm:$0xff]
        %v2223 = vld [vmem:[#allocation5 + $0x28] sm:$0xff]
        %v2224 = vld [vmem:[#allocation5 + $0x30] sm:$0xff]
        %v2225 = vld [vmem:[#allocation5 + $0x38] sm:$0xff]
        %v2226 = vld [vmem:[#allocation5 + $0x40] sm:$0xff]
        %v2227 = vld [vmem:[#allocation5 + $0x48] sm:$0xff]
        %v2228 = vld [vmem:[#allocation5 + $0x50] sm:$0xff]
        %v2229 = vld [vmem:[#allocation5 + $0x58] sm:$0xff]
        %v2230 = vld [vmem:[#allocation5 + $0x60] sm:$0xff]
        %v2231 = vld [vmem:[#allocation5 + $0x68] sm:$0xff]
        %v2232 = vld [vmem:[#allocation5 + $0x70] sm:$0xff]
        %v2233 = vld [vmem:[#allocation5 + $0x78] sm:$0xff]
        %v2234 = vld [vmem:[#allocation5 + $0x80] sm:$0xff]
        %v2235 = vld [vmem:[#allocation5 + $0x88] sm:$0xff]
        %v2236 = vld [vmem:[#allocation5 + $0x90] sm:$0xff]
        %v2237 = vld [vmem:[#allocation5 + $0x98] sm:$0xff]
        %v2238 = vld [vmem:[#allocation5 + $0xa0] sm:$0xff]
        %v2239 = vld [vmem:[#allocation5 + $0xa8] sm:$0xff]
        %v2240 = vld [vmem:[#allocation5 + $0xb0] sm:$0xff]
        %v2241 = vld [vmem:[#allocation5 + $0xb8] sm:$0xff]
        %v2242 = vld [vmem:[#allocation5 + $0xc0] sm:$0xff]
        %v2243 = vld [vmem:[#allocation5 + $0xc8] sm:$0xff]
        %v2244 = vld [vmem:[#allocation5 + $0xd0] sm:$0xff]
        %v2245 = vld [vmem:[#allocation5 + $0xd8] sm:$0xff]
        %v2246 = vld [vmem:[#allocation5 + $0xe0] sm:$0xff]
        %v2247 = vld [vmem:[#allocation5 + $0xe8] sm:$0xff]
        %v2248 = vld [vmem:[#allocation5 + $0xf0] sm:$0xff]
        %v2249 = vld [vmem:[#allocation5 + $0xf8] sm:$0xff]
        %v2250 = vld [vmem:[#allocation5 + $0x100] sm:$0xff]
        %v2251 = vld [vmem:[#allocation5 + $0x108] sm:$0xff]
        %v2252 = vld [vmem:[#allocation5 + $0x110] sm:$0xff]
        %v2253 = vld [vmem:[#allocation5 + $0x118] sm:$0xff]
        %v2254 = vld [vmem:[#allocation5 + $0x120] sm:$0xff]
        %v2255 = vld [vmem:[#allocation5 + $0x128] sm:$0xff]
        %v2256 = vld [vmem:[#allocation5 + $0x130] sm:$0xff]
        %v2257 = vld [vmem:[#allocation5 + $0x138] sm:$0xff]
        %v2258 = vld [vmem:[#allocation5 + $0x140] sm:$0xff]
        %v2259 = vld [vmem:[#allocation5 + $0x148] sm:$0xff]
        %v2260 = vld [vmem:[#allocation5 + $0x150] sm:$0xff]
        %v2261 = vld [vmem:[#allocation5 + $0x158] sm:$0xff]
        %v2262 = vld [vmem:[#allocation5 + $0x160] sm:$0xff]
        %v2263 = vld [vmem:[#allocation5 + $0x168] sm:$0xff]
        %v2264 = vld [vmem:[#allocation5 + $0x170] sm:$0xff]
        %v2265 = vld [vmem:[#allocation5 + $0x178] sm:$0xff]
        %v2266 = vld [vmem:[#allocation5 + $0x180] sm:$0xff]
        %v2267 = vld [vmem:[#allocation5 + $0x188] sm:$0xff]
        %v2268 = vld [vmem:[#allocation5 + $0x190] sm:$0xff]
        %v2269 = vld [vmem:[#allocation5 + $0x198] sm:$0xff]
        %v2270 = vld [vmem:[#allocation5 + $0x1a0] sm:$0xff]
        %v2271 = vld [vmem:[#allocation5 + $0x1a8] sm:$0xff]
        %v2272 = vld [vmem:[#allocation5 + $0x1b0] sm:$0xff]
        %v2273 = vld [vmem:[#allocation5 + $0x1b8] sm:$0xff]
        %v2274 = vld [vmem:[#allocation5 + $0x1c0] sm:$0xff]
        %v2275 = vld [vmem:[#allocation5 + $0x1c8] sm:$0xff]
        %v2276 = vld [vmem:[#allocation5 + $0x1d0] sm:$0xff]
        %v2277 = vld [vmem:[#allocation5 + $0x1d8] sm:$0xff]
        %v2278 = vld [vmem:[#allocation5 + $0x1e0] sm:$0xff]
        %v2279 = vld [vmem:[#allocation5 + $0x1e8] sm:$0xff]
        %v2280 = vld [vmem:[#allocation5 + $0x1f0] sm:$0xff]
        %v2281 = vld [vmem:[#allocation5 + $0x1f8] sm:$0xff]
        %v2282 = vld [vmem:[#allocation3] sm:$0xff]
        %v2283 = vld [vmem:[#allocation3 + $0x8] sm:$0xff]
        %v2284 = vld [vmem:[#allocation3 + $0x10] sm:$0xff]
        %v2285 = vld [vmem:[#allocation3 + $0x18] sm:$0xff]
        %v2286 = vld [vmem:[#allocation3 + $0x20] sm:$0xff]
        %v2287 = vld [vmem:[#allocation3 + $0x28] sm:$0xff]
        %v2288 = vld [vmem:[#allocation3 + $0x30] sm:$0xff]
        %v2289 = vld [vmem:[#allocation3 + $0x38] sm:$0xff]
        %v2290 = vld [vmem:[#allocation3 + $0x40] sm:$0xff]
        %v2291 = vld [vmem:[#allocation3 + $0x48] sm:$0xff]
        %v2292 = vld [vmem:[#allocation3 + $0x50] sm:$0xff]
        %v2293 = vld [vmem:[#allocation3 + $0x58] sm:$0xff]
        %v2294 = vld [vmem:[#allocation3 + $0x60] sm:$0xff]
        %v2295 = vld [vmem:[#allocation3 + $0x68] sm:$0xff]
        %v2296 = vld [vmem:[#allocation3 + $0x70] sm:$0xff]
        %v2297 = vld [vmem:[#allocation3 + $0x78] sm:$0xff]
        %v2298 = vld [vmem:[#allocation3 + $0x80] sm:$0xff]
        %v2299 = vld [vmem:[#allocation3 + $0x88] sm:$0xff]
        %v2300 = vld [vmem:[#allocation3 + $0x90] sm:$0xff]
        %v2301 = vld [vmem:[#allocation3 + $0x98] sm:$0xff]
        %v2302 = vld [vmem:[#allocation3 + $0xa0] sm:$0xff]
        %v2303 = vld [vmem:[#allocation3 + $0xa8] sm:$0xff]
        %v2304 = vld [vmem:[#allocation3 + $0xb0] sm:$0xff]
        %v2305 = vld [vmem:[#allocation3 + $0xb8] sm:$0xff]
        %v2306 = vld [vmem:[#allocation3 + $0xc0] sm:$0xff]
        %v2307 = vld [vmem:[#allocation3 + $0xc8] sm:$0xff]
        %v2308 = vld [vmem:[#allocation3 + $0xd0] sm:$0xff]
        %v2309 = vld [vmem:[#allocation3 + $0xd8] sm:$0xff]
        %v2310 = vld [vmem:[#allocation3 + $0xe0] sm:$0xff]
        %v2311 = vld [vmem:[#allocation3 + $0xe8] sm:$0xff]
        %v2312 = vld [vmem:[#allocation3 + $0xf0] sm:$0xff]
        %v2313 = vld [vmem:[#allocation3 + $0xf8] sm:$0xff]
        %v2314 = vld [vmem:[#allocation3 + $0x100] sm:$0xff]
        %v2315 = vld [vmem:[#allocation3 + $0x108] sm:$0xff]
        %v2316 = vld [vmem:[#allocation3 + $0x110] sm:$0xff]
        %v2317 = vld [vmem:[#allocation3 + $0x118] sm:$0xff]
        %v2318 = vld [vmem:[#allocation3 + $0x120] sm:$0xff]
        %v2319 = vld [vmem:[#allocation3 + $0x128] sm:$0xff]
        %v2320 = vld [vmem:[#allocation3 + $0x130] sm:$0xff]
        %v2321 = vld [vmem:[#allocation3 + $0x138] sm:$0xff]
        %v2322 = vld [vmem:[#allocation3 + $0x140] sm:$0xff]
        %v2323 = vld [vmem:[#allocation3 + $0x148] sm:$0xff]
        %v2324 = vld [vmem:[#allocation3 + $0x150] sm:$0xff]
        %v2325 = vld [vmem:[#allocation3 + $0x158] sm:$0xff]
        %v2326 = vld [vmem:[#allocation3 + $0x160] sm:$0xff]
        %v2327 = vld [vmem:[#allocation3 + $0x168] sm:$0xff]
        %v2328 = vld [vmem:[#allocation3 + $0x170] sm:$0xff]
        %v2329 = vld [vmem:[#allocation3 + $0x178] sm:$0xff]
        %v2330 = vld [vmem:[#allocation3 + $0x180] sm:$0xff]
        %v2331 = vld [vmem:[#allocation3 + $0x188] sm:$0xff]
        %v2332 = vld [vmem:[#allocation3 + $0x190] sm:$0xff]
        %v2333 = vld [vmem:[#allocation3 + $0x198] sm:$0xff]
        %v2334 = vld [vmem:[#allocation3 + $0x1a0] sm:$0xff]
        %v2335 = vld [vmem:[#allocation3 + $0x1a8] sm:$0xff]
        %v2336 = vld [vmem:[#allocation3 + $0x1b0] sm:$0xff]
        %v2337 = vld [vmem:[#allocation3 + $0x1b8] sm:$0xff]
        %v2338 = vld [vmem:[#allocation3 + $0x1c0] sm:$0xff]
        %v2339 = vld [vmem:[#allocation3 + $0x1c8] sm:$0xff]
        %v2340 = vld [vmem:[#allocation3 + $0x1d0] sm:$0xff]
        %v2341 = vld [vmem:[#allocation3 + $0x1d8] sm:$0xff]
        %v2342 = vld [vmem:[#allocation3 + $0x1e0] sm:$0xff]
        %v2343 = vld [vmem:[#allocation3 + $0x1e8] sm:$0xff]
        %v2344 = vld [vmem:[#allocation3 + $0x1f0] sm:$0xff]
        %v2345 = vld [vmem:[#allocation3 + $0x1f8] sm:$0xff]
        %v2346 = vadd.f32 %v2218, %v2282
        %v2347 = vadd.f32 %v2219, %v2283
        %v2348 = vadd.f32 %v2220, %v2284
        %v2349 = vadd.f32 %v2221, %v2285
        %v2350 = vadd.f32 %v2222, %v2286
        %v2351 = vadd.f32 %v2223, %v2287
        %v2352 = vadd.f32 %v2224, %v2288
        %v2353 = vadd.f32 %v2225, %v2289
        %v2354 = vadd.f32 %v2226, %v2290
        %v2355 = vadd.f32 %v2227, %v2291
        %v2356 = vadd.f32 %v2228, %v2292
        %v2357 = vadd.f32 %v2229, %v2293
        %v2358 = vadd.f32 %v2230, %v2294
        %v2359 = vadd.f32 %v2231, %v2295
        %v2360 = vadd.f32 %v2232, %v2296
        %v2361 = vadd.f32 %v2233, %v2297
        %v2362 = vadd.f32 %v2234, %v2298
        %v2363 = vadd.f32 %v2235, %v2299
        %v2364 = vadd.f32 %v2236, %v2300
        %v2365 = vadd.f32 %v2237, %v2301
        %v2366 = vadd.f32 %v2238, %v2302
        %v2367 = vadd.f32 %v2239, %v2303
        %v2368 = vadd.f32 %v2240, %v2304
        %v2369 = vadd.f32 %v2241, %v2305
        %v2370 = vadd.f32 %v2242, %v2306
        %v2371 = vadd.f32 %v2243, %v2307
        %v2372 = vadd.f32 %v2244, %v2308
        %v2373 = vadd.f32 %v2245, %v2309
        %v2374 = vadd.f32 %v2246, %v2310
        %v2375 = vadd.f32 %v2247, %v2311
        %v2376 = vadd.f32 %v2248, %v2312
        %v2377 = vadd.f32 %v2249, %v2313
        %v2378 = vadd.f32 %v2250, %v2314
        %v2379 = vadd.f32 %v2251, %v2315
        %v2380 = vadd.f32 %v2252, %v2316
        %v2381 = vadd.f32 %v2253, %v2317
        %v2382 = vadd.f32 %v2254, %v2318
        %v2383 = vadd.f32 %v2255, %v2319
        %v2384 = vadd.f32 %v2256, %v2320
        %v2385 = vadd.f32 %v2257, %v2321
        %v2386 = vadd.f32 %v2258, %v2322
        %v2387 = vadd.f32 %v2259, %v2323
        %v2388 = vadd.f32 %v2260, %v2324
        %v2389 = vadd.f32 %v2261, %v2325
        %v2390 = vadd.f32 %v2262, %v2326
        %v2391 = vadd.f32 %v2263, %v2327
        %v2392 = vadd.f32 %v2264, %v2328
        %v2393 = vadd.f32 %v2265, %v2329
        %v2394 = vadd.f32 %v2266, %v2330
        %v2395 = vadd.f32 %v2267, %v2331
        %v2396 = vadd.f32 %v2268, %v2332
        %v2397 = vadd.f32 %v2269, %v2333
        %v2398 = vadd.f32 %v2270, %v2334
        %v2399 = vadd.f32 %v2271, %v2335
        %v2400 = vadd.f32 %v2272, %v2336
        %v2401 = vadd.f32 %v2273, %v2337
        %v2402 = vadd.f32 %v2274, %v2338
        %v2403 = vadd.f32 %v2275, %v2339
        %v2404 = vadd.f32 %v2276, %v2340
        %v2405 = vadd.f32 %v2277, %v2341
        %v2406 = vadd.f32 %v2278, %v2342
        %v2407 = vadd.f32 %v2279, %v2343
        %v2408 = vadd.f32 %v2280, %v2344
        %v2409 = vadd.f32 %v2281, %v2345
        %2410 = vst [vmem:[#allocation5] sm:$0xff] %v2346
        %2411 = vst [vmem:[#allocation5 + $0x8] sm:$0xff] %v2347
        %2412 = vst [vmem:[#allocation5 + $0x10] sm:$0xff] %v2348
        %2413 = vst [vmem:[#allocation5 + $0x18] sm:$0xff] %v2349
        %2414 = vst [vmem:[#allocation5 + $0x20] sm:$0xff] %v2350
        %2415 = vst [vmem:[#allocation5 + $0x28] sm:$0xff] %v2351
        %2416 = vst [vmem:[#allocation5 + $0x30] sm:$0xff] %v2352
        %2417 = vst [vmem:[#allocation5 + $0x38] sm:$0xff] %v2353
        %2418 = vst [vmem:[#allocation5 + $0x40] sm:$0xff] %v2354
        %2419 = vst [vmem:[#allocation5 + $0x48] sm:$0xff] %v2355
        %2420 = vst [vmem:[#allocation5 + $0x50] sm:$0xff] %v2356
        %2421 = vst [vmem:[#allocation5 + $0x58] sm:$0xff] %v2357
        %2422 = vst [vmem:[#allocation5 + $0x60] sm:$0xff] %v2358
        %2423 = vst [vmem:[#allocation5 + $0x68] sm:$0xff] %v2359
        %2424 = vst [vmem:[#allocation5 + $0x70] sm:$0xff] %v2360
        %2425 = vst [vmem:[#allocation5 + $0x78] sm:$0xff] %v2361
        %2426 = vst [vmem:[#allocation5 + $0x80] sm:$0xff] %v2362
        %2427 = vst [vmem:[#allocation5 + $0x88] sm:$0xff] %v2363
        %2428 = vst [vmem:[#allocation5 + $0x90] sm:$0xff] %v2364
        %2429 = vst [vmem:[#allocation5 + $0x98] sm:$0xff] %v2365
        %2430 = vst [vmem:[#allocation5 + $0xa0] sm:$0xff] %v2366
        %2431 = vst [vmem:[#allocation5 + $0xa8] sm:$0xff] %v2367
        %2432 = vst [vmem:[#allocation5 + $0xb0] sm:$0xff] %v2368
        %2433 = vst [vmem:[#allocation5 + $0xb8] sm:$0xff] %v2369
        %2434 = vst [vmem:[#allocation5 + $0xc0] sm:$0xff] %v2370
        %2435 = vst [vmem:[#allocation5 + $0xc8] sm:$0xff] %v2371
        %2436 = vst [vmem:[#allocation5 + $0xd0] sm:$0xff] %v2372
        %2437 = vst [vmem:[#allocation5 + $0xd8] sm:$0xff] %v2373
        %2438 = vst [vmem:[#allocation5 + $0xe0] sm:$0xff] %v2374
        %2439 = vst [vmem:[#allocation5 + $0xe8] sm:$0xff] %v2375
        %2440 = vst [vmem:[#allocation5 + $0xf0] sm:$0xff] %v2376
        %2441 = vst [vmem:[#allocation5 + $0xf8] sm:$0xff] %v2377
        %2442 = vst [vmem:[#allocation5 + $0x100] sm:$0xff] %v2378
        %2443 = vst [vmem:[#allocation5 + $0x108] sm:$0xff] %v2379
        %2444 = vst [vmem:[#allocation5 + $0x110] sm:$0xff] %v2380
        %2445 = vst [vmem:[#allocation5 + $0x118] sm:$0xff] %v2381
        %2446 = vst [vmem:[#allocation5 + $0x120] sm:$0xff] %v2382
        %2447 = vst [vmem:[#allocation5 + $0x128] sm:$0xff] %v2383
        %2448 = vst [vmem:[#allocation5 + $0x130] sm:$0xff] %v2384
        %2449 = vst [vmem:[#allocation5 + $0x138] sm:$0xff] %v2385
        %2450 = vst [vmem:[#allocation5 + $0x140] sm:$0xff] %v2386
        %2451 = vst [vmem:[#allocation5 + $0x148] sm:$0xff] %v2387
        %2452 = vst [vmem:[#allocation5 + $0x150] sm:$0xff] %v2388
        %2453 = vst [vmem:[#allocation5 + $0x158] sm:$0xff] %v2389
        %2454 = vst [vmem:[#allocation5 + $0x160] sm:$0xff] %v2390
        %2455 = vst [vmem:[#allocation5 + $0x168] sm:$0xff] %v2391
        %2456 = vst [vmem:[#allocation5 + $0x170] sm:$0xff] %v2392
        %2457 = vst [vmem:[#allocation5 + $0x178] sm:$0xff] %v2393
        %2458 = vst [vmem:[#allocation5 + $0x180] sm:$0xff] %v2394
        %2459 = vst [vmem:[#allocation5 + $0x188] sm:$0xff] %v2395
        %2460 = vst [vmem:[#allocation5 + $0x190] sm:$0xff] %v2396
        %2461 = vst [vmem:[#allocation5 + $0x198] sm:$0xff] %v2397
        %2462 = vst [vmem:[#allocation5 + $0x1a0] sm:$0xff] %v2398
        %2463 = vst [vmem:[#allocation5 + $0x1a8] sm:$0xff] %v2399
        %2464 = vst [vmem:[#allocation5 + $0x1b0] sm:$0xff] %v2400
        %2465 = vst [vmem:[#allocation5 + $0x1b8] sm:$0xff] %v2401
        %2466 = vst [vmem:[#allocation5 + $0x1c0] sm:$0xff] %v2402
        %2467 = vst [vmem:[#allocation5 + $0x1c8] sm:$0xff] %v2403
        %2468 = vst [vmem:[#allocation5 + $0x1d0] sm:$0xff] %v2404
        %2469 = vst [vmem:[#allocation5 + $0x1d8] sm:$0xff] %v2405
        %2470 = vst [vmem:[#allocation5 + $0x1e0] sm:$0xff] %v2406
        %2471 = vst [vmem:[#allocation5 + $0x1e8] sm:$0xff] %v2407
        %2472 = vst [vmem:[#allocation5 + $0x1f0] sm:$0xff] %v2408
        %2473 = vst [vmem:[#allocation5 + $0x1f8] sm:$0xff] %v2409
        %v2474 = vld [vmem:[#allocation3] sm:$0xff]
        %v2475 = vld [vmem:[#allocation3 + $0x8] sm:$0xff]
        %v2476 = vld [vmem:[#allocation3 + $0x10] sm:$0xff]
        %v2477 = vld [vmem:[#allocation3 + $0x18] sm:$0xff]
        %v2478 = vld [vmem:[#allocation3 + $0x20] sm:$0xff]
        %v2479 = vld [vmem:[#allocation3 + $0x28] sm:$0xff]
        %v2480 = vld [vmem:[#allocation3 + $0x30] sm:$0xff]
        %v2481 = vld [vmem:[#allocation3 + $0x38] sm:$0xff]
        %v2482 = vld [vmem:[#allocation3 + $0x40] sm:$0xff]
        %v2483 = vld [vmem:[#allocation3 + $0x48] sm:$0xff]
        %v2484 = vld [vmem:[#allocation3 + $0x50] sm:$0xff]
        %v2485 = vld [vmem:[#allocation3 + $0x58] sm:$0xff]
        %v2486 = vld [vmem:[#allocation3 + $0x60] sm:$0xff]
        %v2487 = vld [vmem:[#allocation3 + $0x68] sm:$0xff]
        %v2488 = vld [vmem:[#allocation3 + $0x70] sm:$0xff]
        %v2489 = vld [vmem:[#allocation3 + $0x78] sm:$0xff]
        %v2490 = vld [vmem:[#allocation3 + $0x80] sm:$0xff]
        %v2491 = vld [vmem:[#allocation3 + $0x88] sm:$0xff]
        %v2492 = vld [vmem:[#allocation3 + $0x90] sm:$0xff]
        %v2493 = vld [vmem:[#allocation3 + $0x98] sm:$0xff]
        %v2494 = vld [vmem:[#allocation3 + $0xa0] sm:$0xff]
        %v2495 = vld [vmem:[#allocation3 + $0xa8] sm:$0xff]
        %v2496 = vld [vmem:[#allocation3 + $0xb0] sm:$0xff]
        %v2497 = vld [vmem:[#allocation3 + $0xb8] sm:$0xff]
        %v2498 = vld [vmem:[#allocation3 + $0xc0] sm:$0xff]
        %v2499 = vld [vmem:[#allocation3 + $0xc8] sm:$0xff]
        %v2500 = vld [vmem:[#allocation3 + $0xd0] sm:$0xff]
        %v2501 = vld [vmem:[#allocation3 + $0xd8] sm:$0xff]
        %v2502 = vld [vmem:[#allocation3 + $0xe0] sm:$0xff]
        %v2503 = vld [vmem:[#allocation3 + $0xe8] sm:$0xff]
        %v2504 = vld [vmem:[#allocation3 + $0xf0] sm:$0xff]
        %v2505 = vld [vmem:[#allocation3 + $0xf8] sm:$0xff]
        %v2506 = vld [vmem:[#allocation3 + $0x100] sm:$0xff]
        %v2507 = vld [vmem:[#allocation3 + $0x108] sm:$0xff]
        %v2508 = vld [vmem:[#allocation3 + $0x110] sm:$0xff]
        %v2509 = vld [vmem:[#allocation3 + $0x118] sm:$0xff]
        %v2510 = vld [vmem:[#allocation3 + $0x120] sm:$0xff]
        %v2511 = vld [vmem:[#allocation3 + $0x128] sm:$0xff]
        %v2512 = vld [vmem:[#allocation3 + $0x130] sm:$0xff]
        %v2513 = vld [vmem:[#allocation3 + $0x138] sm:$0xff]
        %v2514 = vld [vmem:[#allocation3 + $0x140] sm:$0xff]
        %v2515 = vld [vmem:[#allocation3 + $0x148] sm:$0xff]
        %v2516 = vld [vmem:[#allocation3 + $0x150] sm:$0xff]
        %v2517 = vld [vmem:[#allocation3 + $0x158] sm:$0xff]
        %v2518 = vld [vmem:[#allocation3 + $0x160] sm:$0xff]
        %v2519 = vld [vmem:[#allocation3 + $0x168] sm:$0xff]
        %v2520 = vld [vmem:[#allocation3 + $0x170] sm:$0xff]
        %v2521 = vld [vmem:[#allocation3 + $0x178] sm:$0xff]
        %v2522 = vld [vmem:[#allocation3 + $0x180] sm:$0xff]
        %v2523 = vld [vmem:[#allocation3 + $0x188] sm:$0xff]
        %v2524 = vld [vmem:[#allocation3 + $0x190] sm:$0xff]
        %v2525 = vld [vmem:[#allocation3 + $0x198] sm:$0xff]
        %v2526 = vld [vmem:[#allocation3 + $0x1a0] sm:$0xff]
        %v2527 = vld [vmem:[#allocation3 + $0x1a8] sm:$0xff]
        %v2528 = vld [vmem:[#allocation3 + $0x1b0] sm:$0xff]
        %v2529 = vld [vmem:[#allocation3 + $0x1b8] sm:$0xff]
        %v2530 = vld [vmem:[#allocation3 + $0x1c0] sm:$0xff]
        %v2531 = vld [vmem:[#allocation3 + $0x1c8] sm:$0xff]
        %v2532 = vld [vmem:[#allocation3 + $0x1d0] sm:$0xff]
        %v2533 = vld [vmem:[#allocation3 + $0x1d8] sm:$0xff]
        %v2534 = vld [vmem:[#allocation3 + $0x1e0] sm:$0xff]
        %v2535 = vld [vmem:[#allocation3 + $0x1e8] sm:$0xff]
        %v2536 = vld [vmem:[#allocation3 + $0x1f0] sm:$0xff]
        %v2537 = vld [vmem:[#allocation3 + $0x1f8] sm:$0xff]
        %v2538 = vpack.c.bf16 %v2475, %v2474
        %v2539 = vpack.c.bf16 %v2477, %v2476
        %v2540 = vpack.c.bf16 %v2479, %v2478
        %v2541 = vpack.c.bf16 %v2481, %v2480
        %v2542 = vpack.c.bf16 %v2483, %v2482
        %v2543 = vpack.c.bf16 %v2485, %v2484
        %v2544 = vpack.c.bf16 %v2487, %v2486
        %v2545 = vpack.c.bf16 %v2489, %v2488
        %v2546 = vpack.c.bf16 %v2491, %v2490
        %v2547 = vpack.c.bf16 %v2493, %v2492
        %v2548 = vpack.c.bf16 %v2495, %v2494
        %v2549 = vpack.c.bf16 %v2497, %v2496
        %v2550 = vpack.c.bf16 %v2499, %v2498
        %v2551 = vpack.c.bf16 %v2501, %v2500
        %v2552 = vpack.c.bf16 %v2503, %v2502
        %v2553 = vpack.c.bf16 %v2505, %v2504
        %v2554 = vpack.c.bf16 %v2507, %v2506
        %v2555 = vpack.c.bf16 %v2509, %v2508
        %v2556 = vpack.c.bf16 %v2511, %v2510
        %v2557 = vpack.c.bf16 %v2513, %v2512
        %v2558 = vpack.c.bf16 %v2515, %v2514
        %v2559 = vpack.c.bf16 %v2517, %v2516
        %v2560 = vpack.c.bf16 %v2519, %v2518
        %v2561 = vpack.c.bf16 %v2521, %v2520
        %v2562 = vpack.c.bf16 %v2523, %v2522
        %v2563 = vpack.c.bf16 %v2525, %v2524
        %v2564 = vpack.c.bf16 %v2527, %v2526
        %v2565 = vpack.c.bf16 %v2529, %v2528
        %v2566 = vpack.c.bf16 %v2531, %v2530
        %v2567 = vpack.c.bf16 %v2533, %v2532
        %v2568 = vpack.c.bf16 %v2535, %v2534
        %v2569 = vpack.c.bf16 %v2537, %v2536
        %2570 = vst [vmem:[#allocation2] sm:$0xff] %v2538
        %2571 = vst [vmem:[#allocation2 + $0x8] sm:$0xff] %v2539
        %2572 = vst [vmem:[#allocation2 + $0x10] sm:$0xff] %v2540
        %2573 = vst [vmem:[#allocation2 + $0x18] sm:$0xff] %v2541
        %2574 = vst [vmem:[#allocation2 + $0x20] sm:$0xff] %v2542
        %2575 = vst [vmem:[#allocation2 + $0x28] sm:$0xff] %v2543
        %2576 = vst [vmem:[#allocation2 + $0x30] sm:$0xff] %v2544
        %2577 = vst [vmem:[#allocation2 + $0x38] sm:$0xff] %v2545
        %2578 = vst [vmem:[#allocation2 + $0x40] sm:$0xff] %v2546
        %2579 = vst [vmem:[#allocation2 + $0x48] sm:$0xff] %v2547
        %2580 = vst [vmem:[#allocation2 + $0x50] sm:$0xff] %v2548
        %2581 = vst [vmem:[#allocation2 + $0x58] sm:$0xff] %v2549
        %2582 = vst [vmem:[#allocation2 + $0x60] sm:$0xff] %v2550
        %2583 = vst [vmem:[#allocation2 + $0x68] sm:$0xff] %v2551
        %2584 = vst [vmem:[#allocation2 + $0x70] sm:$0xff] %v2552
        %2585 = vst [vmem:[#allocation2 + $0x78] sm:$0xff] %v2553
        %2586 = vst [vmem:[#allocation2 + $0x80] sm:$0xff] %v2554
        %2587 = vst [vmem:[#allocation2 + $0x88] sm:$0xff] %v2555
        %2588 = vst [vmem:[#allocation2 + $0x90] sm:$0xff] %v2556
        %2589 = vst [vmem:[#allocation2 + $0x98] sm:$0xff] %v2557
        %2590 = vst [vmem:[#allocation2 + $0xa0] sm:$0xff] %v2558
        %2591 = vst [vmem:[#allocation2 + $0xa8] sm:$0xff] %v2559
        %2592 = vst [vmem:[#allocation2 + $0xb0] sm:$0xff] %v2560
        %2593 = vst [vmem:[#allocation2 + $0xb8] sm:$0xff] %v2561
        %2594 = vst [vmem:[#allocation2 + $0xc0] sm:$0xff] %v2562
        %2595 = vst [vmem:[#allocation2 + $0xc8] sm:$0xff] %v2563
        %2596 = vst [vmem:[#allocation2 + $0xd0] sm:$0xff] %v2564
        %2597 = vst [vmem:[#allocation2 + $0xd8] sm:$0xff] %v2565
        %2598 = vst [vmem:[#allocation2 + $0xe0] sm:$0xff] %v2566
        %2599 = vst [vmem:[#allocation2 + $0xe8] sm:$0xff] %v2567
        %2600 = vst [vmem:[#allocation2 + $0xf0] sm:$0xff] %v2568
        %2601 = vst [vmem:[#allocation2 + $0xf8] sm:$0xff] %v2569
      $region48: #{sslgcn_forward.4} parent=35 // pred_fallthru
        _
      %p2602 = scmp.eq.s32.totalorder %s22, 1
      %p2603 = pnand %p2022, %p2602
      %p2604 = pneg %p2603
      // Predicated region
      $region49: #{sslgcn_forward.4} parent=35 // pred_check
        _
      $region50: #{sslgcn_forward.4} parent=35 // pred_check_branch
        %2606 = sbr.rel (%p2603) target = $region52
      $region51: #{sslgcn_forward.4} parent=35 // pred_region
        %v2607 = vld [vmem:[#allocation6] sm:$0xff]
        %v2608 = vld [vmem:[#allocation6 + $0x8] sm:$0xff]
        %v2609 = vld [vmem:[#allocation6 + $0x10] sm:$0xff]
        %v2610 = vld [vmem:[#allocation6 + $0x18] sm:$0xff]
        %v2611 = vld [vmem:[#allocation6 + $0x20] sm:$0xff]
        %v2612 = vld [vmem:[#allocation6 + $0x28] sm:$0xff]
        %v2613 = vld [vmem:[#allocation6 + $0x30] sm:$0xff]
        %v2614 = vld [vmem:[#allocation6 + $0x38] sm:$0xff]
        %v2615 = vld [vmem:[#allocation6 + $0x40] sm:$0xff]
        %v2616 = vld [vmem:[#allocation6 + $0x48] sm:$0xff]
        %v2617 = vld [vmem:[#allocation6 + $0x50] sm:$0xff]
        %v2618 = vld [vmem:[#allocation6 + $0x58] sm:$0xff]
        %v2619 = vld [vmem:[#allocation6 + $0x60] sm:$0xff]
        %v2620 = vld [vmem:[#allocation6 + $0x68] sm:$0xff]
        %v2621 = vld [vmem:[#allocation6 + $0x70] sm:$0xff]
        %v2622 = vld [vmem:[#allocation6 + $0x78] sm:$0xff]
        %v2623 = vld [vmem:[#allocation6 + $0x80] sm:$0xff]
        %v2624 = vld [vmem:[#allocation6 + $0x88] sm:$0xff]
        %v2625 = vld [vmem:[#allocation6 + $0x90] sm:$0xff]
        %v2626 = vld [vmem:[#allocation6 + $0x98] sm:$0xff]
        %v2627 = vld [vmem:[#allocation6 + $0xa0] sm:$0xff]
        %v2628 = vld [vmem:[#allocation6 + $0xa8] sm:$0xff]
        %v2629 = vld [vmem:[#allocation6 + $0xb0] sm:$0xff]
        %v2630 = vld [vmem:[#allocation6 + $0xb8] sm:$0xff]
        %v2631 = vld [vmem:[#allocation6 + $0xc0] sm:$0xff]
        %v2632 = vld [vmem:[#allocation6 + $0xc8] sm:$0xff]
        %v2633 = vld [vmem:[#allocation6 + $0xd0] sm:$0xff]
        %v2634 = vld [vmem:[#allocation6 + $0xd8] sm:$0xff]
        %v2635 = vld [vmem:[#allocation6 + $0xe0] sm:$0xff]
        %v2636 = vld [vmem:[#allocation6 + $0xe8] sm:$0xff]
        %v2637 = vld [vmem:[#allocation6 + $0xf0] sm:$0xff]
        %v2638 = vld [vmem:[#allocation6 + $0xf8] sm:$0xff]
        %v2639 = vld [vmem:[#allocation6 + $0x100] sm:$0xff]
        %v2640 = vld [vmem:[#allocation6 + $0x108] sm:$0xff]
        %v2641 = vld [vmem:[#allocation6 + $0x110] sm:$0xff]
        %v2642 = vld [vmem:[#allocation6 + $0x118] sm:$0xff]
        %v2643 = vld [vmem:[#allocation6 + $0x120] sm:$0xff]
        %v2644 = vld [vmem:[#allocation6 + $0x128] sm:$0xff]
        %v2645 = vld [vmem:[#allocation6 + $0x130] sm:$0xff]
        %v2646 = vld [vmem:[#allocation6 + $0x138] sm:$0xff]
        %v2647 = vld [vmem:[#allocation6 + $0x140] sm:$0xff]
        %v2648 = vld [vmem:[#allocation6 + $0x148] sm:$0xff]
        %v2649 = vld [vmem:[#allocation6 + $0x150] sm:$0xff]
        %v2650 = vld [vmem:[#allocation6 + $0x158] sm:$0xff]
        %v2651 = vld [vmem:[#allocation6 + $0x160] sm:$0xff]
        %v2652 = vld [vmem:[#allocation6 + $0x168] sm:$0xff]
        %v2653 = vld [vmem:[#allocation6 + $0x170] sm:$0xff]
        %v2654 = vld [vmem:[#allocation6 + $0x178] sm:$0xff]
        %v2655 = vmul.f32 %v2607, 0.33333334
        %v2656 = vmul.f32 %v2608, 0.33333334
        %v2657 = vmul.f32 %v2609, 0.33333334
        %v2658 = vmul.f32 %v2610, 0.33333334
        %v2659 = vmul.f32 %v2611, 0.33333334
        %v2660 = vmul.f32 %v2612, 0.33333334
        %v2661 = vmul.f32 %v2613, 0.33333334
        %v2662 = vmul.f32 %v2614, 0.33333334
        %v2663 = vmul.f32 %v2615, 0.33333334
        %v2664 = vmul.f32 %v2616, 0.33333334
        %v2665 = vmul.f32 %v2617, 0.33333334
        %v2666 = vmul.f32 %v2618, 0.33333334
        %v2667 = vmul.f32 %v2619, 0.33333334
        %v2668 = vmul.f32 %v2620, 0.33333334
        %v2669 = vmul.f32 %v2621, 0.33333334
        %v2670 = vmul.f32 %v2622, 0.33333334
        %v2671 = vmul.f32 %v2623, 0.33333334
        %v2672 = vmul.f32 %v2624, 0.33333334
        %v2673 = vmul.f32 %v2625, 0.33333334
        %v2674 = vmul.f32 %v2626, 0.33333334
        %v2675 = vmul.f32 %v2627, 0.33333334
        %v2676 = vmul.f32 %v2628, 0.33333334
        %v2677 = vmul.f32 %v2629, 0.33333334
        %v2678 = vmul.f32 %v2630, 0.33333334
        %v2679 = vmul.f32 %v2631, 0.33333334
        %v2680 = vmul.f32 %v2632, 0.33333334
        %v2681 = vmul.f32 %v2633, 0.33333334
        %v2682 = vmul.f32 %v2634, 0.33333334
        %v2683 = vmul.f32 %v2635, 0.33333334
        %v2684 = vmul.f32 %v2636, 0.33333334
        %v2685 = vmul.f32 %v2637, 0.33333334
        %v2686 = vmul.f32 %v2638, 0.33333334
        %v2687 = vmul.f32 %v2639, 0.33333334
        %v2688 = vmul.f32 %v2640, 0.33333334
        %v2689 = vmul.f32 %v2641, 0.33333334
        %v2690 = vmul.f32 %v2642, 0.33333334
        %v2691 = vmul.f32 %v2643, 0.33333334
        %v2692 = vmul.f32 %v2644, 0.33333334
        %v2693 = vmul.f32 %v2645, 0.33333334
        %v2694 = vmul.f32 %v2646, 0.33333334
        %v2695 = vmul.f32 %v2647, 0.33333334
        %v2696 = vmul.f32 %v2648, 0.33333334
        %v2697 = vmul.f32 %v2649, 0.33333334
        %v2698 = vmul.f32 %v2650, 0.33333334
        %v2699 = vmul.f32 %v2651, 0.33333334
        %v2700 = vmul.f32 %v2652, 0.33333334
        %v2701 = vmul.f32 %v2653, 0.33333334
        %v2702 = vmul.f32 %v2654, 0.33333334
        %2703 = vst [vmem:[%s5] sm:$0xff] %v2655
        %2704 = vst [vmem:[%s5 + $0x8] sm:$0xff] %v2656
        %2705 = vst [vmem:[%s5 + $0x10] sm:$0xff] %v2657
        %2706 = vst [vmem:[%s5 + $0x18] sm:$0xff] %v2658
        %2707 = vst [vmem:[%s5 + $0x20] sm:$0xff] %v2659
        %2708 = vst [vmem:[%s5 + $0x28] sm:$0xff] %v2660
        %2709 = vst [vmem:[%s5 + $0x30] sm:$0xff] %v2661
        %2710 = vst [vmem:[%s5 + $0x38] sm:$0xff] %v2662
        %2711 = vst [vmem:[%s5 + $0x40] sm:$0xff] %v2663
        %2712 = vst [vmem:[%s5 + $0x48] sm:$0xff] %v2664
        %2713 = vst [vmem:[%s5 + $0x50] sm:$0xff] %v2665
        %2714 = vst [vmem:[%s5 + $0x58] sm:$0xff] %v2666
        %2715 = vst [vmem:[%s5 + $0x60] sm:$0xff] %v2667
        %2716 = vst [vmem:[%s5 + $0x68] sm:$0xff] %v2668
        %2717 = vst [vmem:[%s5 + $0x70] sm:$0xff] %v2669
        %2718 = vst [vmem:[%s5 + $0x78] sm:$0xff] %v2670
        %2719 = vst [vmem:[%s5 + $0x80] sm:$0xff] %v2671
        %2720 = vst [vmem:[%s5 + $0x88] sm:$0xff] %v2672
        %2721 = vst [vmem:[%s5 + $0x90] sm:$0xff] %v2673
        %2722 = vst [vmem:[%s5 + $0x98] sm:$0xff] %v2674
        %2723 = vst [vmem:[%s5 + $0xa0] sm:$0xff] %v2675
        %2724 = vst [vmem:[%s5 + $0xa8] sm:$0xff] %v2676
        %2725 = vst [vmem:[%s5 + $0xb0] sm:$0xff] %v2677
        %2726 = vst [vmem:[%s5 + $0xb8] sm:$0xff] %v2678
        %2727 = vst [vmem:[%s5 + $0xc0] sm:$0xff] %v2679
        %2728 = vst [vmem:[%s5 + $0xc8] sm:$0xff] %v2680
        %2729 = vst [vmem:[%s5 + $0xd0] sm:$0xff] %v2681
        %2730 = vst [vmem:[%s5 + $0xd8] sm:$0xff] %v2682
        %2731 = vst [vmem:[%s5 + $0xe0] sm:$0xff] %v2683
        %2732 = vst [vmem:[%s5 + $0xe8] sm:$0xff] %v2684
        %2733 = vst [vmem:[%s5 + $0xf0] sm:$0xff] %v2685
        %2734 = vst [vmem:[%s5 + $0xf8] sm:$0xff] %v2686
        %2735 = vst [vmem:[%s5 + $0x100] sm:$0xff] %v2687
        %2736 = vst [vmem:[%s5 + $0x108] sm:$0xff] %v2688
        %2737 = vst [vmem:[%s5 + $0x110] sm:$0xff] %v2689
        %2738 = vst [vmem:[%s5 + $0x118] sm:$0xff] %v2690
        %2739 = vst [vmem:[%s5 + $0x120] sm:$0xff] %v2691
        %2740 = vst [vmem:[%s5 + $0x128] sm:$0xff] %v2692
        %2741 = vst [vmem:[%s5 + $0x130] sm:$0xff] %v2693
        %2742 = vst [vmem:[%s5 + $0x138] sm:$0xff] %v2694
        %2743 = vst [vmem:[%s5 + $0x140] sm:$0xff] %v2695
        %2744 = vst [vmem:[%s5 + $0x148] sm:$0xff] %v2696
        %2745 = vst [vmem:[%s5 + $0x150] sm:$0xff] %v2697
        %2746 = vst [vmem:[%s5 + $0x158] sm:$0xff] %v2698
        %2747 = vst [vmem:[%s5 + $0x160] sm:$0xff] %v2699
        %2748 = vst [vmem:[%s5 + $0x168] sm:$0xff] %v2700
        %2749 = vst [vmem:[%s5 + $0x170] sm:$0xff] %v2701
        %2750 = vst [vmem:[%s5 + $0x178] sm:$0xff] %v2702
        %v2751 = vld [vmem:[#allocation5] sm:$0xff]
        %v2752 = vld [vmem:[#allocation5 + $0x8] sm:$0xff]
        %v2753 = vld [vmem:[#allocation5 + $0x10] sm:$0xff]
        %v2754 = vld [vmem:[#allocation5 + $0x18] sm:$0xff]
        %v2755 = vld [vmem:[#allocation5 + $0x20] sm:$0xff]
        %v2756 = vld [vmem:[#allocation5 + $0x28] sm:$0xff]
        %v2757 = vld [vmem:[#allocation5 + $0x30] sm:$0xff]
        %v2758 = vld [vmem:[#allocation5 + $0x38] sm:$0xff]
        %v2759 = vld [vmem:[#allocation5 + $0x40] sm:$0xff]
        %v2760 = vld [vmem:[#allocation5 + $0x48] sm:$0xff]
        %v2761 = vld [vmem:[#allocation5 + $0x50] sm:$0xff]
        %v2762 = vld [vmem:[#allocation5 + $0x58] sm:$0xff]
        %v2763 = vld [vmem:[#allocation5 + $0x60] sm:$0xff]
        %v2764 = vld [vmem:[#allocation5 + $0x68] sm:$0xff]
        %v2765 = vld [vmem:[#allocation5 + $0x70] sm:$0xff]
        %v2766 = vld [vmem:[#allocation5 + $0x78] sm:$0xff]
        %v2767 = vld [vmem:[#allocation5 + $0x80] sm:$0xff]
        %v2768 = vld [vmem:[#allocation5 + $0x88] sm:$0xff]
        %v2769 = vld [vmem:[#allocation5 + $0x90] sm:$0xff]
        %v2770 = vld [vmem:[#allocation5 + $0x98] sm:$0xff]
        %v2771 = vld [vmem:[#allocation5 + $0xa0] sm:$0xff]
        %v2772 = vld [vmem:[#allocation5 + $0xa8] sm:$0xff]
        %v2773 = vld [vmem:[#allocation5 + $0xb0] sm:$0xff]
        %v2774 = vld [vmem:[#allocation5 + $0xb8] sm:$0xff]
        %v2775 = vld [vmem:[#allocation5 + $0xc0] sm:$0xff]
        %v2776 = vld [vmem:[#allocation5 + $0xc8] sm:$0xff]
        %v2777 = vld [vmem:[#allocation5 + $0xd0] sm:$0xff]
        %v2778 = vld [vmem:[#allocation5 + $0xd8] sm:$0xff]
        %v2779 = vld [vmem:[#allocation5 + $0xe0] sm:$0xff]
        %v2780 = vld [vmem:[#allocation5 + $0xe8] sm:$0xff]
        %v2781 = vld [vmem:[#allocation5 + $0xf0] sm:$0xff]
        %v2782 = vld [vmem:[#allocation5 + $0xf8] sm:$0xff]
        %v2783 = vld [vmem:[#allocation5 + $0x100] sm:$0xff]
        %v2784 = vld [vmem:[#allocation5 + $0x108] sm:$0xff]
        %v2785 = vld [vmem:[#allocation5 + $0x110] sm:$0xff]
        %v2786 = vld [vmem:[#allocation5 + $0x118] sm:$0xff]
        %v2787 = vld [vmem:[#allocation5 + $0x120] sm:$0xff]
        %v2788 = vld [vmem:[#allocation5 + $0x128] sm:$0xff]
        %v2789 = vld [vmem:[#allocation5 + $0x130] sm:$0xff]
        %v2790 = vld [vmem:[#allocation5 + $0x138] sm:$0xff]
        %v2791 = vld [vmem:[#allocation5 + $0x140] sm:$0xff]
        %v2792 = vld [vmem:[#allocation5 + $0x148] sm:$0xff]
        %v2793 = vld [vmem:[#allocation5 + $0x150] sm:$0xff]
        %v2794 = vld [vmem:[#allocation5 + $0x158] sm:$0xff]
        %v2795 = vld [vmem:[#allocation5 + $0x160] sm:$0xff]
        %v2796 = vld [vmem:[#allocation5 + $0x168] sm:$0xff]
        %v2797 = vld [vmem:[#allocation5 + $0x170] sm:$0xff]
        %v2798 = vld [vmem:[#allocation5 + $0x178] sm:$0xff]
        %v2799 = vld [vmem:[#allocation5 + $0x180] sm:$0xff]
        %v2800 = vld [vmem:[#allocation5 + $0x188] sm:$0xff]
        %v2801 = vld [vmem:[#allocation5 + $0x190] sm:$0xff]
        %v2802 = vld [vmem:[#allocation5 + $0x198] sm:$0xff]
        %v2803 = vld [vmem:[#allocation5 + $0x1a0] sm:$0xff]
        %v2804 = vld [vmem:[#allocation5 + $0x1a8] sm:$0xff]
        %v2805 = vld [vmem:[#allocation5 + $0x1b0] sm:$0xff]
        %v2806 = vld [vmem:[#allocation5 + $0x1b8] sm:$0xff]
        %v2807 = vld [vmem:[#allocation5 + $0x1c0] sm:$0xff]
        %v2808 = vld [vmem:[#allocation5 + $0x1c8] sm:$0xff]
        %v2809 = vld [vmem:[#allocation5 + $0x1d0] sm:$0xff]
        %v2810 = vld [vmem:[#allocation5 + $0x1d8] sm:$0xff]
        %v2811 = vld [vmem:[#allocation5 + $0x1e0] sm:$0xff]
        %v2812 = vld [vmem:[#allocation5 + $0x1e8] sm:$0xff]
        %v2813 = vld [vmem:[#allocation5 + $0x1f0] sm:$0xff]
        %v2814 = vld [vmem:[#allocation5 + $0x1f8] sm:$0xff]
        %2815 = vst [vmem:[%s4] sm:$0xff] %v2751
        %2816 = vst [vmem:[%s4 + $0x8] sm:$0xff] %v2752
        %2817 = vst [vmem:[%s4 + $0x10] sm:$0xff] %v2753
        %2818 = vst [vmem:[%s4 + $0x18] sm:$0xff] %v2754
        %2819 = vst [vmem:[%s4 + $0x20] sm:$0xff] %v2755
        %2820 = vst [vmem:[%s4 + $0x28] sm:$0xff] %v2756
        %2821 = vst [vmem:[%s4 + $0x30] sm:$0xff] %v2757
        %2822 = vst [vmem:[%s4 + $0x38] sm:$0xff] %v2758
        %2823 = vst [vmem:[%s4 + $0x40] sm:$0xff] %v2759
        %2824 = vst [vmem:[%s4 + $0x48] sm:$0xff] %v2760
        %2825 = vst [vmem:[%s4 + $0x50] sm:$0xff] %v2761
        %2826 = vst [vmem:[%s4 + $0x58] sm:$0xff] %v2762
        %2827 = vst [vmem:[%s4 + $0x60] sm:$0xff] %v2763
        %2828 = vst [vmem:[%s4 + $0x68] sm:$0xff] %v2764
        %2829 = vst [vmem:[%s4 + $0x70] sm:$0xff] %v2765
        %2830 = vst [vmem:[%s4 + $0x78] sm:$0xff] %v2766
        %2831 = vst [vmem:[%s4 + $0x80] sm:$0xff] %v2767
        %2832 = vst [vmem:[%s4 + $0x88] sm:$0xff] %v2768
        %2833 = vst [vmem:[%s4 + $0x90] sm:$0xff] %v2769
        %2834 = vst [vmem:[%s4 + $0x98] sm:$0xff] %v2770
        %2835 = vst [vmem:[%s4 + $0xa0] sm:$0xff] %v2771
        %2836 = vst [vmem:[%s4 + $0xa8] sm:$0xff] %v2772
        %2837 = vst [vmem:[%s4 + $0xb0] sm:$0xff] %v2773
        %2838 = vst [vmem:[%s4 + $0xb8] sm:$0xff] %v2774
        %2839 = vst [vmem:[%s4 + $0xc0] sm:$0xff] %v2775
        %2840 = vst [vmem:[%s4 + $0xc8] sm:$0xff] %v2776
        %2841 = vst [vmem:[%s4 + $0xd0] sm:$0xff] %v2777
        %2842 = vst [vmem:[%s4 + $0xd8] sm:$0xff] %v2778
        %2843 = vst [vmem:[%s4 + $0xe0] sm:$0xff] %v2779
        %2844 = vst [vmem:[%s4 + $0xe8] sm:$0xff] %v2780
        %2845 = vst [vmem:[%s4 + $0xf0] sm:$0xff] %v2781
        %2846 = vst [vmem:[%s4 + $0xf8] sm:$0xff] %v2782
        %2847 = vst [vmem:[%s4 + $0x100] sm:$0xff] %v2783
        %2848 = vst [vmem:[%s4 + $0x108] sm:$0xff] %v2784
        %2849 = vst [vmem:[%s4 + $0x110] sm:$0xff] %v2785
        %2850 = vst [vmem:[%s4 + $0x118] sm:$0xff] %v2786
        %2851 = vst [vmem:[%s4 + $0x120] sm:$0xff] %v2787
        %2852 = vst [vmem:[%s4 + $0x128] sm:$0xff] %v2788
        %2853 = vst [vmem:[%s4 + $0x130] sm:$0xff] %v2789
        %2854 = vst [vmem:[%s4 + $0x138] sm:$0xff] %v2790
        %2855 = vst [vmem:[%s4 + $0x140] sm:$0xff] %v2791
        %2856 = vst [vmem:[%s4 + $0x148] sm:$0xff] %v2792
        %2857 = vst [vmem:[%s4 + $0x150] sm:$0xff] %v2793
        %2858 = vst [vmem:[%s4 + $0x158] sm:$0xff] %v2794
        %2859 = vst [vmem:[%s4 + $0x160] sm:$0xff] %v2795
        %2860 = vst [vmem:[%s4 + $0x168] sm:$0xff] %v2796
        %2861 = vst [vmem:[%s4 + $0x170] sm:$0xff] %v2797
        %2862 = vst [vmem:[%s4 + $0x178] sm:$0xff] %v2798
        %2863 = vst [vmem:[%s4 + $0x180] sm:$0xff] %v2799
        %2864 = vst [vmem:[%s4 + $0x188] sm:$0xff] %v2800
        %2865 = vst [vmem:[%s4 + $0x190] sm:$0xff] %v2801
        %2866 = vst [vmem:[%s4 + $0x198] sm:$0xff] %v2802
        %2867 = vst [vmem:[%s4 + $0x1a0] sm:$0xff] %v2803
        %2868 = vst [vmem:[%s4 + $0x1a8] sm:$0xff] %v2804
        %2869 = vst [vmem:[%s4 + $0x1b0] sm:$0xff] %v2805
        %2870 = vst [vmem:[%s4 + $0x1b8] sm:$0xff] %v2806
        %2871 = vst [vmem:[%s4 + $0x1c0] sm:$0xff] %v2807
        %2872 = vst [vmem:[%s4 + $0x1c8] sm:$0xff] %v2808
        %2873 = vst [vmem:[%s4 + $0x1d0] sm:$0xff] %v2809
        %2874 = vst [vmem:[%s4 + $0x1d8] sm:$0xff] %v2810
        %2875 = vst [vmem:[%s4 + $0x1e0] sm:$0xff] %v2811
        %2876 = vst [vmem:[%s4 + $0x1e8] sm:$0xff] %v2812
        %2877 = vst [vmem:[%s4 + $0x1f0] sm:$0xff] %v2813
        %2878 = vst [vmem:[%s4 + $0x1f8] sm:$0xff] %v2814
        %v2879 = vld [vmem:[#allocation3 + $0x100] sm:$0xff]
        %v2880 = vld [vmem:[#allocation3 + $0x108] sm:$0xff]
        %v2881 = vld [vmem:[#allocation3 + $0x110] sm:$0xff]
        %v2882 = vld [vmem:[#allocation3 + $0x118] sm:$0xff]
        %v2883 = vld [vmem:[#allocation3 + $0x120] sm:$0xff]
        %v2884 = vld [vmem:[#allocation3 + $0x128] sm:$0xff]
        %v2885 = vld [vmem:[#allocation3 + $0x130] sm:$0xff]
        %v2886 = vld [vmem:[#allocation3 + $0x138] sm:$0xff]
        %v2887 = vld [vmem:[#allocation3 + $0x140] sm:$0xff]
        %v2888 = vld [vmem:[#allocation3 + $0x148] sm:$0xff]
        %v2889 = vld [vmem:[#allocation3 + $0x150] sm:$0xff]
        %v2890 = vld [vmem:[#allocation3 + $0x158] sm:$0xff]
        %v2891 = vld [vmem:[#allocation3 + $0x160] sm:$0xff]
        %v2892 = vld [vmem:[#allocation3 + $0x168] sm:$0xff]
        %v2893 = vld [vmem:[#allocation3 + $0x170] sm:$0xff]
        %v2894 = vld [vmem:[#allocation3 + $0x178] sm:$0xff]
        %v2895 = vld [vmem:[#allocation3 + $0x180] sm:$0xff]
        %v2896 = vld [vmem:[#allocation3 + $0x188] sm:$0xff]
        %v2897 = vld [vmem:[#allocation3 + $0x190] sm:$0xff]
        %v2898 = vld [vmem:[#allocation3 + $0x198] sm:$0xff]
        %v2899 = vld [vmem:[#allocation3 + $0x1a0] sm:$0xff]
        %v2900 = vld [vmem:[#allocation3 + $0x1a8] sm:$0xff]
        %v2901 = vld [vmem:[#allocation3 + $0x1b0] sm:$0xff]
        %v2902 = vld [vmem:[#allocation3 + $0x1b8] sm:$0xff]
        %v2903 = vld [vmem:[#allocation3 + $0x1c0] sm:$0xff]
        %v2904 = vld [vmem:[#allocation3 + $0x1c8] sm:$0xff]
        %v2905 = vld [vmem:[#allocation3 + $0x1d0] sm:$0xff]
        %v2906 = vld [vmem:[#allocation3 + $0x1d8] sm:$0xff]
        %v2907 = vld [vmem:[#allocation3 + $0x1e0] sm:$0xff]
        %v2908 = vld [vmem:[#allocation3 + $0x1e8] sm:$0xff]
        %v2909 = vld [vmem:[#allocation3 + $0x1f0] sm:$0xff]
        %v2910 = vld [vmem:[#allocation3 + $0x1f8] sm:$0xff]
        %v2911 = vpack.c.bf16 %v2880, %v2879
        %v2912 = vpack.c.bf16 %v2882, %v2881
        %v2913 = vpack.c.bf16 %v2884, %v2883
        %v2914 = vpack.c.bf16 %v2886, %v2885
        %v2915 = vpack.c.bf16 %v2888, %v2887
        %v2916 = vpack.c.bf16 %v2890, %v2889
        %v2917 = vpack.c.bf16 %v2892, %v2891
        %v2918 = vpack.c.bf16 %v2894, %v2893
        %v2919 = vpack.c.bf16 %v2896, %v2895
        %v2920 = vpack.c.bf16 %v2898, %v2897
        %v2921 = vpack.c.bf16 %v2900, %v2899
        %v2922 = vpack.c.bf16 %v2902, %v2901
        %v2923 = vpack.c.bf16 %v2904, %v2903
        %v2924 = vpack.c.bf16 %v2906, %v2905
        %v2925 = vpack.c.bf16 %v2908, %v2907
        %v2926 = vpack.c.bf16 %v2910, %v2909
        %2927 = vst [vmem:[%s6] sm:$0xff] %v2911
        %2928 = vst [vmem:[%s6 + $0x8] sm:$0xff] %v2912
        %2929 = vst [vmem:[%s6 + $0x10] sm:$0xff] %v2913
        %2930 = vst [vmem:[%s6 + $0x18] sm:$0xff] %v2914
        %2931 = vst [vmem:[%s6 + $0x20] sm:$0xff] %v2915
        %2932 = vst [vmem:[%s6 + $0x28] sm:$0xff] %v2916
        %2933 = vst [vmem:[%s6 + $0x30] sm:$0xff] %v2917
        %2934 = vst [vmem:[%s6 + $0x38] sm:$0xff] %v2918
        %2935 = vst [vmem:[%s6 + $0x40] sm:$0xff] %v2919
        %2936 = vst [vmem:[%s6 + $0x48] sm:$0xff] %v2920
        %2937 = vst [vmem:[%s6 + $0x50] sm:$0xff] %v2921
        %2938 = vst [vmem:[%s6 + $0x58] sm:$0xff] %v2922
        %2939 = vst [vmem:[%s6 + $0x60] sm:$0xff] %v2923
        %2940 = vst [vmem:[%s6 + $0x68] sm:$0xff] %v2924
        %2941 = vst [vmem:[%s6 + $0x70] sm:$0xff] %v2925
        %2942 = vst [vmem:[%s6 + $0x78] sm:$0xff] %v2926
      $region52: #{sslgcn_forward.4} parent=35 // pred_fallthru
        _
      // Predicated region
      $region53: #{sslgcn_forward.4} parent=35 // pred_check
        %p2943 = pneg %p132
      $region54: #{sslgcn_forward.4} parent=35 // pred_check_branch
        %2945 = sbr.rel (%p2943) target = $region56
      $region55: #{sslgcn_forward.4} parent=35 // pred_region
        _
      $region56: #{sslgcn_forward.4} parent=35 // pred_fallthru
        _
      // Predicated region
      $region57: #{sslgcn_forward.4} parent=35 // pred_check
        %p2946 = pneg %p153
      $region58: #{sslgcn_forward.4} parent=35 // pred_check_branch
        %2948 = sbr.rel (%p2946) target = $region60
      $region59: #{sslgcn_forward.4} parent=35 // pred_region
        _
      $region60: #{sslgcn_forward.4} parent=35 // pred_fallthru
        _
      // Predicated region
      $region61: #{sslgcn_forward.4} parent=35 // pred_check
        %p2949 = pneg %p174
      $region62: #{sslgcn_forward.4} parent=35 // pred_check_branch
        %2951 = sbr.rel (%p2949) target = $region64
      $region63: #{sslgcn_forward.4} parent=35 // pred_region
        _
      $region64: #{sslgcn_forward.4} parent=35 // pred_fallthru
        _
      // Predicated region
      $region65: #{sslgcn_forward.4} parent=35 // pred_check
        %p2952 = pneg %p132
      $region66: #{sslgcn_forward.4} parent=35 // pred_check_branch
        %2954 = sbr.rel (%p2952) target = $region68
      $region67: #{sslgcn_forward.4} parent=35 // pred_region
        _
      $region68: #{sslgcn_forward.4} parent=35 // pred_fallthru
        _
      // Predicated region
      $region69: #{sslgcn_forward.4} parent=35 // pred_check
        %p2955 = pneg %p153
      $region70: #{sslgcn_forward.4} parent=35 // pred_check_branch
        %2957 = sbr.rel (%p2955) target = $region72
      $region71: #{sslgcn_forward.4} parent=35 // pred_region
        _
      $region72: #{sslgcn_forward.4} parent=35 // pred_fallthru
        _
      // Predicated region
      $region73: #{sslgcn_forward.4} parent=35 // pred_check
        %p2958 = pneg %p174
      $region74: #{sslgcn_forward.4} parent=35 // pred_check_branch
        %2960 = sbr.rel (%p2958) target = $region76
      $region75: #{sslgcn_forward.4} parent=35 // pred_region
        _
      $region76: #{sslgcn_forward.4} parent=35 // pred_fallthru
        _
    $region36: #{sslgcn_forward.4} parent=5 // pred_fallthru
      _
    %p2961 = scmp.le.s32.totalorder 2, %s13
    // Predicated region
    $region77: #{sslgcn_forward.4} parent=5 // pred_check
      %p2962 = pneg %p2961
    $region78: #{sslgcn_forward.4} parent=5 // pred_check_branch
      %2964 = sbr.rel (%p2962) target = $region80
    $region79: #{sslgcn_forward.4} parent=5 // pred_region
      %s2965 = ssub.s32 %s13, 2
    $region80: #{sslgcn_forward.4} parent=5 // pred_fallthru
      _
  $region6: #{sslgcn_forward.4} parent=0 // loop_footer
    %s17 = sadd.s32 1, %s13
  $region7: #{sslgcn_forward.4} parent=0 // loop_footer_branch
    %12 = sbr.rel target = $region3
  $region8: #{sslgcn_forward.4} parent=0 // loop_exit
    _

</llo_original>
